<compile_context>
chip_gen: v7x
topology: tpu7x:2x2x1
jax: 0.10.0
libtpu: 0.0.40
codegen_flags: <defaults>
</compile_context>

<pallas_src>
import math
import functools

import jax
import jax.numpy as jnp
from jax.experimental import pallas as pl
from jax.experimental.pallas import tpu as pltpu

# ----------------------------- architecture constants -----------------------------
HIDDEN = 128              # nn.GRU hidden_size
D_MODEL = 2 * HIDDEN      # bidirectional output / transformer d_model
NHEAD = 8
HEAD_DIM = D_MODEL // NHEAD
DIM_FF = 2048             # nn.TransformerEncoderLayer default dim_feedforward
LN_EPS = 1e-5


def _round_up(x, m):
    return ((x + m - 1) // m) * m


def _time_tile(S, target=16):
    """Largest divisor of S that is <= target (GRU time-block size)."""
    t = min(S, target)
    while t > 1 and S % t:
        t -= 1
    return max(t, 1)


# ================================ Pallas kernels ================================

# ---------- generic tiled linear:  y = x @ W + b  (bf16 MXU, f32 accum) ----------
def _linear_kernel(x_ref, w_ref, b_ref, o_ref):
    y = jnp.dot(x_ref[...].astype(jnp.bfloat16), w_ref[...],
                preferred_element_type=jnp.float32) + b_ref[...]
    o_ref[...] = y.astype(o_ref.dtype)


def pallas_linear(x, w_bf, b2d, out_dtype=jnp.float32, tm_target=256):
    """x:(M,K) f32, w_bf:(K,N) bf16, b2d:(1,N) f32 -> (M,N) out_dtype."""
    M, K = x.shape
    N = w_bf.shape[1]
    tm = tm_target if M >= tm_target else _round_up(M, 8)
    Mp = _round_up(M, tm)
    if Mp != M:
        x = jnp.pad(x, ((0, Mp - M), (0, 0)))
    y = pl.pallas_call(
        _linear_kernel,
        grid=(Mp // tm,),
        in_specs=[pl.BlockSpec((tm, K), lambda i: (i, 0)),
                  pl.BlockSpec((K, N), lambda i: (0, 0)),
                  pl.BlockSpec((1, N), lambda i: (0, 0))],
        out_specs=pl.BlockSpec((tm, N), lambda i: (i, 0)),
        out_shape=jax.ShapeDtypeStruct((Mp, N), out_dtype),
        compiler_params=pltpu.CompilerParams(dimension_semantics=("parallel",)),
    )(x, w_bf, b2d)
    return y if Mp == M else y[:M]


# ---------- time-blocked bidirectional GRU recurrence ----------
#   grid = (direction, time-block); direction is "parallel" (v7x megacore),
#   time is "arbitrary" (sequential carry in VMEM scratch).
def _gru_seq_kernel(H, Tb, x_ref, whh_ref, bhh_ref, o_ref, h_scr):
    d = pl.program_id(0)        # 0 = forward, 1 = backward
    tb = pl.program_id(1)

    @pl.when(tb == 0)
    def _():
        h_scr[...] = jnp.zeros_like(h_scr)

    whh = whh_ref[0]            # (H, 3H)  bf16
    bhh = bhh_ref[0]            # (1, 3H)  f32

    def step(j, h):
        local = (1 - d) * j + d * (Tb - 1 - j)      # reverse traversal for the bwd direction
        xp = x_ref[local].astype(jnp.float32)       # (B, 3H)  [r | z | n] projections
        gh = jnp.dot(h.astype(jnp.bfloat16), whh,
                     preferred_element_type=jnp.float32) + bhh
        r = jax.nn.sigmoid(xp[:, :H] + gh[:, :H])
        z = jax.nn.sigmoid(xp[:, H:2 * H] + gh[:, H:2 * H])
        n = jnp.tanh(xp[:, 2 * H:] + r * gh[:, 2 * H:])
        h_new = (1.0 - z) * n + z * h
        o_ref[local] = h_new
        return h_new

    h_scr[...] = jax.lax.fori_loop(0, Tb, step, h_scr[...], unroll=True)


def pallas_bigru_recurrence(xp, whh, bhh):
    """xp:(S,B,6H) bf16 (time-major, [fwd|bwd] projections); whh:(2,H,3H) bf16;
    bhh:(2,1,3H) f32 -> (S,B,2H) f32 = [fwd hidden | bwd hidden]."""
    S, B, _ = xp.shape
    H = HIDDEN
    Tb = _time_tile(S)
    nb = S // Tb
    return pl.pallas_call(
        functools.partial(_gru_seq_kernel, H, Tb),
        grid=(2, nb),
        in_specs=[pl.BlockSpec((Tb, B, 3 * H),
                               lambda d, t: ((1 - d) * t + d * (nb - 1 - t), 0, d)),
                  pl.BlockSpec((1, H, 3 * H), lambda d, t: (d, 0, 0)),
                  pl.BlockSpec((1, 1, 3 * H), lambda d, t: (d, 0, 0))],
        out_specs=pl.BlockSpec((Tb, B, H),
                               lambda d, t: ((1 - d) * t + d * (nb - 1 - t), 0, d)),
        out_shape=jax.ShapeDtypeStruct((S, B, 2 * H), jnp.float32),
        scratch_shapes=[pltpu.VMEM((B, H), jnp.float32)],
        compiler_params=pltpu.CompilerParams(
            # NOTE: the time axis must stay "arbitrary" (sequential hidden-state carry);
            # only the direction axis may be sharded across cores.
            dimension_semantics=("parallel", "arbitrary")),
    )(xp, whh, bhh)


# ---------- fused attention block: per-head SDPA + per-head out-proj + residual + LN1 ----------
def _attn_block_kernel(nhead, qkv_ref, x_ref, wo_ref, bo_ref, g_ref, b_ref, o_ref):
    x = x_ref[0]                                              # (S, D) f32
    acc = None
    for h in range(nhead):
        q = qkv_ref[0, 0, h]                                  # (S, hd) bf16, 1/sqrt(hd) pre-folded
        k = qkv_ref[0, 1, h]
        v = qkv_ref[0, 2, h]
        s = jax.lax.dot_general(q, k, (((1,), (1,)), ((), ())),
                                preferred_element_type=jnp.float32)      # (S, S)
        s = s - jnp.max(s, axis=-1, keepdims=True)
        p = jnp.exp(s)
        p = p * pl.reciprocal(jnp.sum(p, axis=-1, keepdims=True), approx=True)
        ctx = jnp.dot(p.astype(jnp.bfloat16), v, preferred_element_type=jnp.float32)
        part = jnp.dot(ctx.astype(jnp.bfloat16), wo_ref[h],
                       preferred_element_type=jnp.float32)               # (S, D) lane-dense
        acc = part if acc is None else acc + part
    y = acc + bo_ref[...] + x                                 # residual (post-norm)
    mu = jnp.mean(y, axis=-1, keepdims=True)
    var = jnp.mean((y - mu) ** 2, axis=-1, keepdims=True)
    o_ref[0] = (y - mu) * jax.lax.rsqrt(var + LN_EPS) * g_ref[...] + b_ref[...]


def pallas_attention_block(qkv, x, wo_bf, bo, g, b):
    """qkv:(B,3,nhead,S,hd) bf16; x:(B,S,D) f32; wo_bf:(nhead,hd,D) bf16."""
    B, _, nh, S, hd = qkv.shape
    D = nh * hd
    # TODO(synk): for very long S, tile S with an online softmax (or raise vmem_limit_bytes).
    return pl.pallas_call(
        functools.partial(_attn_block_kernel, nh),
        grid=(B,),
        in_specs=[pl.BlockSpec((1, 3, nh, S, hd), lambda i: (i, 0, 0, 0, 0)),
                  pl.BlockSpec((1, S, D), lambda i: (i, 0, 0)),
                  pl.BlockSpec((nh, hd, D), lambda i: (0, 0, 0)),
                  pl.BlockSpec((1, D), lambda i: (0, 0)),
                  pl.BlockSpec((1, D), lambda i: (0, 0)),
                  pl.BlockSpec((1, D), lambda i: (0, 0))],
        out_specs=pl.BlockSpec((1, S, D), lambda i: (i, 0, 0)),
        out_shape=jax.ShapeDtypeStruct((B, S, D), jnp.float32),
        compiler_params=pltpu.CompilerParams(dimension_semantics=("parallel",)),
    )(qkv, x, wo_bf, bo, g, b)


# ---------- fused FFN: relu(x@W1+b1)@W2 + b2 + residual -> LayerNorm2 (single pass) ----------
def _ffn_kernel(x_ref, w1_ref, b1_ref, w2_ref, b2_ref, g_ref, bet_ref, o_ref):
    x = x_ref[...]
    h = jnp.dot(x.astype(jnp.bfloat16), w1_ref[...],
                preferred_element_type=jnp.float32) + b1_ref[...]
    h = jnp.maximum(h, 0.0)
    y = jnp.dot(h.astype(jnp.bfloat16), w2_ref[...],
                preferred_element_type=jnp.float32) + b2_ref[...] + x    # residual
    mu = jnp.mean(y, axis=-1, keepdims=True)
    var = jnp.mean((y - mu) ** 2, axis=-1, keepdims=True)
    o_ref[...] = (y - mu) * jax.lax.rsqrt(var + LN_EPS) * g_ref[...] + bet_ref[...]


def pallas_ffn_block(x, w1_bf, b1, w2_bf, b2, g, beta):
    M, D = x.shape
    FF = w1_bf.shape[1]
    tm = 256 if M >= 256 else _round_up(M, 8)
    Mp = _round_up(M, tm)
    if Mp != M:
        x = jnp.pad(x, ((0, Mp - M), (0, 0)))
    y = pl.pallas_call(
        _ffn_kernel,
        grid=(Mp // tm,),
        in_specs=[pl.BlockSpec((tm, D), lambda i: (i, 0)),
                  pl.BlockSpec((D, FF), lambda i: (0, 0)),
                  pl.BlockSpec((1, FF), lambda i: (0, 0)),
                  pl.BlockSpec((FF, D), lambda i: (0, 0)),
                  pl.BlockSpec((1, D), lambda i: (0, 0)),
                  pl.BlockSpec((1, D), lambda i: (0, 0)),
                  pl.BlockSpec((1, D), lambda i: (0, 0))],
        out_specs=pl.BlockSpec((tm, D), lambda i: (i, 0)),
        out_shape=jax.ShapeDtypeStruct((Mp, D), jnp.float32),
        compiler_params=pltpu.CompilerParams(dimension_semantics=("parallel",)),
    )(x, w1_bf, b1, w2_bf, b2, g, beta)
    return y if Mp == M else y[:M]


# ---------- fused attention-pooling + MLP head (gridded over batch rows) ----------
def _pool_head_kernel(x_ref, a1w_ref, a1b_ref, a2w_ref, a2b_ref,
                      f1w_ref, f1b_ref, f2w_ref, f2b_ref, o_ref):
    tb, S, D = x_ref.shape
    x = x_ref[...]                                            # (tb, S, D) f32
    xf = x.reshape(tb * S, D)
    a = jnp.tanh(jnp.dot(xf.astype(jnp.bfloat16), a1w_ref[...],
                         preferred_element_type=jnp.float32) + a1b_ref[...])
    a = a.reshape(tb, S, D)
    sc = jnp.sum(a * a2w_ref[...][None], axis=-1, keepdims=True) + a2b_ref[...][None]
    sc = sc - jnp.max(sc, axis=1, keepdims=True)              # softmax over seq
    p = jnp.exp(sc)
    p = p * pl.reciprocal(jnp.sum(p, axis=1, keepdims=True), approx=True)
    pooled = jnp.sum(x * p, axis=1)                           # (tb, D)
    h1 = jnp.maximum(jnp.dot(pooled.astype(jnp.bfloat16), f1w_ref[...],
                             preferred_element_type=jnp.float32) + f1b_ref[...], 0.0)
    o_ref[...] = jnp.sum(h1 * f2w_ref[...], axis=-1, keepdims=True) + f2b_ref[...]


def pallas_pool_head(t, prm, tb=8):
    B, S, D = t.shape                                         # B is padded to a multiple of 8
    return pl.pallas_call(
        _pool_head_kernel,
        grid=(B // tb,),
        in_specs=[pl.BlockSpec((tb, S, D), lambda i: (i, 0, 0)),
                  pl.BlockSpec((D, D), lambda i: (0, 0)),
                  pl.BlockSpec((1, D), lambda i: (0, 0)),
                  pl.BlockSpec((1, D), lambda i: (0, 0)),
                  pl.BlockSpec((1, 1), lambda i: (0, 0)),
                  pl.BlockSpec((D, HIDDEN), lambda i: (0, 0)),
                  pl.BlockSpec((1, HIDDEN), lambda i: (0, 0)),
                  pl.BlockSpec((1, HIDDEN), lambda i: (0, 0)),
                  pl.BlockSpec((1, 1), lambda i: (0, 0))],
        out_specs=pl.BlockSpec((tb, 1), lambda i: (i, 0)),
        out_shape=jax.ShapeDtypeStruct((B, 1), jnp.float32),
        compiler_params=pltpu.CompilerParams(dimension_semantics=("parallel",)),
    )(t, prm["a1_w"], prm["a1_b"], prm["a2_w"], prm["a2_b"],
      prm["f1_w"], prm["f1_b"], prm["f2_w"], prm["f2_b"])


# ================================ model (glue) ================================

def positional_encoding(seq_len, d_model):
    pos = jnp.arange(seq_len, dtype=jnp.float32)[:, None]
    div = jnp.exp(jnp.arange(0, d_model, 2, dtype=jnp.float32) *
                  (-math.log(10000.0) / d_model))
    pe = jnp.zeros((seq_len, d_model), jnp.float32)
    pe = pe.at[:, 0::2].set(jnp.sin(pos * div))
    pe = pe.at[:, 1::2].set(jnp.cos(pos * div))
    return pe


def transformer_layer(x, p):
    """Post-norm TransformerEncoderLayer (ReLU FFN), eval-mode dropout. x:(B,S,D)."""
    B, S, D = x.shape
    flat = x.reshape(B * S, D)
    qkv = pallas_linear(flat, p["in_w"], p["in_b"], out_dtype=jnp.bfloat16)  # (B*S, 3D) bf16
    # per-head leading-axis layout: (B, 3, nhead, S, hd)  -> no lane-offset head slicing in-kernel
    qkv = qkv.reshape(B, S, 3, NHEAD, HEAD_DIM).transpose(0, 2, 3, 1, 4)
    x1 = pallas_attention_block(qkv, x, p["wo"], p["out_b"], p["n1_g"], p["n1_b"])
    x2 = pallas_ffn_block(x1.reshape(B * S, D), p["l1_w"], p["l1_b"],
                          p["l2_w"], p["l2_b"], p["n2_g"], p["n2_b"])
    return x2.reshape(B, S, D)


def emodel_bigru_forward(x, prm):
    """x: (B, S, F) float32 -> (B,) float32 (uses prepared/kernel-layout params)."""
    B0, S, F = x.shape
    Bp = _round_up(B0, 8)                 # pad batch so every sublane dim is dense
    if Bp != B0:
        x = jnp.pad(x, ((0, Bp - B0), (0, 0), (0, 0)))
    B = Bp

    # ---- 2-layer bidirectional GRU (feature_importance folded into layer-0 weights) ----
    h = jnp.transpose(x, (1, 0, 2))                           # (S, B, F)   time-major
    for lp in prm["gru"]:
        Din = lp["w_in"].shape[0]
        xp = pallas_linear(h.reshape(S * B, Din), lp["w_in"], lp["b_in"],
                           out_dtype=jnp.bfloat16)            # bf16 xp -> half HBM traffic
        xp = xp.reshape(S, B, 6 * HIDDEN)
        h = pallas_bigru_recurrence(xp, lp["whh"], lp["bhh"]) # (S, B, 2H) f32
    gru_out = jnp.transpose(h, (1, 0, 2))                     # (B, S, 2H)

    # ---- positional encoding ----
    t = gru_out + positional_encoding(S, D_MODEL)[None]

    # ---- transformer encoder (2 layers) ----
    for lp in prm["transformer"]:
        t = transformer_layer(t, lp)

    # ---- fused attention pooling + MLP head ----
    y = pallas_pool_head(t, prm)                              # (Bp, 1)
    return y[:B0, 0]                                          # drop pad, squeeze(-1)


# ================================ params ================================

def init_params(feature_dim, key):
    """Torch-layout float32 parameters (same layout as the PyTorch module)."""
    ks = iter(jax.random.split(key, 64))

    def w(shape, scale=0.05):
        return jax.random.normal(next(ks), shape, jnp.float32) * scale

    def b(shape):
        return jnp.zeros(shape, jnp.float32)

    params = {"feature_importance": jnp.ones((feature_dim,), jnp.float32)}

    gru = []
    for layer in range(2):
        in_dim = feature_dim if layer == 0 else 2 * HIDDEN
        dirs = []
        for _d in range(2):
            dirs.append((w((3 * HIDDEN, in_dim)),   # weight_ih
                         w((3 * HIDDEN, HIDDEN)),   # weight_hh
                         w((3 * HIDDEN,)),          # bias_ih
                         w((3 * HIDDEN,))))         # bias_hh
        gru.append(dirs)
    params["gru"] = gru

    tlayers = []
    for _l in range(2):
        tlayers.append({
            "in_w": w((3 * D_MODEL, D_MODEL)), "in_b": b((3 * D_MODEL,)),
            "out_w": w((D_MODEL, D_MODEL)), "out_b": b((D_MODEL,)),
            "l1_w": w((DIM_FF, D_MODEL)), "l1_b": b((DIM_FF,)),
            "l2_w": w((D_MODEL, DIM_FF)), "l2_b": b((D_MODEL,)),
            "n1_g": jnp.ones((D_MODEL,), jnp.float32), "n1_b": b((D_MODEL,)),
            "n2_g": jnp.ones((D_MODEL,), jnp.float32), "n2_b": b((D_MODEL,)),
        })
    params["transformer"] = tlayers

    params["a1_w"] = w((D_MODEL, D_MODEL)); params["a1_b"] = b((D_MODEL,))
    params["a2_w"] = w((1, D_MODEL));       params["a2_b"] = b((1,))
    params["f1_w"] = w((HIDDEN, D_MODEL));  params["f1_b"] = b((HIDDEN,))
    params["f2_w"] = w((1, HIDDEN));        params["f2_b"] = b((1,))
    return params


def prepare_params(params):
    """Convert torch-layout params to kernel-ready layouts (transposed, bf16 weights)."""
    prep = {}
    fi = params["feature_importance"]

    gru = []
    for layer in range(2):
        (wif, whf, bif, bhf), (wib, whb, bib, bhb) = params["gru"][layer]
        w_cat = jnp.concatenate([wif.T, wib.T], axis=1)       # (Din, 6H) = [fwd | bwd]
        if layer == 0:
            w_cat = w_cat * fi[:, None]                       # fold feature_importance
        gru.append({
            "w_in": w_cat.astype(jnp.bfloat16),
            "b_in": jnp.concatenate([bif, bib]).reshape(1, 6 * HIDDEN),
            "whh": jnp.stack([whf.T, whb.T]).astype(jnp.bfloat16),        # (2, H, 3H)
            "bhh": jnp.stack([bhf, bhb]).reshape(2, 1, 3 * HIDDEN),       # (2, 1, 3H)
        })
    prep["gru"] = gru

    scale = 1.0 / math.sqrt(HEAD_DIM)
    tls = []
    for p in params["transformer"]:
        wq, wk, wv = (p["in_w"][:D_MODEL], p["in_w"][D_MODEL:2 * D_MODEL],
                      p["in_w"][2 * D_MODEL:])
        bq, bk, bv = (p["in_b"][:D_MODEL], p["in_b"][D_MODEL:2 * D_MODEL],
                      p["in_b"][2 * D_MODEL:])
        in_w = jnp.concatenate([wq * scale, wk, wv], axis=0).T            # fold 1/sqrt(hd) into Q
        in_b = jnp.concatenate([bq * scale, bk, bv]).reshape(1, 3 * D_MODEL)
        tls.append({
            "in_w": in_w.astype(jnp.bfloat16), "in_b": in_b,
            "wo": p["out_w"].T.reshape(NHEAD, HEAD_DIM, D_MODEL).astype(jnp.bfloat16),
            "out_b": p["out_b"].reshape(1, D_MODEL),
            "l1_w": p["l1_w"].T.astype(jnp.bfloat16), "l1_b": p["l1_b"].reshape(1, DIM_FF),
            "l2_w": p["l2_w"].T.astype(jnp.bfloat16), "l2_b": p["l2_b"].reshape(1, D_MODEL),
            "n1_g": p["n1_g"].reshape(1, D_MODEL), "n1_b": p["n1_b"].reshape(1, D_MODEL),
            "n2_g": p["n2_g"].reshape(1, D_MODEL), "n2_b": p["n2_b"].reshape(1, D_MODEL),
        })
    prep["transformer"] = tls

    prep["a1_w"] = params["a1_w"].T.astype(jnp.bfloat16)
    prep["a1_b"] = params["a1_b"].reshape(1, D_MODEL)
    prep["a2_w"] = params["a2_w"].reshape(1, D_MODEL)         # f32 row (VPU reduce)
    prep["a2_b"] = params["a2_b"].reshape(1, 1)
    prep["f1_w"] = params["f1_w"].T.astype(jnp.bfloat16)
    prep["f1_b"] = params["f1_b"].reshape(1, HIDDEN)
    prep["f2_w"] = params["f2_w"].reshape(1, HIDDEN)
    prep["f2_b"] = params["f2_b"].reshape(1, 1)
    return prep


# ================================ main ================================

if __name__ == "__main__":
    B, S, FEAT = 2, 8, 16
    key = jax.random.PRNGKey(0)
    kx, kp = jax.random.split(key)
    x = jax.random.normal(kx, (B, S, FEAT), jnp.float32)
    params = init_params(FEAT, kp)
    prep = prepare_params(params)

    fwd = jax.jit(emodel_bigru_forward)
    out = jax.block_until_ready(fwd(x, prep))
    assert out.shape == (B,) and bool(jnp.all(jnp.isfinite(out)))
    # TODO(synk): dropout layers (GRU inter-layer, attention-weight, transformer, fc) are
    # identity here (eval-mode inference semantics), not stochastic training dropout.
    print("KERNEL_OK")
</pallas_src>

<mosaic_0001>
module attributes {stable_mosaic.version = 11 : i64} {
  func.func @_linear_kernel(%arg0: i32, %arg1: memref<64x16xf32, #tpu.memory_space<vmem>>, %arg2: memref<16x768xbf16, #tpu.memory_space<vmem>>, %arg3: memref<1x768xf32, #tpu.memory_space<vmem>>, %arg4: memref<64x768xbf16, #tpu.memory_space<vmem>>) attributes {dimension_semantics = [#tpu.dimension_semantics<parallel>], iteration_bounds = array<i64: 1>, scalar_prefetch = 0 : i64, scratch_operands = 0 : i64, tpu.core_type = #tpu.core_type<tc>, window_params = [{transform_indices = @transform_0, window_bounds = array<i64: 64, 16>}, {pipeline_mode = #tpu.pipeline_mode<synchronous>, transform_indices = @transform_1, window_bounds = array<i64: 16, 768>}, {pipeline_mode = #tpu.pipeline_mode<synchronous>, transform_indices = @transform_2, window_bounds = array<i64: 1, 768>}, {transform_indices = @transform_3, window_bounds = array<i64: 64, 768>}]} {
    %c0 = arith.constant 0 : index
    %c0_0 = arith.constant 0 : index
    %0 = vector.load %arg1[%c0, %c0_0] : memref<64x16xf32, #tpu.memory_space<vmem>>, vector<64x16xf32>
    %1 = arith.truncf %0 : vector<64x16xf32> to vector<64x16xbf16>
    %c0_1 = arith.constant 0 : index
    %c0_2 = arith.constant 0 : index
    %2 = vector.load %arg2[%c0_1, %c0_2] : memref<16x768xbf16, #tpu.memory_space<vmem>>, vector<16x768xbf16>
    %cst = arith.constant dense<0.000000e+00> : vector<64x768xf32>
    %3 = tpu.matmul %1, %2, %cst {dimension_numbers = #tpu.dot_dimension_numbers<[1], [0], [0], [1], [0, 0, 1, 1], [], []>} : vector<64x16xbf16>, vector<16x768xbf16>, vector<64x768xf32> -> vector<64x768xf32>
    %c0_3 = arith.constant 0 : index
    %c0_4 = arith.constant 0 : index
    %4 = vector.load %arg3[%c0_3, %c0_4] : memref<1x768xf32, #tpu.memory_space<vmem>>, vector<1x768xf32>
    %5 = vector.broadcast %4 : vector<1x768xf32> to vector<64x768xf32>
    %6 = arith.addf %3, %5 : vector<64x768xf32>
    %7 = arith.truncf %6 : vector<64x768xf32> to vector<64x768xbf16>
    %c0_5 = arith.constant 0 : index
    %c0_6 = arith.constant 0 : index
    %8 = vector.load %arg4[%c0_5, %c0_6] : memref<64x768xbf16, #tpu.memory_space<vmem>>, vector<64x768xbf16>
    tpu.vector_store %arg4[%c0_5, %c0_6], %7 {strides = array<i32>} : memref<64x768xbf16, #tpu.memory_space<vmem>>, vector<64x768xbf16>,
    return
  }
  func.func @transform_0(%arg0: i32) -> (i32, i32) {
    %c0_i32 = arith.constant 0 : i32
    %c0_i32_0 = arith.constant 0 : i32
    return %arg0, %c0_i32 : i32, i32
  }
  func.func @transform_1(%arg0: i32) -> (i32, i32) {
    %c0_i32 = arith.constant 0 : i32
    %c0_i32_0 = arith.constant 0 : i32
    %c0_i32_1 = arith.constant 0 : i32
    return %c0_i32, %c0_i32_0 : i32, i32
  }
  func.func @transform_2(%arg0: i32) -> (i32, i32) {
    %c0_i32 = arith.constant 0 : i32
    %c0_i32_0 = arith.constant 0 : i32
    %c0_i32_1 = arith.constant 0 : i32
    return %c0_i32, %c0_i32_0 : i32, i32
  }
  func.func @transform_3(%arg0: i32) -> (i32, i32) {
    %c0_i32 = arith.constant 0 : i32
    %c0_i32_0 = arith.constant 0 : i32
    return %arg0, %c0_i32 : i32, i32
  }
}

module attributes {stable_mosaic.version = 11 : i64} {
  func.func @_gru_seq_kernel(%arg0: i32, %arg1: i32, %arg2: memref<8x8x384xbf16, #tpu.memory_space<vmem>>, %arg3: memref<1x128x384xbf16, #tpu.memory_space<vmem>>, %arg4: memref<1x1x384xf32, #tpu.memory_space<vmem>>, %arg5: memref<8x8x128xf32, #tpu.memory_space<vmem>>, %arg6: memref<8x128xf32, #tpu.memory_space<vmem>>) attributes {dimension_semantics = [#tpu.dimension_semantics<parallel>, #tpu.dimension_semantics<arbitrary>], iteration_bounds = array<i64: 2, 1>, scalar_prefetch = 0 : i64, scratch_operands = 1 : i64, tpu.core_type = #tpu.core_type<tc>, window_params = [{transform_indices = @transform_0, window_bounds = array<i64: 8, 8, 384>}, {transform_indices = @transform_1, window_bounds = array<i64: 1, 128, 384>}, {transform_indices = @transform_2, window_bounds = array<i64: 1, 1, 384>}, {transform_indices = @transform_3, window_bounds = array<i64: 8, 8, 128>}]} {
    %c0_i32 = arith.constant 0 : i32
    %0 = arith.cmpi eq, %arg1, %c0_i32 : i32
    %1 = arith.extui %0 : i1 to i32
    %c0_i32_0 = arith.constant 0 : i32
    %2 = arith.cmpi ne, %1, %c0_i32_0 : i32
    scf.if %2 {
      %cst_90 = arith.constant 0.000000e+00 : f32
      %353 = vector.broadcast %cst_90 : f32 to vector<8x128xf32>
      %c0_91 = arith.constant 0 : index
      %c0_92 = arith.constant 0 : index
      %354 = vector.load %arg6[%c0_91, %c0_92] : memref<8x128xf32, #tpu.memory_space<vmem>>, vector<8x128xf32>
      tpu.vector_store %arg6[%c0_91, %c0_92], %353 {strides = array<i32>} : memref<8x128xf32, #tpu.memory_space<vmem>>, vector<8x128xf32>,
    } else {
    }
    %c0 = arith.constant 0 : index
    %c0_1 = arith.constant 0 : index
    %c0_2 = arith.constant 0 : index
    %3 = vector.load %arg3[%c0, %c0_1, %c0_2] : memref<1x128x384xbf16, #tpu.memory_space<vmem>>, vector<1x128x384xbf16>
    %4 = vector.shape_cast %3 : vector<1x128x384xbf16> to vector<128x384xbf16>
    %c0_3 = arith.constant 0 : index
    %c0_4 = arith.constant 0 : index
    %c0_5 = arith.constant 0 : index
    %5 = vector.load %arg4[%c0_3, %c0_4, %c0_5] : memref<1x1x384xf32, #tpu.memory_space<vmem>>, vector<1x1x384xf32>
    %6 = vector.shape_cast %5 : vector<1x1x384xf32> to vector<1x384xf32>
    %c0_6 = arith.constant 0 : index
    %c0_7 = arith.constant 0 : index
    %7 = vector.load %arg6[%c0_6, %c0_7] : memref<8x128xf32, #tpu.memory_space<vmem>>, vector<8x128xf32>
    %c0_i32_8 = arith.constant 0 : i32
    %c1_i32 = arith.constant 1 : i32
    %8 = arith.subi %c1_i32, %arg0 : i32
    %9 = arith.muli %8, %c0_i32_8 : i32
    %c7_i32 = arith.constant 7 : i32
    %10 = arith.subi %c7_i32, %c0_i32_8 : i32
    %11 = arith.muli %arg0, %10 : i32
    %12 = arith.addi %9, %11 : i32
    %13 = arith.index_cast %12 : i32 to index
    %c0_9 = arith.constant 0 : index
    %c0_10 = arith.constant 0 : index
    %14 = vector.load %arg2[%13, %c0_9, %c0_10] : memref<8x8x384xbf16, #tpu.memory_space<vmem>>, vector<1x8x384xbf16>
    %15 = vector.shape_cast %14 : vector<1x8x384xbf16> to vector<8x384xbf16>
    %16 = arith.extf %15 : vector<8x384xbf16> to vector<8x384xf32>
    %17 = arith.truncf %7 : vector<8x128xf32> to vector<8x128xbf16>
    %cst = arith.constant dense<0.000000e+00> : vector<8x384xf32>
    %18 = tpu.matmul %17, %4, %cst {dimension_numbers = #tpu.dot_dimension_numbers<[1], [0], [0], [1], [0, 0, 1, 1], [], []>} : vector<8x128xbf16>, vector<128x384xbf16>, vector<8x384xf32> -> vector<8x384xf32>
    %19 = vector.broadcast %6 : vector<1x384xf32> to vector<8x384xf32>
    %20 = arith.addf %18, %19 : vector<8x384xf32>
    %21 = vector.extract_strided_slice %16 {offsets = [0, 0], sizes = [8, 128], strides = [1, 1]} : vector<8x384xf32> to vector<8x128xf32>
    %22 = vector.extract_strided_slice %20 {offsets = [0, 0], sizes = [8, 128], strides = [1, 1]} : vector<8x384xf32> to vector<8x128xf32>
    %23 = arith.addf %21, %22 : vector<8x128xf32>
    %24 = arith.negf %23 : vector<8x128xf32>
    %25 = math.exp %24 : vector<8x128xf32>
    %cst_11 = arith.constant 1.000000e+00 : f32
    %26 = vector.broadcast %cst_11 : f32 to vector<8x128xf32>
    %27 = arith.addf %26, %25 : vector<8x128xf32>
    %28 = arith.divf %26, %27 : vector<8x128xf32>
    %29 = vector.extract_strided_slice %16 {offsets = [0, 128], sizes = [8, 128], strides = [1, 1]} : vector<8x384xf32> to vector<8x128xf32>
    %30 = vector.extract_strided_slice %20 {offsets = [0, 128], sizes = [8, 128], strides = [1, 1]} : vector<8x384xf32> to vector<8x128xf32>
    %31 = arith.addf %29, %30 : vector<8x128xf32>
    %32 = arith.negf %31 : vector<8x128xf32>
    %33 = math.exp %32 : vector<8x128xf32>
    %cst_12 = arith.constant 1.000000e+00 : f32
    %34 = vector.broadcast %cst_12 : f32 to vector<8x128xf32>
    %35 = arith.addf %34, %33 : vector<8x128xf32>
    %36 = arith.divf %34, %35 : vector<8x128xf32>
    %37 = vector.extract_strided_slice %16 {offsets = [0, 256], sizes = [8, 128], strides = [1, 1]} : vector<8x384xf32> to vector<8x128xf32>
    %38 = vector.extract_strided_slice %20 {offsets = [0, 256], sizes = [8, 128], strides = [1, 1]} : vector<8x384xf32> to vector<8x128xf32>
    %39 = arith.mulf %28, %38 : vector<8x128xf32>
    %40 = arith.addf %37, %39 : vector<8x128xf32>
    %41 = math.tanh %40 : vector<8x128xf32>
    %cst_13 = arith.constant 1.000000e+00 : f32
    %42 = vector.broadcast %cst_13 : f32 to vector<8x128xf32>
    %43 = arith.subf %42, %36 : vector<8x128xf32>
    %44 = arith.mulf %43, %41 : vector<8x128xf32>
    %45 = arith.mulf %36, %7 : vector<8x128xf32>
    %46 = arith.addf %44, %45 : vector<8x128xf32>
    %47 = arith.index_cast %12 : i32 to index
    %c0_14 = arith.constant 0 : index
    %c0_15 = arith.constant 0 : index
    %48 = vector.load %arg5[%47, %c0_14, %c0_15] : memref<8x8x128xf32, #tpu.memory_space<vmem>>, vector<1x8x128xf32>
    %49 = vector.shape_cast %48 : vector<1x8x128xf32> to vector<8x128xf32>
    %50 = vector.shape_cast %46 : vector<8x128xf32> to vector<1x8x128xf32>
    tpu.vector_store %arg5[%47, %c0_14, %c0_15], %50 {strides = array<i32>} : memref<8x8x128xf32, #tpu.memory_space<vmem>>, vector<1x8x128xf32>,
    %c1_i32_16 = arith.constant 1 : i32
    %c1_i32_17 = arith.constant 1 : i32
    %51 = arith.subi %c1_i32_17, %arg0 : i32
    %52 = arith.muli %51, %c1_i32_16 : i32
    %c7_i32_18 = arith.constant 7 : i32
    %53 = arith.subi %c7_i32_18, %c1_i32_16 : i32
    %54 = arith.muli %arg0, %53 : i32
    %55 = arith.addi %52, %54 : i32
    %56 = arith.index_cast %55 : i32 to index
    %c0_19 = arith.constant 0 : index
    %c0_20 = arith.constant 0 : index
    %57 = vector.load %arg2[%56, %c0_19, %c0_20] : memref<8x8x384xbf16, #tpu.memory_space<vmem>>, vector<1x8x384xbf16>
    %58 = vector.shape_cast %57 : vector<1x8x384xbf16> to vector<8x384xbf16>
    %59 = arith.extf %58 : vector<8x384xbf16> to vector<8x384xf32>
    %60 = arith.truncf %46 : vector<8x128xf32> to vector<8x128xbf16>
    %cst_21 = arith.constant dense<0.000000e+00> : vector<8x384xf32>
    %61 = tpu.matmul %60, %4, %cst_21 {dimension_numbers = #tpu.dot_dimension_numbers<[1], [0], [0], [1], [0, 0, 1, 1], [], []>} : vector<8x128xbf16>, vector<128x384xbf16>, vector<8x384xf32> -> vector<8x384xf32>
    %62 = vector.broadcast %6 : vector<1x384xf32> to vector<8x384xf32>
    %63 = arith.addf %61, %62 : vector<8x384xf32>
    %64 = vector.extract_strided_slice %59 {offsets = [0, 0], sizes = [8, 128], strides = [1, 1]} : vector<8x384xf32> to vector<8x128xf32>
    %65 = vector.extract_strided_slice %63 {offsets = [0, 0], sizes = [8, 128], strides = [1, 1]} : vector<8x384xf32> to vector<8x128xf32>
    %66 = arith.addf %64, %65 : vector<8x128xf32>
    %67 = arith.negf %66 : vector<8x128xf32>
    %68 = math.exp %67 : vector<8x128xf32>
    %cst_22 = arith.constant 1.000000e+00 : f32
    %69 = vector.broadcast %cst_22 : f32 to vector<8x128xf32>
    %70 = arith.addf %69, %68 : vector<8x128xf32>
    %71 = arith.divf %69, %70 : vector<8x128xf32>
    %72 = vector.extract_strided_slice %59 {offsets = [0, 128], sizes = [8, 128], strides = [1, 1]} : vector<8x384xf32> to vector<8x128xf32>
    %73 = vector.extract_strided_slice %63 {offsets = [0, 128], sizes = [8, 128], strides = [1, 1]} : vector<8x384xf32> to vector<8x128xf32>
    %74 = arith.addf %72, %73 : vector<8x128xf32>
    %75 = arith.negf %74 : vector<8x128xf32>
    %76 = math.exp %75 : vector<8x128xf32>
    %cst_23 = arith.constant 1.000000e+00 : f32
    %77 = vector.broadcast %cst_23 : f32 to vector<8x128xf32>
    %78 = arith.addf %77, %76 : vector<8x128xf32>
    %79 = arith.divf %77, %78 : vector<8x128xf32>
    %80 = vector.extract_strided_slice %59 {offsets = [0, 256], sizes = [8, 128], strides = [1, 1]} : vector<8x384xf32> to vector<8x128xf32>
    %81 = vector.extract_strided_slice %63 {offsets = [0, 256], sizes = [8, 128], strides = [1, 1]} : vector<8x384xf32> to vector<8x128xf32>
    %82 = arith.mulf %71, %81 : vector<8x128xf32>
    %83 = arith.addf %80, %82 : vector<8x128xf32>
    %84 = math.tanh %83 : vector<8x128xf32>
    %cst_24 = arith.constant 1.000000e+00 : f32
    %85 = vector.broadcast %cst_24 : f32 to vector<8x128xf32>
    %86 = arith.subf %85, %79 : vector<8x128xf32>
    %87 = arith.mulf %86, %84 : vector<8x128xf32>
    %88 = arith.mulf %79, %46 : vector<8x128xf32>
    %89 = arith.addf %87, %88 : vector<8x128xf32>
    %90 = arith.index_cast %55 : i32 to index
    %c0_25 = arith.constant 0 : index
    %c0_26 = arith.constant 0 : index
    %91 = vector.load %arg5[%90, %c0_25, %c0_26] : memref<8x8x128xf32, #tpu.memory_space<vmem>>, vector<1x8x128xf32>
    %92 = vector.shape_cast %91 : vector<1x8x128xf32> to vector<8x128xf32>
    %93 = vector.shape_cast %89 : vector<8x128xf32> to vector<1x8x128xf32>
    tpu.vector_store %arg5[%90, %c0_25, %c0_26], %93 {strides = array<i32>} : memref<8x8x128xf32, #tpu.memory_space<vmem>>, vector<1x8x128xf32>,
    %c2_i32 = arith.constant 2 : i32
    %c1_i32_27 = arith.constant 1 : i32
    %94 = arith.subi %c1_i32_27, %arg0 : i32
    %95 = arith.muli %94, %c2_i32 : i32
    %c7_i32_28 = arith.constant 7 : i32
    %96 = arith.subi %c7_i32_28, %c2_i32 : i32
    %97 = arith.muli %arg0, %96 : i32
    %98 = arith.addi %95, %97 : i32
    %99 = arith.index_cast %98 : i32 to index
    %c0_29 = arith.constant 0 : index
    %c0_30 = arith.constant 0 : index
    %100 = vector.load %arg2[%99, %c0_29, %c0_30] : memref<8x8x384xbf16, #tpu.memory_space<vmem>>, vector<1x8x384xbf16>
    %101 = vector.shape_cast %100 : vector<1x8x384xbf16> to vector<8x384xbf16>
    %102 = arith.extf %101 : vector<8x384xbf16> to vector<8x384xf32>
    %103 = arith.truncf %89 : vector<8x128xf32> to vector<8x128xbf16>
    %cst_31 = arith.constant dense<0.000000e+00> : vector<8x384xf32>
    %104 = tpu.matmul %103, %4, %cst_31 {dimension_numbers = #tpu.dot_dimension_numbers<[1], [0], [0], [1], [0, 0, 1, 1], [], []>} : vector<8x128xbf16>, vector<128x384xbf16>, vector<8x384xf32> -> vector<8x384xf32>
    %105 = vector.broadcast %6 : vector<1x384xf32> to vector<8x384xf32>
    %106 = arith.addf %104, %105 : vector<8x384xf32>
    %107 = vector.extract_strided_slice %102 {offsets = [0, 0], sizes = [8, 128], strides = [1, 1]} : vector<8x384xf32> to vector<8x128xf32>
    %108 = vector.extract_strided_slice %106 {offsets = [0, 0], sizes = [8, 128], strides = [1, 1]} : vector<8x384xf32> to vector<8x128xf32>
    %109 = arith.addf %107, %108 : vector<8x128xf32>
    %110 = arith.negf %109 : vector<8x128xf32>
    %111 = math.exp %110 : vector<8x128xf32>
    %cst_32 = arith.constant 1.000000e+00 : f32
    %112 = vector.broadcast %cst_32 : f32 to vector<8x128xf32>
    %113 = arith.addf %112, %111 : vector<8x128xf32>
    %114 = arith.divf %112, %113 : vector<8x128xf32>
    %115 = vector.extract_strided_slice %102 {offsets = [0, 128], sizes = [8, 128], strides = [1, 1]} : vector<8x384xf32> to vector<8x128xf32>
    %116 = vector.extract_strided_slice %106 {offsets = [0, 128], sizes = [8, 128], strides = [1, 1]} : vector<8x384xf32> to vector<8x128xf32>
    %117 = arith.addf %115, %116 : vector<8x128xf32>
    %118 = arith.negf %117 : vector<8x128xf32>
    %119 = math.exp %118 : vector<8x128xf32>
    %cst_33 = arith.constant 1.000000e+00 : f32
    %120 = vector.broadcast %cst_33 : f32 to vector<8x128xf32>
    %121 = arith.addf %120, %119 : vector<8x128xf32>
    %122 = arith.divf %120, %121 : vector<8x128xf32>
    %123 = vector.extract_strided_slice %102 {offsets = [0, 256], sizes = [8, 128], strides = [1, 1]} : vector<8x384xf32> to vector<8x128xf32>
    %124 = vector.extract_strided_slice %106 {offsets = [0, 256], sizes = [8, 128], strides = [1, 1]} : vector<8x384xf32> to vector<8x128xf32>
    %125 = arith.mulf %114, %124 : vector<8x128xf32>
    %126 = arith.addf %123, %125 : vector<8x128xf32>
    %127 = math.tanh %126 : vector<8x128xf32>
    %cst_34 = arith.constant 1.000000e+00 : f32
    %128 = vector.broadcast %cst_34 : f32 to vector<8x128xf32>
    %129 = arith.subf %128, %122 : vector<8x128xf32>
    %130 = arith.mulf %129, %127 : vector<8x128xf32>
    %131 = arith.mulf %122, %89 : vector<8x128xf32>
    %132 = arith.addf %130, %131 : vector<8x128xf32>
    %133 = arith.index_cast %98 : i32 to index
    %c0_35 = arith.constant 0 : index
    %c0_36 = arith.constant 0 : index
    %134 = vector.load %arg5[%133, %c0_35, %c0_36] : memref<8x8x128xf32, #tpu.memory_space<vmem>>, vector<1x8x128xf32>
    %135 = vector.shape_cast %134 : vector<1x8x128xf32> to vector<8x128xf32>
    %136 = vector.shape_cast %132 : vector<8x128xf32> to vector<1x8x128xf32>
    tpu.vector_store %arg5[%133, %c0_35, %c0_36], %136 {strides = array<i32>} : memref<8x8x128xf32, #tpu.memory_space<vmem>>, vector<1x8x128xf32>,
    %c3_i32 = arith.constant 3 : i32
    %c1_i32_37 = arith.constant 1 : i32
    %137 = arith.subi %c1_i32_37, %arg0 : i32
    %138 = arith.muli %137, %c3_i32 : i32
    %c7_i32_38 = arith.constant 7 : i32
    %139 = arith.subi %c7_i32_38, %c3_i32 : i32
    %140 = arith.muli %arg0, %139 : i32
    %141 = arith.addi %138, %140 : i32
    %142 = arith.index_cast %141 : i32 to index
    %c0_39 = arith.constant 0 : index
    %c0_40 = arith.constant 0 : index
    %143 = vector.load %arg2[%142, %c0_39, %c0_40] : memref<8x8x384xbf16, #tpu.memory_space<vmem>>, vector<1x8x384xbf16>
    %144 = vector.shape_cast %143 : vector<1x8x384xbf16> to vector<8x384xbf16>
    %145 = arith.extf %144 : vector<8x384xbf16> to vector<8x384xf32>
    %146 = arith.truncf %132 : vector<8x128xf32> to vector<8x128xbf16>
    %cst_41 = arith.constant dense<0.000000e+00> : vector<8x384xf32>
    %147 = tpu.matmul %146, %4, %cst_41 {dimension_numbers = #tpu.dot_dimension_numbers<[1], [0], [0], [1], [0, 0, 1, 1], [], []>} : vector<8x128xbf16>, vector<128x384xbf16>, vector<8x384xf32> -> vector<8x384xf32>
    %148 = vector.broadcast %6 : vector<1x384xf32> to vector<8x384xf32>
    %149 = arith.addf %147, %148 : vector<8x384xf32>
    %150 = vector.extract_strided_slice %145 {offsets = [0, 0], sizes = [8, 128], strides = [1, 1]} : vector<8x384xf32> to vector<8x128xf32>
    %151 = vector.extract_strided_slice %149 {offsets = [0, 0], sizes = [8, 128], strides = [1, 1]} : vector<8x384xf32> to vector<8x128xf32>
    %152 = arith.addf %150, %151 : vector<8x128xf32>
    %153 = arith.negf %152 : vector<8x128xf32>
    %154 = math.exp %153 : vector<8x128xf32>
    %cst_42 = arith.constant 1.000000e+00 : f32
    %155 = vector.broadcast %cst_42 : f32 to vector<8x128xf32>
    %156 = arith.addf %155, %154 : vector<8x128xf32>
    %157 = arith.divf %155, %156 : vector<8x128xf32>
    %158 = vector.extract_strided_slice %145 {offsets = [0, 128], sizes = [8, 128], strides = [1, 1]} : vector<8x384xf32> to vector<8x128xf32>
    %159 = vector.extract_strided_slice %149 {offsets = [0, 128], sizes = [8, 128], strides = [1, 1]} : vector<8x384xf32> to vector<8x128xf32>
    %160 = arith.addf %158, %159 : vector<8x128xf32>
    %161 = arith.negf %160 : vector<8x128xf32>
    %162 = math.exp %161 : vector<8x128xf32>
    %cst_43 = arith.constant 1.000000e+00 : f32
    %163 = vector.broadcast %cst_43 : f32 to vector<8x128xf32>
    %164 = arith.addf %163, %162 : vector<8x128xf32>
    %165 = arith.divf %163, %164 : vector<8x128xf32>
    %166 = vector.extract_strided_slice %145 {offsets = [0, 256], sizes = [8, 128], strides = [1, 1]} : vector<8x384xf32> to vector<8x128xf32>
    %167 = vector.extract_strided_slice %149 {offsets = [0, 256], sizes = [8, 128], strides = [1, 1]} : vector<8x384xf32> to vector<8x128xf32>
    %168 = arith.mulf %157, %167 : vector<8x128xf32>
    %169 = arith.addf %166, %168 : vector<8x128xf32>
    %170 = math.tanh %169 : vector<8x128xf32>
    %cst_44 = arith.constant 1.000000e+00 : f32
    %171 = vector.broadcast %cst_44 : f32 to vector<8x128xf32>
    %172 = arith.subf %171, %165 : vector<8x128xf32>
    %173 = arith.mulf %172, %170 : vector<8x128xf32>
    %174 = arith.mulf %165, %132 : vector<8x128xf32>
    %175 = arith.addf %173, %174 : vector<8x128xf32>
    %176 = arith.index_cast %141 : i32 to index
    %c0_45 = arith.constant 0 : index
    %c0_46 = arith.constant 0 : index
    %177 = vector.load %arg5[%176, %c0_45, %c0_46] : memref<8x8x128xf32, #tpu.memory_space<vmem>>, vector<1x8x128xf32>
    %178 = vector.shape_cast %177 : vector<1x8x128xf32> to vector<8x128xf32>
    %179 = vector.shape_cast %175 : vector<8x128xf32> to vector<1x8x128xf32>
    tpu.vector_store %arg5[%176, %c0_45, %c0_46], %179 {strides = array<i32>} : memref<8x8x128xf32, #tpu.memory_space<vmem>>, vector<1x8x128xf32>,
    %c4_i32 = arith.constant 4 : i32
    %c1_i32_47 = arith.constant 1 : i32
    %180 = arith.subi %c1_i32_47, %arg0 : i32
    %181 = arith.muli %180, %c4_i32 : i32
    %c7_i32_48 = arith.constant 7 : i32
    %182 = arith.subi %c7_i32_48, %c4_i32 : i32
    %183 = arith.muli %arg0, %182 : i32
    %184 = arith.addi %181, %183 : i32
    %185 = arith.index_cast %184 : i32 to index
    %c0_49 = arith.constant 0 : index
    %c0_50 = arith.constant 0 : index
    %186 = vector.load %arg2[%185, %c0_49, %c0_50] : memref<8x8x384xbf16, #tpu.memory_space<vmem>>, vector<1x8x384xbf16>
    %187 = vector.shape_cast %186 : vector<1x8x384xbf16> to vector<8x384xbf16>
    %188 = arith.extf %187 : vector<8x384xbf16> to vector<8x384xf32>
    %189 = arith.truncf %175 : vector<8x128xf32> to vector<8x128xbf16>
    %cst_51 = arith.constant dense<0.000000e+00> : vector<8x384xf32>
    %190 = tpu.matmul %189, %4, %cst_51 {dimension_numbers = #tpu.dot_dimension_numbers<[1], [0], [0], [1], [0, 0, 1, 1], [], []>} : vector<8x128xbf16>, vector<128x384xbf16>, vector<8x384xf32> -> vector<8x384xf32>
    %191 = vector.broadcast %6 : vector<1x384xf32> to vector<8x384xf32>
    %192 = arith.addf %190, %191 : vector<8x384xf32>
    %193 = vector.extract_strided_slice %188 {offsets = [0, 0], sizes = [8, 128], strides = [1, 1]} : vector<8x384xf32> to vector<8x128xf32>
    %194 = vector.extract_strided_slice %192 {offsets = [0, 0], sizes = [8, 128], strides = [1, 1]} : vector<8x384xf32> to vector<8x128xf32>
    %195 = arith.addf %193, %194 : vector<8x128xf32>
    %196 = arith.negf %195 : vector<8x128xf32>
    %197 = math.exp %196 : vector<8x128xf32>
    %cst_52 = arith.constant 1.000000e+00 : f32
    %198 = vector.broadcast %cst_52 : f32 to vector<8x128xf32>
    %199 = arith.addf %198, %197 : vector<8x128xf32>
    %200 = arith.divf %198, %199 : vector<8x128xf32>
    %201 = vector.extract_strided_slice %188 {offsets = [0, 128], sizes = [8, 128], strides = [1, 1]} : vector<8x384xf32> to vector<8x128xf32>
    %202 = vector.extract_strided_slice %192 {offsets = [0, 128], sizes = [8, 128], strides = [1, 1]} : vector<8x384xf32> to vector<8x128xf32>
    %203 = arith.addf %201, %202 : vector<8x128xf32>
    %204 = arith.negf %203 : vector<8x128xf32>
    %205 = math.exp %204 : vector<8x128xf32>
    %cst_53 = arith.constant 1.000000e+00 : f32
    %206 = vector.broadcast %cst_53 : f32 to vector<8x128xf32>
    %207 = arith.addf %206, %205 : vector<8x128xf32>
    %208 = arith.divf %206, %207 : vector<8x128xf32>
    %209 = vector.extract_strided_slice %188 {offsets = [0, 256], sizes = [8, 128], strides = [1, 1]} : vector<8x384xf32> to vector<8x128xf32>
    %210 = vector.extract_strided_slice %192 {offsets = [0, 256], sizes = [8, 128], strides = [1, 1]} : vector<8x384xf32> to vector<8x128xf32>
    %211 = arith.mulf %200, %210 : vector<8x128xf32>
    %212 = arith.addf %209, %211 : vector<8x128xf32>
    %213 = math.tanh %212 : vector<8x128xf32>
    %cst_54 = arith.constant 1.000000e+00 : f32
    %214 = vector.broadcast %cst_54 : f32 to vector<8x128xf32>
    %215 = arith.subf %214, %208 : vector<8x128xf32>
    %216 = arith.mulf %215, %213 : vector<8x128xf32>
    %217 = arith.mulf %208, %175 : vector<8x128xf32>
    %218 = arith.addf %216, %217 : vector<8x128xf32>
    %219 = arith.index_cast %184 : i32 to index
    %c0_55 = arith.constant 0 : index
    %c0_56 = arith.constant 0 : index
    %220 = vector.load %arg5[%219, %c0_55, %c0_56] : memref<8x8x128xf32, #tpu.memory_space<vmem>>, vector<1x8x128xf32>
    %221 = vector.shape_cast %220 : vector<1x8x128xf32> to vector<8x128xf32>
    %222 = vector.shape_cast %218 : vector<8x128xf32> to vector<1x8x128xf32>
    tpu.vector_store %arg5[%219, %c0_55, %c0_56], %222 {strides = array<i32>} : memref<8x8x128xf32, #tpu.memory_space<vmem>>, vector<1x8x128xf32>,
    %c5_i32 = arith.constant 5 : i32
    %c1_i32_57 = arith.constant 1 : i32
    %223 = arith.subi %c1_i32_57, %arg0 : i32
    %224 = arith.muli %223, %c5_i32 : i32
    %c7_i32_58 = arith.constant 7 : i32
    %225 = arith.subi %c7_i32_58, %c5_i32 : i32
    %226 = arith.muli %arg0, %225 : i32
    %227 = arith.addi %224, %226 : i32
    %228 = arith.index_cast %227 : i32 to index
    %c0_59 = arith.constant 0 : index
    %c0_60 = arith.constant 0 : index
    %229 = vector.load %arg2[%228, %c0_59, %c0_60] : memref<8x8x384xbf16, #tpu.memory_space<vmem>>, vector<1x8x384xbf16>
    %230 = vector.shape_cast %229 : vector<1x8x384xbf16> to vector<8x384xbf16>
    %231 = arith.extf %230 : vector<8x384xbf16> to vector<8x384xf32>
    %232 = arith.truncf %218 : vector<8x128xf32> to vector<8x128xbf16>
    %cst_61 = arith.constant dense<0.000000e+00> : vector<8x384xf32>
    %233 = tpu.matmul %232, %4, %cst_61 {dimension_numbers = #tpu.dot_dimension_numbers<[1], [0], [0], [1], [0, 0, 1, 1], [], []>} : vector<8x128xbf16>, vector<128x384xbf16>, vector<8x384xf32> -> vector<8x384xf32>
    %234 = vector.broadcast %6 : vector<1x384xf32> to vector<8x384xf32>
    %235 = arith.addf %233, %234 : vector<8x384xf32>
    %236 = vector.extract_strided_slice %231 {offsets = [0, 0], sizes = [8, 128], strides = [1, 1]} : vector<8x384xf32> to vector<8x128xf32>
    %237 = vector.extract_strided_slice %235 {offsets = [0, 0], sizes = [8, 128], strides = [1, 1]} : vector<8x384xf32> to vector<8x128xf32>
    %238 = arith.addf %236, %237 : vector<8x128xf32>
    %239 = arith.negf %238 : vector<8x128xf32>
    %240 = math.exp %239 : vector<8x128xf32>
    %cst_62 = arith.constant 1.000000e+00 : f32
    %241 = vector.broadcast %cst_62 : f32 to vector<8x128xf32>
    %242 = arith.addf %241, %240 : vector<8x128xf32>
    %243 = arith.divf %241, %242 : vector<8x128xf32>
    %244 = vector.extract_strided_slice %231 {offsets = [0, 128], sizes = [8, 128], strides = [1, 1]} : vector<8x384xf32> to vector<8x128xf32>
    %245 = vector.extract_strided_slice %235 {offsets = [0, 128], sizes = [8, 128], strides = [1, 1]} : vector<8x384xf32> to vector<8x128xf32>
    %246 = arith.addf %244, %245 : vector<8x128xf32>
    %247 = arith.negf %246 : vector<8x128xf32>
    %248 = math.exp %247 : vector<8x128xf32>
    %cst_63 = arith.constant 1.000000e+00 : f32
    %249 = vector.broadcast %cst_63 : f32 to vector<8x128xf32>
    %250 = arith.addf %249, %248 : vector<8x128xf32>
    %251 = arith.divf %249, %250 : vector<8x128xf32>
    %252 = vector.extract_strided_slice %231 {offsets = [0, 256], sizes = [8, 128], strides = [1, 1]} : vector<8x384xf32> to vector<8x128xf32>
    %253 = vector.extract_strided_slice %235 {offsets = [0, 256], sizes = [8, 128], strides = [1, 1]} : vector<8x384xf32> to vector<8x128xf32>
    %254 = arith.mulf %243, %253 : vector<8x128xf32>
    %255 = arith.addf %252, %254 : vector<8x128xf32>
    %256 = math.tanh %255 : vector<8x128xf32>
    %cst_64 = arith.constant 1.000000e+00 : f32
    %257 = vector.broadcast %cst_64 : f32 to vector<8x128xf32>
    %258 = arith.subf %257, %251 : vector<8x128xf32>
    %259 = arith.mulf %258, %256 : vector<8x128xf32>
    %260 = arith.mulf %251, %218 : vector<8x128xf32>
    %261 = arith.addf %259, %260 : vector<8x128xf32>
    %262 = arith.index_cast %227 : i32 to index
    %c0_65 = arith.constant 0 : index
    %c0_66 = arith.constant 0 : index
    %263 = vector.load %arg5[%262, %c0_65, %c0_66] : memref<8x8x128xf32, #tpu.memory_space<vmem>>, vector<1x8x128xf32>
    %264 = vector.shape_cast %263 : vector<1x8x128xf32> to vector<8x128xf32>
    %265 = vector.shape_cast %261 : vector<8x128xf32> to vector<1x8x128xf32>
    tpu.vector_store %arg5[%262, %c0_65, %c0_66], %265 {strides = array<i32>} : memref<8x8x128xf32, #tpu.memory_space<vmem>>, vector<1x8x128xf32>,
    %c6_i32 = arith.constant 6 : i32
    %c1_i32_67 = arith.constant 1 : i32
    %266 = arith.subi %c1_i32_67, %arg0 : i32
    %267 = arith.muli %266, %c6_i32 : i32
    %c7_i32_68 = arith.constant 7 : i32
    %268 = arith.subi %c7_i32_68, %c6_i32 : i32
    %269 = arith.muli %arg0, %268 : i32
    %270 = arith.addi %267, %269 : i32
    %271 = arith.index_cast %270 : i32 to index
    %c0_69 = arith.constant 0 : index
    %c0_70 = arith.constant 0 : index
    %272 = vector.load %arg2[%271, %c0_69, %c0_70] : memref<8x8x384xbf16, #tpu.memory_space<vmem>>, vector<1x8x384xbf16>
    %273 = vector.shape_cast %272 : vector<1x8x384xbf16> to vector<8x384xbf16>
    %274 = arith.extf %273 : vector<8x384xbf16> to vector<8x384xf32>
    %275 = arith.truncf %261 : vector<8x128xf32> to vector<8x128xbf16>
    %cst_71 = arith.constant dense<0.000000e+00> : vector<8x384xf32>
    %276 = tpu.matmul %275, %4, %cst_71 {dimension_numbers = #tpu.dot_dimension_numbers<[1], [0], [0], [1], [0, 0, 1, 1], [], []>} : vector<8x128xbf16>, vector<128x384xbf16>, vector<8x384xf32> -> vector<8x384xf32>
    %277 = vector.broadcast %6 : vector<1x384xf32> to vector<8x384xf32>
    %278 = arith.addf %276, %277 : vector<8x384xf32>
    %279 = vector.extract_strided_slice %274 {offsets = [0, 0], sizes = [8, 128], strides = [1, 1]} : vector<8x384xf32> to vector<8x128xf32>
    %280 = vector.extract_strided_slice %278 {offsets = [0, 0], sizes = [8, 128], strides = [1, 1]} : vector<8x384xf32> to vector<8x128xf32>
    %281 = arith.addf %279, %280 : vector<8x128xf32>
    %282 = arith.negf %281 : vector<8x128xf32>
    %283 = math.exp %282 : vector<8x128xf32>
    %cst_72 = arith.constant 1.000000e+00 : f32
    %284 = vector.broadcast %cst_72 : f32 to vector<8x128xf32>
    %285 = arith.addf %284, %283 : vector<8x128xf32>
    %286 = arith.divf %284, %285 : vector<8x128xf32>
    %287 = vector.extract_strided_slice %274 {offsets = [0, 128], sizes = [8, 128], strides = [1, 1]} : vector<8x384xf32> to vector<8x128xf32>
    %288 = vector.extract_strided_slice %278 {offsets = [0, 128], sizes = [8, 128], strides = [1, 1]} : vector<8x384xf32> to vector<8x128xf32>
    %289 = arith.addf %287, %288 : vector<8x128xf32>
    %290 = arith.negf %289 : vector<8x128xf32>
    %291 = math.exp %290 : vector<8x128xf32>
    %cst_73 = arith.constant 1.000000e+00 : f32
    %292 = vector.broadcast %cst_73 : f32 to vector<8x128xf32>
    %293 = arith.addf %292, %291 : vector<8x128xf32>
    %294 = arith.divf %292, %293 : vector<8x128xf32>
    %295 = vector.extract_strided_slice %274 {offsets = [0, 256], sizes = [8, 128], strides = [1, 1]} : vector<8x384xf32> to vector<8x128xf32>
    %296 = vector.extract_strided_slice %278 {offsets = [0, 256], sizes = [8, 128], strides = [1, 1]} : vector<8x384xf32> to vector<8x128xf32>
    %297 = arith.mulf %286, %296 : vector<8x128xf32>
    %298 = arith.addf %295, %297 : vector<8x128xf32>
    %299 = math.tanh %298 : vector<8x128xf32>
    %cst_74 = arith.constant 1.000000e+00 : f32
    %300 = vector.broadcast %cst_74 : f32 to vector<8x128xf32>
    %301 = arith.subf %300, %294 : vector<8x128xf32>
    %302 = arith.mulf %301, %299 : vector<8x128xf32>
    %303 = arith.mulf %294, %261 : vector<8x128xf32>
    %304 = arith.addf %302, %303 : vector<8x128xf32>
    %305 = arith.index_cast %270 : i32 to index
    %c0_75 = arith.constant 0 : index
    %c0_76 = arith.constant 0 : index
    %306 = vector.load %arg5[%305, %c0_75, %c0_76] : memref<8x8x128xf32, #tpu.memory_space<vmem>>, vector<1x8x128xf32>
    %307 = vector.shape_cast %306 : vector<1x8x128xf32> to vector<8x128xf32>
    %308 = vector.shape_cast %304 : vector<8x128xf32> to vector<1x8x128xf32>
    tpu.vector_store %arg5[%305, %c0_75, %c0_76], %308 {strides = array<i32>} : memref<8x8x128xf32, #tpu.memory_space<vmem>>, vector<1x8x128xf32>,
    %c7_i32_77 = arith.constant 7 : i32
    %c1_i32_78 = arith.constant 1 : i32
    %309 = arith.subi %c1_i32_78, %arg0 : i32
    %310 = arith.muli %309, %c7_i32_77 : i32
    %c7_i32_79 = arith.constant 7 : i32
    %311 = arith.subi %c7_i32_79, %c7_i32_77 : i32
    %312 = arith.muli %arg0, %311 : i32
    %313 = arith.addi %310, %312 : i32
    %314 = arith.index_cast %313 : i32 to index
    %c0_80 = arith.constant 0 : index
    %c0_81 = arith.constant 0 : index
    %315 = vector.load %arg2[%314, %c0_80, %c0_81] : memref<8x8x384xbf16, #tpu.memory_space<vmem>>, vector<1x8x384xbf16>
    %316 = vector.shape_cast %315 : vector<1x8x384xbf16> to vector<8x384xbf16>
    %317 = arith.extf %316 : vector<8x384xbf16> to vector<8x384xf32>
    %318 = arith.truncf %304 : vector<8x128xf32> to vector<8x128xbf16>
    %cst_82 = arith.constant dense<0.000000e+00> : vector<8x384xf32>
    %319 = tpu.matmul %318, %4, %cst_82 {dimension_numbers = #tpu.dot_dimension_numbers<[1], [0], [0], [1], [0, 0, 1, 1], [], []>} : vector<8x128xbf16>, vector<128x384xbf16>, vector<8x384xf32> -> vector<8x384xf32>
    %320 = vector.broadcast %6 : vector<1x384xf32> to vector<8x384xf32>
    %321 = arith.addf %319, %320 : vector<8x384xf32>
    %322 = vector.extract_strided_slice %317 {offsets = [0, 0], sizes = [8, 128], strides = [1, 1]} : vector<8x384xf32> to vector<8x128xf32>
    %323 = vector.extract_strided_slice %321 {offsets = [0, 0], sizes = [8, 128], strides = [1, 1]} : vector<8x384xf32> to vector<8x128xf32>
    %324 = arith.addf %322, %323 : vector<8x128xf32>
    %325 = arith.negf %324 : vector<8x128xf32>
    %326 = math.exp %325 : vector<8x128xf32>
    %cst_83 = arith.constant 1.000000e+00 : f32
    %327 = vector.broadcast %cst_83 : f32 to vector<8x128xf32>
    %328 = arith.addf %327, %326 : vector<8x128xf32>
    %329 = arith.divf %327, %328 : vector<8x128xf32>
    %330 = vector.extract_strided_slice %317 {offsets = [0, 128], sizes = [8, 128], strides = [1, 1]} : vector<8x384xf32> to vector<8x128xf32>
    %331 = vector.extract_strided_slice %321 {offsets = [0, 128], sizes = [8, 128], strides = [1, 1]} : vector<8x384xf32> to vector<8x128xf32>
    %332 = arith.addf %330, %331 : vector<8x128xf32>
    %333 = arith.negf %332 : vector<8x128xf32>
    %334 = math.exp %333 : vector<8x128xf32>
    %cst_84 = arith.constant 1.000000e+00 : f32
    %335 = vector.broadcast %cst_84 : f32 to vector<8x128xf32>
    %336 = arith.addf %335, %334 : vector<8x128xf32>
    %337 = arith.divf %335, %336 : vector<8x128xf32>
    %338 = vector.extract_strided_slice %317 {offsets = [0, 256], sizes = [8, 128], strides = [1, 1]} : vector<8x384xf32> to vector<8x128xf32>
    %339 = vector.extract_strided_slice %321 {offsets = [0, 256], sizes = [8, 128], strides = [1, 1]} : vector<8x384xf32> to vector<8x128xf32>
    %340 = arith.mulf %329, %339 : vector<8x128xf32>
    %341 = arith.addf %338, %340 : vector<8x128xf32>
    %342 = math.tanh %341 : vector<8x128xf32>
    %cst_85 = arith.constant 1.000000e+00 : f32
    %343 = vector.broadcast %cst_85 : f32 to vector<8x128xf32>
    %344 = arith.subf %343, %337 : vector<8x128xf32>
    %345 = arith.mulf %344, %342 : vector<8x128xf32>
    %346 = arith.mulf %337, %304 : vector<8x128xf32>
    %347 = arith.addf %345, %346 : vector<8x128xf32>
    %348 = arith.index_cast %313 : i32 to index
    %c0_86 = arith.constant 0 : index
    %c0_87 = arith.constant 0 : index
    %349 = vector.load %arg5[%348, %c0_86, %c0_87] : memref<8x8x128xf32, #tpu.memory_space<vmem>>, vector<1x8x128xf32>
    %350 = vector.shape_cast %349 : vector<1x8x128xf32> to vector<8x128xf32>
    %351 = vector.shape_cast %347 : vector<8x128xf32> to vector<1x8x128xf32>
    tpu.vector_store %arg5[%348, %c0_86, %c0_87], %351 {strides = array<i32>} : memref<8x8x128xf32, #tpu.memory_space<vmem>>, vector<1x8x128xf32>,
    %c8_i32 = arith.constant 8 : i32
    %c0_88 = arith.constant 0 : index
    %c0_89 = arith.constant 0 : index
    %352 = vector.load %arg6[%c0_88, %c0_89] : memref<8x128xf32, #tpu.memory_space<vmem>>, vector<8x128xf32>
    tpu.vector_store %arg6[%c0_88, %c0_89], %347 {strides = array<i32>} : memref<8x128xf32, #tpu.memory_space<vmem>>, vector<8x128xf32>,
    return
  }
  func.func @transform_0(%arg0: i32, %arg1: i32) -> (i32, i32, i32) {
    %c1_i32 = arith.constant 1 : i32
    %0 = arith.subi %c1_i32, %arg0 : i32
    %1 = arith.muli %0, %arg1 : i32
    %c0_i32 = arith.constant 0 : i32
    %2 = arith.subi %c0_i32, %arg1 : i32
    %3 = arith.muli %arg0, %2 : i32
    %4 = arith.addi %1, %3 : i32
    %c0_i32_0 = arith.constant 0 : i32
    %c0_i32_1 = arith.constant 0 : i32
    return %4, %c0_i32_0, %arg0 : i32, i32, i32
  }
  func.func @transform_1(%arg0: i32, %arg1: i32) -> (i32, i32, i32) {
    %c0_i32 = arith.constant 0 : i32
    %c0_i32_0 = arith.constant 0 : i32
    %c0_i32_1 = arith.constant 0 : i32
    return %arg0, %c0_i32, %c0_i32_0 : i32, i32, i32
  }
  func.func @transform_2(%arg0: i32, %arg1: i32) -> (i32, i32, i32) {
    %c0_i32 = arith.constant 0 : i32
    %c0_i32_0 = arith.constant 0 : i32
    %c0_i32_1 = arith.constant 0 : i32
    return %arg0, %c0_i32, %c0_i32_0 : i32, i32, i32
  }
  func.func @transform_3(%arg0: i32, %arg1: i32) -> (i32, i32, i32) {
    %c1_i32 = arith.constant 1 : i32
    %0 = arith.subi %c1_i32, %arg0 : i32
    %1 = arith.muli %0, %arg1 : i32
    %c0_i32 = arith.constant 0 : i32
    %2 = arith.subi %c0_i32, %arg1 : i32
    %3 = arith.muli %arg0, %2 : i32
    %4 = arith.addi %1, %3 : i32
    %c0_i32_0 = arith.constant 0 : i32
    %c0_i32_1 = arith.constant 0 : i32
    return %4, %c0_i32_0, %arg0 : i32, i32, i32
  }
}

module attributes {stable_mosaic.version = 11 : i64} {
  func.func @_linear_kernel(%arg0: i32, %arg1: memref<64x256xf32, #tpu.memory_space<vmem>>, %arg2: memref<256x768xbf16, #tpu.memory_space<vmem>>, %arg3: memref<1x768xf32, #tpu.memory_space<vmem>>, %arg4: memref<64x768xbf16, #tpu.memory_space<vmem>>) attributes {dimension_semantics = [#tpu.dimension_semantics<parallel>], iteration_bounds = array<i64: 1>, scalar_prefetch = 0 : i64, scratch_operands = 0 : i64, tpu.core_type = #tpu.core_type<tc>, window_params = [{transform_indices = @transform_0, window_bounds = array<i64: 64, 256>}, {pipeline_mode = #tpu.pipeline_mode<synchronous>, transform_indices = @transform_1, window_bounds = array<i64: 256, 768>}, {pipeline_mode = #tpu.pipeline_mode<synchronous>, transform_indices = @transform_2, window_bounds = array<i64: 1, 768>}, {transform_indices = @transform_3, window_bounds = array<i64: 64, 768>}]} {
    %c0 = arith.constant 0 : index
    %c0_0 = arith.constant 0 : index
    %0 = vector.load %arg1[%c0, %c0_0] : memref<64x256xf32, #tpu.memory_space<vmem>>, vector<64x256xf32>
    %1 = arith.truncf %0 : vector<64x256xf32> to vector<64x256xbf16>
    %c0_1 = arith.constant 0 : index
    %c0_2 = arith.constant 0 : index
    %2 = vector.load %arg2[%c0_1, %c0_2] : memref<256x768xbf16, #tpu.memory_space<vmem>>, vector<256x768xbf16>
    %cst = arith.constant dense<0.000000e+00> : vector<64x768xf32>
    %3 = tpu.matmul %1, %2, %cst {dimension_numbers = #tpu.dot_dimension_numbers<[1], [0], [0], [1], [0, 0, 1, 1], [], []>} : vector<64x256xbf16>, vector<256x768xbf16>, vector<64x768xf32> -> vector<64x768xf32>
    %c0_3 = arith.constant 0 : index
    %c0_4 = arith.constant 0 : index
    %4 = vector.load %arg3[%c0_3, %c0_4] : memref<1x768xf32, #tpu.memory_space<vmem>>, vector<1x768xf32>
    %5 = vector.broadcast %4 : vector<1x768xf32> to vector<64x768xf32>
    %6 = arith.addf %3, %5 : vector<64x768xf32>
    %7 = arith.truncf %6 : vector<64x768xf32> to vector<64x768xbf16>
    %c0_5 = arith.constant 0 : index
    %c0_6 = arith.constant 0 : index
    %8 = vector.load %arg4[%c0_5, %c0_6] : memref<64x768xbf16, #tpu.memory_space<vmem>>, vector<64x768xbf16>
    tpu.vector_store %arg4[%c0_5, %c0_6], %7 {strides = array<i32>} : memref<64x768xbf16, #tpu.memory_space<vmem>>, vector<64x768xbf16>,
    return
  }
  func.func @transform_0(%arg0: i32) -> (i32, i32) {
    %c0_i32 = arith.constant 0 : i32
    %c0_i32_0 = arith.constant 0 : i32
    return %arg0, %c0_i32 : i32, i32
  }
  func.func @transform_1(%arg0: i32) -> (i32, i32) {
    %c0_i32 = arith.constant 0 : i32
    %c0_i32_0 = arith.constant 0 : i32
    %c0_i32_1 = arith.constant 0 : i32
    return %c0_i32, %c0_i32_0 : i32, i32
  }
  func.func @transform_2(%arg0: i32) -> (i32, i32) {
    %c0_i32 = arith.constant 0 : i32
    %c0_i32_0 = arith.constant 0 : i32
    %c0_i32_1 = arith.constant 0 : i32
    return %c0_i32, %c0_i32_0 : i32, i32
  }
  func.func @transform_3(%arg0: i32) -> (i32, i32) {
    %c0_i32 = arith.constant 0 : i32
    %c0_i32_0 = arith.constant 0 : i32
    return %arg0, %c0_i32 : i32, i32
  }
}

module attributes {stable_mosaic.version = 11 : i64} {
  func.func @_attn_block_kernel(%arg0: i32, %arg1: memref<1x3x8x8x32xbf16, #tpu.memory_space<vmem>>, %arg2: memref<1x8x256xf32, #tpu.memory_space<vmem>>, %arg3: memref<8x32x256xbf16, #tpu.memory_space<vmem>>, %arg4: memref<1x256xf32, #tpu.memory_space<vmem>>, %arg5: memref<1x256xf32, #tpu.memory_space<vmem>>, %arg6: memref<1x256xf32, #tpu.memory_space<vmem>>, %arg7: memref<1x8x256xf32, #tpu.memory_space<vmem>>) attributes {dimension_semantics = [#tpu.dimension_semantics<parallel>], iteration_bounds = array<i64: 8>, scalar_prefetch = 0 : i64, scratch_operands = 0 : i64, tpu.core_type = #tpu.core_type<tc>, window_params = [{transform_indices = @transform_0, window_bounds = array<i64: 1, 3, 8, 8, 32>}, {transform_indices = @transform_1, window_bounds = array<i64: 1, 8, 256>}, {pipeline_mode = #tpu.pipeline_mode<synchronous>, transform_indices = @transform_2, window_bounds = array<i64: 8, 32, 256>}, {pipeline_mode = #tpu.pipeline_mode<synchronous>, transform_indices = @transform_3, window_bounds = array<i64: 1, 256>}, {pipeline_mode = #tpu.pipeline_mode<synchronous>, transform_indices = @transform_4, window_bounds = array<i64: 1, 256>}, {pipeline_mode = #tpu.pipeline_mode<synchronous>, transform_indices = @transform_5, window_bounds = array<i64: 1, 256>}, {transform_indices = @transform_6, window_bounds = array<i64: 1, 8, 256>}]} {
    %c0 = arith.constant 0 : index
    %c0_0 = arith.constant 0 : index
    %c0_1 = arith.constant 0 : index
    %0 = vector.load %arg2[%c0, %c0_0, %c0_1] : memref<1x8x256xf32, #tpu.memory_space<vmem>>, vector<1x8x256xf32>
    %1 = vector.shape_cast %0 : vector<1x8x256xf32> to vector<8x256xf32>
    %c0_2 = arith.constant 0 : index
    %c0_3 = arith.constant 0 : index
    %c0_4 = arith.constant 0 : index
    %c0_5 = arith.constant 0 : index
    %c0_6 = arith.constant 0 : index
    %2 = vector.load %arg1[%c0_2, %c0_3, %c0_4, %c0_5, %c0_6] : memref<1x3x8x8x32xbf16, #tpu.memory_space<vmem>>, vector<1x1x1x8x32xbf16>
    %3 = vector.shape_cast %2 : vector<1x1x1x8x32xbf16> to vector<8x32xbf16>
    %c0_7 = arith.constant 0 : index
    %c1 = arith.constant 1 : index
    %c0_8 = arith.constant 0 : index
    %c0_9 = arith.constant 0 : index
    %c0_10 = arith.constant 0 : index
    %4 = vector.load %arg1[%c0_7, %c1, %c0_8, %c0_9, %c0_10] : memref<1x3x8x8x32xbf16, #tpu.memory_space<vmem>>, vector<1x1x1x8x32xbf16>
    %5 = vector.shape_cast %4 : vector<1x1x1x8x32xbf16> to vector<8x32xbf16>
    %c0_11 = arith.constant 0 : index
    %c2 = arith.constant 2 : index
    %c0_12 = arith.constant 0 : index
    %c0_13 = arith.constant 0 : index
    %c0_14 = arith.constant 0 : index
    %6 = vector.load %arg1[%c0_11, %c2, %c0_12, %c0_13, %c0_14] : memref<1x3x8x8x32xbf16, #tpu.memory_space<vmem>>, vector<1x1x1x8x32xbf16>
    %7 = vector.shape_cast %6 : vector<1x1x1x8x32xbf16> to vector<8x32xbf16>
    %cst = arith.constant dense<0.000000e+00> : vector<8x8xf32>
    %8 = tpu.matmul %3, %5, %cst {dimension_numbers = #tpu.dot_dimension_numbers<[1], [1], [0], [0], [0, 0, 1, 0], [], []>} : vector<8x32xbf16>, vector<8x32xbf16>, vector<8x8xf32> -> vector<8x8xf32>
    %cst_15 = arith.constant dense<0xFF800000> : vector<8xf32>
    %9 = vector.multi_reduction <maximumf>, %8, %cst_15 [1] : vector<8x8xf32> to vector<8xf32>
    %10 = vector.shape_cast %9 : vector<8xf32> to vector<8x1xf32>
    %11 = vector.broadcast %10 : vector<8x1xf32> to vector<8x8xf32>
    %12 = arith.subf %8, %11 : vector<8x8xf32>
    %13 = math.exp %12 : vector<8x8xf32>
    %cst_16 = arith.constant dense<0.000000e+00> : vector<8xf32>
    %14 = vector.multi_reduction <add>, %13, %cst_16 [1] : vector<8x8xf32> to vector<8xf32>
    %15 = vector.shape_cast %14 : vector<8xf32> to vector<8x1xf32>
    %16 = tpu.reciprocal %15 {approx = true} : vector<8x1xf32> -> vector<8x1xf32>
    %17 = vector.broadcast %16 : vector<8x1xf32> to vector<8x8xf32>
    %18 = arith.mulf %13, %17 : vector<8x8xf32>
    %19 = arith.truncf %18 : vector<8x8xf32> to vector<8x8xbf16>
    %cst_17 = arith.constant dense<0.000000e+00> : vector<8x32xf32>
    %20 = tpu.matmul %19, %7, %cst_17 {dimension_numbers = #tpu.dot_dimension_numbers<[1], [0], [0], [1], [0, 0, 1, 1], [], []>} : vector<8x8xbf16>, vector<8x32xbf16>, vector<8x32xf32> -> vector<8x32xf32>
    %21 = arith.truncf %20 : vector<8x32xf32> to vector<8x32xbf16>
    %c0_18 = arith.constant 0 : index
    %c0_19 = arith.constant 0 : index
    %c0_20 = arith.constant 0 : index
    %22 = vector.load %arg3[%c0_18, %c0_19, %c0_20] : memref<8x32x256xbf16, #tpu.memory_space<vmem>>, vector<1x32x256xbf16>
    %23 = vector.shape_cast %22 : vector<1x32x256xbf16> to vector<32x256xbf16>
    %cst_21 = arith.constant dense<0.000000e+00> : vector<8x256xf32>
    %24 = tpu.matmul %21, %23, %cst_21 {dimension_numbers = #tpu.dot_dimension_numbers<[1], [0], [0], [1], [0, 0, 1, 1], [], []>} : vector<8x32xbf16>, vector<32x256xbf16>, vector<8x256xf32> -> vector<8x256xf32>
    %c0_22 = arith.constant 0 : index
    %c0_23 = arith.constant 0 : index
    %c1_24 = arith.constant 1 : index
    %c0_25 = arith.constant 0 : index
    %c0_26 = arith.constant 0 : index
    %25 = vector.load %arg1[%c0_22, %c0_23, %c1_24, %c0_25, %c0_26] : memref<1x3x8x8x32xbf16, #tpu.memory_space<vmem>>, vector<1x1x1x8x32xbf16>
    %26 = vector.shape_cast %25 : vector<1x1x1x8x32xbf16> to vector<8x32xbf16>
    %c0_27 = arith.constant 0 : index
    %c1_28 = arith.constant 1 : index
    %c1_29 = arith.constant 1 : index
    %c0_30 = arith.constant 0 : index
    %c0_31 = arith.constant 0 : index
    %27 = vector.load %arg1[%c0_27, %c1_28, %c1_29, %c0_30, %c0_31] : memref<1x3x8x8x32xbf16, #tpu.memory_space<vmem>>, vector<1x1x1x8x32xbf16>
    %28 = vector.shape_cast %27 : vector<1x1x1x8x32xbf16> to vector<8x32xbf16>
    %c0_32 = arith.constant 0 : index
    %c2_33 = arith.constant 2 : index
    %c1_34 = arith.constant 1 : index
    %c0_35 = arith.constant 0 : index
    %c0_36 = arith.constant 0 : index
    %29 = vector.load %arg1[%c0_32, %c2_33, %c1_34, %c0_35, %c0_36] : memref<1x3x8x8x32xbf16, #tpu.memory_space<vmem>>, vector<1x1x1x8x32xbf16>
    %30 = vector.shape_cast %29 : vector<1x1x1x8x32xbf16> to vector<8x32xbf16>
    %cst_37 = arith.constant dense<0.000000e+00> : vector<8x8xf32>
    %31 = tpu.matmul %26, %28, %cst_37 {dimension_numbers = #tpu.dot_dimension_numbers<[1], [1], [0], [0], [0, 0, 1, 0], [], []>} : vector<8x32xbf16>, vector<8x32xbf16>, vector<8x8xf32> -> vector<8x8xf32>
    %cst_38 = arith.constant dense<0xFF800000> : vector<8xf32>
    %32 = vector.multi_reduction <maximumf>, %31, %cst_38 [1] : vector<8x8xf32> to vector<8xf32>
    %33 = vector.shape_cast %32 : vector<8xf32> to vector<8x1xf32>
    %34 = vector.broadcast %33 : vector<8x1xf32> to vector<8x8xf32>
    %35 = arith.subf %31, %34 : vector<8x8xf32>
    %36 = math.exp %35 : vector<8x8xf32>
    %cst_39 = arith.constant dense<0.000000e+00> : vector<8xf32>
    %37 = vector.multi_reduction <add>, %36, %cst_39 [1] : vector<8x8xf32> to vector<8xf32>
    %38 = vector.shape_cast %37 : vector<8xf32> to vector<8x1xf32>
    %39 = tpu.reciprocal %38 {approx = true} : vector<8x1xf32> -> vector<8x1xf32>
    %40 = vector.broadcast %39 : vector<8x1xf32> to vector<8x8xf32>
    %41 = arith.mulf %36, %40 : vector<8x8xf32>
    %42 = arith.truncf %41 : vector<8x8xf32> to vector<8x8xbf16>
    %cst_40 = arith.constant dense<0.000000e+00> : vector<8x32xf32>
    %43 = tpu.matmul %42, %30, %cst_40 {dimension_numbers = #tpu.dot_dimension_numbers<[1], [0], [0], [1], [0, 0, 1, 1], [], []>} : vector<8x8xbf16>, vector<8x32xbf16>, vector<8x32xf32> -> vector<8x32xf32>
    %44 = arith.truncf %43 : vector<8x32xf32> to vector<8x32xbf16>
    %c1_41 = arith.constant 1 : index
    %c0_42 = arith.constant 0 : index
    %c0_43 = arith.constant 0 : index
    %45 = vector.load %arg3[%c1_41, %c0_42, %c0_43] : memref<8x32x256xbf16, #tpu.memory_space<vmem>>, vector<1x32x256xbf16>
    %46 = vector.shape_cast %45 : vector<1x32x256xbf16> to vector<32x256xbf16>
    %cst_44 = arith.constant dense<0.000000e+00> : vector<8x256xf32>
    %47 = tpu.matmul %44, %46, %cst_44 {dimension_numbers = #tpu.dot_dimension_numbers<[1], [0], [0], [1], [0, 0, 1, 1], [], []>} : vector<8x32xbf16>, vector<32x256xbf16>, vector<8x256xf32> -> vector<8x256xf32>
    %48 = arith.addf %24, %47 : vector<8x256xf32>
    %c0_45 = arith.constant 0 : index
    %c0_46 = arith.constant 0 : index
    %c2_47 = arith.constant 2 : index
    %c0_48 = arith.constant 0 : index
    %c0_49 = arith.constant 0 : index
    %49 = vector.load %arg1[%c0_45, %c0_46, %c2_47, %c0_48, %c0_49] : memref<1x3x8x8x32xbf16, #tpu.memory_space<vmem>>, vector<1x1x1x8x32xbf16>
    %50 = vector.shape_cast %49 : vector<1x1x1x8x32xbf16> to vector<8x32xbf16>
    %c0_50 = arith.constant 0 : index
    %c1_51 = arith.constant 1 : index
    %c2_52 = arith.constant 2 : index
    %c0_53 = arith.constant 0 : index
    %c0_54 = arith.constant 0 : index
    %51 = vector.load %arg1[%c0_50, %c1_51, %c2_52, %c0_53, %c0_54] : memref<1x3x8x8x32xbf16, #tpu.memory_space<vmem>>, vector<1x1x1x8x32xbf16>
    %52 = vector.shape_cast %51 : vector<1x1x1x8x32xbf16> to vector<8x32xbf16>
    %c0_55 = arith.constant 0 : index
    %c2_56 = arith.constant 2 : index
    %c2_57 = arith.constant 2 : index
    %c0_58 = arith.constant 0 : index
    %c0_59 = arith.constant 0 : index
    %53 = vector.load %arg1[%c0_55, %c2_56, %c2_57, %c0_58, %c0_59] : memref<1x3x8x8x32xbf16, #tpu.memory_space<vmem>>, vector<1x1x1x8x32xbf16>
    %54 = vector.shape_cast %53 : vector<1x1x1x8x32xbf16> to vector<8x32xbf16>
    %cst_60 = arith.constant dense<0.000000e+00> : vector<8x8xf32>
    %55 = tpu.matmul %50, %52, %cst_60 {dimension_numbers = #tpu.dot_dimension_numbers<[1], [1], [0], [0], [0, 0, 1, 0], [], []>} : vector<8x32xbf16>, vector<8x32xbf16>, vector<8x8xf32> -> vector<8x8xf32>
    %cst_61 = arith.constant dense<0xFF800000> : vector<8xf32>
    %56 = vector.multi_reduction <maximumf>, %55, %cst_61 [1] : vector<8x8xf32> to vector<8xf32>
    %57 = vector.shape_cast %56 : vector<8xf32> to vector<8x1xf32>
    %58 = vector.broadcast %57 : vector<8x1xf32> to vector<8x8xf32>
    %59 = arith.subf %55, %58 : vector<8x8xf32>
    %60 = math.exp %59 : vector<8x8xf32>
    %cst_62 = arith.constant dense<0.000000e+00> : vector<8xf32>
    %61 = vector.multi_reduction <add>, %60, %cst_62 [1] : vector<8x8xf32> to vector<8xf32>
    %62 = vector.shape_cast %61 : vector<8xf32> to vector<8x1xf32>
    %63 = tpu.reciprocal %62 {approx = true} : vector<8x1xf32> -> vector<8x1xf32>
    %64 = vector.broadcast %63 : vector<8x1xf32> to vector<8x8xf32>
    %65 = arith.mulf %60, %64 : vector<8x8xf32>
    %66 = arith.truncf %65 : vector<8x8xf32> to vector<8x8xbf16>
    %cst_63 = arith.constant dense<0.000000e+00> : vector<8x32xf32>
    %67 = tpu.matmul %66, %54, %cst_63 {dimension_numbers = #tpu.dot_dimension_numbers<[1], [0], [0], [1], [0, 0, 1, 1], [], []>} : vector<8x8xbf16>, vector<8x32xbf16>, vector<8x32xf32> -> vector<8x32xf32>
    %68 = arith.truncf %67 : vector<8x32xf32> to vector<8x32xbf16>
    %c2_64 = arith.constant 2 : index
    %c0_65 = arith.constant 0 : index
    %c0_66 = arith.constant 0 : index
    %69 = vector.load %arg3[%c2_64, %c0_65, %c0_66] : memref<8x32x256xbf16, #tpu.memory_space<vmem>>, vector<1x32x256xbf16>
    %70 = vector.shape_cast %69 : vector<1x32x256xbf16> to vector<32x256xbf16>
    %cst_67 = arith.constant dense<0.000000e+00> : vector<8x256xf32>
    %71 = tpu.matmul %68, %70, %cst_67 {dimension_numbers = #tpu.dot_dimension_numbers<[1], [0], [0], [1], [0, 0, 1, 1], [], []>} : vector<8x32xbf16>, vector<32x256xbf16>, vector<8x256xf32> -> vector<8x256xf32>
    %72 = arith.addf %48, %71 : vector<8x256xf32>
    %c0_68 = arith.constant 0 : index
    %c0_69 = arith.constant 0 : index
    %c3 = arith.constant 3 : index
    %c0_70 = arith.constant 0 : index
    %c0_71 = arith.constant 0 : index
    %73 = vector.load %arg1[%c0_68, %c0_69, %c3, %c0_70, %c0_71] : memref<1x3x8x8x32xbf16, #tpu.memory_space<vmem>>, vector<1x1x1x8x32xbf16>
    %74 = vector.shape_cast %73 : vector<1x1x1x8x32xbf16> to vector<8x32xbf16>
    %c0_72 = arith.constant 0 : index
    %c1_73 = arith.constant 1 : index
    %c3_74 = arith.constant 3 : index
    %c0_75 = arith.constant 0 : index
    %c0_76 = arith.constant 0 : index
    %75 = vector.load %arg1[%c0_72, %c1_73, %c3_74, %c0_75, %c0_76] : memref<1x3x8x8x32xbf16, #tpu.memory_space<vmem>>, vector<1x1x1x8x32xbf16>
    %76 = vector.shape_cast %75 : vector<1x1x1x8x32xbf16> to vector<8x32xbf16>
    %c0_77 = arith.constant 0 : index
    %c2_78 = arith.constant 2 : index
    %c3_79 = arith.constant 3 : index
    %c0_80 = arith.constant 0 : index
    %c0_81 = arith.constant 0 : index
    %77 = vector.load %arg1[%c0_77, %c2_78, %c3_79, %c0_80, %c0_81] : memref<1x3x8x8x32xbf16, #tpu.memory_space<vmem>>, vector<1x1x1x8x32xbf16>
    %78 = vector.shape_cast %77 : vector<1x1x1x8x32xbf16> to vector<8x32xbf16>
    %cst_82 = arith.constant dense<0.000000e+00> : vector<8x8xf32>
    %79 = tpu.matmul %74, %76, %cst_82 {dimension_numbers = #tpu.dot_dimension_numbers<[1], [1], [0], [0], [0, 0, 1, 0], [], []>} : vector<8x32xbf16>, vector<8x32xbf16>, vector<8x8xf32> -> vector<8x8xf32>
    %cst_83 = arith.constant dense<0xFF800000> : vector<8xf32>
    %80 = vector.multi_reduction <maximumf>, %79, %cst_83 [1] : vector<8x8xf32> to vector<8xf32>
    %81 = vector.shape_cast %80 : vector<8xf32> to vector<8x1xf32>
    %82 = vector.broadcast %81 : vector<8x1xf32> to vector<8x8xf32>
    %83 = arith.subf %79, %82 : vector<8x8xf32>
    %84 = math.exp %83 : vector<8x8xf32>
    %cst_84 = arith.constant dense<0.000000e+00> : vector<8xf32>
    %85 = vector.multi_reduction <add>, %84, %cst_84 [1] : vector<8x8xf32> to vector<8xf32>
    %86 = vector.shape_cast %85 : vector<8xf32> to vector<8x1xf32>
    %87 = tpu.reciprocal %86 {approx = true} : vector<8x1xf32> -> vector<8x1xf32>
    %88 = vector.broadcast %87 : vector<8x1xf32> to vector<8x8xf32>
    %89 = arith.mulf %84, %88 : vector<8x8xf32>
    %90 = arith.truncf %89 : vector<8x8xf32> to vector<8x8xbf16>
    %cst_85 = arith.constant dense<0.000000e+00> : vector<8x32xf32>
    %91 = tpu.matmul %90, %78, %cst_85 {dimension_numbers = #tpu.dot_dimension_numbers<[1], [0], [0], [1], [0, 0, 1, 1], [], []>} : vector<8x8xbf16>, vector<8x32xbf16>, vector<8x32xf32> -> vector<8x32xf32>
    %92 = arith.truncf %91 : vector<8x32xf32> to vector<8x32xbf16>
    %c3_86 = arith.constant 3 : index
    %c0_87 = arith.constant 0 : index
    %c0_88 = arith.constant 0 : index
    %93 = vector.load %arg3[%c3_86, %c0_87, %c0_88] : memref<8x32x256xbf16, #tpu.memory_space<vmem>>, vector<1x32x256xbf16>
    %94 = vector.shape_cast %93 : vector<1x32x256xbf16> to vector<32x256xbf16>
    %cst_89 = arith.constant dense<0.000000e+00> : vector<8x256xf32>
    %95 = tpu.matmul %92, %94, %cst_89 {dimension_numbers = #tpu.dot_dimension_numbers<[1], [0], [0], [1], [0, 0, 1, 1], [], []>} : vector<8x32xbf16>, vector<32x256xbf16>, vector<8x256xf32> -> vector<8x256xf32>
    %96 = arith.addf %72, %95 : vector<8x256xf32>
    %c0_90 = arith.constant 0 : index
    %c0_91 = arith.constant 0 : index
    %c4 = arith.constant 4 : index
    %c0_92 = arith.constant 0 : index
    %c0_93 = arith.constant 0 : index
    %97 = vector.load %arg1[%c0_90, %c0_91, %c4, %c0_92, %c0_93] : memref<1x3x8x8x32xbf16, #tpu.memory_space<vmem>>, vector<1x1x1x8x32xbf16>
    %98 = vector.shape_cast %97 : vector<1x1x1x8x32xbf16> to vector<8x32xbf16>
    %c0_94 = arith.constant 0 : index
    %c1_95 = arith.constant 1 : index
    %c4_96 = arith.constant 4 : index
    %c0_97 = arith.constant 0 : index
    %c0_98 = arith.constant 0 : index
    %99 = vector.load %arg1[%c0_94, %c1_95, %c4_96, %c0_97, %c0_98] : memref<1x3x8x8x32xbf16, #tpu.memory_space<vmem>>, vector<1x1x1x8x32xbf16>
    %100 = vector.shape_cast %99 : vector<1x1x1x8x32xbf16> to vector<8x32xbf16>
    %c0_99 = arith.constant 0 : index
    %c2_100 = arith.constant 2 : index
    %c4_101 = arith.constant 4 : index
    %c0_102 = arith.constant 0 : index
    %c0_103 = arith.constant 0 : index
    %101 = vector.load %arg1[%c0_99, %c2_100, %c4_101, %c0_102, %c0_103] : memref<1x3x8x8x32xbf16, #tpu.memory_space<vmem>>, vector<1x1x1x8x32xbf16>
    %102 = vector.shape_cast %101 : vector<1x1x1x8x32xbf16> to vector<8x32xbf16>
    %cst_104 = arith.constant dense<0.000000e+00> : vector<8x8xf32>
    %103 = tpu.matmul %98, %100, %cst_104 {dimension_numbers = #tpu.dot_dimension_numbers<[1], [1], [0], [0], [0, 0, 1, 0], [], []>} : vector<8x32xbf16>, vector<8x32xbf16>, vector<8x8xf32> -> vector<8x8xf32>
    %cst_105 = arith.constant dense<0xFF800000> : vector<8xf32>
    %104 = vector.multi_reduction <maximumf>, %103, %cst_105 [1] : vector<8x8xf32> to vector<8xf32>
    %105 = vector.shape_cast %104 : vector<8xf32> to vector<8x1xf32>
    %106 = vector.broadcast %105 : vector<8x1xf32> to vector<8x8xf32>
    %107 = arith.subf %103, %106 : vector<8x8xf32>
    %108 = math.exp %107 : vector<8x8xf32>
    %cst_106 = arith.constant dense<0.000000e+00> : vector<8xf32>
    %109 = vector.multi_reduction <add>, %108, %cst_106 [1] : vector<8x8xf32> to vector<8xf32>
    %110 = vector.shape_cast %109 : vector<8xf32> to vector<8x1xf32>
    %111 = tpu.reciprocal %110 {approx = true} : vector<8x1xf32> -> vector<8x1xf32>
    %112 = vector.broadcast %111 : vector<8x1xf32> to vector<8x8xf32>
    %113 = arith.mulf %108, %112 : vector<8x8xf32>
    %114 = arith.truncf %113 : vector<8x8xf32> to vector<8x8xbf16>
    %cst_107 = arith.constant dense<0.000000e+00> : vector<8x32xf32>
    %115 = tpu.matmul %114, %102, %cst_107 {dimension_numbers = #tpu.dot_dimension_numbers<[1], [0], [0], [1], [0, 0, 1, 1], [], []>} : vector<8x8xbf16>, vector<8x32xbf16>, vector<8x32xf32> -> vector<8x32xf32>
    %116 = arith.truncf %115 : vector<8x32xf32> to vector<8x32xbf16>
    %c4_108 = arith.constant 4 : index
    %c0_109 = arith.constant 0 : index
    %c0_110 = arith.constant 0 : index
    %117 = vector.load %arg3[%c4_108, %c0_109, %c0_110] : memref<8x32x256xbf16, #tpu.memory_space<vmem>>, vector<1x32x256xbf16>
    %118 = vector.shape_cast %117 : vector<1x32x256xbf16> to vector<32x256xbf16>
    %cst_111 = arith.constant dense<0.000000e+00> : vector<8x256xf32>
    %119 = tpu.matmul %116, %118, %cst_111 {dimension_numbers = #tpu.dot_dimension_numbers<[1], [0], [0], [1], [0, 0, 1, 1], [], []>} : vector<8x32xbf16>, vector<32x256xbf16>, vector<8x256xf32> -> vector<8x256xf32>
    %120 = arith.addf %96, %119 : vector<8x256xf32>
    %c0_112 = arith.constant 0 : index
    %c0_113 = arith.constant 0 : index
    %c5 = arith.constant 5 : index
    %c0_114 = arith.constant 0 : index
    %c0_115 = arith.constant 0 : index
    %121 = vector.load %arg1[%c0_112, %c0_113, %c5, %c0_114, %c0_115] : memref<1x3x8x8x32xbf16, #tpu.memory_space<vmem>>, vector<1x1x1x8x32xbf16>
    %122 = vector.shape_cast %121 : vector<1x1x1x8x32xbf16> to vector<8x32xbf16>
    %c0_116 = arith.constant 0 : index
    %c1_117 = arith.constant 1 : index
    %c5_118 = arith.constant 5 : index
    %c0_119 = arith.constant 0 : index
    %c0_120 = arith.constant 0 : index
    %123 = vector.load %arg1[%c0_116, %c1_117, %c5_118, %c0_119, %c0_120] : memref<1x3x8x8x32xbf16, #tpu.memory_space<vmem>>, vector<1x1x1x8x32xbf16>
    %124 = vector.shape_cast %123 : vector<1x1x1x8x32xbf16> to vector<8x32xbf16>
    %c0_121 = arith.constant 0 : index
    %c2_122 = arith.constant 2 : index
    %c5_123 = arith.constant 5 : index
    %c0_124 = arith.constant 0 : index
    %c0_125 = arith.constant 0 : index
    %125 = vector.load %arg1[%c0_121, %c2_122, %c5_123, %c0_124, %c0_125] : memref<1x3x8x8x32xbf16, #tpu.memory_space<vmem>>, vector<1x1x1x8x32xbf16>
    %126 = vector.shape_cast %125 : vector<1x1x1x8x32xbf16> to vector<8x32xbf16>
    %cst_126 = arith.constant dense<0.000000e+00> : vector<8x8xf32>
    %127 = tpu.matmul %122, %124, %cst_126 {dimension_numbers = #tpu.dot_dimension_numbers<[1], [1], [0], [0], [0, 0, 1, 0], [], []>} : vector<8x32xbf16>, vector<8x32xbf16>, vector<8x8xf32> -> vector<8x8xf32>
    %cst_127 = arith.constant dense<0xFF800000> : vector<8xf32>
    %128 = vector.multi_reduction <maximumf>, %127, %cst_127 [1] : vector<8x8xf32> to vector<8xf32>
    %129 = vector.shape_cast %128 : vector<8xf32> to vector<8x1xf32>
    %130 = vector.broadcast %129 : vector<8x1xf32> to vector<8x8xf32>
    %131 = arith.subf %127, %130 : vector<8x8xf32>
    %132 = math.exp %131 : vector<8x8xf32>
    %cst_128 = arith.constant dense<0.000000e+00> : vector<8xf32>
    %133 = vector.multi_reduction <add>, %132, %cst_128 [1] : vector<8x8xf32> to vector<8xf32>
    %134 = vector.shape_cast %133 : vector<8xf32> to vector<8x1xf32>
    %135 = tpu.reciprocal %134 {approx = true} : vector<8x1xf32> -> vector<8x1xf32>
    %136 = vector.broadcast %135 : vector<8x1xf32> to vector<8x8xf32>
    %137 = arith.mulf %132, %136 : vector<8x8xf32>
    %138 = arith.truncf %137 : vector<8x8xf32> to vector<8x8xbf16>
    %cst_129 = arith.constant dense<0.000000e+00> : vector<8x32xf32>
    %139 = tpu.matmul %138, %126, %cst_129 {dimension_numbers = #tpu.dot_dimension_numbers<[1], [0], [0], [1], [0, 0, 1, 1], [], []>} : vector<8x8xbf16>, vector<8x32xbf16>, vector<8x32xf32> -> vector<8x32xf32>
    %140 = arith.truncf %139 : vector<8x32xf32> to vector<8x32xbf16>
    %c5_130 = arith.constant 5 : index
    %c0_131 = arith.constant 0 : index
    %c0_132 = arith.constant 0 : index
    %141 = vector.load %arg3[%c5_130, %c0_131, %c0_132] : memref<8x32x256xbf16, #tpu.memory_space<vmem>>, vector<1x32x256xbf16>
    %142 = vector.shape_cast %141 : vector<1x32x256xbf16> to vector<32x256xbf16>
    %cst_133 = arith.constant dense<0.000000e+00> : vector<8x256xf32>
    %143 = tpu.matmul %140, %142, %cst_133 {dimension_numbers = #tpu.dot_dimension_numbers<[1], [0], [0], [1], [0, 0, 1, 1], [], []>} : vector<8x32xbf16>, vector<32x256xbf16>, vector<8x256xf32> -> vector<8x256xf32>
    %144 = arith.addf %120, %143 : vector<8x256xf32>
    %c0_134 = arith.constant 0 : index
    %c0_135 = arith.constant 0 : index
    %c6 = arith.constant 6 : index
    %c0_136 = arith.constant 0 : index
    %c0_137 = arith.constant 0 : index
    %145 = vector.load %arg1[%c0_134, %c0_135, %c6, %c0_136, %c0_137] : memref<1x3x8x8x32xbf16, #tpu.memory_space<vmem>>, vector<1x1x1x8x32xbf16>
    %146 = vector.shape_cast %145 : vector<1x1x1x8x32xbf16> to vector<8x32xbf16>
    %c0_138 = arith.constant 0 : index
    %c1_139 = arith.constant 1 : index
    %c6_140 = arith.constant 6 : index
    %c0_141 = arith.constant 0 : index
    %c0_142 = arith.constant 0 : index
    %147 = vector.load %arg1[%c0_138, %c1_139, %c6_140, %c0_141, %c0_142] : memref<1x3x8x8x32xbf16, #tpu.memory_space<vmem>>, vector<1x1x1x8x32xbf16>
    %148 = vector.shape_cast %147 : vector<1x1x1x8x32xbf16> to vector<8x32xbf16>
    %c0_143 = arith.constant 0 : index
    %c2_144 = arith.constant 2 : index
    %c6_145 = arith.constant 6 : index
    %c0_146 = arith.constant 0 : index
    %c0_147 = arith.constant 0 : index
    %149 = vector.load %arg1[%c0_143, %c2_144, %c6_145, %c0_146, %c0_147] : memref<1x3x8x8x32xbf16, #tpu.memory_space<vmem>>, vector<1x1x1x8x32xbf16>
    %150 = vector.shape_cast %149 : vector<1x1x1x8x32xbf16> to vector<8x32xbf16>
    %cst_148 = arith.constant dense<0.000000e+00> : vector<8x8xf32>
    %151 = tpu.matmul %146, %148, %cst_148 {dimension_numbers = #tpu.dot_dimension_numbers<[1], [1], [0], [0], [0, 0, 1, 0], [], []>} : vector<8x32xbf16>, vector<8x32xbf16>, vector<8x8xf32> -> vector<8x8xf32>
    %cst_149 = arith.constant dense<0xFF800000> : vector<8xf32>
    %152 = vector.multi_reduction <maximumf>, %151, %cst_149 [1] : vector<8x8xf32> to vector<8xf32>
    %153 = vector.shape_cast %152 : vector<8xf32> to vector<8x1xf32>
    %154 = vector.broadcast %153 : vector<8x1xf32> to vector<8x8xf32>
    %155 = arith.subf %151, %154 : vector<8x8xf32>
    %156 = math.exp %155 : vector<8x8xf32>
    %cst_150 = arith.constant dense<0.000000e+00> : vector<8xf32>
    %157 = vector.multi_reduction <add>, %156, %cst_150 [1] : vector<8x8xf32> to vector<8xf32>
    %158 = vector.shape_cast %157 : vector<8xf32> to vector<8x1xf32>
    %159 = tpu.reciprocal %158 {approx = true} : vector<8x1xf32> -> vector<8x1xf32>
    %160 = vector.broadcast %159 : vector<8x1xf32> to vector<8x8xf32>
    %161 = arith.mulf %156, %160 : vector<8x8xf32>
    %162 = arith.truncf %161 : vector<8x8xf32> to vector<8x8xbf16>
    %cst_151 = arith.constant dense<0.000000e+00> : vector<8x32xf32>
    %163 = tpu.matmul %162, %150, %cst_151 {dimension_numbers = #tpu.dot_dimension_numbers<[1], [0], [0], [1], [0, 0, 1, 1], [], []>} : vector<8x8xbf16>, vector<8x32xbf16>, vector<8x32xf32> -> vector<8x32xf32>
    %164 = arith.truncf %163 : vector<8x32xf32> to vector<8x32xbf16>
    %c6_152 = arith.constant 6 : index
    %c0_153 = arith.constant 0 : index
    %c0_154 = arith.constant 0 : index
    %165 = vector.load %arg3[%c6_152, %c0_153, %c0_154] : memref<8x32x256xbf16, #tpu.memory_space<vmem>>, vector<1x32x256xbf16>
    %166 = vector.shape_cast %165 : vector<1x32x256xbf16> to vector<32x256xbf16>
    %cst_155 = arith.constant dense<0.000000e+00> : vector<8x256xf32>
    %167 = tpu.matmul %164, %166, %cst_155 {dimension_numbers = #tpu.dot_dimension_numbers<[1], [0], [0], [1], [0, 0, 1, 1], [], []>} : vector<8x32xbf16>, vector<32x256xbf16>, vector<8x256xf32> -> vector<8x256xf32>
    %168 = arith.addf %144, %167 : vector<8x256xf32>
    %c0_156 = arith.constant 0 : index
    %c0_157 = arith.constant 0 : index
    %c7 = arith.constant 7 : index
    %c0_158 = arith.constant 0 : index
    %c0_159 = arith.constant 0 : index
    %169 = vector.load %arg1[%c0_156, %c0_157, %c7, %c0_158, %c0_159] : memref<1x3x8x8x32xbf16, #tpu.memory_space<vmem>>, vector<1x1x1x8x32xbf16>
    %170 = vector.shape_cast %169 : vector<1x1x1x8x32xbf16> to vector<8x32xbf16>
    %c0_160 = arith.constant 0 : index
    %c1_161 = arith.constant 1 : index
    %c7_162 = arith.constant 7 : index
    %c0_163 = arith.constant 0 : index
    %c0_164 = arith.constant 0 : index
    %171 = vector.load %arg1[%c0_160, %c1_161, %c7_162, %c0_163, %c0_164] : memref<1x3x8x8x32xbf16, #tpu.memory_space<vmem>>, vector<1x1x1x8x32xbf16>
    %172 = vector.shape_cast %171 : vector<1x1x1x8x32xbf16> to vector<8x32xbf16>
    %c0_165 = arith.constant 0 : index
    %c2_166 = arith.constant 2 : index
    %c7_167 = arith.constant 7 : index
    %c0_168 = arith.constant 0 : index
    %c0_169 = arith.constant 0 : index
    %173 = vector.load %arg1[%c0_165, %c2_166, %c7_167, %c0_168, %c0_169] : memref<1x3x8x8x32xbf16, #tpu.memory_space<vmem>>, vector<1x1x1x8x32xbf16>
    %174 = vector.shape_cast %173 : vector<1x1x1x8x32xbf16> to vector<8x32xbf16>
    %cst_170 = arith.constant dense<0.000000e+00> : vector<8x8xf32>
    %175 = tpu.matmul %170, %172, %cst_170 {dimension_numbers = #tpu.dot_dimension_numbers<[1], [1], [0], [0], [0, 0, 1, 0], [], []>} : vector<8x32xbf16>, vector<8x32xbf16>, vector<8x8xf32> -> vector<8x8xf32>
    %cst_171 = arith.constant dense<0xFF800000> : vector<8xf32>
    %176 = vector.multi_reduction <maximumf>, %175, %cst_171 [1] : vector<8x8xf32> to vector<8xf32>
    %177 = vector.shape_cast %176 : vector<8xf32> to vector<8x1xf32>
    %178 = vector.broadcast %177 : vector<8x1xf32> to vector<8x8xf32>
    %179 = arith.subf %175, %178 : vector<8x8xf32>
    %180 = math.exp %179 : vector<8x8xf32>
    %cst_172 = arith.constant dense<0.000000e+00> : vector<8xf32>
    %181 = vector.multi_reduction <add>, %180, %cst_172 [1] : vector<8x8xf32> to vector<8xf32>
    %182 = vector.shape_cast %181 : vector<8xf32> to vector<8x1xf32>
    %183 = tpu.reciprocal %182 {approx = true} : vector<8x1xf32> -> vector<8x1xf32>
    %184 = vector.broadcast %183 : vector<8x1xf32> to vector<8x8xf32>
    %185 = arith.mulf %180, %184 : vector<8x8xf32>
    %186 = arith.truncf %185 : vector<8x8xf32> to vector<8x8xbf16>
    %cst_173 = arith.constant dense<0.000000e+00> : vector<8x32xf32>
    %187 = tpu.matmul %186, %174, %cst_173 {dimension_numbers = #tpu.dot_dimension_numbers<[1], [0], [0], [1], [0, 0, 1, 1], [], []>} : vector<8x8xbf16>, vector<8x32xbf16>, vector<8x32xf32> -> vector<8x32xf32>
    %188 = arith.truncf %187 : vector<8x32xf32> to vector<8x32xbf16>
    %c7_174 = arith.constant 7 : index
    %c0_175 = arith.constant 0 : index
    %c0_176 = arith.constant 0 : index
    %189 = vector.load %arg3[%c7_174, %c0_175, %c0_176] : memref<8x32x256xbf16, #tpu.memory_space<vmem>>, vector<1x32x256xbf16>
    %190 = vector.shape_cast %189 : vector<1x32x256xbf16> to vector<32x256xbf16>
    %cst_177 = arith.constant dense<0.000000e+00> : vector<8x256xf32>
    %191 = tpu.matmul %188, %190, %cst_177 {dimension_numbers = #tpu.dot_dimension_numbers<[1], [0], [0], [1], [0, 0, 1, 1], [], []>} : vector<8x32xbf16>, vector<32x256xbf16>, vector<8x256xf32> -> vector<8x256xf32>
    %192 = arith.addf %168, %191 : vector<8x256xf32>
    %c0_178 = arith.constant 0 : index
    %c0_179 = arith.constant 0 : index
    %193 = vector.load %arg4[%c0_178, %c0_179] : memref<1x256xf32, #tpu.memory_space<vmem>>, vector<1x256xf32>
    %194 = vector.broadcast %193 : vector<1x256xf32> to vector<8x256xf32>
    %195 = arith.addf %192, %194 : vector<8x256xf32>
    %196 = arith.addf %195, %1 : vector<8x256xf32>
    %cst_180 = arith.constant dense<0.000000e+00> : vector<8xf32>
    %197 = vector.multi_reduction <add>, %196, %cst_180 [1] : vector<8x256xf32> to vector<8xf32>
    %198 = vector.shape_cast %197 : vector<8xf32> to vector<8x1xf32>
    %cst_181 = arith.constant 2.560000e+02 : f32
    %199 = vector.broadcast %cst_181 : f32 to vector<8x1xf32>
    %200 = arith.divf %198, %199 : vector<8x1xf32>
    %201 = vector.broadcast %200 : vector<8x1xf32> to vector<8x256xf32>
    %202 = arith.subf %196, %201 : vector<8x256xf32>
    %203 = arith.mulf %202, %202 : vector<8x256xf32>
    %cst_182 = arith.constant dense<0.000000e+00> : vector<8xf32>
    %204 = vector.multi_reduction <add>, %203, %cst_182 [1] : vector<8x256xf32> to vector<8xf32>
    %205 = vector.shape_cast %204 : vector<8xf32> to vector<8x1xf32>
    %cst_183 = arith.constant 2.560000e+02 : f32
    %206 = vector.broadcast %cst_183 : f32 to vector<8x1xf32>
    %207 = arith.divf %205, %206 : vector<8x1xf32>
    %208 = vector.broadcast %200 : vector<8x1xf32> to vector<8x256xf32>
    %209 = arith.subf %196, %208 : vector<8x256xf32>
    %cst_184 = arith.constant 9.99999974E-6 : f32
    %210 = vector.broadcast %cst_184 : f32 to vector<8x1xf32>
    %211 = arith.addf %207, %210 : vector<8x1xf32>
    %212 = math.rsqrt %211 : vector<8x1xf32>
    %213 = vector.broadcast %212 : vector<8x1xf32> to vector<8x256xf32>
    %214 = arith.mulf %209, %213 : vector<8x256xf32>
    %c0_185 = arith.constant 0 : index
    %c0_186 = arith.constant 0 : index
    %215 = vector.load %arg5[%c0_185, %c0_186] : memref<1x256xf32, #tpu.memory_space<vmem>>, vector<1x256xf32>
    %216 = vector.broadcast %215 : vector<1x256xf32> to vector<8x256xf32>
    %217 = arith.mulf %214, %216 : vector<8x256xf32>
    %c0_187 = arith.constant 0 : index
    %c0_188 = arith.constant 0 : index
    %218 = vector.load %arg6[%c0_187, %c0_188] : memref<1x256xf32, #tpu.memory_space<vmem>>, vector<1x256xf32>
    %219 = vector.broadcast %218 : vector<1x256xf32> to vector<8x256xf32>
    %220 = arith.addf %217, %219 : vector<8x256xf32>
    %c0_189 = arith.constant 0 : index
    %c0_190 = arith.constant 0 : index
    %c0_191 = arith.constant 0 : index
    %221 = vector.load %arg7[%c0_189, %c0_190, %c0_191] : memref<1x8x256xf32, #tpu.memory_space<vmem>>, vector<1x8x256xf32>
    %222 = vector.shape_cast %221 : vector<1x8x256xf32> to vector<8x256xf32>
    %223 = vector.shape_cast %220 : vector<8x256xf32> to vector<1x8x256xf32>
    tpu.vector_store %arg7[%c0_189, %c0_190, %c0_191], %223 {strides = array<i32>} : memref<1x8x256xf32, #tpu.memory_space<vmem>>, vector<1x8x256xf32>,
    return
  }
  func.func @transform_0(%arg0: i32) -> (i32, i32, i32, i32, i32) {
    %c0_i32 = arith.constant 0 : i32
    %c0_i32_0 = arith.constant 0 : i32
    %c0_i32_1 = arith.constant 0 : i32
    %c0_i32_2 = arith.constant 0 : i32
    %c0_i32_3 = arith.constant 0 : i32
    return %arg0, %c0_i32, %c0_i32_0, %c0_i32_1, %c0_i32_2 : i32, i32, i32, i32, i32
  }
  func.func @transform_1(%arg0: i32) -> (i32, i32, i32) {
    %c0_i32 = arith.constant 0 : i32
    %c0_i32_0 = arith.constant 0 : i32
    %c0_i32_1 = arith.constant 0 : i32
    return %arg0, %c0_i32, %c0_i32_0 : i32, i32, i32
  }
  func.func @transform_2(%arg0: i32) -> (i32, i32, i32) {
    %c0_i32 = arith.constant 0 : i32
    %c0_i32_0 = arith.constant 0 : i32
    %c0_i32_1 = arith.constant 0 : i32
    %c0_i32_2 = arith.constant 0 : i32
    return %c0_i32, %c0_i32_0, %c0_i32_1 : i32, i32, i32
  }
  func.func @transform_3(%arg0: i32) -> (i32, i32) {
    %c0_i32 = arith.constant 0 : i32
    %c0_i32_0 = arith.constant 0 : i32
    %c0_i32_1 = arith.constant 0 : i32
    return %c0_i32, %c0_i32_0 : i32, i32
  }
  func.func @transform_4(%arg0: i32) -> (i32, i32) {
    %c0_i32 = arith.constant 0 : i32
    %c0_i32_0 = arith.constant 0 : i32
    %c0_i32_1 = arith.constant 0 : i32
    return %c0_i32, %c0_i32_0 : i32, i32
  }
  func.func @transform_5(%arg0: i32) -> (i32, i32) {
    %c0_i32 = arith.constant 0 : i32
    %c0_i32_0 = arith.constant 0 : i32
    %c0_i32_1 = arith.constant 0 : i32
    return %c0_i32, %c0_i32_0 : i32, i32
  }
  func.func @transform_6(%arg0: i32) -> (i32, i32, i32) {
    %c0_i32 = arith.constant 0 : i32
    %c0_i32_0 = arith.constant 0 : i32
    %c0_i32_1 = arith.constant 0 : i32
    return %arg0, %c0_i32, %c0_i32_0 : i32, i32, i32
  }
}

module attributes {stable_mosaic.version = 11 : i64} {
  func.func @_ffn_kernel(%arg0: i32, %arg1: memref<64x256xf32, #tpu.memory_space<vmem>>, %arg2: memref<256x2048xbf16, #tpu.memory_space<vmem>>, %arg3: memref<1x2048xf32, #tpu.memory_space<vmem>>, %arg4: memref<2048x256xbf16, #tpu.memory_space<vmem>>, %arg5: memref<1x256xf32, #tpu.memory_space<vmem>>, %arg6: memref<1x256xf32, #tpu.memory_space<vmem>>, %arg7: memref<1x256xf32, #tpu.memory_space<vmem>>, %arg8: memref<64x256xf32, #tpu.memory_space<vmem>>) attributes {dimension_semantics = [#tpu.dimension_semantics<parallel>], iteration_bounds = array<i64: 1>, scalar_prefetch = 0 : i64, scratch_operands = 0 : i64, tpu.core_type = #tpu.core_type<tc>, window_params = [{transform_indices = @transform_0, window_bounds = array<i64: 64, 256>}, {pipeline_mode = #tpu.pipeline_mode<synchronous>, transform_indices = @transform_1, window_bounds = array<i64: 256, 2048>}, {pipeline_mode = #tpu.pipeline_mode<synchronous>, transform_indices = @transform_2, window_bounds = array<i64: 1, 2048>}, {pipeline_mode = #tpu.pipeline_mode<synchronous>, transform_indices = @transform_3, window_bounds = array<i64: 2048, 256>}, {pipeline_mode = #tpu.pipeline_mode<synchronous>, transform_indices = @transform_4, window_bounds = array<i64: 1, 256>}, {pipeline_mode = #tpu.pipeline_mode<synchronous>, transform_indices = @transform_5, window_bounds = array<i64: 1, 256>}, {pipeline_mode = #tpu.pipeline_mode<synchronous>, transform_indices = @transform_6, window_bounds = array<i64: 1, 256>}, {transform_indices = @transform_7, window_bounds = array<i64: 64, 256>}]} {
    %c0 = arith.constant 0 : index
    %c0_0 = arith.constant 0 : index
    %0 = vector.load %arg1[%c0, %c0_0] : memref<64x256xf32, #tpu.memory_space<vmem>>, vector<64x256xf32>
    %1 = arith.truncf %0 : vector<64x256xf32> to vector<64x256xbf16>
    %c0_1 = arith.constant 0 : index
    %c0_2 = arith.constant 0 : index
    %2 = vector.load %arg2[%c0_1, %c0_2] : memref<256x2048xbf16, #tpu.memory_space<vmem>>, vector<256x2048xbf16>
    %cst = arith.constant dense<0.000000e+00> : vector<64x2048xf32>
    %3 = tpu.matmul %1, %2, %cst {dimension_numbers = #tpu.dot_dimension_numbers<[1], [0], [0], [1], [0, 0, 1, 1], [], []>} : vector<64x256xbf16>, vector<256x2048xbf16>, vector<64x2048xf32> -> vector<64x2048xf32>
    %c0_3 = arith.constant 0 : index
    %c0_4 = arith.constant 0 : index
    %4 = vector.load %arg3[%c0_3, %c0_4] : memref<1x2048xf32, #tpu.memory_space<vmem>>, vector<1x2048xf32>
    %5 = vector.broadcast %4 : vector<1x2048xf32> to vector<64x2048xf32>
    %6 = arith.addf %3, %5 : vector<64x2048xf32>
    %cst_5 = arith.constant 0.000000e+00 : f32
    %7 = vector.broadcast %cst_5 : f32 to vector<64x2048xf32>
    %8 = arith.maximumf %6, %7 : vector<64x2048xf32>
    %9 = arith.truncf %8 : vector<64x2048xf32> to vector<64x2048xbf16>
    %c0_6 = arith.constant 0 : index
    %c0_7 = arith.constant 0 : index
    %10 = vector.load %arg4[%c0_6, %c0_7] : memref<2048x256xbf16, #tpu.memory_space<vmem>>, vector<2048x256xbf16>
    %cst_8 = arith.constant dense<0.000000e+00> : vector<64x256xf32>
    %11 = tpu.matmul %9, %10, %cst_8 {dimension_numbers = #tpu.dot_dimension_numbers<[1], [0], [0], [1], [0, 0, 1, 1], [], []>} : vector<64x2048xbf16>, vector<2048x256xbf16>, vector<64x256xf32> -> vector<64x256xf32>
    %c0_9 = arith.constant 0 : index
    %c0_10 = arith.constant 0 : index
    %12 = vector.load %arg5[%c0_9, %c0_10] : memref<1x256xf32, #tpu.memory_space<vmem>>, vector<1x256xf32>
    %13 = vector.broadcast %12 : vector<1x256xf32> to vector<64x256xf32>
    %14 = arith.addf %11, %13 : vector<64x256xf32>
    %15 = arith.addf %14, %0 : vector<64x256xf32>
    %cst_11 = arith.constant dense<0.000000e+00> : vector<64xf32>
    %16 = vector.multi_reduction <add>, %15, %cst_11 [1] : vector<64x256xf32> to vector<64xf32>
    %17 = vector.shape_cast %16 : vector<64xf32> to vector<64x1xf32>
    %cst_12 = arith.constant 2.560000e+02 : f32
    %18 = vector.broadcast %cst_12 : f32 to vector<64x1xf32>
    %19 = arith.divf %17, %18 : vector<64x1xf32>
    %20 = vector.broadcast %19 : vector<64x1xf32> to vector<64x256xf32>
    %21 = arith.subf %15, %20 : vector<64x256xf32>
    %22 = arith.mulf %21, %21 : vector<64x256xf32>
    %cst_13 = arith.constant dense<0.000000e+00> : vector<64xf32>
    %23 = vector.multi_reduction <add>, %22, %cst_13 [1] : vector<64x256xf32> to vector<64xf32>
    %24 = vector.shape_cast %23 : vector<64xf32> to vector<64x1xf32>
    %cst_14 = arith.constant 2.560000e+02 : f32
    %25 = vector.broadcast %cst_14 : f32 to vector<64x1xf32>
    %26 = arith.divf %24, %25 : vector<64x1xf32>
    %27 = vector.broadcast %19 : vector<64x1xf32> to vector<64x256xf32>
    %28 = arith.subf %15, %27 : vector<64x256xf32>
    %cst_15 = arith.constant 9.99999974E-6 : f32
    %29 = vector.broadcast %cst_15 : f32 to vector<64x1xf32>
    %30 = arith.addf %26, %29 : vector<64x1xf32>
    %31 = math.rsqrt %30 : vector<64x1xf32>
    %32 = vector.broadcast %31 : vector<64x1xf32> to vector<64x256xf32>
    %33 = arith.mulf %28, %32 : vector<64x256xf32>
    %c0_16 = arith.constant 0 : index
    %c0_17 = arith.constant 0 : index
    %34 = vector.load %arg6[%c0_16, %c0_17] : memref<1x256xf32, #tpu.memory_space<vmem>>, vector<1x256xf32>
    %35 = vector.broadcast %34 : vector<1x256xf32> to vector<64x256xf32>
    %36 = arith.mulf %33, %35 : vector<64x256xf32>
    %c0_18 = arith.constant 0 : index
    %c0_19 = arith.constant 0 : index
    %37 = vector.load %arg7[%c0_18, %c0_19] : memref<1x256xf32, #tpu.memory_space<vmem>>, vector<1x256xf32>
    %38 = vector.broadcast %37 : vector<1x256xf32> to vector<64x256xf32>
    %39 = arith.addf %36, %38 : vector<64x256xf32>
    %c0_20 = arith.constant 0 : index
    %c0_21 = arith.constant 0 : index
    %40 = vector.load %arg8[%c0_20, %c0_21] : memref<64x256xf32, #tpu.memory_space<vmem>>, vector<64x256xf32>
    tpu.vector_store %arg8[%c0_20, %c0_21], %39 {strides = array<i32>} : memref<64x256xf32, #tpu.memory_space<vmem>>, vector<64x256xf32>,
    return
  }
  func.func @transform_0(%arg0: i32) -> (i32, i32) {
    %c0_i32 = arith.constant 0 : i32
    %c0_i32_0 = arith.constant 0 : i32
    return %arg0, %c0_i32 : i32, i32
  }
  func.func @transform_1(%arg0: i32) -> (i32, i32) {
    %c0_i32 = arith.constant 0 : i32
    %c0_i32_0 = arith.constant 0 : i32
    %c0_i32_1 = arith.constant 0 : i32
    return %c0_i32, %c0_i32_0 : i32, i32
  }
  func.func @transform_2(%arg0: i32) -> (i32, i32) {
    %c0_i32 = arith.constant 0 : i32
    %c0_i32_0 = arith.constant 0 : i32
    %c0_i32_1 = arith.constant 0 : i32
    return %c0_i32, %c0_i32_0 : i32, i32
  }
  func.func @transform_3(%arg0: i32) -> (i32, i32) {
    %c0_i32 = arith.constant 0 : i32
    %c0_i32_0 = arith.constant 0 : i32
    %c0_i32_1 = arith.constant 0 : i32
    return %c0_i32, %c0_i32_0 : i32, i32
  }
  func.func @transform_4(%arg0: i32) -> (i32, i32) {
    %c0_i32 = arith.constant 0 : i32
    %c0_i32_0 = arith.constant 0 : i32
    %c0_i32_1 = arith.constant 0 : i32
    return %c0_i32, %c0_i32_0 : i32, i32
  }
  func.func @transform_5(%arg0: i32) -> (i32, i32) {
    %c0_i32 = arith.constant 0 : i32
    %c0_i32_0 = arith.constant 0 : i32
    %c0_i32_1 = arith.constant 0 : i32
    return %c0_i32, %c0_i32_0 : i32, i32
  }
  func.func @transform_6(%arg0: i32) -> (i32, i32) {
    %c0_i32 = arith.constant 0 : i32
    %c0_i32_0 = arith.constant 0 : i32
    %c0_i32_1 = arith.constant 0 : i32
    return %c0_i32, %c0_i32_0 : i32, i32
  }
  func.func @transform_7(%arg0: i32) -> (i32, i32) {
    %c0_i32 = arith.constant 0 : i32
    %c0_i32_0 = arith.constant 0 : i32
    return %arg0, %c0_i32 : i32, i32
  }
}

module attributes {stable_mosaic.version = 11 : i64} {
  func.func @_pool_head_kernel(%arg0: i32, %arg1: memref<8x8x256xf32, #tpu.memory_space<vmem>>, %arg2: memref<256x256xbf16, #tpu.memory_space<vmem>>, %arg3: memref<1x256xf32, #tpu.memory_space<vmem>>, %arg4: memref<1x256xf32, #tpu.memory_space<vmem>>, %arg5: memref<1x1xf32, #tpu.memory_space<vmem>>, %arg6: memref<256x128xbf16, #tpu.memory_space<vmem>>, %arg7: memref<1x128xf32, #tpu.memory_space<vmem>>, %arg8: memref<1x128xf32, #tpu.memory_space<vmem>>, %arg9: memref<1x1xf32, #tpu.memory_space<vmem>>, %arg10: memref<8x1xf32, #tpu.memory_space<vmem>>) attributes {dimension_semantics = [#tpu.dimension_semantics<parallel>], iteration_bounds = array<i64: 1>, scalar_prefetch = 0 : i64, scratch_operands = 0 : i64, tpu.core_type = #tpu.core_type<tc>, window_params = [{transform_indices = @transform_0, window_bounds = array<i64: 8, 8, 256>}, {pipeline_mode = #tpu.pipeline_mode<synchronous>, transform_indices = @transform_1, window_bounds = array<i64: 256, 256>}, {pipeline_mode = #tpu.pipeline_mode<synchronous>, transform_indices = @transform_2, window_bounds = array<i64: 1, 256>}, {pipeline_mode = #tpu.pipeline_mode<synchronous>, transform_indices = @transform_3, window_bounds = array<i64: 1, 256>}, {pipeline_mode = #tpu.pipeline_mode<synchronous>, transform_indices = @transform_4, window_bounds = array<i64: 1, 1>}, {pipeline_mode = #tpu.pipeline_mode<synchronous>, transform_indices = @transform_5, window_bounds = array<i64: 256, 128>}, {pipeline_mode = #tpu.pipeline_mode<synchronous>, transform_indices = @transform_6, window_bounds = array<i64: 1, 128>}, {pipeline_mode = #tpu.pipeline_mode<synchronous>, transform_indices = @transform_7, window_bounds = array<i64: 1, 128>}, {pipeline_mode = #tpu.pipeline_mode<synchronous>, transform_indices = @transform_8, window_bounds = array<i64: 1, 1>}, {transform_indices = @transform_9, window_bounds = array<i64: 8, 1>}]} {
    %c0 = arith.constant 0 : index
    %c0_0 = arith.constant 0 : index
    %c0_1 = arith.constant 0 : index
    %0 = vector.load %arg1[%c0, %c0_0, %c0_1] : memref<8x8x256xf32, #tpu.memory_space<vmem>>, vector<8x8x256xf32>
    %1 = vector.shape_cast %0 : vector<8x8x256xf32> to vector<64x256xf32>
    %2 = arith.truncf %1 : vector<64x256xf32> to vector<64x256xbf16>
    %c0_2 = arith.constant 0 : index
    %c0_3 = arith.constant 0 : index
    %3 = vector.load %arg2[%c0_2, %c0_3] : memref<256x256xbf16, #tpu.memory_space<vmem>>, vector<256x256xbf16>
    %cst = arith.constant dense<0.000000e+00> : vector<64x256xf32>
    %4 = tpu.matmul %2, %3, %cst {dimension_numbers = #tpu.dot_dimension_numbers<[1], [0], [0], [1], [0, 0, 1, 1], [], []>} : vector<64x256xbf16>, vector<256x256xbf16>, vector<64x256xf32> -> vector<64x256xf32>
    %c0_4 = arith.constant 0 : index
    %c0_5 = arith.constant 0 : index
    %5 = vector.load %arg3[%c0_4, %c0_5] : memref<1x256xf32, #tpu.memory_space<vmem>>, vector<1x256xf32>
    %6 = vector.broadcast %5 : vector<1x256xf32> to vector<64x256xf32>
    %7 = arith.addf %4, %6 : vector<64x256xf32>
    %8 = math.tanh %7 : vector<64x256xf32>
    %9 = vector.shape_cast %8 : vector<64x256xf32> to vector<8x8x256xf32>
    %c0_6 = arith.constant 0 : index
    %c0_7 = arith.constant 0 : index
    %10 = vector.load %arg4[%c0_6, %c0_7] : memref<1x256xf32, #tpu.memory_space<vmem>>, vector<1x256xf32>
    %11 = vector.shape_cast %10 : vector<1x256xf32> to vector<1x1x256xf32>
    %12 = vector.broadcast %11 : vector<1x1x256xf32> to vector<8x8x256xf32>
    %13 = arith.mulf %9, %12 : vector<8x8x256xf32>
    %cst_8 = arith.constant dense<0.000000e+00> : vector<8x8xf32>
    %14 = vector.multi_reduction <add>, %13, %cst_8 [2] : vector<8x8x256xf32> to vector<8x8xf32>
    %15 = vector.shape_cast %14 : vector<8x8xf32> to vector<8x8x1xf32>
    %c0_9 = arith.constant 0 : index
    %c0_10 = arith.constant 0 : index
    %16 = vector.load %arg5[%c0_9, %c0_10] : memref<1x1xf32, #tpu.memory_space<vmem>>, vector<1x1xf32>
    %17 = vector.shape_cast %16 : vector<1x1xf32> to vector<1x1x1xf32>
    %18 = vector.broadcast %17 : vector<1x1x1xf32> to vector<8x8x1xf32>
    %19 = arith.addf %15, %18 : vector<8x8x1xf32>
    %cst_11 = arith.constant dense<0xFF800000> : vector<8x1xf32>
    %20 = vector.multi_reduction <maximumf>, %19, %cst_11 [1] : vector<8x8x1xf32> to vector<8x1xf32>
    %21 = vector.shape_cast %20 : vector<8x1xf32> to vector<8x1x1xf32>
    %22 = vector.broadcast %21 : vector<8x1x1xf32> to vector<8x8x1xf32>
    %23 = arith.subf %19, %22 : vector<8x8x1xf32>
    %24 = math.exp %23 : vector<8x8x1xf32>
    %cst_12 = arith.constant dense<0.000000e+00> : vector<8x1xf32>
    %25 = vector.multi_reduction <add>, %24, %cst_12 [1] : vector<8x8x1xf32> to vector<8x1xf32>
    %26 = vector.shape_cast %25 : vector<8x1xf32> to vector<8x1x1xf32>
    %27 = tpu.reciprocal %26 {approx = true} : vector<8x1x1xf32> -> vector<8x1x1xf32>
    %28 = vector.broadcast %27 : vector<8x1x1xf32> to vector<8x8x1xf32>
    %29 = arith.mulf %24, %28 : vector<8x8x1xf32>
    %30 = vector.broadcast %29 : vector<8x8x1xf32> to vector<8x8x256xf32>
    %31 = arith.mulf %0, %30 : vector<8x8x256xf32>
    %cst_13 = arith.constant dense<0.000000e+00> : vector<8x256xf32>
    %32 = vector.multi_reduction <add>, %31, %cst_13 [1] : vector<8x8x256xf32> to vector<8x256xf32>
    %33 = arith.truncf %32 : vector<8x256xf32> to vector<8x256xbf16>
    %c0_14 = arith.constant 0 : index
    %c0_15 = arith.constant 0 : index
    %34 = vector.load %arg6[%c0_14, %c0_15] : memref<256x128xbf16, #tpu.memory_space<vmem>>, vector<256x128xbf16>
    %cst_16 = arith.constant dense<0.000000e+00> : vector<8x128xf32>
    %35 = tpu.matmul %33, %34, %cst_16 {dimension_numbers = #tpu.dot_dimension_numbers<[1], [0], [0], [1], [0, 0, 1, 1], [], []>} : vector<8x256xbf16>, vector<256x128xbf16>, vector<8x128xf32> -> vector<8x128xf32>
    %c0_17 = arith.constant 0 : index
    %c0_18 = arith.constant 0 : index
    %36 = vector.load %arg7[%c0_17, %c0_18] : memref<1x128xf32, #tpu.memory_space<vmem>>, vector<1x128xf32>
    %37 = vector.broadcast %36 : vector<1x128xf32> to vector<8x128xf32>
    %38 = arith.addf %35, %37 : vector<8x128xf32>
    %cst_19 = arith.constant 0.000000e+00 : f32
    %39 = vector.broadcast %cst_19 : f32 to vector<8x128xf32>
    %40 = arith.maximumf %38, %39 : vector<8x128xf32>
    %c0_20 = arith.constant 0 : index
    %c0_21 = arith.constant 0 : index
    %41 = vector.load %arg8[%c0_20, %c0_21] : memref<1x128xf32, #tpu.memory_space<vmem>>, vector<1x128xf32>
    %42 = vector.broadcast %41 : vector<1x128xf32> to vector<8x128xf32>
    %43 = arith.mulf %40, %42 : vector<8x128xf32>
    %cst_22 = arith.constant dense<0.000000e+00> : vector<8xf32>
    %44 = vector.multi_reduction <add>, %43, %cst_22 [1] : vector<8x128xf32> to vector<8xf32>
    %45 = vector.shape_cast %44 : vector<8xf32> to vector<8x1xf32>
    %c0_23 = arith.constant 0 : index
    %c0_24 = arith.constant 0 : index
    %46 = vector.load %arg9[%c0_23, %c0_24] : memref<1x1xf32, #tpu.memory_space<vmem>>, vector<1x1xf32>
    %47 = vector.broadcast %46 : vector<1x1xf32> to vector<8x1xf32>
    %48 = arith.addf %45, %47 : vector<8x1xf32>
    %c0_25 = arith.constant 0 : index
    %c0_26 = arith.constant 0 : index
    %49 = vector.load %arg10[%c0_25, %c0_26] : memref<8x1xf32, #tpu.memory_space<vmem>>, vector<8x1xf32>
    tpu.vector_store %arg10[%c0_25, %c0_26], %48 {strides = array<i32>} : memref<8x1xf32, #tpu.memory_space<vmem>>, vector<8x1xf32>,
    return
  }
  func.func @transform_0(%arg0: i32) -> (i32, i32, i32) {
    %c0_i32 = arith.constant 0 : i32
    %c0_i32_0 = arith.constant 0 : i32
    %c0_i32_1 = arith.constant 0 : i32
    return %arg0, %c0_i32, %c0_i32_0 : i32, i32, i32
  }
  func.func @transform_1(%arg0: i32) -> (i32, i32) {
    %c0_i32 = arith.constant 0 : i32
    %c0_i32_0 = arith.constant 0 : i32
    %c0_i32_1 = arith.constant 0 : i32
    return %c0_i32, %c0_i32_0 : i32, i32
  }
  func.func @transform_2(%arg0: i32) -> (i32, i32) {
    %c0_i32 = arith.constant 0 : i32
    %c0_i32_0 = arith.constant 0 : i32
    %c0_i32_1 = arith.constant 0 : i32
    return %c0_i32, %c0_i32_0 : i32, i32
  }
  func.func @transform_3(%arg0: i32) -> (i32, i32) {
    %c0_i32 = arith.constant 0 : i32
    %c0_i32_0 = arith.constant 0 : i32
    %c0_i32_1 = arith.constant 0 : i32
    return %c0_i32, %c0_i32_0 : i32, i32
  }
  func.func @transform_4(%arg0: i32) -> (i32, i32) {
    %c0_i32 = arith.constant 0 : i32
    %c0_i32_0 = arith.constant 0 : i32
    %c0_i32_1 = arith.constant 0 : i32
    return %c0_i32, %c0_i32_0 : i32, i32
  }
  func.func @transform_5(%arg0: i32) -> (i32, i32) {
    %c0_i32 = arith.constant 0 : i32
    %c0_i32_0 = arith.constant 0 : i32
    %c0_i32_1 = arith.constant 0 : i32
    return %c0_i32, %c0_i32_0 : i32, i32
  }
  func.func @transform_6(%arg0: i32) -> (i32, i32) {
    %c0_i32 = arith.constant 0 : i32
    %c0_i32_0 = arith.constant 0 : i32
    %c0_i32_1 = arith.constant 0 : i32
    return %c0_i32, %c0_i32_0 : i32, i32
  }
  func.func @transform_7(%arg0: i32) -> (i32, i32) {
    %c0_i32 = arith.constant 0 : i32
    %c0_i32_0 = arith.constant 0 : i32
    %c0_i32_1 = arith.constant 0 : i32
    return %c0_i32, %c0_i32_0 : i32, i32
  }
  func.func @transform_8(%arg0: i32) -> (i32, i32) {
    %c0_i32 = arith.constant 0 : i32
    %c0_i32_0 = arith.constant 0 : i32
    %c0_i32_1 = arith.constant 0 : i32
    return %c0_i32, %c0_i32_0 : i32, i32
  }
  func.func @transform_9(%arg0: i32) -> (i32, i32) {
    %c0_i32 = arith.constant 0 : i32
    %c0_i32_0 = arith.constant 0 : i32
    return %arg0, %c0_i32 : i32, i32
  }
}

</mosaic_0001>

<llo_original>
// kernel: emodel_bigru_forward.11
$region0: #{emodel_bigru_forward.11}
  #allocation0 [shape = 'u32[]', space=smem, size = 0x4, offset = 0x4, fixed_abs, tag = 'smem constant byte address 0x4 - core index']
  #allocation1 [shape = 'u32[144,128]{1,0:T(1,128)}', space=vmem, size = 0x12000, scoped, tag = 'internal scratch']
  %s0 = inlined_call_operand.vmem [shape: f32[64,16], index: 0, kind: input, shape index: {}]
  %s1 = inlined_call_operand.vmem [shape: bf16[16,768], index: 1, kind: input, shape index: {}]
  %s2 = inlined_call_operand.vmem [shape: f32[1,768], index: 2, kind: input, shape index: {}]
  %s3 = inlined_call_operand.vmem [shape: bf16[64,768], index: 3, kind: output, shape index: {}]
  %s4 = sld [smem:[#allocation0]]
  $region22: #{emodel_bigru_forward.11} parent=0
    _
  %s6 = ssub.s32 1, %s4
  %s7 = scalar_select 0, %s6, %s4
  // Predicated region
  $region2: #{emodel_bigru_forward.11} parent=0 // pred_check
    _
  $region3: #{emodel_bigru_forward.11} parent=0 // pred_check_branch
    %9 = sbr.rel (0) target = $region5
  $region4: #{emodel_bigru_forward.11} parent=0 // pred_region
    _
  $region5: #{emodel_bigru_forward.11} parent=0 // pred_fallthru
    _
  // Predicated region
  $region6: #{emodel_bigru_forward.11} parent=0 // pred_check
    _
  $region7: #{emodel_bigru_forward.11} parent=0 // pred_check_branch
    %11 = sbr.rel (0) target = $region9
  $region8: #{emodel_bigru_forward.11} parent=0 // pred_region
    _
  $region9: #{emodel_bigru_forward.11} parent=0 // pred_fallthru
    _
  // Predicated region
  $region10: #{emodel_bigru_forward.11} parent=0 // pred_check
    _
  $region11: #{emodel_bigru_forward.11} parent=0 // pred_check_branch
    %13 = sbr.rel (0) target = $region13
  $region12: #{emodel_bigru_forward.11} parent=0 // pred_region
    _
  $region13: #{emodel_bigru_forward.11} parent=0 // pred_fallthru
    _
  %v15 = vld [vmem:[%s0] sm:$0xff]
  %v16 = vld [vmem:[%s0 + $0x8] sm:$0xff]
  %v17 = vld [vmem:[%s0 + $0x10] sm:$0xff]
  %v18 = vld [vmem:[%s0 + $0x18] sm:$0xff]
  %v19 = vld [vmem:[%s0 + $0x20] sm:$0xff]
  %v20 = vld [vmem:[%s0 + $0x28] sm:$0xff]
  %v21 = vld [vmem:[%s0 + $0x30] sm:$0xff]
  %v22 = vld [vmem:[%s0 + $0x38] sm:$0xff]
  %v23 = vpack.c.bf16 %v16, %v15
  %v24 = vpack.c.bf16 %v18, %v17
  %v25 = vpack.c.bf16 %v20, %v19
  %v26 = vpack.c.bf16 %v22, %v21
  %v27 = vld [vmem:[%s1] sm:$0xff]
  %v28 = vld [vmem:[%s1 + $0x8] sm:$0xff]
  %v29 = vld [vmem:[%s1 + $0x10] sm:$0xff]
  %v30 = vld [vmem:[%s1 + $0x18] sm:$0xff]
  %v31 = vld [vmem:[%s1 + $0x20] sm:$0xff]
  %v32 = vld [vmem:[%s1 + $0x28] sm:$0xff]
  %v33 = vld [vmem:[%s2] sm:$0x3f]
  %v35 = vlaneseq
  %v36 = vshrl.u32 %v35, 7
  %v37 = vsub.s32 0, %v36
  %v38 = vrot.slane %v33, %v37
  %v39 = vlaneseq
  %v40 = vshrl.u32 %v39, 7
  %v41 = vsub.s32 1, %v40
  %v42 = vrot.slane %v33, %v41
  %v43 = vlaneseq
  %v44 = vshrl.u32 %v43, 7
  %v45 = vsub.s32 2, %v44
  %v46 = vrot.slane %v33, %v45
  %v47 = vlaneseq
  %v48 = vshrl.u32 %v47, 7
  %v49 = vsub.s32 3, %v48
  %v50 = vrot.slane %v33, %v49
  %v51 = vlaneseq
  %v52 = vshrl.u32 %v51, 7
  %v53 = vsub.s32 4, %v52
  %v54 = vrot.slane %v33, %v53
  %v55 = vlaneseq
  %v56 = vshrl.u32 %v55, 7
  %v57 = vsub.s32 5, %v56
  %v58 = vrot.slane %v33, %v57
  %v71 = vunpack.c.l.b16 %v27
  %v72 = vunpack.c.h.b16 %v27
  %v73 = vunpack.c.l.b16 %v28
  %v74 = vunpack.c.h.b16 %v28
  %v75 = vunpack.c.l.b16 %v29
  %v76 = vunpack.c.h.b16 %v29
  %v77 = vunpack.c.l.b16 %v30
  %v78 = vunpack.c.h.b16 %v30
  %v79 = vunpack.c.l.b16 %v31
  %v80 = vunpack.c.h.b16 %v31
  %v81 = vunpack.c.l.b16 %v32
  %v82 = vunpack.c.h.b16 %v32
  %v83 = vpack.c.b16 %v77, %v71
  %v84 = vpack.c.b16 %v78, %v72
  %v85 = vpack.c.b16 %v79, %v73
  %v86 = vpack.c.b16 %v80, %v74
  %v87 = vpack.c.b16 %v81, %v75
  %v88 = vpack.c.b16 %v82, %v76
  %vm95 = vcmask 130048
  %v97 = vsel %vm95, %v23, 0
  %v100 = vsel %vm95, %v24, 0
  %v103 = vsel %vm95, %v25, 0
  %v106 = vsel %vm95, %v26, 0
  %108 = vmatprep.subr.bf16.mxu0 %v84
  %109 = vmatpush1.bf16.msra.mxu0 %v83
  %110 = vmatprep.subr.bf16.mxu0 0
  %111 = vmatpush1.bf16.msra.mxu0 0
  %112 = vmatprep.subr.bf16.mxu0 0
  %113 = vmatpush1.bf16.msra.mxu0 0
  %114 = vmatprep.subr.bf16.mxu0 0
  %115 = vmatpush1.bf16.msra.mxu0 0
  %116 = vmatprep.subr.bf16.mxu0 0
  %117 = vmatpush1.bf16.msra.mxu0 0
  %118 = vmatprep.subr.bf16.mxu0 0
  %119 = vmatpush1.bf16.msra.mxu0 0
  %120 = vmatprep.subr.bf16.mxu0 0
  %121 = vmatpush1.bf16.msra.mxu0 0
  %122 = vmatprep.subr.bf16.mxu0 0
  %123 = vmatpush1.bf16.msra.mxu0 0
  %124 = vmatprep.subr.bf16.mxu0 0
  %125 = vmatpush1.bf16.msra.mxu0 0
  %126 = vmatprep.subr.bf16.mxu0 0
  %127 = vmatpush1.bf16.msra.mxu0 0
  %128 = vmatprep.subr.bf16.mxu0 0
  %129 = vmatpush1.bf16.msra.mxu0 0
  %130 = vmatprep.subr.bf16.mxu0 0
  %131 = vmatpush1.bf16.msra.mxu0 0
  %132 = vmatprep.subr.bf16.mxu0 0
  %133 = vmatpush1.bf16.msra.mxu0 0
  %134 = vmatprep.subr.bf16.mxu0 0
  %135 = vmatpush1.bf16.msra.mxu0 0
  %136 = vmatprep.subr.bf16.mxu0 0
  %137 = vmatpush1.bf16.msra.mxu0 0
  %138 = vmatprep.subr.bf16.mxu0 0
  %139 = vmatpush1.bf16.msra.mxu0 0
  %140 = vmatprep.mubr.bf16.mxu0 0
  %141 = vmatmul.mubr.bf16.gmra.mrb[0].mxu0 %v97
  %v142 = vpop.f32.mrb[0].mxu0
  %v143 = vadd.f32 %v38, %v142
  %v144 = vpop.f32.mrb[0].mxu0
  %v145 = vadd.f32 %v42, %v144
  %v146 = vpop.f32.mrb[0].mxu0
  %v147 = vadd.f32 %v38, %v146
  %v148 = vpop.f32.mrb[0].mxu0
  %v149 = vadd.f32 %v42, %v148
  %150 = vmatprep.mubr.bf16.mxu0 0
  %151 = vmatmul.mubr.bf16.gmra.mrb[0].mxu0 %v100
  %v152 = vpop.f32.mrb[0].mxu0
  %v153 = vadd.f32 %v38, %v152
  %v154 = vpop.f32.mrb[0].mxu0
  %v155 = vadd.f32 %v42, %v154
  %v156 = vpop.f32.mrb[0].mxu0
  %v157 = vadd.f32 %v38, %v156
  %v158 = vpop.f32.mrb[0].mxu0
  %v159 = vadd.f32 %v42, %v158
  %160 = vmatprep.mubr.bf16.mxu0 0
  %161 = vmatmul.mubr.bf16.gmra.mrb[0].mxu0 %v103
  %v162 = vpop.f32.mrb[0].mxu0
  %v163 = vadd.f32 %v38, %v162
  %v164 = vpop.f32.mrb[0].mxu0
  %v165 = vadd.f32 %v42, %v164
  %v166 = vpop.f32.mrb[0].mxu0
  %v167 = vadd.f32 %v38, %v166
  %v168 = vpop.f32.mrb[0].mxu0
  %v169 = vadd.f32 %v42, %v168
  %170 = vmatprep.mubr.bf16.mxu0 0
  %171 = vmatmul.mubr.bf16.gmra.mrb[0].mxu0 %v106
  %v172 = vpop.f32.mrb[0].mxu0
  %v173 = vadd.f32 %v38, %v172
  %v174 = vpop.f32.mrb[0].mxu0
  %v175 = vadd.f32 %v42, %v174
  %v176 = vpop.f32.mrb[0].mxu0
  %v177 = vadd.f32 %v38, %v176
  %v178 = vpop.f32.mrb[0].mxu0
  %v179 = vadd.f32 %v42, %v178
  %180 = vdwg.mxu0
  %181 = vmatprep.subr.bf16.mxu0 %v86
  %182 = vmatpush1.bf16.msra.mxu0 %v85
  %183 = vmatprep.subr.bf16.mxu0 0
  %184 = vmatpush1.bf16.msra.mxu0 0
  %185 = vmatprep.subr.bf16.mxu0 0
  %186 = vmatpush1.bf16.msra.mxu0 0
  %187 = vmatprep.subr.bf16.mxu0 0
  %188 = vmatpush1.bf16.msra.mxu0 0
  %189 = vmatprep.subr.bf16.mxu0 0
  %190 = vmatpush1.bf16.msra.mxu0 0
  %191 = vmatprep.subr.bf16.mxu0 0
  %192 = vmatpush1.bf16.msra.mxu0 0
  %193 = vmatprep.subr.bf16.mxu0 0
  %194 = vmatpush1.bf16.msra.mxu0 0
  %195 = vmatprep.subr.bf16.mxu0 0
  %196 = vmatpush1.bf16.msra.mxu0 0
  %197 = vmatprep.subr.bf16.mxu0 0
  %198 = vmatpush1.bf16.msra.mxu0 0
  %199 = vmatprep.subr.bf16.mxu0 0
  %200 = vmatpush1.bf16.msra.mxu0 0
  %201 = vmatprep.subr.bf16.mxu0 0
  %202 = vmatpush1.bf16.msra.mxu0 0
  %203 = vmatprep.subr.bf16.mxu0 0
  %204 = vmatpush1.bf16.msra.mxu0 0
  %205 = vmatprep.subr.bf16.mxu0 0
  %206 = vmatpush1.bf16.msra.mxu0 0
  %207 = vmatprep.subr.bf16.mxu0 0
  %208 = vmatpush1.bf16.msra.mxu0 0
  %209 = vmatprep.subr.bf16.mxu0 0
  %210 = vmatpush1.bf16.msra.mxu0 0
  %211 = vmatprep.subr.bf16.mxu0 0
  %212 = vmatpush1.bf16.msra.mxu0 0
  %213 = vmatprep.mubr.bf16.mxu0 0
  %214 = vmatmul.mubr.bf16.gmra.mrb[0].mxu0 %v97
  %v215 = vpop.f32.mrb[0].mxu0
  %v216 = vadd.f32 %v46, %v215
  %v217 = vpop.f32.mrb[0].mxu0
  %v218 = vadd.f32 %v50, %v217
  %v219 = vpop.f32.mrb[0].mxu0
  %v220 = vadd.f32 %v46, %v219
  %v221 = vpop.f32.mrb[0].mxu0
  %v222 = vadd.f32 %v50, %v221
  %223 = vmatprep.mubr.bf16.mxu0 0
  %224 = vmatmul.mubr.bf16.gmra.mrb[0].mxu0 %v100
  %v225 = vpop.f32.mrb[0].mxu0
  %v226 = vadd.f32 %v46, %v225
  %v227 = vpop.f32.mrb[0].mxu0
  %v228 = vadd.f32 %v50, %v227
  %v229 = vpop.f32.mrb[0].mxu0
  %v230 = vadd.f32 %v46, %v229
  %v231 = vpop.f32.mrb[0].mxu0
  %v232 = vadd.f32 %v50, %v231
  %233 = vmatprep.mubr.bf16.mxu0 0
  %234 = vmatmul.mubr.bf16.gmra.mrb[0].mxu0 %v103
  %v235 = vpop.f32.mrb[0].mxu0
  %v236 = vadd.f32 %v46, %v235
  %v237 = vpop.f32.mrb[0].mxu0
  %v238 = vadd.f32 %v50, %v237
  %v239 = vpop.f32.mrb[0].mxu0
  %v240 = vadd.f32 %v46, %v239
  %v241 = vpop.f32.mrb[0].mxu0
  %v242 = vadd.f32 %v50, %v241
  %243 = vmatprep.mubr.bf16.mxu0 0
  %244 = vmatmul.mubr.bf16.gmra.mrb[0].mxu0 %v106
  %v245 = vpop.f32.mrb[0].mxu0
  %v246 = vadd.f32 %v46, %v245
  %v247 = vpop.f32.mrb[0].mxu0
  %v248 = vadd.f32 %v50, %v247
  %v249 = vpop.f32.mrb[0].mxu0
  %v250 = vadd.f32 %v46, %v249
  %v251 = vpop.f32.mrb[0].mxu0
  %v252 = vadd.f32 %v50, %v251
  %253 = vdwg.mxu0
  %254 = vmatprep.subr.bf16.mxu0 %v88
  %255 = vmatpush1.bf16.msra.mxu0 %v87
  %256 = vmatprep.subr.bf16.mxu0 0
  %257 = vmatpush1.bf16.msra.mxu0 0
  %258 = vmatprep.subr.bf16.mxu0 0
  %259 = vmatpush1.bf16.msra.mxu0 0
  %260 = vmatprep.subr.bf16.mxu0 0
  %261 = vmatpush1.bf16.msra.mxu0 0
  %262 = vmatprep.subr.bf16.mxu0 0
  %263 = vmatpush1.bf16.msra.mxu0 0
  %264 = vmatprep.subr.bf16.mxu0 0
  %265 = vmatpush1.bf16.msra.mxu0 0
  %266 = vmatprep.subr.bf16.mxu0 0
  %267 = vmatpush1.bf16.msra.mxu0 0
  %268 = vmatprep.subr.bf16.mxu0 0
  %269 = vmatpush1.bf16.msra.mxu0 0
  %270 = vmatprep.subr.bf16.mxu0 0
  %271 = vmatpush1.bf16.msra.mxu0 0
  %272 = vmatprep.subr.bf16.mxu0 0
  %273 = vmatpush1.bf16.msra.mxu0 0
  %274 = vmatprep.subr.bf16.mxu0 0
  %275 = vmatpush1.bf16.msra.mxu0 0
  %276 = vmatprep.subr.bf16.mxu0 0
  %277 = vmatpush1.bf16.msra.mxu0 0
  %278 = vmatprep.subr.bf16.mxu0 0
  %279 = vmatpush1.bf16.msra.mxu0 0
  %280 = vmatprep.subr.bf16.mxu0 0
  %281 = vmatpush1.bf16.msra.mxu0 0
  %282 = vmatprep.subr.bf16.mxu0 0
  %283 = vmatpush1.bf16.msra.mxu0 0
  %284 = vmatprep.subr.bf16.mxu0 0
  %285 = vmatpush1.bf16.msra.mxu0 0
  %286 = vmatprep.mubr.bf16.mxu0 0
  %287 = vmatmul.mubr.bf16.gmra.mrb[0].mxu0 %v97
  %v288 = vpop.f32.mrb[0].mxu0
  %v289 = vadd.f32 %v54, %v288
  %v290 = vpop.f32.mrb[0].mxu0
  %v291 = vadd.f32 %v58, %v290
  %v292 = vpop.f32.mrb[0].mxu0
  %v293 = vadd.f32 %v54, %v292
  %v294 = vpop.f32.mrb[0].mxu0
  %v295 = vadd.f32 %v58, %v294
  %296 = vmatprep.mubr.bf16.mxu0 0
  %297 = vmatmul.mubr.bf16.gmra.mrb[0].mxu0 %v100
  %v298 = vpop.f32.mrb[0].mxu0
  %v299 = vadd.f32 %v54, %v298
  %v300 = vpop.f32.mrb[0].mxu0
  %v301 = vadd.f32 %v58, %v300
  %v302 = vpop.f32.mrb[0].mxu0
  %v303 = vadd.f32 %v54, %v302
  %v304 = vpop.f32.mrb[0].mxu0
  %v305 = vadd.f32 %v58, %v304
  %306 = vmatprep.mubr.bf16.mxu0 0
  %307 = vmatmul.mubr.bf16.gmra.mrb[0].mxu0 %v103
  %v308 = vpop.f32.mrb[0].mxu0
  %v309 = vadd.f32 %v54, %v308
  %v310 = vpop.f32.mrb[0].mxu0
  %v311 = vadd.f32 %v58, %v310
  %v312 = vpop.f32.mrb[0].mxu0
  %v313 = vadd.f32 %v54, %v312
  %v314 = vpop.f32.mrb[0].mxu0
  %v315 = vadd.f32 %v58, %v314
  %316 = vmatprep.mubr.bf16.mxu0 0
  %317 = vmatmul.mubr.bf16.gmra.mrb[0].mxu0 %v106
  %v318 = vpop.f32.mrb[0].mxu0
  %v319 = vadd.f32 %v54, %v318
  %v320 = vpop.f32.mrb[0].mxu0
  %v321 = vadd.f32 %v58, %v320
  %v322 = vpop.f32.mrb[0].mxu0
  %v323 = vadd.f32 %v54, %v322
  %v324 = vpop.f32.mrb[0].mxu0
  %v325 = vadd.f32 %v58, %v324
  %326 = vdwg.mxu0
  %v327 = vpack.c.bf16 %v147, %v143
  %v328 = vpack.c.bf16 %v149, %v145
  %v329 = vpack.c.bf16 %v220, %v216
  %v330 = vpack.c.bf16 %v222, %v218
  %v331 = vpack.c.bf16 %v293, %v289
  %v332 = vpack.c.bf16 %v295, %v291
  %v333 = vpack.c.bf16 %v157, %v153
  %v334 = vpack.c.bf16 %v159, %v155
  %v335 = vpack.c.bf16 %v230, %v226
  %v336 = vpack.c.bf16 %v232, %v228
  %v337 = vpack.c.bf16 %v303, %v299
  %v338 = vpack.c.bf16 %v305, %v301
  %v339 = vpack.c.bf16 %v167, %v163
  %v340 = vpack.c.bf16 %v169, %v165
  %v341 = vpack.c.bf16 %v240, %v236
  %v342 = vpack.c.bf16 %v242, %v238
  %v343 = vpack.c.bf16 %v313, %v309
  %v344 = vpack.c.bf16 %v315, %v311
  %v345 = vpack.c.bf16 %v177, %v173
  %v346 = vpack.c.bf16 %v179, %v175
  %v347 = vpack.c.bf16 %v250, %v246
  %v348 = vpack.c.bf16 %v252, %v248
  %v349 = vpack.c.bf16 %v323, %v319
  %v350 = vpack.c.bf16 %v325, %v321
  %v375 = vunpack.c.l.b16 %v327
  %v376 = vunpack.c.l.b16 %v328
  %v377 = vunpack.c.l.b16 %v329
  %v378 = vunpack.c.l.b16 %v330
  %v379 = vunpack.c.l.b16 %v331
  %v380 = vunpack.c.l.b16 %v332
  %v381 = vunpack.c.h.b16 %v327
  %v382 = vunpack.c.h.b16 %v328
  %v383 = vunpack.c.h.b16 %v329
  %v384 = vunpack.c.h.b16 %v330
  %v385 = vunpack.c.h.b16 %v331
  %v386 = vunpack.c.h.b16 %v332
  %v387 = vunpack.c.l.b16 %v333
  %v388 = vunpack.c.l.b16 %v334
  %v389 = vunpack.c.l.b16 %v335
  %v390 = vunpack.c.l.b16 %v336
  %v391 = vunpack.c.l.b16 %v337
  %v392 = vunpack.c.l.b16 %v338
  %v393 = vunpack.c.h.b16 %v333
  %v394 = vunpack.c.h.b16 %v334
  %v395 = vunpack.c.h.b16 %v335
  %v396 = vunpack.c.h.b16 %v336
  %v397 = vunpack.c.h.b16 %v337
  %v398 = vunpack.c.h.b16 %v338
  %v399 = vunpack.c.l.b16 %v339
  %v400 = vunpack.c.l.b16 %v340
  %v401 = vunpack.c.l.b16 %v341
  %v402 = vunpack.c.l.b16 %v342
  %v403 = vunpack.c.l.b16 %v343
  %v404 = vunpack.c.l.b16 %v344
  %v405 = vunpack.c.h.b16 %v339
  %v406 = vunpack.c.h.b16 %v340
  %v407 = vunpack.c.h.b16 %v341
  %v408 = vunpack.c.h.b16 %v342
  %v409 = vunpack.c.h.b16 %v343
  %v410 = vunpack.c.h.b16 %v344
  %v411 = vunpack.c.l.b16 %v345
  %v412 = vunpack.c.l.b16 %v346
  %v413 = vunpack.c.l.b16 %v347
  %v414 = vunpack.c.l.b16 %v348
  %v415 = vunpack.c.l.b16 %v349
  %v416 = vunpack.c.l.b16 %v350
  %v417 = vunpack.c.h.b16 %v345
  %v418 = vunpack.c.h.b16 %v346
  %v419 = vunpack.c.h.b16 %v347
  %v420 = vunpack.c.h.b16 %v348
  %v421 = vunpack.c.h.b16 %v349
  %v422 = vunpack.c.h.b16 %v350
  %v423 = vpack.c.b16 %v376, %v375
  %v424 = vpack.c.b16 %v378, %v377
  %v425 = vpack.c.b16 %v380, %v379
  %v426 = vpack.c.b16 %v382, %v381
  %v427 = vpack.c.b16 %v384, %v383
  %v428 = vpack.c.b16 %v386, %v385
  %v429 = vpack.c.b16 %v388, %v387
  %v430 = vpack.c.b16 %v390, %v389
  %v431 = vpack.c.b16 %v392, %v391
  %v432 = vpack.c.b16 %v394, %v393
  %v433 = vpack.c.b16 %v396, %v395
  %v434 = vpack.c.b16 %v398, %v397
  %v435 = vpack.c.b16 %v400, %v399
  %v436 = vpack.c.b16 %v402, %v401
  %v437 = vpack.c.b16 %v404, %v403
  %v438 = vpack.c.b16 %v406, %v405
  %v439 = vpack.c.b16 %v408, %v407
  %v440 = vpack.c.b16 %v410, %v409
  %v441 = vpack.c.b16 %v412, %v411
  %v442 = vpack.c.b16 %v414, %v413
  %v443 = vpack.c.b16 %v416, %v415
  %v444 = vpack.c.b16 %v418, %v417
  %v445 = vpack.c.b16 %v420, %v419
  %v446 = vpack.c.b16 %v422, %v421
  %471 = vst [vmem:[%s3] sm:$0xff] %v423
  %472 = vst [vmem:[%s3 + $0x8] sm:$0xff] %v424
  %473 = vst [vmem:[%s3 + $0x10] sm:$0xff] %v425
  %474 = vst [vmem:[%s3 + $0x18] sm:$0xff] %v426
  %475 = vst [vmem:[%s3 + $0x20] sm:$0xff] %v427
  %476 = vst [vmem:[%s3 + $0x28] sm:$0xff] %v428
  %477 = vst [vmem:[%s3 + $0x30] sm:$0xff] %v429
  %478 = vst [vmem:[%s3 + $0x38] sm:$0xff] %v430
  %479 = vst [vmem:[%s3 + $0x40] sm:$0xff] %v431
  %480 = vst [vmem:[%s3 + $0x48] sm:$0xff] %v432
  %481 = vst [vmem:[%s3 + $0x50] sm:$0xff] %v433
  %482 = vst [vmem:[%s3 + $0x58] sm:$0xff] %v434
  %483 = vst [vmem:[%s3 + $0x60] sm:$0xff] %v435
  %484 = vst [vmem:[%s3 + $0x68] sm:$0xff] %v436
  %485 = vst [vmem:[%s3 + $0x70] sm:$0xff] %v437
  %486 = vst [vmem:[%s3 + $0x78] sm:$0xff] %v438
  %487 = vst [vmem:[%s3 + $0x80] sm:$0xff] %v439
  %488 = vst [vmem:[%s3 + $0x88] sm:$0xff] %v440
  %489 = vst [vmem:[%s3 + $0x90] sm:$0xff] %v441
  %490 = vst [vmem:[%s3 + $0x98] sm:$0xff] %v442
  %491 = vst [vmem:[%s3 + $0xa0] sm:$0xff] %v443
  %492 = vst [vmem:[%s3 + $0xa8] sm:$0xff] %v444
  %493 = vst [vmem:[%s3 + $0xb0] sm:$0xff] %v445
  %494 = vst [vmem:[%s3 + $0xb8] sm:$0xff] %v446
  // Predicated region
  $region14: #{emodel_bigru_forward.11} parent=0 // pred_check
    _
  $region15: #{emodel_bigru_forward.11} parent=0 // pred_check_branch
    %496 = sbr.rel (0) target = $region17
  $region16: #{emodel_bigru_forward.11} parent=0 // pred_region
    _
  $region17: #{emodel_bigru_forward.11} parent=0 // pred_fallthru
    _
  // Predicated region
  $region18: #{emodel_bigru_forward.11} parent=0 // pred_check
    _
  $region19: #{emodel_bigru_forward.11} parent=0 // pred_check_branch
    %498 = sbr.rel (0) target = $region21
  $region20: #{emodel_bigru_forward.11} parent=0 // pred_region
    _
  $region21: #{emodel_bigru_forward.11} parent=0 // pred_fallthru
    _

// kernel: emodel_bigru_forward.12
$region0: #{emodel_bigru_forward.12}
  #allocation0 [shape = 'u32[]', space=smem, size = 0x4, offset = 0x4, fixed_abs, tag = 'smem constant byte address 0x4 - core index']
  #allocation1 [shape = 'u32[144,128]{1,0:T(1,128)}', space=vmem, size = 0x12000, scoped, tag = 'internal scratch']
  #allocation2 [shape = 'f32[8,128]{1,0:T(8,128)}', space=vmem, size = 0x1000, scoped, tag = 'scratch operand']
  %s0 = inlined_call_operand.vmem [shape: bf16[8,8,768], index: 0, kind: input, shape index: {}]
  %s1 = inlined_call_operand.vmem [shape: bf16[2,128,384], index: 1, kind: input, shape index: {}]
  %s2 = inlined_call_operand.vmem [shape: f32[2,1,384], index: 2, kind: input, shape index: {}]
  %s3 = inlined_call_operand.vmem [shape: f32[8,8,256], index: 3, kind: output, shape index: {}]
  %s4 = sld [smem:[#allocation0]]
  $region109: #{emodel_bigru_forward.12} parent=0
    _
  %s6 = ssub.s32 1, %s4
  %s7 = scalar_select 0, %s6, %s4
  $region1: #{emodel_bigru_forward.12} parent=0
    #allocation3 [shape = 'u8[98304]{0}', space=vmem, size = 0x18000, scoped, tag = 'input window, operand 0']
    #allocation4 [shape = 'u8[65536]{0}', space=vmem, size = 0x10000, scoped, tag = 'output window, operand 0']
    loop: start=0, step=1, limit=4
    $region2: #{emodel_bigru_forward.12} parent=1 // loop_pre_header
      _
    $region3: #{emodel_bigru_forward.12} parent=1 // loop_header
      %s9 = sphi 0, %s13
      %p10 = scmp.ge.s32.totalorder %s9, 4
      %s16 = sphi 0, %s28
      %s17 = sphi 0, %s24
      %s18 = sphi 0, %s16
      %s19 = sphi 0, %s17
      %s20 = sphi 0, %s18
      %s21 = sphi 0, %s19
      %s43 = sphi 0, %s45
      %s46 = sphi 0, %s43
      %s47 = sphi 0, %s46
      %s63 = sphi 0, %s47
      %s69 = sphi 0, %s71
      %s72 = sphi 0, %s69
      %s73 = sphi 0, %s72
      %s89 = sphi 0, %s73
      %s95 = sphi 0, %s97
      %s98 = sphi 0, %s95
      %s99 = sphi 0, %s98
      %s115 = sphi 0, %s99
      %s133 = sphi 0, %s135
      %s136 = sphi 0, %s133
      %s137 = sphi 0, %s136
      %s153 = sphi 0, %s137
    $region4: #{emodel_bigru_forward.12} parent=1 // loop_header_branch
      %12 = sbr.rel (%p10) target = $region8
    $region5: #{emodel_bigru_forward.12} parent=1 // loop_body
      %s14 = ssub.s32 %s9, 1
      %s15 = ssub.s32 %s9, 2
      %s22 = sadd.s32 1, %s17
      %p23 = scmp.ge.s32.totalorder %s22, 1
      %s24 = scalar_select %p23, 0, %s22
      %s25 = sadd.s32 1, %s16
      %s26 = scalar_select %p23, %s25, %s16
      %p27 = scmp.ge.s32.totalorder %s26, 2
      %s28 = scalar_select %p27, 0, %s26
      %s29 = ssub.s32 1, %s16
      %s30 = smul.u32 %s29, %s17
      %s31 = ssub.s32 0, %s17
      %s32 = smul.u32 %s16, %s31
      %s33 = sadd.s32 %s30, %s32
      %s34 = ssub.s32 1, %s28
      %s35 = smul.u32 %s34, %s24
      %s36 = ssub.s32 0, %s24
      %s37 = smul.u32 %s28, %s36
      %s38 = sadd.s32 %s35, %s37
      %s39 = ssub.s32 %s33, %s38
      %s40 = ssub.s32 %s16, %s28
      %s41 = sor.u32 %s39, %s40
      %p42 = scmp.eq.s32.totalorder %s41, 0
      %s44 = sadd.s32 %s43, 1
      %s45 = scalar_select %p42, %s43, %s44
      %p48 = pneg %p42
      %p49 = scmp.eq.s32.totalorder %s9, 1
      %p50 = por %p48, %p49
      %p51 = scmp.ne.s32.totalorder %s43, %s46
      %p52 = scmp.eq.s32.totalorder %s9, 0
      %p53 = por %p51, %p52
      %p54 = scmp.ne.s32.totalorder %s43, %s46
      %p55 = scmp.eq.s32.totalorder %s14, 1
      %p56 = por %p54, %p55
      %p57 = scmp.ne.s32.totalorder %s46, %s47
      %p58 = scmp.eq.s32.totalorder %s14, 0
      %p59 = por %p57, %p58
      %p60 = scmp.ne.s32.totalorder %s46, %s47
      %p61 = scmp.eq.s32.totalorder %s15, 1
      %p62 = por %p60, %p61
      %p64 = scmp.ne.s32.totalorder %s47, %s63
      %p65 = scmp.eq.s32.totalorder %s15, 0
      %p66 = por %p64, %p65
      %s67 = ssub.s32 %s16, %s28
      %p68 = scmp.eq.s32.totalorder %s67, 0
      %s70 = sadd.s32 %s69, 1
      %s71 = scalar_select %p68, %s69, %s70
      %p74 = pneg %p68
      %p75 = scmp.eq.s32.totalorder %s9, 1
      %p76 = por %p74, %p75
      %p77 = scmp.ne.s32.totalorder %s69, %s72
      %p78 = scmp.eq.s32.totalorder %s9, 0
      %p79 = por %p77, %p78
      %p80 = scmp.ne.s32.totalorder %s69, %s72
      %p81 = scmp.eq.s32.totalorder %s14, 1
      %p82 = por %p80, %p81
      %p83 = scmp.ne.s32.totalorder %s72, %s73
      %p84 = scmp.eq.s32.totalorder %s14, 0
      %p85 = por %p83, %p84
      %p86 = scmp.ne.s32.totalorder %s72, %s73
      %p87 = scmp.eq.s32.totalorder %s15, 1
      %p88 = por %p86, %p87
      %p90 = scmp.ne.s32.totalorder %s73, %s89
      %p91 = scmp.eq.s32.totalorder %s15, 0
      %p92 = por %p90, %p91
      %s93 = ssub.s32 %s16, %s28
      %p94 = scmp.eq.s32.totalorder %s93, 0
      %s96 = sadd.s32 %s95, 1
      %s97 = scalar_select %p94, %s95, %s96
      %p100 = pneg %p94
      %p101 = scmp.eq.s32.totalorder %s9, 1
      %p102 = por %p100, %p101
      %p103 = scmp.ne.s32.totalorder %s95, %s98
      %p104 = scmp.eq.s32.totalorder %s9, 0
      %p105 = por %p103, %p104
      %p106 = scmp.ne.s32.totalorder %s95, %s98
      %p107 = scmp.eq.s32.totalorder %s14, 1
      %p108 = por %p106, %p107
      %p109 = scmp.ne.s32.totalorder %s98, %s99
      %p110 = scmp.eq.s32.totalorder %s14, 0
      %p111 = por %p109, %p110
      %p112 = scmp.ne.s32.totalorder %s98, %s99
      %p113 = scmp.eq.s32.totalorder %s15, 1
      %p114 = por %p112, %p113
      %p116 = scmp.ne.s32.totalorder %s99, %s115
      %p117 = scmp.eq.s32.totalorder %s15, 0
      %p118 = por %p116, %p117
      %s119 = ssub.s32 1, %s16
      %s120 = smul.u32 %s119, %s17
      %s121 = ssub.s32 0, %s17
      %s122 = smul.u32 %s16, %s121
      %s123 = sadd.s32 %s120, %s122
      %s124 = ssub.s32 1, %s28
      %s125 = smul.u32 %s124, %s24
      %s126 = ssub.s32 0, %s24
      %s127 = smul.u32 %s28, %s126
      %s128 = sadd.s32 %s125, %s127
      %s129 = ssub.s32 %s123, %s128
      %s130 = ssub.s32 %s16, %s28
      %s131 = sor.u32 %s129, %s130
      %p132 = scmp.eq.s32.totalorder %s131, 0
      %s134 = sadd.s32 %s133, 1
      %s135 = scalar_select %p132, %s133, %s134
      %p138 = pneg %p132
      %p139 = scmp.eq.s32.totalorder %s9, 1
      %p140 = por %p138, %p139
      %p141 = scmp.ne.s32.totalorder %s133, %s136
      %p142 = scmp.eq.s32.totalorder %s9, 0
      %p143 = por %p141, %p142
      %p144 = scmp.ne.s32.totalorder %s133, %s136
      %p145 = scmp.eq.s32.totalorder %s14, 1
      %p146 = por %p144, %p145
      %p147 = scmp.ne.s32.totalorder %s136, %s137
      %p148 = scmp.eq.s32.totalorder %s14, 0
      %p149 = por %p147, %p148
      %p150 = scmp.ne.s32.totalorder %s136, %s137
      %p151 = scmp.eq.s32.totalorder %s15, 1
      %p152 = por %p150, %p151
      %p154 = scmp.ne.s32.totalorder %s137, %s153
      %p155 = scmp.eq.s32.totalorder %s15, 0
      %p156 = por %p154, %p155
      %p157 = scmp.le.s32.totalorder 1, %s9
      %p158 = scmp.lt.s32.totalorder %s9, 3
      %p159 = pnand %p157, %p158
      %p160 = pneg %p159
      // Predicated region
      $region9: #{emodel_bigru_forward.12} parent=5 // pred_check
        _
      $region10: #{emodel_bigru_forward.12} parent=5 // pred_check_branch
        %162 = sbr.rel (%p159) target = $region12
      $region11: #{emodel_bigru_forward.12} parent=5 // pred_region
        %s163 = ssub.s32 %s9, 1
      $region12: #{emodel_bigru_forward.12} parent=5 // pred_fallthru
        _
      %p164 = scmp.lt.s32.totalorder %s9, 2
      // Predicated region
      $region13: #{emodel_bigru_forward.12} parent=5 // pred_check
        %p165 = pneg %p164
      $region14: #{emodel_bigru_forward.12} parent=5 // pred_check_branch
        %167 = sbr.rel (%p165) target = $region16
      $region15: #{emodel_bigru_forward.12} parent=5 // pred_region
        // Predicated region
        $region17: #{emodel_bigru_forward.12} parent=15 // pred_check
          %p168 = pneg %p53
        $region18: #{emodel_bigru_forward.12} parent=15 // pred_check_branch
          %170 = sbr.rel (%p168) target = $region20
        $region19: #{emodel_bigru_forward.12} parent=15 // pred_region
          %s171 = sand.u32 %s43, 1
          %s172 = sand.u32 %s43, 1
          %s173 = smul.addr %s172, 96
          %s174 = scalar_lea.vmem [#allocation3], %s173
          %s175 = ssub.s32 1, %s16
          %s176 = smul.u32 %s175, %s17
          %s177 = ssub.s32 0, %s17
          %s178 = smul.u32 %s16, %s177
          %s179 = sadd.s32 %s176, %s178
          %s180 = smul.u32 8, %s179
          %s181 = smul.u32 3, %s16
          %s182 = smul.addr %s180, 6
          %s183 = sadd.s32 %s181, %s182
          %s184 = smul.addr %s183, 4
          %s185 = scalar_lea.vmem %s0, %s184
          // Predicated region
          $region21: #{emodel_bigru_forward.12} parent=19 // pred_check
            _
          $region22: #{emodel_bigru_forward.12} parent=19 // pred_check_branch
            %187 = sbr.rel (0) target = $region24
          $region23: #{emodel_bigru_forward.12} parent=19 // pred_region
            // Predicated region
            $region25: #{emodel_bigru_forward.12} parent=23 // pred_check
              _
            $region26: #{emodel_bigru_forward.12} parent=23 // pred_check_branch
              %189 = sbr.rel (0) target = $region28
            $region27: #{emodel_bigru_forward.12} parent=23 // pred_region
              %s190 = scalar_lea.vmem %s185, 8
              %s191 = scalar_lea.vmem %s174, 8 [#allocation3]
              loop: start=0, step=1, limit=1
              $region29: #{emodel_bigru_forward.12} parent=27 // loop_pre_header
                _
              $region30: #{emodel_bigru_forward.12} parent=27 // loop_header
                %s193 = sphi 0, %s197
                %p194 = scmp.ge.s32.totalorder %s193, 1
                %s198 = sphi %s185, %s185
                %s199 = sphi %s174, %s174
              $region31: #{emodel_bigru_forward.12} parent=27 // loop_header_branch
                %196 = sbr.rel (%p194) target = $region35
              $region32: #{emodel_bigru_forward.12} parent=27 // loop_body
                %v200 = vld [vmem:[%s198] sm:$0xff]
                %201 = vst [vmem:[%s199] sm:$0xff] %v200
                %v202 = vld [vmem:[%s198 + $0x18] sm:$0xff]
                %203 = vst [vmem:[%s199 + $0xc] sm:$0xff] %v202
                %v204 = vld [vmem:[%s198 + $0x30] sm:$0xff]
                %205 = vst [vmem:[%s199 + $0x18] sm:$0xff] %v204
                %v206 = vld [vmem:[%s198 + $0x48] sm:$0xff]
                %207 = vst [vmem:[%s199 + $0x24] sm:$0xff] %v206
                %v208 = vld [vmem:[%s198 + $0x60] sm:$0xff]
                %209 = vst [vmem:[%s199 + $0x30] sm:$0xff] %v208
                %v210 = vld [vmem:[%s198 + $0x78] sm:$0xff]
                %211 = vst [vmem:[%s199 + $0x3c] sm:$0xff] %v210
                %v212 = vld [vmem:[%s198 + $0x90] sm:$0xff]
                %213 = vst [vmem:[%s199 + $0x48] sm:$0xff] %v212
                %v214 = vld [vmem:[%s198 + $0xa8] sm:$0xff]
                %215 = vst [vmem:[%s199 + $0x54] sm:$0xff] %v214
              $region33: #{emodel_bigru_forward.12} parent=27 // loop_footer
                %s197 = sadd.s32 1, %s193
              $region34: #{emodel_bigru_forward.12} parent=27 // loop_footer_branch
                %192 = sbr.rel target = $region30
              $region35: #{emodel_bigru_forward.12} parent=27 // loop_exit
                _
              loop: start=0, step=1, limit=1
              $region36: #{emodel_bigru_forward.12} parent=27 // loop_pre_header
                _
              $region37: #{emodel_bigru_forward.12} parent=27 // loop_header
                %s218 = sphi 0, %s222
                %p219 = scmp.ge.s32.totalorder %s218, 1
                %s223 = sphi %s190, %s190
                %s224 = sphi %s191, %s191
              $region38: #{emodel_bigru_forward.12} parent=27 // loop_header_branch
                %221 = sbr.rel (%p219) target = $region42
              $region39: #{emodel_bigru_forward.12} parent=27 // loop_body
                %v225 = vld [vmem:[%s223] sm:$0xf]
                %226 = vst [vmem:[%s224] sm:$0xf] %v225
                %v227 = vld [vmem:[%s223 + $0x18] sm:$0xf]
                %228 = vst [vmem:[%s224 + $0xc] sm:$0xf] %v227
                %v229 = vld [vmem:[%s223 + $0x30] sm:$0xf]
                %230 = vst [vmem:[%s224 + $0x18] sm:$0xf] %v229
                %v231 = vld [vmem:[%s223 + $0x48] sm:$0xf]
                %232 = vst [vmem:[%s224 + $0x24] sm:$0xf] %v231
                %v233 = vld [vmem:[%s223 + $0x60] sm:$0xf]
                %234 = vst [vmem:[%s224 + $0x30] sm:$0xf] %v233
                %v235 = vld [vmem:[%s223 + $0x78] sm:$0xf]
                %236 = vst [vmem:[%s224 + $0x3c] sm:$0xf] %v235
                %v237 = vld [vmem:[%s223 + $0x90] sm:$0xf]
                %238 = vst [vmem:[%s224 + $0x48] sm:$0xf] %v237
                %v239 = vld [vmem:[%s223 + $0xa8] sm:$0xf]
                %240 = vst [vmem:[%s224 + $0x54] sm:$0xf] %v239
              $region40: #{emodel_bigru_forward.12} parent=27 // loop_footer
                %s222 = sadd.s32 1, %s218
              $region41: #{emodel_bigru_forward.12} parent=27 // loop_footer_branch
                %217 = sbr.rel target = $region37
              $region42: #{emodel_bigru_forward.12} parent=27 // loop_exit
                _
            $region28: #{emodel_bigru_forward.12} parent=23 // pred_fallthru
              _
          $region24: #{emodel_bigru_forward.12} parent=19 // pred_fallthru
            _
          %241 = vnop
        $region20: #{emodel_bigru_forward.12} parent=15 // pred_fallthru
          _
        // Predicated region
        $region43: #{emodel_bigru_forward.12} parent=15 // pred_check
          %p242 = pneg %p79
        $region44: #{emodel_bigru_forward.12} parent=15 // pred_check_branch
          %244 = sbr.rel (%p242) target = $region46
        $region45: #{emodel_bigru_forward.12} parent=15 // pred_region
          %p245 = scmp.lt.s32.totalorder %s16, 1
          %s246 = scalar_select %p245, %s16, 1
          %s247 = smul.addr %s246, 48
          %s248 = smul.addr %s247, 4
          %s249 = scalar_lea.vmem %s1, %s248
        $region46: #{emodel_bigru_forward.12} parent=15 // pred_fallthru
          _
        // Predicated region
        $region47: #{emodel_bigru_forward.12} parent=15 // pred_check
          %p250 = pneg %p105
        $region48: #{emodel_bigru_forward.12} parent=15 // pred_check_branch
          %252 = sbr.rel (%p250) target = $region50
        $region49: #{emodel_bigru_forward.12} parent=15 // pred_region
          %p253 = scmp.lt.s32.totalorder %s16, 1
          %s254 = scalar_select %p253, %s16, 1
          %s255 = smul.addr %s254, 3
          %s256 = scalar_lea.vmem %s2, %s255
        $region50: #{emodel_bigru_forward.12} parent=15 // pred_fallthru
          _
      $region16: #{emodel_bigru_forward.12} parent=5 // pred_fallthru
        _
      %p257 = scmp.le.s32.totalorder 1, %s9
      %p258 = scmp.lt.s32.totalorder %s9, 3
      %p259 = pnand %p257, %p258
      %p260 = pneg %p259
      // Predicated region
      $region51: #{emodel_bigru_forward.12} parent=5 // pred_check
        _
      $region52: #{emodel_bigru_forward.12} parent=5 // pred_check_branch
        %262 = sbr.rel (%p259) target = $region54
      $region53: #{emodel_bigru_forward.12} parent=5 // pred_region
        %s263 = ssub.s32 %s9, 1
        %s264 = sand.u32 %s46, 1
        %s265 = sand.u32 %s46, 1
        %s266 = smul.addr %s265, 96
        %s267 = scalar_lea.vmem [#allocation3], %s266
        // Predicated region
        $region55: #{emodel_bigru_forward.12} parent=53 // pred_check
          %p268 = pneg %p59
        $region56: #{emodel_bigru_forward.12} parent=53 // pred_check_branch
          %270 = sbr.rel (%p268) target = $region58
        $region57: #{emodel_bigru_forward.12} parent=53 // pred_region
          _
        $region58: #{emodel_bigru_forward.12} parent=53 // pred_fallthru
          _
        %s271 = sand.u32 %s46, 1
        %s272 = sand.u32 %s46, 1
        %s273 = smul.addr %s272, 96
        %s274 = scalar_lea.vmem [#allocation3], %s273
        %p275 = pneg %p59
        %p276 = pneg %p56
        %p277 = scmp.lt.s32.totalorder %s18, 1
        %s278 = scalar_select %p277, %s18, 1
        %s279 = smul.addr %s278, 48
        %s280 = smul.addr %s279, 4
        %s281 = scalar_lea.vmem %s1, %s280
        %p282 = pneg %p85
        %p283 = pneg %p82
        %p284 = scmp.lt.s32.totalorder %s18, 1
        %s285 = scalar_select %p284, %s18, 1
        %s286 = smul.addr %s285, 3
        %s287 = scalar_lea.vmem %s2, %s286
        %p288 = pneg %p111
        %p289 = pneg %p108
        %p290 = pneg %p149
        %p291 = pneg %p146
        %s292 = sand.u32 %s136, 1
        %s293 = sand.u32 %s136, 1
        %s294 = smul.addr %s293, 64
        %s295 = scalar_lea.vmem [#allocation4], %s294
        %s296 = ssub.s32 1, %s18
        %s297 = smul.u32 %s296, %s19
        %s298 = ssub.s32 0, %s19
        %s299 = smul.u32 %s18, %s298
        %s300 = sadd.s32 %s297, %s299
        %s301 = smul.u32 8, %s300
        %s302 = smul.u32 3, %s18
        %p303 = scmp.lt.s32.totalorder %s18, 1
        %s304 = scalar_select %p303, %s18, 1
        %s305 = smul.addr %s304, 48
        %s306 = smul.addr %s305, 4
        %s307 = scalar_lea.vmem %s1, %s306
        %p308 = scmp.lt.s32.totalorder %s18, 1
        %s309 = scalar_select %p308, %s18, 1
        %s310 = smul.addr %s309, 3
        %s311 = scalar_lea.vmem %s2, %s310
        %s312 = ssub.s32 1, %s18
        %s313 = smul.u32 %s312, %s19
        %s314 = ssub.s32 0, %s19
        %s315 = smul.u32 %s18, %s314
        %s316 = sadd.s32 %s313, %s315
        %s317 = smul.u32 8, %s316
        %p319 = scmp.eq.s32.totalorder %s19, 0
        // Predicated region
        $region59: #{emodel_bigru_forward.12} parent=53 // pred_check
          %p320 = pneg %p319
        $region60: #{emodel_bigru_forward.12} parent=53 // pred_check_branch
          %322 = sbr.rel (%p320) target = $region62
        $region61: #{emodel_bigru_forward.12} parent=53 // pred_region
          %323 = vst [vmem:[#allocation2] sm:$0xff] 0.0
        $region62: #{emodel_bigru_forward.12} parent=53 // pred_fallthru
          _
        %v324 = vld [vmem:[%s307] sm:$0xff]
        %v325 = vld [vmem:[%s307 + $0x8] sm:$0xf]
        %v326 = vld [vmem:[%s307 + $0xc] sm:$0xff]
        %v327 = vld [vmem:[%s307 + $0x14] sm:$0xf]
        %v328 = vld [vmem:[%s307 + $0x18] sm:$0xff]
        %v329 = vld [vmem:[%s307 + $0x20] sm:$0xf]
        %v330 = vld [vmem:[%s307 + $0x24] sm:$0xff]
        %v331 = vld [vmem:[%s307 + $0x2c] sm:$0xf]
        %v332 = vld [vmem:[%s307 + $0x30] sm:$0xff]
        %v333 = vld [vmem:[%s307 + $0x38] sm:$0xf]
        %v334 = vld [vmem:[%s307 + $0x3c] sm:$0xff]
        %v335 = vld [vmem:[%s307 + $0x44] sm:$0xf]
        %v336 = vld [vmem:[%s307 + $0x48] sm:$0xff]
        %v337 = vld [vmem:[%s307 + $0x50] sm:$0xf]
        %v338 = vld [vmem:[%s307 + $0x54] sm:$0xff]
        %v339 = vld [vmem:[%s307 + $0x5c] sm:$0xf]
        %v340 = vld [vmem:[%s307 + $0x60] sm:$0xff]
        %v341 = vld [vmem:[%s307 + $0x68] sm:$0xf]
        %v342 = vld [vmem:[%s307 + $0x6c] sm:$0xff]
        %v343 = vld [vmem:[%s307 + $0x74] sm:$0xf]
        %v344 = vld [vmem:[%s307 + $0x78] sm:$0xff]
        %v345 = vld [vmem:[%s307 + $0x80] sm:$0xf]
        %v346 = vld [vmem:[%s307 + $0x84] sm:$0xff]
        %v347 = vld [vmem:[%s307 + $0x8c] sm:$0xf]
        %v348 = vld [vmem:[%s307 + $0x90] sm:$0xff]
        %v349 = vld [vmem:[%s307 + $0x98] sm:$0xf]
        %v350 = vld [vmem:[%s307 + $0x9c] sm:$0xff]
        %v351 = vld [vmem:[%s307 + $0xa4] sm:$0xf]
        %v352 = vld [vmem:[%s307 + $0xa8] sm:$0xff]
        %v353 = vld [vmem:[%s307 + $0xb0] sm:$0xf]
        %v354 = vld [vmem:[%s307 + $0xb4] sm:$0xff]
        %v355 = vld [vmem:[%s307 + $0xbc] sm:$0xf]
        %v356 = vld [vmem:[%s311] sm:$0x7]
        %v357 = vld [vmem:[#allocation2] sm:$0xff]
        %s358 = smul.u32 %s18, 7
        %s359 = smul.u32 %s358, 3
        %s360 = smul.addr %s359, 4
        %s361 = scalar_lea.vmem %s267, %s360 [#allocation3]
        %v362 = vld [vmem:[%s361] sm:$0xff]
        %v363 = vld [vmem:[%s361 + $0x8] sm:$0xf]
        %v364 = vunpack.c.l.bf16 %v362
        %v365 = vunpack.c.h.bf16 %v362
        %v366 = vunpack.c.l.bf16 %v363
        %v367 = vpack.c.bf16 %v357, %v357
        %v369 = vlaneseq
        %v370 = vshrl.u32 %v369, 7
        %v371 = vsub.s32 0, %v370
        %v372 = vrot.slane %v356, %v371
        %v373 = vlaneseq
        %v374 = vshrl.u32 %v373, 7
        %v375 = vsub.s32 1, %v374
        %v376 = vrot.slane %v356, %v375
        %v377 = vlaneseq
        %v378 = vshrl.u32 %v377, 7
        %v379 = vsub.s32 2, %v378
        %v380 = vrot.slane %v356, %v379
        %v416 = vunpack.c.l.b16 %v324
        %v417 = vunpack.c.h.b16 %v324
        %v418 = vunpack.c.l.b16 %v325
        %v419 = vunpack.c.l.b16 %v326
        %v420 = vunpack.c.h.b16 %v326
        %v421 = vunpack.c.l.b16 %v327
        %v422 = vunpack.c.l.b16 %v328
        %v423 = vunpack.c.h.b16 %v328
        %v424 = vunpack.c.l.b16 %v329
        %v425 = vunpack.c.l.b16 %v330
        %v426 = vunpack.c.h.b16 %v330
        %v427 = vunpack.c.l.b16 %v331
        %v428 = vunpack.c.l.b16 %v332
        %v429 = vunpack.c.h.b16 %v332
        %v430 = vunpack.c.l.b16 %v333
        %v431 = vunpack.c.l.b16 %v334
        %v432 = vunpack.c.h.b16 %v334
        %v433 = vunpack.c.l.b16 %v335
        %v434 = vunpack.c.l.b16 %v336
        %v435 = vunpack.c.h.b16 %v336
        %v436 = vunpack.c.l.b16 %v337
        %v437 = vunpack.c.l.b16 %v338
        %v438 = vunpack.c.h.b16 %v338
        %v439 = vunpack.c.l.b16 %v339
        %v440 = vunpack.c.l.b16 %v340
        %v441 = vunpack.c.h.b16 %v340
        %v442 = vunpack.c.l.b16 %v341
        %v443 = vunpack.c.l.b16 %v342
        %v444 = vunpack.c.h.b16 %v342
        %v445 = vunpack.c.l.b16 %v343
        %v446 = vunpack.c.l.b16 %v344
        %v447 = vunpack.c.h.b16 %v344
        %v448 = vunpack.c.l.b16 %v345
        %v449 = vunpack.c.l.b16 %v346
        %v450 = vunpack.c.h.b16 %v346
        %v451 = vunpack.c.l.b16 %v347
        %v452 = vunpack.c.l.b16 %v348
        %v453 = vunpack.c.h.b16 %v348
        %v454 = vunpack.c.l.b16 %v349
        %v455 = vunpack.c.l.b16 %v350
        %v456 = vunpack.c.h.b16 %v350
        %v457 = vunpack.c.l.b16 %v351
        %v458 = vunpack.c.l.b16 %v352
        %v459 = vunpack.c.h.b16 %v352
        %v460 = vunpack.c.l.b16 %v353
        %v461 = vunpack.c.l.b16 %v354
        %v462 = vunpack.c.h.b16 %v354
        %v463 = vunpack.c.l.b16 %v355
        %v464 = vpack.c.b16 %v419, %v416
        %v465 = vpack.c.b16 %v420, %v417
        %v466 = vpack.c.b16 %v421, %v418
        %v467 = vpack.c.b16 %v425, %v422
        %v468 = vpack.c.b16 %v426, %v423
        %v469 = vpack.c.b16 %v427, %v424
        %v470 = vpack.c.b16 %v431, %v428
        %v471 = vpack.c.b16 %v432, %v429
        %v472 = vpack.c.b16 %v433, %v430
        %v473 = vpack.c.b16 %v437, %v434
        %v474 = vpack.c.b16 %v438, %v435
        %v475 = vpack.c.b16 %v439, %v436
        %v476 = vpack.c.b16 %v443, %v440
        %v477 = vpack.c.b16 %v444, %v441
        %v478 = vpack.c.b16 %v445, %v442
        %v479 = vpack.c.b16 %v449, %v446
        %v480 = vpack.c.b16 %v450, %v447
        %v481 = vpack.c.b16 %v451, %v448
        %v482 = vpack.c.b16 %v455, %v452
        %v483 = vpack.c.b16 %v456, %v453
        %v484 = vpack.c.b16 %v457, %v454
        %v485 = vpack.c.b16 %v461, %v458
        %v486 = vpack.c.b16 %v462, %v459
        %v487 = vpack.c.b16 %v463, %v460
        %512 = vmatprep.subr.bf16.mxu0 %v465
        %513 = vmatpush1.bf16.msra.mxu0 %v464
        %514 = vmatprep.subr.bf16.mxu0 %v468
        %515 = vmatpush1.bf16.msra.mxu0 %v467
        %516 = vmatprep.subr.bf16.mxu0 %v471
        %517 = vmatpush1.bf16.msra.mxu0 %v470
        %518 = vmatprep.subr.bf16.mxu0 %v474
        %519 = vmatpush1.bf16.msra.mxu0 %v473
        %520 = vmatprep.subr.bf16.mxu0 %v477
        %521 = vmatpush1.bf16.msra.mxu0 %v476
        %522 = vmatprep.subr.bf16.mxu0 %v480
        %523 = vmatpush1.bf16.msra.mxu0 %v479
        %524 = vmatprep.subr.bf16.mxu0 %v483
        %525 = vmatpush1.bf16.msra.mxu0 %v482
        %526 = vmatprep.subr.bf16.mxu0 %v486
        %527 = vmatpush1.bf16.msra.mxu0 %v485
        %528 = vmatprep.subr.bf16.mxu0 0
        %529 = vmatpush1.bf16.msra.mxu0 0
        %530 = vmatprep.subr.bf16.mxu0 0
        %531 = vmatpush1.bf16.msra.mxu0 0
        %532 = vmatprep.subr.bf16.mxu0 0
        %533 = vmatpush1.bf16.msra.mxu0 0
        %534 = vmatprep.subr.bf16.mxu0 0
        %535 = vmatpush1.bf16.msra.mxu0 0
        %536 = vmatprep.subr.bf16.mxu0 0
        %537 = vmatpush1.bf16.msra.mxu0 0
        %538 = vmatprep.subr.bf16.mxu0 0
        %539 = vmatpush1.bf16.msra.mxu0 0
        %540 = vmatprep.subr.bf16.mxu0 0
        %541 = vmatpush1.bf16.msra.mxu0 0
        %542 = vmatprep.subr.bf16.mxu0 0
        %543 = vmatpush1.bf16.msra.mxu0 0
        %544 = vmatprep.mubr.bf16.mxu0 0
        %545 = vmatmul.mubr.bf16.gmra.mrb[0].mxu0 %v367
        %v546 = vpop.f32.mrb[0].mxu0
        %v547 = vadd.f32 %v372, %v546
        %v548 = vpop.f32.mrb[0].mxu0
        %v549 = vadd.f32 %v376, %v548
        %v550 = vpop.f32.mrb[0].mxu0
        %v551 = vpop.f32.mrb[0].mxu0
        %552 = vdwg.mxu0
        %553 = vmatprep.subr.bf16.mxu0 0
        %554 = vmatpush1.bf16.msra.mxu0 %v466
        %555 = vmatprep.subr.bf16.mxu0 0
        %556 = vmatpush1.bf16.msra.mxu0 %v469
        %557 = vmatprep.subr.bf16.mxu0 0
        %558 = vmatpush1.bf16.msra.mxu0 %v472
        %559 = vmatprep.subr.bf16.mxu0 0
        %560 = vmatpush1.bf16.msra.mxu0 %v475
        %561 = vmatprep.subr.bf16.mxu0 0
        %562 = vmatpush1.bf16.msra.mxu0 %v478
        %563 = vmatprep.subr.bf16.mxu0 0
        %564 = vmatpush1.bf16.msra.mxu0 %v481
        %565 = vmatprep.subr.bf16.mxu0 0
        %566 = vmatpush1.bf16.msra.mxu0 %v484
        %567 = vmatprep.subr.bf16.mxu0 0
        %568 = vmatpush1.bf16.msra.mxu0 %v487
        %569 = vmatprep.subr.bf16.mxu0 0
        %570 = vmatpush1.bf16.msra.mxu0 0
        %571 = vmatprep.subr.bf16.mxu0 0
        %572 = vmatpush1.bf16.msra.mxu0 0
        %573 = vmatprep.subr.bf16.mxu0 0
        %574 = vmatpush1.bf16.msra.mxu0 0
        %575 = vmatprep.subr.bf16.mxu0 0
        %576 = vmatpush1.bf16.msra.mxu0 0
        %577 = vmatprep.subr.bf16.mxu0 0
        %578 = vmatpush1.bf16.msra.mxu0 0
        %579 = vmatprep.subr.bf16.mxu0 0
        %580 = vmatpush1.bf16.msra.mxu0 0
        %581 = vmatprep.subr.bf16.mxu0 0
        %582 = vmatpush1.bf16.msra.mxu0 0
        %583 = vmatprep.subr.bf16.mxu0 0
        %584 = vmatpush1.bf16.msra.mxu0 0
        %585 = vmatprep.mubr.bf16.mxu0 0
        %586 = vmatmul.mubr.bf16.gmra.mrb[0].mxu0 %v367
        %v587 = vpop.f32.mrb[0].mxu0
        %v588 = vadd.f32 %v380, %v587
        %v589 = vpop.f32.mrb[0].mxu0
        %v590 = vpop.f32.mrb[0].mxu0
        %v591 = vpop.f32.mrb[0].mxu0
        %592 = vdwg.mxu0
        %v593 = vadd.f32 %v364, %v547
        %v594 = vxor.u32 %v593, 2147483648
        %v595 = vmul.f32 %v594, 1.442695
        %v596 = vpow.pop %v595
        %v597 = vadd.f32 %v596, 1.0
        %v598 = vrcp.pop %v597
        %v599 = vmul.f32 1.0, %v598
        %v600 = vadd.f32 %v365, %v549
        %v601 = vxor.u32 %v600, 2147483648
        %v602 = vmul.f32 %v601, 1.442695
        %v603 = vpow.pop %v602
        %v604 = vadd.f32 %v603, 1.0
        %v605 = vrcp.pop %v604
        %v606 = vmul.f32 1.0, %v605
        %v607 = vmul.f32 %v599, %v588
        %v608 = vadd.f32 %v366, %v607
        %v609 = vtanh.pop %v608
        %v610 = vsub.f32 1.0, %v606
        %v611 = vmul.f32 %v610, %v609
        %v612 = vmul.f32 %v606, %v357
        %v613 = vadd.f32 %v611, %v612
        %s614 = smul.u32 %s358, 8
        %s615 = scalar_lea.vmem %s295, %s614 [#allocation4]
        %616 = vst [vmem:[%s615] sm:$0xff] %v613
        %s617 = ssub.s32 1, %s18
        %s618 = smul.u32 %s18, 6
        %s619 = sadd.s32 %s617, %s618
        %s620 = smul.u32 %s619, 3
        %s621 = smul.addr %s620, 4
        %s622 = scalar_lea.vmem %s267, %s621 [#allocation3]
        %v623 = vld [vmem:[%s622] sm:$0xff]
        %v624 = vld [vmem:[%s622 + $0x8] sm:$0xf]
        %v625 = vunpack.c.l.bf16 %v623
        %v626 = vunpack.c.h.bf16 %v623
        %v627 = vunpack.c.l.bf16 %v624
        %v628 = vpack.c.bf16 %v613, %v613
        %629 = vmatprep.subr.bf16.mxu0 %v465
        %630 = vmatpush1.bf16.msra.mxu0 %v464
        %631 = vmatprep.subr.bf16.mxu0 %v468
        %632 = vmatpush1.bf16.msra.mxu0 %v467
        %633 = vmatprep.subr.bf16.mxu0 %v471
        %634 = vmatpush1.bf16.msra.mxu0 %v470
        %635 = vmatprep.subr.bf16.mxu0 %v474
        %636 = vmatpush1.bf16.msra.mxu0 %v473
        %637 = vmatprep.subr.bf16.mxu0 %v477
        %638 = vmatpush1.bf16.msra.mxu0 %v476
        %639 = vmatprep.subr.bf16.mxu0 %v480
        %640 = vmatpush1.bf16.msra.mxu0 %v479
        %641 = vmatprep.subr.bf16.mxu0 %v483
        %642 = vmatpush1.bf16.msra.mxu0 %v482
        %643 = vmatprep.subr.bf16.mxu0 %v486
        %644 = vmatpush1.bf16.msra.mxu0 %v485
        %645 = vmatprep.subr.bf16.mxu0 0
        %646 = vmatpush1.bf16.msra.mxu0 0
        %647 = vmatprep.subr.bf16.mxu0 0
        %648 = vmatpush1.bf16.msra.mxu0 0
        %649 = vmatprep.subr.bf16.mxu0 0
        %650 = vmatpush1.bf16.msra.mxu0 0
        %651 = vmatprep.subr.bf16.mxu0 0
        %652 = vmatpush1.bf16.msra.mxu0 0
        %653 = vmatprep.subr.bf16.mxu0 0
        %654 = vmatpush1.bf16.msra.mxu0 0
        %655 = vmatprep.subr.bf16.mxu0 0
        %656 = vmatpush1.bf16.msra.mxu0 0
        %657 = vmatprep.subr.bf16.mxu0 0
        %658 = vmatpush1.bf16.msra.mxu0 0
        %659 = vmatprep.subr.bf16.mxu0 0
        %660 = vmatpush1.bf16.msra.mxu0 0
        %661 = vmatprep.mubr.bf16.mxu0 0
        %662 = vmatmul.mubr.bf16.gmra.mrb[0].mxu0 %v628
        %v663 = vpop.f32.mrb[0].mxu0
        %v664 = vadd.f32 %v372, %v663
        %v665 = vpop.f32.mrb[0].mxu0
        %v666 = vadd.f32 %v376, %v665
        %v667 = vpop.f32.mrb[0].mxu0
        %v668 = vpop.f32.mrb[0].mxu0
        %669 = vdwg.mxu0
        %670 = vmatprep.subr.bf16.mxu0 0
        %671 = vmatpush1.bf16.msra.mxu0 %v466
        %672 = vmatprep.subr.bf16.mxu0 0
        %673 = vmatpush1.bf16.msra.mxu0 %v469
        %674 = vmatprep.subr.bf16.mxu0 0
        %675 = vmatpush1.bf16.msra.mxu0 %v472
        %676 = vmatprep.subr.bf16.mxu0 0
        %677 = vmatpush1.bf16.msra.mxu0 %v475
        %678 = vmatprep.subr.bf16.mxu0 0
        %679 = vmatpush1.bf16.msra.mxu0 %v478
        %680 = vmatprep.subr.bf16.mxu0 0
        %681 = vmatpush1.bf16.msra.mxu0 %v481
        %682 = vmatprep.subr.bf16.mxu0 0
        %683 = vmatpush1.bf16.msra.mxu0 %v484
        %684 = vmatprep.subr.bf16.mxu0 0
        %685 = vmatpush1.bf16.msra.mxu0 %v487
        %686 = vmatprep.subr.bf16.mxu0 0
        %687 = vmatpush1.bf16.msra.mxu0 0
        %688 = vmatprep.subr.bf16.mxu0 0
        %689 = vmatpush1.bf16.msra.mxu0 0
        %690 = vmatprep.subr.bf16.mxu0 0
        %691 = vmatpush1.bf16.msra.mxu0 0
        %692 = vmatprep.subr.bf16.mxu0 0
        %693 = vmatpush1.bf16.msra.mxu0 0
        %694 = vmatprep.subr.bf16.mxu0 0
        %695 = vmatpush1.bf16.msra.mxu0 0
        %696 = vmatprep.subr.bf16.mxu0 0
        %697 = vmatpush1.bf16.msra.mxu0 0
        %698 = vmatprep.subr.bf16.mxu0 0
        %699 = vmatpush1.bf16.msra.mxu0 0
        %700 = vmatprep.subr.bf16.mxu0 0
        %701 = vmatpush1.bf16.msra.mxu0 0
        %702 = vmatprep.mubr.bf16.mxu0 0
        %703 = vmatmul.mubr.bf16.gmra.mrb[0].mxu0 %v628
        %v704 = vpop.f32.mrb[0].mxu0
        %v705 = vadd.f32 %v380, %v704
        %v706 = vpop.f32.mrb[0].mxu0
        %v707 = vpop.f32.mrb[0].mxu0
        %v708 = vpop.f32.mrb[0].mxu0
        %709 = vdwg.mxu0
        %v710 = vadd.f32 %v625, %v664
        %v711 = vxor.u32 %v710, 2147483648
        %v712 = vmul.f32 %v711, 1.442695
        %v713 = vpow.pop %v712
        %v714 = vadd.f32 %v713, 1.0
        %v715 = vrcp.pop %v714
        %v716 = vmul.f32 1.0, %v715
        %v717 = vadd.f32 %v626, %v666
        %v718 = vxor.u32 %v717, 2147483648
        %v719 = vmul.f32 %v718, 1.442695
        %v720 = vpow.pop %v719
        %v721 = vadd.f32 %v720, 1.0
        %v722 = vrcp.pop %v721
        %v723 = vmul.f32 1.0, %v722
        %v724 = vmul.f32 %v716, %v705
        %v725 = vadd.f32 %v627, %v724
        %v726 = vtanh.pop %v725
        %v727 = vsub.f32 1.0, %v723
        %v728 = vmul.f32 %v727, %v726
        %v729 = vmul.f32 %v723, %v613
        %v730 = vadd.f32 %v728, %v729
        %s731 = smul.u32 %s619, 8
        %s732 = scalar_lea.vmem %s295, %s731 [#allocation4]
        %733 = vst [vmem:[%s732] sm:$0xff] %v730
        %s734 = smul.u32 %s617, 2
        %s735 = smul.u32 %s18, 5
        %s736 = sadd.s32 %s734, %s735
        %s737 = smul.u32 %s736, 3
        %s738 = smul.addr %s737, 4
        %s739 = scalar_lea.vmem %s267, %s738 [#allocation3]
        %v740 = vld [vmem:[%s739] sm:$0xff]
        %v741 = vld [vmem:[%s739 + $0x8] sm:$0xf]
        %v742 = vunpack.c.l.bf16 %v740
        %v743 = vunpack.c.h.bf16 %v740
        %v744 = vunpack.c.l.bf16 %v741
        %v745 = vpack.c.bf16 %v730, %v730
        %746 = vmatprep.subr.bf16.mxu0 %v465
        %747 = vmatpush1.bf16.msra.mxu0 %v464
        %748 = vmatprep.subr.bf16.mxu0 %v468
        %749 = vmatpush1.bf16.msra.mxu0 %v467
        %750 = vmatprep.subr.bf16.mxu0 %v471
        %751 = vmatpush1.bf16.msra.mxu0 %v470
        %752 = vmatprep.subr.bf16.mxu0 %v474
        %753 = vmatpush1.bf16.msra.mxu0 %v473
        %754 = vmatprep.subr.bf16.mxu0 %v477
        %755 = vmatpush1.bf16.msra.mxu0 %v476
        %756 = vmatprep.subr.bf16.mxu0 %v480
        %757 = vmatpush1.bf16.msra.mxu0 %v479
        %758 = vmatprep.subr.bf16.mxu0 %v483
        %759 = vmatpush1.bf16.msra.mxu0 %v482
        %760 = vmatprep.subr.bf16.mxu0 %v486
        %761 = vmatpush1.bf16.msra.mxu0 %v485
        %762 = vmatprep.subr.bf16.mxu0 0
        %763 = vmatpush1.bf16.msra.mxu0 0
        %764 = vmatprep.subr.bf16.mxu0 0
        %765 = vmatpush1.bf16.msra.mxu0 0
        %766 = vmatprep.subr.bf16.mxu0 0
        %767 = vmatpush1.bf16.msra.mxu0 0
        %768 = vmatprep.subr.bf16.mxu0 0
        %769 = vmatpush1.bf16.msra.mxu0 0
        %770 = vmatprep.subr.bf16.mxu0 0
        %771 = vmatpush1.bf16.msra.mxu0 0
        %772 = vmatprep.subr.bf16.mxu0 0
        %773 = vmatpush1.bf16.msra.mxu0 0
        %774 = vmatprep.subr.bf16.mxu0 0
        %775 = vmatpush1.bf16.msra.mxu0 0
        %776 = vmatprep.subr.bf16.mxu0 0
        %777 = vmatpush1.bf16.msra.mxu0 0
        %778 = vmatprep.mubr.bf16.mxu0 0
        %779 = vmatmul.mubr.bf16.gmra.mrb[0].mxu0 %v745
        %v780 = vpop.f32.mrb[0].mxu0
        %v781 = vadd.f32 %v372, %v780
        %v782 = vpop.f32.mrb[0].mxu0
        %v783 = vadd.f32 %v376, %v782
        %v784 = vpop.f32.mrb[0].mxu0
        %v785 = vpop.f32.mrb[0].mxu0
        %786 = vdwg.mxu0
        %787 = vmatprep.subr.bf16.mxu0 0
        %788 = vmatpush1.bf16.msra.mxu0 %v466
        %789 = vmatprep.subr.bf16.mxu0 0
        %790 = vmatpush1.bf16.msra.mxu0 %v469
        %791 = vmatprep.subr.bf16.mxu0 0
        %792 = vmatpush1.bf16.msra.mxu0 %v472
        %793 = vmatprep.subr.bf16.mxu0 0
        %794 = vmatpush1.bf16.msra.mxu0 %v475
        %795 = vmatprep.subr.bf16.mxu0 0
        %796 = vmatpush1.bf16.msra.mxu0 %v478
        %797 = vmatprep.subr.bf16.mxu0 0
        %798 = vmatpush1.bf16.msra.mxu0 %v481
        %799 = vmatprep.subr.bf16.mxu0 0
        %800 = vmatpush1.bf16.msra.mxu0 %v484
        %801 = vmatprep.subr.bf16.mxu0 0
        %802 = vmatpush1.bf16.msra.mxu0 %v487
        %803 = vmatprep.subr.bf16.mxu0 0
        %804 = vmatpush1.bf16.msra.mxu0 0
        %805 = vmatprep.subr.bf16.mxu0 0
        %806 = vmatpush1.bf16.msra.mxu0 0
        %807 = vmatprep.subr.bf16.mxu0 0
        %808 = vmatpush1.bf16.msra.mxu0 0
        %809 = vmatprep.subr.bf16.mxu0 0
        %810 = vmatpush1.bf16.msra.mxu0 0
        %811 = vmatprep.subr.bf16.mxu0 0
        %812 = vmatpush1.bf16.msra.mxu0 0
        %813 = vmatprep.subr.bf16.mxu0 0
        %814 = vmatpush1.bf16.msra.mxu0 0
        %815 = vmatprep.subr.bf16.mxu0 0
        %816 = vmatpush1.bf16.msra.mxu0 0
        %817 = vmatprep.subr.bf16.mxu0 0
        %818 = vmatpush1.bf16.msra.mxu0 0
        %819 = vmatprep.mubr.bf16.mxu0 0
        %820 = vmatmul.mubr.bf16.gmra.mrb[0].mxu0 %v745
        %v821 = vpop.f32.mrb[0].mxu0
        %v822 = vadd.f32 %v380, %v821
        %v823 = vpop.f32.mrb[0].mxu0
        %v824 = vpop.f32.mrb[0].mxu0
        %v825 = vpop.f32.mrb[0].mxu0
        %826 = vdwg.mxu0
        %v827 = vadd.f32 %v742, %v781
        %v828 = vxor.u32 %v827, 2147483648
        %v829 = vmul.f32 %v828, 1.442695
        %v830 = vpow.pop %v829
        %v831 = vadd.f32 %v830, 1.0
        %v832 = vrcp.pop %v831
        %v833 = vmul.f32 1.0, %v832
        %v834 = vadd.f32 %v743, %v783
        %v835 = vxor.u32 %v834, 2147483648
        %v836 = vmul.f32 %v835, 1.442695
        %v837 = vpow.pop %v836
        %v838 = vadd.f32 %v837, 1.0
        %v839 = vrcp.pop %v838
        %v840 = vmul.f32 1.0, %v839
        %v841 = vmul.f32 %v833, %v822
        %v842 = vadd.f32 %v744, %v841
        %v843 = vtanh.pop %v842
        %v844 = vsub.f32 1.0, %v840
        %v845 = vmul.f32 %v844, %v843
        %v846 = vmul.f32 %v840, %v730
        %v847 = vadd.f32 %v845, %v846
        %s848 = smul.u32 %s736, 8
        %s849 = scalar_lea.vmem %s295, %s848 [#allocation4]
        %850 = vst [vmem:[%s849] sm:$0xff] %v847
        %s851 = smul.u32 %s617, 3
        %s852 = smul.u32 %s18, 4
        %s853 = sadd.s32 %s851, %s852
        %s854 = smul.u32 %s853, 3
        %s855 = smul.addr %s854, 4
        %s856 = scalar_lea.vmem %s267, %s855 [#allocation3]
        %v857 = vld [vmem:[%s856] sm:$0xff]
        %v858 = vld [vmem:[%s856 + $0x8] sm:$0xf]
        %v859 = vunpack.c.l.bf16 %v857
        %v860 = vunpack.c.h.bf16 %v857
        %v861 = vunpack.c.l.bf16 %v858
        %v862 = vpack.c.bf16 %v847, %v847
        %863 = vmatprep.subr.bf16.mxu0 %v465
        %864 = vmatpush1.bf16.msra.mxu0 %v464
        %865 = vmatprep.subr.bf16.mxu0 %v468
        %866 = vmatpush1.bf16.msra.mxu0 %v467
        %867 = vmatprep.subr.bf16.mxu0 %v471
        %868 = vmatpush1.bf16.msra.mxu0 %v470
        %869 = vmatprep.subr.bf16.mxu0 %v474
        %870 = vmatpush1.bf16.msra.mxu0 %v473
        %871 = vmatprep.subr.bf16.mxu0 %v477
        %872 = vmatpush1.bf16.msra.mxu0 %v476
        %873 = vmatprep.subr.bf16.mxu0 %v480
        %874 = vmatpush1.bf16.msra.mxu0 %v479
        %875 = vmatprep.subr.bf16.mxu0 %v483
        %876 = vmatpush1.bf16.msra.mxu0 %v482
        %877 = vmatprep.subr.bf16.mxu0 %v486
        %878 = vmatpush1.bf16.msra.mxu0 %v485
        %879 = vmatprep.subr.bf16.mxu0 0
        %880 = vmatpush1.bf16.msra.mxu0 0
        %881 = vmatprep.subr.bf16.mxu0 0
        %882 = vmatpush1.bf16.msra.mxu0 0
        %883 = vmatprep.subr.bf16.mxu0 0
        %884 = vmatpush1.bf16.msra.mxu0 0
        %885 = vmatprep.subr.bf16.mxu0 0
        %886 = vmatpush1.bf16.msra.mxu0 0
        %887 = vmatprep.subr.bf16.mxu0 0
        %888 = vmatpush1.bf16.msra.mxu0 0
        %889 = vmatprep.subr.bf16.mxu0 0
        %890 = vmatpush1.bf16.msra.mxu0 0
        %891 = vmatprep.subr.bf16.mxu0 0
        %892 = vmatpush1.bf16.msra.mxu0 0
        %893 = vmatprep.subr.bf16.mxu0 0
        %894 = vmatpush1.bf16.msra.mxu0 0
        %895 = vmatprep.mubr.bf16.mxu0 0
        %896 = vmatmul.mubr.bf16.gmra.mrb[0].mxu0 %v862
        %v897 = vpop.f32.mrb[0].mxu0
        %v898 = vadd.f32 %v372, %v897
        %v899 = vpop.f32.mrb[0].mxu0
        %v900 = vadd.f32 %v376, %v899
        %v901 = vpop.f32.mrb[0].mxu0
        %v902 = vpop.f32.mrb[0].mxu0
        %903 = vdwg.mxu0
        %904 = vmatprep.subr.bf16.mxu0 0
        %905 = vmatpush1.bf16.msra.mxu0 %v466
        %906 = vmatprep.subr.bf16.mxu0 0
        %907 = vmatpush1.bf16.msra.mxu0 %v469
        %908 = vmatprep.subr.bf16.mxu0 0
        %909 = vmatpush1.bf16.msra.mxu0 %v472
        %910 = vmatprep.subr.bf16.mxu0 0
        %911 = vmatpush1.bf16.msra.mxu0 %v475
        %912 = vmatprep.subr.bf16.mxu0 0
        %913 = vmatpush1.bf16.msra.mxu0 %v478
        %914 = vmatprep.subr.bf16.mxu0 0
        %915 = vmatpush1.bf16.msra.mxu0 %v481
        %916 = vmatprep.subr.bf16.mxu0 0
        %917 = vmatpush1.bf16.msra.mxu0 %v484
        %918 = vmatprep.subr.bf16.mxu0 0
        %919 = vmatpush1.bf16.msra.mxu0 %v487
        %920 = vmatprep.subr.bf16.mxu0 0
        %921 = vmatpush1.bf16.msra.mxu0 0
        %922 = vmatprep.subr.bf16.mxu0 0
        %923 = vmatpush1.bf16.msra.mxu0 0
        %924 = vmatprep.subr.bf16.mxu0 0
        %925 = vmatpush1.bf16.msra.mxu0 0
        %926 = vmatprep.subr.bf16.mxu0 0
        %927 = vmatpush1.bf16.msra.mxu0 0
        %928 = vmatprep.subr.bf16.mxu0 0
        %929 = vmatpush1.bf16.msra.mxu0 0
        %930 = vmatprep.subr.bf16.mxu0 0
        %931 = vmatpush1.bf16.msra.mxu0 0
        %932 = vmatprep.subr.bf16.mxu0 0
        %933 = vmatpush1.bf16.msra.mxu0 0
        %934 = vmatprep.subr.bf16.mxu0 0
        %935 = vmatpush1.bf16.msra.mxu0 0
        %936 = vmatprep.mubr.bf16.mxu0 0
        %937 = vmatmul.mubr.bf16.gmra.mrb[0].mxu0 %v862
        %v938 = vpop.f32.mrb[0].mxu0
        %v939 = vadd.f32 %v380, %v938
        %v940 = vpop.f32.mrb[0].mxu0
        %v941 = vpop.f32.mrb[0].mxu0
        %v942 = vpop.f32.mrb[0].mxu0
        %943 = vdwg.mxu0
        %v944 = vadd.f32 %v859, %v898
        %v945 = vxor.u32 %v944, 2147483648
        %v946 = vmul.f32 %v945, 1.442695
        %v947 = vpow.pop %v946
        %v948 = vadd.f32 %v947, 1.0
        %v949 = vrcp.pop %v948
        %v950 = vmul.f32 1.0, %v949
        %v951 = vadd.f32 %v860, %v900
        %v952 = vxor.u32 %v951, 2147483648
        %v953 = vmul.f32 %v952, 1.442695
        %v954 = vpow.pop %v953
        %v955 = vadd.f32 %v954, 1.0
        %v956 = vrcp.pop %v955
        %v957 = vmul.f32 1.0, %v956
        %v958 = vmul.f32 %v950, %v939
        %v959 = vadd.f32 %v861, %v958
        %v960 = vtanh.pop %v959
        %v961 = vsub.f32 1.0, %v957
        %v962 = vmul.f32 %v961, %v960
        %v963 = vmul.f32 %v957, %v847
        %v964 = vadd.f32 %v962, %v963
        %s965 = smul.u32 %s853, 8
        %s966 = scalar_lea.vmem %s295, %s965 [#allocation4]
        %967 = vst [vmem:[%s966] sm:$0xff] %v964
        %s968 = smul.u32 %s617, 4
        %s969 = smul.u32 %s18, 3
        %s970 = sadd.s32 %s968, %s969
        %s971 = smul.u32 %s970, 3
        %s972 = smul.addr %s971, 4
        %s973 = scalar_lea.vmem %s267, %s972 [#allocation3]
        %v974 = vld [vmem:[%s973] sm:$0xff]
        %v975 = vld [vmem:[%s973 + $0x8] sm:$0xf]
        %v976 = vunpack.c.l.bf16 %v974
        %v977 = vunpack.c.h.bf16 %v974
        %v978 = vunpack.c.l.bf16 %v975
        %v979 = vpack.c.bf16 %v964, %v964
        %980 = vmatprep.subr.bf16.mxu0 %v465
        %981 = vmatpush1.bf16.msra.mxu0 %v464
        %982 = vmatprep.subr.bf16.mxu0 %v468
        %983 = vmatpush1.bf16.msra.mxu0 %v467
        %984 = vmatprep.subr.bf16.mxu0 %v471
        %985 = vmatpush1.bf16.msra.mxu0 %v470
        %986 = vmatprep.subr.bf16.mxu0 %v474
        %987 = vmatpush1.bf16.msra.mxu0 %v473
        %988 = vmatprep.subr.bf16.mxu0 %v477
        %989 = vmatpush1.bf16.msra.mxu0 %v476
        %990 = vmatprep.subr.bf16.mxu0 %v480
        %991 = vmatpush1.bf16.msra.mxu0 %v479
        %992 = vmatprep.subr.bf16.mxu0 %v483
        %993 = vmatpush1.bf16.msra.mxu0 %v482
        %994 = vmatprep.subr.bf16.mxu0 %v486
        %995 = vmatpush1.bf16.msra.mxu0 %v485
        %996 = vmatprep.subr.bf16.mxu0 0
        %997 = vmatpush1.bf16.msra.mxu0 0
        %998 = vmatprep.subr.bf16.mxu0 0
        %999 = vmatpush1.bf16.msra.mxu0 0
        %1000 = vmatprep.subr.bf16.mxu0 0
        %1001 = vmatpush1.bf16.msra.mxu0 0
        %1002 = vmatprep.subr.bf16.mxu0 0
        %1003 = vmatpush1.bf16.msra.mxu0 0
        %1004 = vmatprep.subr.bf16.mxu0 0
        %1005 = vmatpush1.bf16.msra.mxu0 0
        %1006 = vmatprep.subr.bf16.mxu0 0
        %1007 = vmatpush1.bf16.msra.mxu0 0
        %1008 = vmatprep.subr.bf16.mxu0 0
        %1009 = vmatpush1.bf16.msra.mxu0 0
        %1010 = vmatprep.subr.bf16.mxu0 0
        %1011 = vmatpush1.bf16.msra.mxu0 0
        %1012 = vmatprep.mubr.bf16.mxu0 0
        %1013 = vmatmul.mubr.bf16.gmra.mrb[0].mxu0 %v979
        %v1014 = vpop.f32.mrb[0].mxu0
        %v1015 = vadd.f32 %v372, %v1014
        %v1016 = vpop.f32.mrb[0].mxu0
        %v1017 = vadd.f32 %v376, %v1016
        %v1018 = vpop.f32.mrb[0].mxu0
        %v1019 = vpop.f32.mrb[0].mxu0
        %1020 = vdwg.mxu0
        %1021 = vmatprep.subr.bf16.mxu0 0
        %1022 = vmatpush1.bf16.msra.mxu0 %v466
        %1023 = vmatprep.subr.bf16.mxu0 0
        %1024 = vmatpush1.bf16.msra.mxu0 %v469
        %1025 = vmatprep.subr.bf16.mxu0 0
        %1026 = vmatpush1.bf16.msra.mxu0 %v472
        %1027 = vmatprep.subr.bf16.mxu0 0
        %1028 = vmatpush1.bf16.msra.mxu0 %v475
        %1029 = vmatprep.subr.bf16.mxu0 0
        %1030 = vmatpush1.bf16.msra.mxu0 %v478
        %1031 = vmatprep.subr.bf16.mxu0 0
        %1032 = vmatpush1.bf16.msra.mxu0 %v481
        %1033 = vmatprep.subr.bf16.mxu0 0
        %1034 = vmatpush1.bf16.msra.mxu0 %v484
        %1035 = vmatprep.subr.bf16.mxu0 0
        %1036 = vmatpush1.bf16.msra.mxu0 %v487
        %1037 = vmatprep.subr.bf16.mxu0 0
        %1038 = vmatpush1.bf16.msra.mxu0 0
        %1039 = vmatprep.subr.bf16.mxu0 0
        %1040 = vmatpush1.bf16.msra.mxu0 0
        %1041 = vmatprep.subr.bf16.mxu0 0
        %1042 = vmatpush1.bf16.msra.mxu0 0
        %1043 = vmatprep.subr.bf16.mxu0 0
        %1044 = vmatpush1.bf16.msra.mxu0 0
        %1045 = vmatprep.subr.bf16.mxu0 0
        %1046 = vmatpush1.bf16.msra.mxu0 0
        %1047 = vmatprep.subr.bf16.mxu0 0
        %1048 = vmatpush1.bf16.msra.mxu0 0
        %1049 = vmatprep.subr.bf16.mxu0 0
        %1050 = vmatpush1.bf16.msra.mxu0 0
        %1051 = vmatprep.subr.bf16.mxu0 0
        %1052 = vmatpush1.bf16.msra.mxu0 0
        %1053 = vmatprep.mubr.bf16.mxu0 0
        %1054 = vmatmul.mubr.bf16.gmra.mrb[0].mxu0 %v979
        %v1055 = vpop.f32.mrb[0].mxu0
        %v1056 = vadd.f32 %v380, %v1055
        %v1057 = vpop.f32.mrb[0].mxu0
        %v1058 = vpop.f32.mrb[0].mxu0
        %v1059 = vpop.f32.mrb[0].mxu0
        %1060 = vdwg.mxu0
        %v1061 = vadd.f32 %v976, %v1015
        %v1062 = vxor.u32 %v1061, 2147483648
        %v1063 = vmul.f32 %v1062, 1.442695
        %v1064 = vpow.pop %v1063
        %v1065 = vadd.f32 %v1064, 1.0
        %v1066 = vrcp.pop %v1065
        %v1067 = vmul.f32 1.0, %v1066
        %v1068 = vadd.f32 %v977, %v1017
        %v1069 = vxor.u32 %v1068, 2147483648
        %v1070 = vmul.f32 %v1069, 1.442695
        %v1071 = vpow.pop %v1070
        %v1072 = vadd.f32 %v1071, 1.0
        %v1073 = vrcp.pop %v1072
        %v1074 = vmul.f32 1.0, %v1073
        %v1075 = vmul.f32 %v1067, %v1056
        %v1076 = vadd.f32 %v978, %v1075
        %v1077 = vtanh.pop %v1076
        %v1078 = vsub.f32 1.0, %v1074
        %v1079 = vmul.f32 %v1078, %v1077
        %v1080 = vmul.f32 %v1074, %v964
        %v1081 = vadd.f32 %v1079, %v1080
        %s1082 = smul.u32 %s970, 8
        %s1083 = scalar_lea.vmem %s295, %s1082 [#allocation4]
        %1084 = vst [vmem:[%s1083] sm:$0xff] %v1081
        %s1085 = smul.u32 %s617, 5
        %s1086 = smul.u32 %s18, 2
        %s1087 = sadd.s32 %s1085, %s1086
        %s1088 = smul.u32 %s1087, 3
        %s1089 = smul.addr %s1088, 4
        %s1090 = scalar_lea.vmem %s267, %s1089 [#allocation3]
        %v1091 = vld [vmem:[%s1090] sm:$0xff]
        %v1092 = vld [vmem:[%s1090 + $0x8] sm:$0xf]
        %v1093 = vunpack.c.l.bf16 %v1091
        %v1094 = vunpack.c.h.bf16 %v1091
        %v1095 = vunpack.c.l.bf16 %v1092
        %v1096 = vpack.c.bf16 %v1081, %v1081
        %1097 = vmatprep.subr.bf16.mxu0 %v465
        %1098 = vmatpush1.bf16.msra.mxu0 %v464
        %1099 = vmatprep.subr.bf16.mxu0 %v468
        %1100 = vmatpush1.bf16.msra.mxu0 %v467
        %1101 = vmatprep.subr.bf16.mxu0 %v471
        %1102 = vmatpush1.bf16.msra.mxu0 %v470
        %1103 = vmatprep.subr.bf16.mxu0 %v474
        %1104 = vmatpush1.bf16.msra.mxu0 %v473
        %1105 = vmatprep.subr.bf16.mxu0 %v477
        %1106 = vmatpush1.bf16.msra.mxu0 %v476
        %1107 = vmatprep.subr.bf16.mxu0 %v480
        %1108 = vmatpush1.bf16.msra.mxu0 %v479
        %1109 = vmatprep.subr.bf16.mxu0 %v483
        %1110 = vmatpush1.bf16.msra.mxu0 %v482
        %1111 = vmatprep.subr.bf16.mxu0 %v486
        %1112 = vmatpush1.bf16.msra.mxu0 %v485
        %1113 = vmatprep.subr.bf16.mxu0 0
        %1114 = vmatpush1.bf16.msra.mxu0 0
        %1115 = vmatprep.subr.bf16.mxu0 0
        %1116 = vmatpush1.bf16.msra.mxu0 0
        %1117 = vmatprep.subr.bf16.mxu0 0
        %1118 = vmatpush1.bf16.msra.mxu0 0
        %1119 = vmatprep.subr.bf16.mxu0 0
        %1120 = vmatpush1.bf16.msra.mxu0 0
        %1121 = vmatprep.subr.bf16.mxu0 0
        %1122 = vmatpush1.bf16.msra.mxu0 0
        %1123 = vmatprep.subr.bf16.mxu0 0
        %1124 = vmatpush1.bf16.msra.mxu0 0
        %1125 = vmatprep.subr.bf16.mxu0 0
        %1126 = vmatpush1.bf16.msra.mxu0 0
        %1127 = vmatprep.subr.bf16.mxu0 0
        %1128 = vmatpush1.bf16.msra.mxu0 0
        %1129 = vmatprep.mubr.bf16.mxu0 0
        %1130 = vmatmul.mubr.bf16.gmra.mrb[0].mxu0 %v1096
        %v1131 = vpop.f32.mrb[0].mxu0
        %v1132 = vadd.f32 %v372, %v1131
        %v1133 = vpop.f32.mrb[0].mxu0
        %v1134 = vadd.f32 %v376, %v1133
        %v1135 = vpop.f32.mrb[0].mxu0
        %v1136 = vpop.f32.mrb[0].mxu0
        %1137 = vdwg.mxu0
        %1138 = vmatprep.subr.bf16.mxu0 0
        %1139 = vmatpush1.bf16.msra.mxu0 %v466
        %1140 = vmatprep.subr.bf16.mxu0 0
        %1141 = vmatpush1.bf16.msra.mxu0 %v469
        %1142 = vmatprep.subr.bf16.mxu0 0
        %1143 = vmatpush1.bf16.msra.mxu0 %v472
        %1144 = vmatprep.subr.bf16.mxu0 0
        %1145 = vmatpush1.bf16.msra.mxu0 %v475
        %1146 = vmatprep.subr.bf16.mxu0 0
        %1147 = vmatpush1.bf16.msra.mxu0 %v478
        %1148 = vmatprep.subr.bf16.mxu0 0
        %1149 = vmatpush1.bf16.msra.mxu0 %v481
        %1150 = vmatprep.subr.bf16.mxu0 0
        %1151 = vmatpush1.bf16.msra.mxu0 %v484
        %1152 = vmatprep.subr.bf16.mxu0 0
        %1153 = vmatpush1.bf16.msra.mxu0 %v487
        %1154 = vmatprep.subr.bf16.mxu0 0
        %1155 = vmatpush1.bf16.msra.mxu0 0
        %1156 = vmatprep.subr.bf16.mxu0 0
        %1157 = vmatpush1.bf16.msra.mxu0 0
        %1158 = vmatprep.subr.bf16.mxu0 0
        %1159 = vmatpush1.bf16.msra.mxu0 0
        %1160 = vmatprep.subr.bf16.mxu0 0
        %1161 = vmatpush1.bf16.msra.mxu0 0
        %1162 = vmatprep.subr.bf16.mxu0 0
        %1163 = vmatpush1.bf16.msra.mxu0 0
        %1164 = vmatprep.subr.bf16.mxu0 0
        %1165 = vmatpush1.bf16.msra.mxu0 0
        %1166 = vmatprep.subr.bf16.mxu0 0
        %1167 = vmatpush1.bf16.msra.mxu0 0
        %1168 = vmatprep.subr.bf16.mxu0 0
        %1169 = vmatpush1.bf16.msra.mxu0 0
        %1170 = vmatprep.mubr.bf16.mxu0 0
        %1171 = vmatmul.mubr.bf16.gmra.mrb[0].mxu0 %v1096
        %v1172 = vpop.f32.mrb[0].mxu0
        %v1173 = vadd.f32 %v380, %v1172
        %v1174 = vpop.f32.mrb[0].mxu0
        %v1175 = vpop.f32.mrb[0].mxu0
        %v1176 = vpop.f32.mrb[0].mxu0
        %1177 = vdwg.mxu0
        %v1178 = vadd.f32 %v1093, %v1132
        %v1179 = vxor.u32 %v1178, 2147483648
        %v1180 = vmul.f32 %v1179, 1.442695
        %v1181 = vpow.pop %v1180
        %v1182 = vadd.f32 %v1181, 1.0
        %v1183 = vrcp.pop %v1182
        %v1184 = vmul.f32 1.0, %v1183
        %v1185 = vadd.f32 %v1094, %v1134
        %v1186 = vxor.u32 %v1185, 2147483648
        %v1187 = vmul.f32 %v1186, 1.442695
        %v1188 = vpow.pop %v1187
        %v1189 = vadd.f32 %v1188, 1.0
        %v1190 = vrcp.pop %v1189
        %v1191 = vmul.f32 1.0, %v1190
        %v1192 = vmul.f32 %v1184, %v1173
        %v1193 = vadd.f32 %v1095, %v1192
        %v1194 = vtanh.pop %v1193
        %v1195 = vsub.f32 1.0, %v1191
        %v1196 = vmul.f32 %v1195, %v1194
        %v1197 = vmul.f32 %v1191, %v1081
        %v1198 = vadd.f32 %v1196, %v1197
        %s1199 = smul.u32 %s1087, 8
        %s1200 = scalar_lea.vmem %s295, %s1199 [#allocation4]
        %1201 = vst [vmem:[%s1200] sm:$0xff] %v1198
        %s1202 = smul.u32 %s617, 6
        %s1203 = sadd.s32 %s1202, %s18
        %s1204 = smul.u32 %s1203, 3
        %s1205 = smul.addr %s1204, 4
        %s1206 = scalar_lea.vmem %s267, %s1205 [#allocation3]
        %v1207 = vld [vmem:[%s1206] sm:$0xff]
        %v1208 = vld [vmem:[%s1206 + $0x8] sm:$0xf]
        %v1209 = vunpack.c.l.bf16 %v1207
        %v1210 = vunpack.c.h.bf16 %v1207
        %v1211 = vunpack.c.l.bf16 %v1208
        %v1212 = vpack.c.bf16 %v1198, %v1198
        %1213 = vmatprep.subr.bf16.mxu0 %v465
        %1214 = vmatpush1.bf16.msra.mxu0 %v464
        %1215 = vmatprep.subr.bf16.mxu0 %v468
        %1216 = vmatpush1.bf16.msra.mxu0 %v467
        %1217 = vmatprep.subr.bf16.mxu0 %v471
        %1218 = vmatpush1.bf16.msra.mxu0 %v470
        %1219 = vmatprep.subr.bf16.mxu0 %v474
        %1220 = vmatpush1.bf16.msra.mxu0 %v473
        %1221 = vmatprep.subr.bf16.mxu0 %v477
        %1222 = vmatpush1.bf16.msra.mxu0 %v476
        %1223 = vmatprep.subr.bf16.mxu0 %v480
        %1224 = vmatpush1.bf16.msra.mxu0 %v479
        %1225 = vmatprep.subr.bf16.mxu0 %v483
        %1226 = vmatpush1.bf16.msra.mxu0 %v482
        %1227 = vmatprep.subr.bf16.mxu0 %v486
        %1228 = vmatpush1.bf16.msra.mxu0 %v485
        %1229 = vmatprep.subr.bf16.mxu0 0
        %1230 = vmatpush1.bf16.msra.mxu0 0
        %1231 = vmatprep.subr.bf16.mxu0 0
        %1232 = vmatpush1.bf16.msra.mxu0 0
        %1233 = vmatprep.subr.bf16.mxu0 0
        %1234 = vmatpush1.bf16.msra.mxu0 0
        %1235 = vmatprep.subr.bf16.mxu0 0
        %1236 = vmatpush1.bf16.msra.mxu0 0
        %1237 = vmatprep.subr.bf16.mxu0 0
        %1238 = vmatpush1.bf16.msra.mxu0 0
        %1239 = vmatprep.subr.bf16.mxu0 0
        %1240 = vmatpush1.bf16.msra.mxu0 0
        %1241 = vmatprep.subr.bf16.mxu0 0
        %1242 = vmatpush1.bf16.msra.mxu0 0
        %1243 = vmatprep.subr.bf16.mxu0 0
        %1244 = vmatpush1.bf16.msra.mxu0 0
        %1245 = vmatprep.mubr.bf16.mxu0 0
        %1246 = vmatmul.mubr.bf16.gmra.mrb[0].mxu0 %v1212
        %v1247 = vpop.f32.mrb[0].mxu0
        %v1248 = vadd.f32 %v372, %v1247
        %v1249 = vpop.f32.mrb[0].mxu0
        %v1250 = vadd.f32 %v376, %v1249
        %v1251 = vpop.f32.mrb[0].mxu0
        %v1252 = vpop.f32.mrb[0].mxu0
        %1253 = vdwg.mxu0
        %1254 = vmatprep.subr.bf16.mxu0 0
        %1255 = vmatpush1.bf16.msra.mxu0 %v466
        %1256 = vmatprep.subr.bf16.mxu0 0
        %1257 = vmatpush1.bf16.msra.mxu0 %v469
        %1258 = vmatprep.subr.bf16.mxu0 0
        %1259 = vmatpush1.bf16.msra.mxu0 %v472
        %1260 = vmatprep.subr.bf16.mxu0 0
        %1261 = vmatpush1.bf16.msra.mxu0 %v475
        %1262 = vmatprep.subr.bf16.mxu0 0
        %1263 = vmatpush1.bf16.msra.mxu0 %v478
        %1264 = vmatprep.subr.bf16.mxu0 0
        %1265 = vmatpush1.bf16.msra.mxu0 %v481
        %1266 = vmatprep.subr.bf16.mxu0 0
        %1267 = vmatpush1.bf16.msra.mxu0 %v484
        %1268 = vmatprep.subr.bf16.mxu0 0
        %1269 = vmatpush1.bf16.msra.mxu0 %v487
        %1270 = vmatprep.subr.bf16.mxu0 0
        %1271 = vmatpush1.bf16.msra.mxu0 0
        %1272 = vmatprep.subr.bf16.mxu0 0
        %1273 = vmatpush1.bf16.msra.mxu0 0
        %1274 = vmatprep.subr.bf16.mxu0 0
        %1275 = vmatpush1.bf16.msra.mxu0 0
        %1276 = vmatprep.subr.bf16.mxu0 0
        %1277 = vmatpush1.bf16.msra.mxu0 0
        %1278 = vmatprep.subr.bf16.mxu0 0
        %1279 = vmatpush1.bf16.msra.mxu0 0
        %1280 = vmatprep.subr.bf16.mxu0 0
        %1281 = vmatpush1.bf16.msra.mxu0 0
        %1282 = vmatprep.subr.bf16.mxu0 0
        %1283 = vmatpush1.bf16.msra.mxu0 0
        %1284 = vmatprep.subr.bf16.mxu0 0
        %1285 = vmatpush1.bf16.msra.mxu0 0
        %1286 = vmatprep.mubr.bf16.mxu0 0
        %1287 = vmatmul.mubr.bf16.gmra.mrb[0].mxu0 %v1212
        %v1288 = vpop.f32.mrb[0].mxu0
        %v1289 = vadd.f32 %v380, %v1288
        %v1290 = vpop.f32.mrb[0].mxu0
        %v1291 = vpop.f32.mrb[0].mxu0
        %v1292 = vpop.f32.mrb[0].mxu0
        %1293 = vdwg.mxu0
        %v1294 = vadd.f32 %v1209, %v1248
        %v1295 = vxor.u32 %v1294, 2147483648
        %v1296 = vmul.f32 %v1295, 1.442695
        %v1297 = vpow.pop %v1296
        %v1298 = vadd.f32 %v1297, 1.0
        %v1299 = vrcp.pop %v1298
        %v1300 = vmul.f32 1.0, %v1299
        %v1301 = vadd.f32 %v1210, %v1250
        %v1302 = vxor.u32 %v1301, 2147483648
        %v1303 = vmul.f32 %v1302, 1.442695
        %v1304 = vpow.pop %v1303
        %v1305 = vadd.f32 %v1304, 1.0
        %v1306 = vrcp.pop %v1305
        %v1307 = vmul.f32 1.0, %v1306
        %v1308 = vmul.f32 %v1300, %v1289
        %v1309 = vadd.f32 %v1211, %v1308
        %v1310 = vtanh.pop %v1309
        %v1311 = vsub.f32 1.0, %v1307
        %v1312 = vmul.f32 %v1311, %v1310
        %v1313 = vmul.f32 %v1307, %v1198
        %v1314 = vadd.f32 %v1312, %v1313
        %s1315 = smul.u32 %s1203, 8
        %s1316 = scalar_lea.vmem %s295, %s1315 [#allocation4]
        %1317 = vst [vmem:[%s1316] sm:$0xff] %v1314
        %s1318 = smul.u32 %s617, 7
        %s1319 = smul.u32 %s1318, 3
        %s1320 = smul.addr %s1319, 4
        %s1321 = scalar_lea.vmem %s267, %s1320 [#allocation3]
        %v1322 = vld [vmem:[%s1321] sm:$0xff]
        %v1323 = vld [vmem:[%s1321 + $0x8] sm:$0xf]
        %v1324 = vunpack.c.l.bf16 %v1322
        %v1325 = vunpack.c.h.bf16 %v1322
        %v1326 = vunpack.c.l.bf16 %v1323
        %v1327 = vpack.c.bf16 %v1314, %v1314
        %1328 = vmatprep.subr.bf16.mxu0 %v465
        %1329 = vmatpush1.bf16.msra.mxu0 %v464
        %1330 = vmatprep.subr.bf16.mxu0 %v468
        %1331 = vmatpush1.bf16.msra.mxu0 %v467
        %1332 = vmatprep.subr.bf16.mxu0 %v471
        %1333 = vmatpush1.bf16.msra.mxu0 %v470
        %1334 = vmatprep.subr.bf16.mxu0 %v474
        %1335 = vmatpush1.bf16.msra.mxu0 %v473
        %1336 = vmatprep.subr.bf16.mxu0 %v477
        %1337 = vmatpush1.bf16.msra.mxu0 %v476
        %1338 = vmatprep.subr.bf16.mxu0 %v480
        %1339 = vmatpush1.bf16.msra.mxu0 %v479
        %1340 = vmatprep.subr.bf16.mxu0 %v483
        %1341 = vmatpush1.bf16.msra.mxu0 %v482
        %1342 = vmatprep.subr.bf16.mxu0 %v486
        %1343 = vmatpush1.bf16.msra.mxu0 %v485
        %1344 = vmatprep.subr.bf16.mxu0 0
        %1345 = vmatpush1.bf16.msra.mxu0 0
        %1346 = vmatprep.subr.bf16.mxu0 0
        %1347 = vmatpush1.bf16.msra.mxu0 0
        %1348 = vmatprep.subr.bf16.mxu0 0
        %1349 = vmatpush1.bf16.msra.mxu0 0
        %1350 = vmatprep.subr.bf16.mxu0 0
        %1351 = vmatpush1.bf16.msra.mxu0 0
        %1352 = vmatprep.subr.bf16.mxu0 0
        %1353 = vmatpush1.bf16.msra.mxu0 0
        %1354 = vmatprep.subr.bf16.mxu0 0
        %1355 = vmatpush1.bf16.msra.mxu0 0
        %1356 = vmatprep.subr.bf16.mxu0 0
        %1357 = vmatpush1.bf16.msra.mxu0 0
        %1358 = vmatprep.subr.bf16.mxu0 0
        %1359 = vmatpush1.bf16.msra.mxu0 0
        %1360 = vmatprep.mubr.bf16.mxu0 0
        %1361 = vmatmul.mubr.bf16.gmra.mrb[0].mxu0 %v1327
        %v1362 = vpop.f32.mrb[0].mxu0
        %v1363 = vadd.f32 %v372, %v1362
        %v1364 = vpop.f32.mrb[0].mxu0
        %v1365 = vadd.f32 %v376, %v1364
        %v1366 = vpop.f32.mrb[0].mxu0
        %v1367 = vpop.f32.mrb[0].mxu0
        %1368 = vdwg.mxu0
        %1369 = vmatprep.subr.bf16.mxu0 0
        %1370 = vmatpush1.bf16.msra.mxu0 %v466
        %1371 = vmatprep.subr.bf16.mxu0 0
        %1372 = vmatpush1.bf16.msra.mxu0 %v469
        %1373 = vmatprep.subr.bf16.mxu0 0
        %1374 = vmatpush1.bf16.msra.mxu0 %v472
        %1375 = vmatprep.subr.bf16.mxu0 0
        %1376 = vmatpush1.bf16.msra.mxu0 %v475
        %1377 = vmatprep.subr.bf16.mxu0 0
        %1378 = vmatpush1.bf16.msra.mxu0 %v478
        %1379 = vmatprep.subr.bf16.mxu0 0
        %1380 = vmatpush1.bf16.msra.mxu0 %v481
        %1381 = vmatprep.subr.bf16.mxu0 0
        %1382 = vmatpush1.bf16.msra.mxu0 %v484
        %1383 = vmatprep.subr.bf16.mxu0 0
        %1384 = vmatpush1.bf16.msra.mxu0 %v487
        %1385 = vmatprep.subr.bf16.mxu0 0
        %1386 = vmatpush1.bf16.msra.mxu0 0
        %1387 = vmatprep.subr.bf16.mxu0 0
        %1388 = vmatpush1.bf16.msra.mxu0 0
        %1389 = vmatprep.subr.bf16.mxu0 0
        %1390 = vmatpush1.bf16.msra.mxu0 0
        %1391 = vmatprep.subr.bf16.mxu0 0
        %1392 = vmatpush1.bf16.msra.mxu0 0
        %1393 = vmatprep.subr.bf16.mxu0 0
        %1394 = vmatpush1.bf16.msra.mxu0 0
        %1395 = vmatprep.subr.bf16.mxu0 0
        %1396 = vmatpush1.bf16.msra.mxu0 0
        %1397 = vmatprep.subr.bf16.mxu0 0
        %1398 = vmatpush1.bf16.msra.mxu0 0
        %1399 = vmatprep.subr.bf16.mxu0 0
        %1400 = vmatpush1.bf16.msra.mxu0 0
        %1401 = vmatprep.mubr.bf16.mxu0 0
        %1402 = vmatmul.mubr.bf16.gmra.mrb[0].mxu0 %v1327
        %v1403 = vpop.f32.mrb[0].mxu0
        %v1404 = vadd.f32 %v380, %v1403
        %v1405 = vpop.f32.mrb[0].mxu0
        %v1406 = vpop.f32.mrb[0].mxu0
        %v1407 = vpop.f32.mrb[0].mxu0
        %1408 = vdwg.mxu0
        %v1409 = vadd.f32 %v1324, %v1363
        %v1410 = vxor.u32 %v1409, 2147483648
        %v1411 = vmul.f32 %v1410, 1.442695
        %v1412 = vpow.pop %v1411
        %v1413 = vadd.f32 %v1412, 1.0
        %v1414 = vrcp.pop %v1413
        %v1415 = vmul.f32 1.0, %v1414
        %v1416 = vadd.f32 %v1325, %v1365
        %v1417 = vxor.u32 %v1416, 2147483648
        %v1418 = vmul.f32 %v1417, 1.442695
        %v1419 = vpow.pop %v1418
        %v1420 = vadd.f32 %v1419, 1.0
        %v1421 = vrcp.pop %v1420
        %v1422 = vmul.f32 1.0, %v1421
        %v1423 = vmul.f32 %v1415, %v1404
        %v1424 = vadd.f32 %v1326, %v1423
        %v1425 = vtanh.pop %v1424
        %v1426 = vsub.f32 1.0, %v1422
        %v1427 = vmul.f32 %v1426, %v1425
        %v1428 = vmul.f32 %v1422, %v1314
        %v1429 = vadd.f32 %v1427, %v1428
        %s1430 = smul.u32 %s1318, 8
        %s1431 = scalar_lea.vmem %s295, %s1430 [#allocation4]
        %1432 = vst [vmem:[%s1431] sm:$0xff] %v1429
        %1433 = vst [vmem:[#allocation2] sm:$0xff] %v1429
        %s1434 = sand.u32 %s136, 1
        %s1435 = sand.u32 %s136, 1
        %s1436 = smul.addr %s1435, 64
        %s1437 = scalar_lea.vmem [#allocation4], %s1436
        // Predicated region
        $region63: #{emodel_bigru_forward.12} parent=53 // pred_check
          %p1438 = pneg %p146
        $region64: #{emodel_bigru_forward.12} parent=53 // pred_check_branch
          %1440 = sbr.rel (%p1438) target = $region66
        $region65: #{emodel_bigru_forward.12} parent=53 // pred_region
          %s1441 = ssub.s32 1, %s18
          %s1442 = smul.u32 %s1441, %s19
          %s1443 = ssub.s32 0, %s19
          %s1444 = smul.u32 %s18, %s1443
          %s1445 = sadd.s32 %s1442, %s1444
          %s1446 = smul.u32 8, %s1445
          %s1447 = smul.addr %s1446, 2
          %s1448 = sadd.s32 %s18, %s1447
          %s1449 = smul.addr %s1448, 8
          %s1450 = scalar_lea.vmem %s3, %s1449
          // Predicated region
          $region67: #{emodel_bigru_forward.12} parent=65 // pred_check
            _
          $region68: #{emodel_bigru_forward.12} parent=65 // pred_check_branch
            %1452 = sbr.rel (0) target = $region70
          $region69: #{emodel_bigru_forward.12} parent=65 // pred_region
            // Predicated region
            $region71: #{emodel_bigru_forward.12} parent=69 // pred_check
              _
            $region72: #{emodel_bigru_forward.12} parent=69 // pred_check_branch
              %1454 = sbr.rel (0) target = $region74
            $region73: #{emodel_bigru_forward.12} parent=69 // pred_region
              // Predicated region
              $region86: #{emodel_bigru_forward.12} parent=73 // pred_check
                _
              $region87: #{emodel_bigru_forward.12} parent=73 // pred_check_branch
                %1483 = sbr.rel (0) target = $region89
              $region88: #{emodel_bigru_forward.12} parent=73 // pred_region
                loop: start=0, step=1, limit=1
                $region90: #{emodel_bigru_forward.12} parent=88 // loop_pre_header
                  _
                $region91: #{emodel_bigru_forward.12} parent=88 // loop_header
                  %s1485 = sphi 0, %s1489
                  %p1486 = scmp.ge.s32.totalorder %s1485, 1
                  %s1490 = sphi %s1437, %s1437
                  %s1491 = sphi %s1450, %s1450
                $region92: #{emodel_bigru_forward.12} parent=88 // loop_header_branch
                  %1488 = sbr.rel (%p1486) target = $region96
                $region93: #{emodel_bigru_forward.12} parent=88 // loop_body
                  %v1492 = vld [vmem:[%s1490] sm:$0xff]
                  %1493 = vst [vmem:[%s1491] sm:$0xff] %v1492
                  %v1494 = vld [vmem:[%s1490 + $0x8] sm:$0xff]
                  %1495 = vst [vmem:[%s1491 + $0x10] sm:$0xff] %v1494
                  %v1496 = vld [vmem:[%s1490 + $0x10] sm:$0xff]
                  %1497 = vst [vmem:[%s1491 + $0x20] sm:$0xff] %v1496
                  %v1498 = vld [vmem:[%s1490 + $0x18] sm:$0xff]
                  %1499 = vst [vmem:[%s1491 + $0x30] sm:$0xff] %v1498
                  %v1500 = vld [vmem:[%s1490 + $0x20] sm:$0xff]
                  %1501 = vst [vmem:[%s1491 + $0x40] sm:$0xff] %v1500
                  %v1502 = vld [vmem:[%s1490 + $0x28] sm:$0xff]
                  %1503 = vst [vmem:[%s1491 + $0x50] sm:$0xff] %v1502
                  %v1504 = vld [vmem:[%s1490 + $0x30] sm:$0xff]
                  %1505 = vst [vmem:[%s1491 + $0x60] sm:$0xff] %v1504
                  %v1506 = vld [vmem:[%s1490 + $0x38] sm:$0xff]
                  %1507 = vst [vmem:[%s1491 + $0x70] sm:$0xff] %v1506
                $region94: #{emodel_bigru_forward.12} parent=88 // loop_footer
                  %s1489 = sadd.s32 1, %s1485
                $region95: #{emodel_bigru_forward.12} parent=88 // loop_footer_branch
                  %1484 = sbr.rel target = $region91
                $region96: #{emodel_bigru_forward.12} parent=88 // loop_exit
                  _
              $region89: #{emodel_bigru_forward.12} parent=73 // pred_fallthru
                _
              // Predicated region
              $region97: #{emodel_bigru_forward.12} parent=73 // pred_check
                _
              $region98: #{emodel_bigru_forward.12} parent=73 // pred_check_branch
                %1509 = sbr.rel target = $region100
              $region99: #{emodel_bigru_forward.12} parent=73 // pred_region
                _
              $region100: #{emodel_bigru_forward.12} parent=73 // pred_fallthru
                _
            $region74: #{emodel_bigru_forward.12} parent=69 // pred_fallthru
              _
            // Predicated region
            $region75: #{emodel_bigru_forward.12} parent=69 // pred_check
              _
            $region76: #{emodel_bigru_forward.12} parent=69 // pred_check_branch
              %1456 = sbr.rel target = $region78
            $region77: #{emodel_bigru_forward.12} parent=69 // pred_region
              loop: start=0, step=1, limit=1
              $region79: #{emodel_bigru_forward.12} parent=77 // loop_pre_header
                _
              $region80: #{emodel_bigru_forward.12} parent=77 // loop_header
                %s1459 = sphi 0, %s1463
                %p1460 = scmp.ge.s32.totalorder %s1459, 1
                %s1464 = sphi %s1437, %s1437
                %s1465 = sphi %s1450, %s1450
              $region81: #{emodel_bigru_forward.12} parent=77 // loop_header_branch
                %1462 = sbr.rel (%p1460) target = $region85
              $region82: #{emodel_bigru_forward.12} parent=77 // loop_body
                %v1466 = vld [vmem:[%s1464] sm:$0xff]
                %1467 = vst [vmem:[%s1465] sm:$0xff] %v1466
                %v1468 = vld [vmem:[%s1464 + $0x8] sm:$0xff]
                %1469 = vst [vmem:[%s1465 + $0x10] sm:$0xff] %v1468
                %v1470 = vld [vmem:[%s1464 + $0x10] sm:$0xff]
                %1471 = vst [vmem:[%s1465 + $0x20] sm:$0xff] %v1470
                %v1472 = vld [vmem:[%s1464 + $0x18] sm:$0xff]
                %1473 = vst [vmem:[%s1465 + $0x30] sm:$0xff] %v1472
                %v1474 = vld [vmem:[%s1464 + $0x20] sm:$0xff]
                %1475 = vst [vmem:[%s1465 + $0x40] sm:$0xff] %v1474
                %v1476 = vld [vmem:[%s1464 + $0x28] sm:$0xff]
                %1477 = vst [vmem:[%s1465 + $0x50] sm:$0xff] %v1476
                %v1478 = vld [vmem:[%s1464 + $0x30] sm:$0xff]
                %1479 = vst [vmem:[%s1465 + $0x60] sm:$0xff] %v1478
                %v1480 = vld [vmem:[%s1464 + $0x38] sm:$0xff]
                %1481 = vst [vmem:[%s1465 + $0x70] sm:$0xff] %v1480
              $region83: #{emodel_bigru_forward.12} parent=77 // loop_footer
                %s1463 = sadd.s32 1, %s1459
              $region84: #{emodel_bigru_forward.12} parent=77 // loop_footer_branch
                %1458 = sbr.rel target = $region80
              $region85: #{emodel_bigru_forward.12} parent=77 // loop_exit
                _
            $region78: #{emodel_bigru_forward.12} parent=69 // pred_fallthru
              _
          $region70: #{emodel_bigru_forward.12} parent=65 // pred_fallthru
            _
          %1510 = vnop
        $region66: #{emodel_bigru_forward.12} parent=53 // pred_fallthru
          _
      $region54: #{emodel_bigru_forward.12} parent=5 // pred_fallthru
        _
      %p1511 = scmp.le.s32.totalorder 2, %s9
      // Predicated region
      $region101: #{emodel_bigru_forward.12} parent=5 // pred_check
        %p1512 = pneg %p1511
      $region102: #{emodel_bigru_forward.12} parent=5 // pred_check_branch
        %1514 = sbr.rel (%p1512) target = $region104
      $region103: #{emodel_bigru_forward.12} parent=5 // pred_region
        %s1515 = ssub.s32 %s9, 2
        // Predicated region
        $region105: #{emodel_bigru_forward.12} parent=103 // pred_check
          %p1516 = pneg %p152
        $region106: #{emodel_bigru_forward.12} parent=103 // pred_check_branch
          %1518 = sbr.rel (%p1516) target = $region108
        $region107: #{emodel_bigru_forward.12} parent=103 // pred_region
          %s1519 = sand.u32 %s137, 1
          %s1520 = sand.u32 %s137, 1
          %s1521 = smul.addr %s1520, 64
          %s1522 = scalar_lea.vmem [#allocation4], %s1521
        $region108: #{emodel_bigru_forward.12} parent=103 // pred_fallthru
          _
      $region104: #{emodel_bigru_forward.12} parent=5 // pred_fallthru
        _
    $region6: #{emodel_bigru_forward.12} parent=1 // loop_footer
      %s13 = sadd.s32 1, %s9
    $region7: #{emodel_bigru_forward.12} parent=1 // loop_footer_branch
      %8 = sbr.rel target = $region3
    $region8: #{emodel_bigru_forward.12} parent=1 // loop_exit
      _

// kernel: emodel_bigru_forward.13
$region0: #{emodel_bigru_forward.13}
  #allocation0 [shape = 'u32[]', space=smem, size = 0x4, offset = 0x4, fixed_abs, tag = 'smem constant byte address 0x4 - core index']
  #allocation1 [shape = 'u32[144,128]{1,0:T(1,128)}', space=vmem, size = 0x12000, scoped, tag = 'internal scratch']
  %s0 = inlined_call_operand.vmem [shape: f32[64,256], index: 0, kind: input, shape index: {}]
  %s1 = inlined_call_operand.vmem [shape: bf16[256,768], index: 1, kind: input, shape index: {}]
  %s2 = inlined_call_operand.vmem [shape: f32[1,768], index: 2, kind: input, shape index: {}]
  %s3 = inlined_call_operand.vmem [shape: bf16[64,768], index: 3, kind: output, shape index: {}]
  %s4 = sld [smem:[#allocation0]]
  $region22: #{emodel_bigru_forward.13} parent=0
    _
  %s6 = ssub.s32 1, %s4
  %s7 = scalar_select 0, %s6, %s4
  // Predicated region
  $region2: #{emodel_bigru_forward.13} parent=0 // pred_check
    _
  $region3: #{emodel_bigru_forward.13} parent=0 // pred_check_branch
    %9 = sbr.rel (0) target = $region5
  $region4: #{emodel_bigru_forward.13} parent=0 // pred_region
    _
  $region5: #{emodel_bigru_forward.13} parent=0 // pred_fallthru
    _
  // Predicated region
  $region6: #{emodel_bigru_forward.13} parent=0 // pred_check
    _
  $region7: #{emodel_bigru_forward.13} parent=0 // pred_check_branch
    %11 = sbr.rel (0) target = $region9
  $region8: #{emodel_bigru_forward.13} parent=0 // pred_region
    _
  $region9: #{emodel_bigru_forward.13} parent=0 // pred_fallthru
    _
  // Predicated region
  $region10: #{emodel_bigru_forward.13} parent=0 // pred_check
    _
  $region11: #{emodel_bigru_forward.13} parent=0 // pred_check_branch
    %13 = sbr.rel (0) target = $region13
  $region12: #{emodel_bigru_forward.13} parent=0 // pred_region
    _
  $region13: #{emodel_bigru_forward.13} parent=0 // pred_fallthru
    _
  %v14 = vld [vmem:[%s0] sm:$0xff]
  %v15 = vld [vmem:[%s0 + $0x8] sm:$0xff]
  %v16 = vld [vmem:[%s0 + $0x10] sm:$0xff]
  %v17 = vld [vmem:[%s0 + $0x18] sm:$0xff]
  %v18 = vld [vmem:[%s0 + $0x20] sm:$0xff]
  %v19 = vld [vmem:[%s0 + $0x28] sm:$0xff]
  %v20 = vld [vmem:[%s0 + $0x30] sm:$0xff]
  %v21 = vld [vmem:[%s0 + $0x38] sm:$0xff]
  %v22 = vld [vmem:[%s0 + $0x40] sm:$0xff]
  %v23 = vld [vmem:[%s0 + $0x48] sm:$0xff]
  %v24 = vld [vmem:[%s0 + $0x50] sm:$0xff]
  %v25 = vld [vmem:[%s0 + $0x58] sm:$0xff]
  %v26 = vld [vmem:[%s0 + $0x60] sm:$0xff]
  %v27 = vld [vmem:[%s0 + $0x68] sm:$0xff]
  %v28 = vld [vmem:[%s0 + $0x70] sm:$0xff]
  %v29 = vld [vmem:[%s0 + $0x78] sm:$0xff]
  %v30 = vpack.c.bf16 %v16, %v14
  %v31 = vpack.c.bf16 %v17, %v15
  %v32 = vpack.c.bf16 %v20, %v18
  %v33 = vpack.c.bf16 %v21, %v19
  %v34 = vpack.c.bf16 %v24, %v22
  %v35 = vpack.c.bf16 %v25, %v23
  %v36 = vpack.c.bf16 %v28, %v26
  %v37 = vpack.c.bf16 %v29, %v27
  %v38 = vld [vmem:[%s1] sm:$0xff]
  %v39 = vld [vmem:[%s1 + $0x8] sm:$0xff]
  %v40 = vld [vmem:[%s1 + $0x10] sm:$0xff]
  %v41 = vld [vmem:[%s1 + $0x18] sm:$0xff]
  %v42 = vld [vmem:[%s1 + $0x20] sm:$0xff]
  %v43 = vld [vmem:[%s1 + $0x28] sm:$0xff]
  %v44 = vld [vmem:[%s1 + $0x30] sm:$0xff]
  %v45 = vld [vmem:[%s1 + $0x38] sm:$0xff]
  %v46 = vld [vmem:[%s1 + $0x40] sm:$0xff]
  %v47 = vld [vmem:[%s1 + $0x48] sm:$0xff]
  %v48 = vld [vmem:[%s1 + $0x50] sm:$0xff]
  %v49 = vld [vmem:[%s1 + $0x58] sm:$0xff]
  %v50 = vld [vmem:[%s1 + $0x60] sm:$0xff]
  %v51 = vld [vmem:[%s1 + $0x68] sm:$0xff]
  %v52 = vld [vmem:[%s1 + $0x70] sm:$0xff]
  %v53 = vld [vmem:[%s1 + $0x78] sm:$0xff]
  %v54 = vld [vmem:[%s1 + $0x80] sm:$0xff]
  %v55 = vld [vmem:[%s1 + $0x88] sm:$0xff]
  %v56 = vld [vmem:[%s1 + $0x90] sm:$0xff]
  %v57 = vld [vmem:[%s1 + $0x98] sm:$0xff]
  %v58 = vld [vmem:[%s1 + $0xa0] sm:$0xff]
  %v59 = vld [vmem:[%s1 + $0xa8] sm:$0xff]
  %v60 = vld [vmem:[%s1 + $0xb0] sm:$0xff]
  %v61 = vld [vmem:[%s1 + $0xb8] sm:$0xff]
  %v62 = vld [vmem:[%s1 + $0xc0] sm:$0xff]
  %v63 = vld [vmem:[%s1 + $0xc8] sm:$0xff]
  %v64 = vld [vmem:[%s1 + $0xd0] sm:$0xff]
  %v65 = vld [vmem:[%s1 + $0xd8] sm:$0xff]
  %v66 = vld [vmem:[%s1 + $0xe0] sm:$0xff]
  %v67 = vld [vmem:[%s1 + $0xe8] sm:$0xff]
  %v68 = vld [vmem:[%s1 + $0xf0] sm:$0xff]
  %v69 = vld [vmem:[%s1 + $0xf8] sm:$0xff]
  %v70 = vld [vmem:[%s1 + $0x100] sm:$0xff]
  %v71 = vld [vmem:[%s1 + $0x108] sm:$0xff]
  %v72 = vld [vmem:[%s1 + $0x110] sm:$0xff]
  %v73 = vld [vmem:[%s1 + $0x118] sm:$0xff]
  %v74 = vld [vmem:[%s1 + $0x120] sm:$0xff]
  %v75 = vld [vmem:[%s1 + $0x128] sm:$0xff]
  %v76 = vld [vmem:[%s1 + $0x130] sm:$0xff]
  %v77 = vld [vmem:[%s1 + $0x138] sm:$0xff]
  %v78 = vld [vmem:[%s1 + $0x140] sm:$0xff]
  %v79 = vld [vmem:[%s1 + $0x148] sm:$0xff]
  %v80 = vld [vmem:[%s1 + $0x150] sm:$0xff]
  %v81 = vld [vmem:[%s1 + $0x158] sm:$0xff]
  %v82 = vld [vmem:[%s1 + $0x160] sm:$0xff]
  %v83 = vld [vmem:[%s1 + $0x168] sm:$0xff]
  %v84 = vld [vmem:[%s1 + $0x170] sm:$0xff]
  %v85 = vld [vmem:[%s1 + $0x178] sm:$0xff]
  %v86 = vld [vmem:[%s1 + $0x180] sm:$0xff]
  %v87 = vld [vmem:[%s1 + $0x188] sm:$0xff]
  %v88 = vld [vmem:[%s1 + $0x190] sm:$0xff]
  %v89 = vld [vmem:[%s1 + $0x198] sm:$0xff]
  %v90 = vld [vmem:[%s1 + $0x1a0] sm:$0xff]
  %v91 = vld [vmem:[%s1 + $0x1a8] sm:$0xff]
  %v92 = vld [vmem:[%s1 + $0x1b0] sm:$0xff]
  %v93 = vld [vmem:[%s1 + $0x1b8] sm:$0xff]
  %v94 = vld [vmem:[%s1 + $0x1c0] sm:$0xff]
  %v95 = vld [vmem:[%s1 + $0x1c8] sm:$0xff]
  %v96 = vld [vmem:[%s1 + $0x1d0] sm:$0xff]
  %v97 = vld [vmem:[%s1 + $0x1d8] sm:$0xff]
  %v98 = vld [vmem:[%s1 + $0x1e0] sm:$0xff]
  %v99 = vld [vmem:[%s1 + $0x1e8] sm:$0xff]
  %v100 = vld [vmem:[%s1 + $0x1f0] sm:$0xff]
  %v101 = vld [vmem:[%s1 + $0x1f8] sm:$0xff]
  %v102 = vld [vmem:[%s1 + $0x200] sm:$0xff]
  %v103 = vld [vmem:[%s1 + $0x208] sm:$0xff]
  %v104 = vld [vmem:[%s1 + $0x210] sm:$0xff]
  %v105 = vld [vmem:[%s1 + $0x218] sm:$0xff]
  %v106 = vld [vmem:[%s1 + $0x220] sm:$0xff]
  %v107 = vld [vmem:[%s1 + $0x228] sm:$0xff]
  %v108 = vld [vmem:[%s1 + $0x230] sm:$0xff]
  %v109 = vld [vmem:[%s1 + $0x238] sm:$0xff]
  %v110 = vld [vmem:[%s1 + $0x240] sm:$0xff]
  %v111 = vld [vmem:[%s1 + $0x248] sm:$0xff]
  %v112 = vld [vmem:[%s1 + $0x250] sm:$0xff]
  %v113 = vld [vmem:[%s1 + $0x258] sm:$0xff]
  %v114 = vld [vmem:[%s1 + $0x260] sm:$0xff]
  %v115 = vld [vmem:[%s1 + $0x268] sm:$0xff]
  %v116 = vld [vmem:[%s1 + $0x270] sm:$0xff]
  %v117 = vld [vmem:[%s1 + $0x278] sm:$0xff]
  %v118 = vld [vmem:[%s1 + $0x280] sm:$0xff]
  %v119 = vld [vmem:[%s1 + $0x288] sm:$0xff]
  %v120 = vld [vmem:[%s1 + $0x290] sm:$0xff]
  %v121 = vld [vmem:[%s1 + $0x298] sm:$0xff]
  %v122 = vld [vmem:[%s1 + $0x2a0] sm:$0xff]
  %v123 = vld [vmem:[%s1 + $0x2a8] sm:$0xff]
  %v124 = vld [vmem:[%s1 + $0x2b0] sm:$0xff]
  %v125 = vld [vmem:[%s1 + $0x2b8] sm:$0xff]
  %v126 = vld [vmem:[%s1 + $0x2c0] sm:$0xff]
  %v127 = vld [vmem:[%s1 + $0x2c8] sm:$0xff]
  %v128 = vld [vmem:[%s1 + $0x2d0] sm:$0xff]
  %v129 = vld [vmem:[%s1 + $0x2d8] sm:$0xff]
  %v130 = vld [vmem:[%s1 + $0x2e0] sm:$0xff]
  %v131 = vld [vmem:[%s1 + $0x2e8] sm:$0xff]
  %v132 = vld [vmem:[%s1 + $0x2f0] sm:$0xff]
  %v133 = vld [vmem:[%s1 + $0x2f8] sm:$0xff]
  %v134 = vld [vmem:[%s2] sm:$0x3f]
  %v136 = vlaneseq
  %v137 = vshrl.u32 %v136, 7
  %v138 = vsub.s32 0, %v137
  %v139 = vrot.slane %v134, %v138
  %v140 = vlaneseq
  %v141 = vshrl.u32 %v140, 7
  %v142 = vsub.s32 1, %v141
  %v143 = vrot.slane %v134, %v142
  %v144 = vlaneseq
  %v145 = vshrl.u32 %v144, 7
  %v146 = vsub.s32 2, %v145
  %v147 = vrot.slane %v134, %v146
  %v148 = vlaneseq
  %v149 = vshrl.u32 %v148, 7
  %v150 = vsub.s32 3, %v149
  %v151 = vrot.slane %v134, %v150
  %v152 = vlaneseq
  %v153 = vshrl.u32 %v152, 7
  %v154 = vsub.s32 4, %v153
  %v155 = vrot.slane %v134, %v154
  %v156 = vlaneseq
  %v157 = vshrl.u32 %v156, 7
  %v158 = vsub.s32 5, %v157
  %v159 = vrot.slane %v134, %v158
  %v262 = vunpack.c.l.b16 %v38
  %v263 = vunpack.c.h.b16 %v38
  %v264 = vunpack.c.l.b16 %v39
  %v265 = vunpack.c.h.b16 %v39
  %v266 = vunpack.c.l.b16 %v40
  %v267 = vunpack.c.h.b16 %v40
  %v268 = vunpack.c.l.b16 %v41
  %v269 = vunpack.c.h.b16 %v41
  %v270 = vunpack.c.l.b16 %v42
  %v271 = vunpack.c.h.b16 %v42
  %v272 = vunpack.c.l.b16 %v43
  %v273 = vunpack.c.h.b16 %v43
  %v274 = vunpack.c.l.b16 %v44
  %v275 = vunpack.c.h.b16 %v44
  %v276 = vunpack.c.l.b16 %v45
  %v277 = vunpack.c.h.b16 %v45
  %v278 = vunpack.c.l.b16 %v46
  %v279 = vunpack.c.h.b16 %v46
  %v280 = vunpack.c.l.b16 %v47
  %v281 = vunpack.c.h.b16 %v47
  %v282 = vunpack.c.l.b16 %v48
  %v283 = vunpack.c.h.b16 %v48
  %v284 = vunpack.c.l.b16 %v49
  %v285 = vunpack.c.h.b16 %v49
  %v286 = vunpack.c.l.b16 %v50
  %v287 = vunpack.c.h.b16 %v50
  %v288 = vunpack.c.l.b16 %v51
  %v289 = vunpack.c.h.b16 %v51
  %v290 = vunpack.c.l.b16 %v52
  %v291 = vunpack.c.h.b16 %v52
  %v292 = vunpack.c.l.b16 %v53
  %v293 = vunpack.c.h.b16 %v53
  %v294 = vunpack.c.l.b16 %v54
  %v295 = vunpack.c.h.b16 %v54
  %v296 = vunpack.c.l.b16 %v55
  %v297 = vunpack.c.h.b16 %v55
  %v298 = vunpack.c.l.b16 %v56
  %v299 = vunpack.c.h.b16 %v56
  %v300 = vunpack.c.l.b16 %v57
  %v301 = vunpack.c.h.b16 %v57
  %v302 = vunpack.c.l.b16 %v58
  %v303 = vunpack.c.h.b16 %v58
  %v304 = vunpack.c.l.b16 %v59
  %v305 = vunpack.c.h.b16 %v59
  %v306 = vunpack.c.l.b16 %v60
  %v307 = vunpack.c.h.b16 %v60
  %v308 = vunpack.c.l.b16 %v61
  %v309 = vunpack.c.h.b16 %v61
  %v310 = vunpack.c.l.b16 %v62
  %v311 = vunpack.c.h.b16 %v62
  %v312 = vunpack.c.l.b16 %v63
  %v313 = vunpack.c.h.b16 %v63
  %v314 = vunpack.c.l.b16 %v64
  %v315 = vunpack.c.h.b16 %v64
  %v316 = vunpack.c.l.b16 %v65
  %v317 = vunpack.c.h.b16 %v65
  %v318 = vunpack.c.l.b16 %v66
  %v319 = vunpack.c.h.b16 %v66
  %v320 = vunpack.c.l.b16 %v67
  %v321 = vunpack.c.h.b16 %v67
  %v322 = vunpack.c.l.b16 %v68
  %v323 = vunpack.c.h.b16 %v68
  %v324 = vunpack.c.l.b16 %v69
  %v325 = vunpack.c.h.b16 %v69
  %v326 = vunpack.c.l.b16 %v70
  %v327 = vunpack.c.h.b16 %v70
  %v328 = vunpack.c.l.b16 %v71
  %v329 = vunpack.c.h.b16 %v71
  %v330 = vunpack.c.l.b16 %v72
  %v331 = vunpack.c.h.b16 %v72
  %v332 = vunpack.c.l.b16 %v73
  %v333 = vunpack.c.h.b16 %v73
  %v334 = vunpack.c.l.b16 %v74
  %v335 = vunpack.c.h.b16 %v74
  %v336 = vunpack.c.l.b16 %v75
  %v337 = vunpack.c.h.b16 %v75
  %v338 = vunpack.c.l.b16 %v76
  %v339 = vunpack.c.h.b16 %v76
  %v340 = vunpack.c.l.b16 %v77
  %v341 = vunpack.c.h.b16 %v77
  %v342 = vunpack.c.l.b16 %v78
  %v343 = vunpack.c.h.b16 %v78
  %v344 = vunpack.c.l.b16 %v79
  %v345 = vunpack.c.h.b16 %v79
  %v346 = vunpack.c.l.b16 %v80
  %v347 = vunpack.c.h.b16 %v80
  %v348 = vunpack.c.l.b16 %v81
  %v349 = vunpack.c.h.b16 %v81
  %v350 = vunpack.c.l.b16 %v82
  %v351 = vunpack.c.h.b16 %v82
  %v352 = vunpack.c.l.b16 %v83
  %v353 = vunpack.c.h.b16 %v83
  %v354 = vunpack.c.l.b16 %v84
  %v355 = vunpack.c.h.b16 %v84
  %v356 = vunpack.c.l.b16 %v85
  %v357 = vunpack.c.h.b16 %v85
  %v358 = vunpack.c.l.b16 %v86
  %v359 = vunpack.c.h.b16 %v86
  %v360 = vunpack.c.l.b16 %v87
  %v361 = vunpack.c.h.b16 %v87
  %v362 = vunpack.c.l.b16 %v88
  %v363 = vunpack.c.h.b16 %v88
  %v364 = vunpack.c.l.b16 %v89
  %v365 = vunpack.c.h.b16 %v89
  %v366 = vunpack.c.l.b16 %v90
  %v367 = vunpack.c.h.b16 %v90
  %v368 = vunpack.c.l.b16 %v91
  %v369 = vunpack.c.h.b16 %v91
  %v370 = vunpack.c.l.b16 %v92
  %v371 = vunpack.c.h.b16 %v92
  %v372 = vunpack.c.l.b16 %v93
  %v373 = vunpack.c.h.b16 %v93
  %v374 = vunpack.c.l.b16 %v94
  %v375 = vunpack.c.h.b16 %v94
  %v376 = vunpack.c.l.b16 %v95
  %v377 = vunpack.c.h.b16 %v95
  %v378 = vunpack.c.l.b16 %v96
  %v379 = vunpack.c.h.b16 %v96
  %v380 = vunpack.c.l.b16 %v97
  %v381 = vunpack.c.h.b16 %v97
  %v382 = vunpack.c.l.b16 %v98
  %v383 = vunpack.c.h.b16 %v98
  %v384 = vunpack.c.l.b16 %v99
  %v385 = vunpack.c.h.b16 %v99
  %v386 = vunpack.c.l.b16 %v100
  %v387 = vunpack.c.h.b16 %v100
  %v388 = vunpack.c.l.b16 %v101
  %v389 = vunpack.c.h.b16 %v101
  %v390 = vunpack.c.l.b16 %v102
  %v391 = vunpack.c.h.b16 %v102
  %v392 = vunpack.c.l.b16 %v103
  %v393 = vunpack.c.h.b16 %v103
  %v394 = vunpack.c.l.b16 %v104
  %v395 = vunpack.c.h.b16 %v104
  %v396 = vunpack.c.l.b16 %v105
  %v397 = vunpack.c.h.b16 %v105
  %v398 = vunpack.c.l.b16 %v106
  %v399 = vunpack.c.h.b16 %v106
  %v400 = vunpack.c.l.b16 %v107
  %v401 = vunpack.c.h.b16 %v107
  %v402 = vunpack.c.l.b16 %v108
  %v403 = vunpack.c.h.b16 %v108
  %v404 = vunpack.c.l.b16 %v109
  %v405 = vunpack.c.h.b16 %v109
  %v406 = vunpack.c.l.b16 %v110
  %v407 = vunpack.c.h.b16 %v110
  %v408 = vunpack.c.l.b16 %v111
  %v409 = vunpack.c.h.b16 %v111
  %v410 = vunpack.c.l.b16 %v112
  %v411 = vunpack.c.h.b16 %v112
  %v412 = vunpack.c.l.b16 %v113
  %v413 = vunpack.c.h.b16 %v113
  %v414 = vunpack.c.l.b16 %v114
  %v415 = vunpack.c.h.b16 %v114
  %v416 = vunpack.c.l.b16 %v115
  %v417 = vunpack.c.h.b16 %v115
  %v418 = vunpack.c.l.b16 %v116
  %v419 = vunpack.c.h.b16 %v116
  %v420 = vunpack.c.l.b16 %v117
  %v421 = vunpack.c.h.b16 %v117
  %v422 = vunpack.c.l.b16 %v118
  %v423 = vunpack.c.h.b16 %v118
  %v424 = vunpack.c.l.b16 %v119
  %v425 = vunpack.c.h.b16 %v119
  %v426 = vunpack.c.l.b16 %v120
  %v427 = vunpack.c.h.b16 %v120
  %v428 = vunpack.c.l.b16 %v121
  %v429 = vunpack.c.h.b16 %v121
  %v430 = vunpack.c.l.b16 %v122
  %v431 = vunpack.c.h.b16 %v122
  %v432 = vunpack.c.l.b16 %v123
  %v433 = vunpack.c.h.b16 %v123
  %v434 = vunpack.c.l.b16 %v124
  %v435 = vunpack.c.h.b16 %v124
  %v436 = vunpack.c.l.b16 %v125
  %v437 = vunpack.c.h.b16 %v125
  %v438 = vunpack.c.l.b16 %v126
  %v439 = vunpack.c.h.b16 %v126
  %v440 = vunpack.c.l.b16 %v127
  %v441 = vunpack.c.h.b16 %v127
  %v442 = vunpack.c.l.b16 %v128
  %v443 = vunpack.c.h.b16 %v128
  %v444 = vunpack.c.l.b16 %v129
  %v445 = vunpack.c.h.b16 %v129
  %v446 = vunpack.c.l.b16 %v130
  %v447 = vunpack.c.h.b16 %v130
  %v448 = vunpack.c.l.b16 %v131
  %v449 = vunpack.c.h.b16 %v131
  %v450 = vunpack.c.l.b16 %v132
  %v451 = vunpack.c.h.b16 %v132
  %v452 = vunpack.c.l.b16 %v133
  %v453 = vunpack.c.h.b16 %v133
  %v454 = vpack.c.b16 %v268, %v262
  %v455 = vpack.c.b16 %v269, %v263
  %v456 = vpack.c.b16 %v270, %v264
  %v457 = vpack.c.b16 %v271, %v265
  %v458 = vpack.c.b16 %v272, %v266
  %v459 = vpack.c.b16 %v273, %v267
  %v460 = vpack.c.b16 %v280, %v274
  %v461 = vpack.c.b16 %v281, %v275
  %v462 = vpack.c.b16 %v282, %v276
  %v463 = vpack.c.b16 %v283, %v277
  %v464 = vpack.c.b16 %v284, %v278
  %v465 = vpack.c.b16 %v285, %v279
  %v466 = vpack.c.b16 %v292, %v286
  %v467 = vpack.c.b16 %v293, %v287
  %v468 = vpack.c.b16 %v294, %v288
  %v469 = vpack.c.b16 %v295, %v289
  %v470 = vpack.c.b16 %v296, %v290
  %v471 = vpack.c.b16 %v297, %v291
  %v472 = vpack.c.b16 %v304, %v298
  %v473 = vpack.c.b16 %v305, %v299
  %v474 = vpack.c.b16 %v306, %v300
  %v475 = vpack.c.b16 %v307, %v301
  %v476 = vpack.c.b16 %v308, %v302
  %v477 = vpack.c.b16 %v309, %v303
  %v478 = vpack.c.b16 %v316, %v310
  %v479 = vpack.c.b16 %v317, %v311
  %v480 = vpack.c.b16 %v318, %v312
  %v481 = vpack.c.b16 %v319, %v313
  %v482 = vpack.c.b16 %v320, %v314
  %v483 = vpack.c.b16 %v321, %v315
  %v484 = vpack.c.b16 %v328, %v322
  %v485 = vpack.c.b16 %v329, %v323
  %v486 = vpack.c.b16 %v330, %v324
  %v487 = vpack.c.b16 %v331, %v325
  %v488 = vpack.c.b16 %v332, %v326
  %v489 = vpack.c.b16 %v333, %v327
  %v490 = vpack.c.b16 %v340, %v334
  %v491 = vpack.c.b16 %v341, %v335
  %v492 = vpack.c.b16 %v342, %v336
  %v493 = vpack.c.b16 %v343, %v337
  %v494 = vpack.c.b16 %v344, %v338
  %v495 = vpack.c.b16 %v345, %v339
  %v496 = vpack.c.b16 %v352, %v346
  %v497 = vpack.c.b16 %v353, %v347
  %v498 = vpack.c.b16 %v354, %v348
  %v499 = vpack.c.b16 %v355, %v349
  %v500 = vpack.c.b16 %v356, %v350
  %v501 = vpack.c.b16 %v357, %v351
  %v502 = vpack.c.b16 %v364, %v358
  %v503 = vpack.c.b16 %v365, %v359
  %v504 = vpack.c.b16 %v366, %v360
  %v505 = vpack.c.b16 %v367, %v361
  %v506 = vpack.c.b16 %v368, %v362
  %v507 = vpack.c.b16 %v369, %v363
  %v508 = vpack.c.b16 %v376, %v370
  %v509 = vpack.c.b16 %v377, %v371
  %v510 = vpack.c.b16 %v378, %v372
  %v511 = vpack.c.b16 %v379, %v373
  %v512 = vpack.c.b16 %v380, %v374
  %v513 = vpack.c.b16 %v381, %v375
  %v514 = vpack.c.b16 %v388, %v382
  %v515 = vpack.c.b16 %v389, %v383
  %v516 = vpack.c.b16 %v390, %v384
  %v517 = vpack.c.b16 %v391, %v385
  %v518 = vpack.c.b16 %v392, %v386
  %v519 = vpack.c.b16 %v393, %v387
  %v520 = vpack.c.b16 %v400, %v394
  %v521 = vpack.c.b16 %v401, %v395
  %v522 = vpack.c.b16 %v402, %v396
  %v523 = vpack.c.b16 %v403, %v397
  %v524 = vpack.c.b16 %v404, %v398
  %v525 = vpack.c.b16 %v405, %v399
  %v526 = vpack.c.b16 %v412, %v406
  %v527 = vpack.c.b16 %v413, %v407
  %v528 = vpack.c.b16 %v414, %v408
  %v529 = vpack.c.b16 %v415, %v409
  %v530 = vpack.c.b16 %v416, %v410
  %v531 = vpack.c.b16 %v417, %v411
  %v532 = vpack.c.b16 %v424, %v418
  %v533 = vpack.c.b16 %v425, %v419
  %v534 = vpack.c.b16 %v426, %v420
  %v535 = vpack.c.b16 %v427, %v421
  %v536 = vpack.c.b16 %v428, %v422
  %v537 = vpack.c.b16 %v429, %v423
  %v538 = vpack.c.b16 %v436, %v430
  %v539 = vpack.c.b16 %v437, %v431
  %v540 = vpack.c.b16 %v438, %v432
  %v541 = vpack.c.b16 %v439, %v433
  %v542 = vpack.c.b16 %v440, %v434
  %v543 = vpack.c.b16 %v441, %v435
  %v544 = vpack.c.b16 %v448, %v442
  %v545 = vpack.c.b16 %v449, %v443
  %v546 = vpack.c.b16 %v450, %v444
  %v547 = vpack.c.b16 %v451, %v445
  %v548 = vpack.c.b16 %v452, %v446
  %v549 = vpack.c.b16 %v453, %v447
  %646 = vmatprep.subr.bf16.mxu0 %v455
  %647 = vmatpush1.bf16.msra.mxu0 %v454
  %648 = vmatprep.subr.bf16.mxu0 %v461
  %649 = vmatpush1.bf16.msra.mxu0 %v460
  %650 = vmatprep.subr.bf16.mxu0 %v467
  %651 = vmatpush1.bf16.msra.mxu0 %v466
  %652 = vmatprep.subr.bf16.mxu0 %v473
  %653 = vmatpush1.bf16.msra.mxu0 %v472
  %654 = vmatprep.subr.bf16.mxu0 %v479
  %655 = vmatpush1.bf16.msra.mxu0 %v478
  %656 = vmatprep.subr.bf16.mxu0 %v485
  %657 = vmatpush1.bf16.msra.mxu0 %v484
  %658 = vmatprep.subr.bf16.mxu0 %v491
  %659 = vmatpush1.bf16.msra.mxu0 %v490
  %660 = vmatprep.subr.bf16.mxu0 %v497
  %661 = vmatpush1.bf16.msra.mxu0 %v496
  %662 = vmatprep.subr.bf16.mxu0 %v503
  %663 = vmatpush1.bf16.msra.mxu0 %v502
  %664 = vmatprep.subr.bf16.mxu0 %v509
  %665 = vmatpush1.bf16.msra.mxu0 %v508
  %666 = vmatprep.subr.bf16.mxu0 %v515
  %667 = vmatpush1.bf16.msra.mxu0 %v514
  %668 = vmatprep.subr.bf16.mxu0 %v521
  %669 = vmatpush1.bf16.msra.mxu0 %v520
  %670 = vmatprep.subr.bf16.mxu0 %v527
  %671 = vmatpush1.bf16.msra.mxu0 %v526
  %672 = vmatprep.subr.bf16.mxu0 %v533
  %673 = vmatpush1.bf16.msra.mxu0 %v532
  %674 = vmatprep.subr.bf16.mxu0 %v539
  %675 = vmatpush1.bf16.msra.mxu0 %v538
  %676 = vmatprep.subr.bf16.mxu0 %v545
  %677 = vmatpush1.bf16.msra.mxu0 %v544
  %678 = vmatprep.mubr.bf16.mxu0 %v31
  %679 = vmatmul.mubr.bf16.gmra.mrb[0].mxu0 %v30
  %v680 = vpop.f32.mrb[0].mxu0
  %v681 = vadd.f32 %v139, %v680
  %v682 = vpop.f32.mrb[0].mxu0
  %v683 = vadd.f32 %v143, %v682
  %v684 = vpop.f32.mrb[0].mxu0
  %v685 = vadd.f32 %v139, %v684
  %v686 = vpop.f32.mrb[0].mxu0
  %v687 = vadd.f32 %v143, %v686
  %688 = vmatprep.mubr.bf16.mxu0 %v33
  %689 = vmatmul.mubr.bf16.gmra.mrb[0].mxu0 %v32
  %v690 = vpop.f32.mrb[0].mxu0
  %v691 = vadd.f32 %v139, %v690
  %v692 = vpop.f32.mrb[0].mxu0
  %v693 = vadd.f32 %v143, %v692
  %v694 = vpop.f32.mrb[0].mxu0
  %v695 = vadd.f32 %v139, %v694
  %v696 = vpop.f32.mrb[0].mxu0
  %v697 = vadd.f32 %v143, %v696
  %698 = vmatprep.mubr.bf16.mxu0 %v35
  %699 = vmatmul.mubr.bf16.gmra.mrb[0].mxu0 %v34
  %v700 = vpop.f32.mrb[0].mxu0
  %v701 = vadd.f32 %v139, %v700
  %v702 = vpop.f32.mrb[0].mxu0
  %v703 = vadd.f32 %v143, %v702
  %v704 = vpop.f32.mrb[0].mxu0
  %v705 = vadd.f32 %v139, %v704
  %v706 = vpop.f32.mrb[0].mxu0
  %v707 = vadd.f32 %v143, %v706
  %708 = vmatprep.mubr.bf16.mxu0 %v37
  %709 = vmatmul.mubr.bf16.gmra.mrb[0].mxu0 %v36
  %v710 = vpop.f32.mrb[0].mxu0
  %v711 = vadd.f32 %v139, %v710
  %v712 = vpop.f32.mrb[0].mxu0
  %v713 = vadd.f32 %v143, %v712
  %v714 = vpop.f32.mrb[0].mxu0
  %v715 = vadd.f32 %v139, %v714
  %v716 = vpop.f32.mrb[0].mxu0
  %v717 = vadd.f32 %v143, %v716
  %718 = vdwg.mxu0
  %719 = vmatprep.subr.bf16.mxu0 %v457
  %720 = vmatpush1.bf16.msra.mxu0 %v456
  %721 = vmatprep.subr.bf16.mxu0 %v463
  %722 = vmatpush1.bf16.msra.mxu0 %v462
  %723 = vmatprep.subr.bf16.mxu0 %v469
  %724 = vmatpush1.bf16.msra.mxu0 %v468
  %725 = vmatprep.subr.bf16.mxu0 %v475
  %726 = vmatpush1.bf16.msra.mxu0 %v474
  %727 = vmatprep.subr.bf16.mxu0 %v481
  %728 = vmatpush1.bf16.msra.mxu0 %v480
  %729 = vmatprep.subr.bf16.mxu0 %v487
  %730 = vmatpush1.bf16.msra.mxu0 %v486
  %731 = vmatprep.subr.bf16.mxu0 %v493
  %732 = vmatpush1.bf16.msra.mxu0 %v492
  %733 = vmatprep.subr.bf16.mxu0 %v499
  %734 = vmatpush1.bf16.msra.mxu0 %v498
  %735 = vmatprep.subr.bf16.mxu0 %v505
  %736 = vmatpush1.bf16.msra.mxu0 %v504
  %737 = vmatprep.subr.bf16.mxu0 %v511
  %738 = vmatpush1.bf16.msra.mxu0 %v510
  %739 = vmatprep.subr.bf16.mxu0 %v517
  %740 = vmatpush1.bf16.msra.mxu0 %v516
  %741 = vmatprep.subr.bf16.mxu0 %v523
  %742 = vmatpush1.bf16.msra.mxu0 %v522
  %743 = vmatprep.subr.bf16.mxu0 %v529
  %744 = vmatpush1.bf16.msra.mxu0 %v528
  %745 = vmatprep.subr.bf16.mxu0 %v535
  %746 = vmatpush1.bf16.msra.mxu0 %v534
  %747 = vmatprep.subr.bf16.mxu0 %v541
  %748 = vmatpush1.bf16.msra.mxu0 %v540
  %749 = vmatprep.subr.bf16.mxu0 %v547
  %750 = vmatpush1.bf16.msra.mxu0 %v546
  %751 = vmatprep.mubr.bf16.mxu0 %v31
  %752 = vmatmul.mubr.bf16.gmra.mrb[0].mxu0 %v30
  %v753 = vpop.f32.mrb[0].mxu0
  %v754 = vadd.f32 %v147, %v753
  %v755 = vpop.f32.mrb[0].mxu0
  %v756 = vadd.f32 %v151, %v755
  %v757 = vpop.f32.mrb[0].mxu0
  %v758 = vadd.f32 %v147, %v757
  %v759 = vpop.f32.mrb[0].mxu0
  %v760 = vadd.f32 %v151, %v759
  %761 = vmatprep.mubr.bf16.mxu0 %v33
  %762 = vmatmul.mubr.bf16.gmra.mrb[0].mxu0 %v32
  %v763 = vpop.f32.mrb[0].mxu0
  %v764 = vadd.f32 %v147, %v763
  %v765 = vpop.f32.mrb[0].mxu0
  %v766 = vadd.f32 %v151, %v765
  %v767 = vpop.f32.mrb[0].mxu0
  %v768 = vadd.f32 %v147, %v767
  %v769 = vpop.f32.mrb[0].mxu0
  %v770 = vadd.f32 %v151, %v769
  %771 = vmatprep.mubr.bf16.mxu0 %v35
  %772 = vmatmul.mubr.bf16.gmra.mrb[0].mxu0 %v34
  %v773 = vpop.f32.mrb[0].mxu0
  %v774 = vadd.f32 %v147, %v773
  %v775 = vpop.f32.mrb[0].mxu0
  %v776 = vadd.f32 %v151, %v775
  %v777 = vpop.f32.mrb[0].mxu0
  %v778 = vadd.f32 %v147, %v777
  %v779 = vpop.f32.mrb[0].mxu0
  %v780 = vadd.f32 %v151, %v779
  %781 = vmatprep.mubr.bf16.mxu0 %v37
  %782 = vmatmul.mubr.bf16.gmra.mrb[0].mxu0 %v36
  %v783 = vpop.f32.mrb[0].mxu0
  %v784 = vadd.f32 %v147, %v783
  %v785 = vpop.f32.mrb[0].mxu0
  %v786 = vadd.f32 %v151, %v785
  %v787 = vpop.f32.mrb[0].mxu0
  %v788 = vadd.f32 %v147, %v787
  %v789 = vpop.f32.mrb[0].mxu0
  %v790 = vadd.f32 %v151, %v789
  %791 = vdwg.mxu0
  %792 = vmatprep.subr.bf16.mxu0 %v459
  %793 = vmatpush1.bf16.msra.mxu0 %v458
  %794 = vmatprep.subr.bf16.mxu0 %v465
  %795 = vmatpush1.bf16.msra.mxu0 %v464
  %796 = vmatprep.subr.bf16.mxu0 %v471
  %797 = vmatpush1.bf16.msra.mxu0 %v470
  %798 = vmatprep.subr.bf16.mxu0 %v477
  %799 = vmatpush1.bf16.msra.mxu0 %v476
  %800 = vmatprep.subr.bf16.mxu0 %v483
  %801 = vmatpush1.bf16.msra.mxu0 %v482
  %802 = vmatprep.subr.bf16.mxu0 %v489
  %803 = vmatpush1.bf16.msra.mxu0 %v488
  %804 = vmatprep.subr.bf16.mxu0 %v495
  %805 = vmatpush1.bf16.msra.mxu0 %v494
  %806 = vmatprep.subr.bf16.mxu0 %v501
  %807 = vmatpush1.bf16.msra.mxu0 %v500
  %808 = vmatprep.subr.bf16.mxu0 %v507
  %809 = vmatpush1.bf16.msra.mxu0 %v506
  %810 = vmatprep.subr.bf16.mxu0 %v513
  %811 = vmatpush1.bf16.msra.mxu0 %v512
  %812 = vmatprep.subr.bf16.mxu0 %v519
  %813 = vmatpush1.bf16.msra.mxu0 %v518
  %814 = vmatprep.subr.bf16.mxu0 %v525
  %815 = vmatpush1.bf16.msra.mxu0 %v524
  %816 = vmatprep.subr.bf16.mxu0 %v531
  %817 = vmatpush1.bf16.msra.mxu0 %v530
  %818 = vmatprep.subr.bf16.mxu0 %v537
  %819 = vmatpush1.bf16.msra.mxu0 %v536
  %820 = vmatprep.subr.bf16.mxu0 %v543
  %821 = vmatpush1.bf16.msra.mxu0 %v542
  %822 = vmatprep.subr.bf16.mxu0 %v549
  %823 = vmatpush1.bf16.msra.mxu0 %v548
  %824 = vmatprep.mubr.bf16.mxu0 %v31
  %825 = vmatmul.mubr.bf16.gmra.mrb[0].mxu0 %v30
  %v826 = vpop.f32.mrb[0].mxu0
  %v827 = vadd.f32 %v155, %v826
  %v828 = vpop.f32.mrb[0].mxu0
  %v829 = vadd.f32 %v159, %v828
  %v830 = vpop.f32.mrb[0].mxu0
  %v831 = vadd.f32 %v155, %v830
  %v832 = vpop.f32.mrb[0].mxu0
  %v833 = vadd.f32 %v159, %v832
  %834 = vmatprep.mubr.bf16.mxu0 %v33
  %835 = vmatmul.mubr.bf16.gmra.mrb[0].mxu0 %v32
  %v836 = vpop.f32.mrb[0].mxu0
  %v837 = vadd.f32 %v155, %v836
  %v838 = vpop.f32.mrb[0].mxu0
  %v839 = vadd.f32 %v159, %v838
  %v840 = vpop.f32.mrb[0].mxu0
  %v841 = vadd.f32 %v155, %v840
  %v842 = vpop.f32.mrb[0].mxu0
  %v843 = vadd.f32 %v159, %v842
  %844 = vmatprep.mubr.bf16.mxu0 %v35
  %845 = vmatmul.mubr.bf16.gmra.mrb[0].mxu0 %v34
  %v846 = vpop.f32.mrb[0].mxu0
  %v847 = vadd.f32 %v155, %v846
  %v848 = vpop.f32.mrb[0].mxu0
  %v849 = vadd.f32 %v159, %v848
  %v850 = vpop.f32.mrb[0].mxu0
  %v851 = vadd.f32 %v155, %v850
  %v852 = vpop.f32.mrb[0].mxu0
  %v853 = vadd.f32 %v159, %v852
  %854 = vmatprep.mubr.bf16.mxu0 %v37
  %855 = vmatmul.mubr.bf16.gmra.mrb[0].mxu0 %v36
  %v856 = vpop.f32.mrb[0].mxu0
  %v857 = vadd.f32 %v155, %v856
  %v858 = vpop.f32.mrb[0].mxu0
  %v859 = vadd.f32 %v159, %v858
  %v860 = vpop.f32.mrb[0].mxu0
  %v861 = vadd.f32 %v155, %v860
  %v862 = vpop.f32.mrb[0].mxu0
  %v863 = vadd.f32 %v159, %v862
  %864 = vdwg.mxu0
  %v865 = vpack.c.bf16 %v685, %v681
  %v866 = vpack.c.bf16 %v687, %v683
  %v867 = vpack.c.bf16 %v758, %v754
  %v868 = vpack.c.bf16 %v760, %v756
  %v869 = vpack.c.bf16 %v831, %v827
  %v870 = vpack.c.bf16 %v833, %v829
  %v871 = vpack.c.bf16 %v695, %v691
  %v872 = vpack.c.bf16 %v697, %v693
  %v873 = vpack.c.bf16 %v768, %v764
  %v874 = vpack.c.bf16 %v770, %v766
  %v875 = vpack.c.bf16 %v841, %v837
  %v876 = vpack.c.bf16 %v843, %v839
  %v877 = vpack.c.bf16 %v705, %v701
  %v878 = vpack.c.bf16 %v707, %v703
  %v879 = vpack.c.bf16 %v778, %v774
  %v880 = vpack.c.bf16 %v780, %v776
  %v881 = vpack.c.bf16 %v851, %v847
  %v882 = vpack.c.bf16 %v853, %v849
  %v883 = vpack.c.bf16 %v715, %v711
  %v884 = vpack.c.bf16 %v717, %v713
  %v885 = vpack.c.bf16 %v788, %v784
  %v886 = vpack.c.bf16 %v790, %v786
  %v887 = vpack.c.bf16 %v861, %v857
  %v888 = vpack.c.bf16 %v863, %v859
  %v913 = vunpack.c.l.b16 %v865
  %v914 = vunpack.c.l.b16 %v866
  %v915 = vunpack.c.l.b16 %v867
  %v916 = vunpack.c.l.b16 %v868
  %v917 = vunpack.c.l.b16 %v869
  %v918 = vunpack.c.l.b16 %v870
  %v919 = vunpack.c.h.b16 %v865
  %v920 = vunpack.c.h.b16 %v866
  %v921 = vunpack.c.h.b16 %v867
  %v922 = vunpack.c.h.b16 %v868
  %v923 = vunpack.c.h.b16 %v869
  %v924 = vunpack.c.h.b16 %v870
  %v925 = vunpack.c.l.b16 %v871
  %v926 = vunpack.c.l.b16 %v872
  %v927 = vunpack.c.l.b16 %v873
  %v928 = vunpack.c.l.b16 %v874
  %v929 = vunpack.c.l.b16 %v875
  %v930 = vunpack.c.l.b16 %v876
  %v931 = vunpack.c.h.b16 %v871
  %v932 = vunpack.c.h.b16 %v872
  %v933 = vunpack.c.h.b16 %v873
  %v934 = vunpack.c.h.b16 %v874
  %v935 = vunpack.c.h.b16 %v875
  %v936 = vunpack.c.h.b16 %v876
  %v937 = vunpack.c.l.b16 %v877
  %v938 = vunpack.c.l.b16 %v878
  %v939 = vunpack.c.l.b16 %v879
  %v940 = vunpack.c.l.b16 %v880
  %v941 = vunpack.c.l.b16 %v881
  %v942 = vunpack.c.l.b16 %v882
  %v943 = vunpack.c.h.b16 %v877
  %v944 = vunpack.c.h.b16 %v878
  %v945 = vunpack.c.h.b16 %v879
  %v946 = vunpack.c.h.b16 %v880
  %v947 = vunpack.c.h.b16 %v881
  %v948 = vunpack.c.h.b16 %v882
  %v949 = vunpack.c.l.b16 %v883
  %v950 = vunpack.c.l.b16 %v884
  %v951 = vunpack.c.l.b16 %v885
  %v952 = vunpack.c.l.b16 %v886
  %v953 = vunpack.c.l.b16 %v887
  %v954 = vunpack.c.l.b16 %v888
  %v955 = vunpack.c.h.b16 %v883
  %v956 = vunpack.c.h.b16 %v884
  %v957 = vunpack.c.h.b16 %v885
  %v958 = vunpack.c.h.b16 %v886
  %v959 = vunpack.c.h.b16 %v887
  %v960 = vunpack.c.h.b16 %v888
  %v961 = vpack.c.b16 %v914, %v913
  %v962 = vpack.c.b16 %v916, %v915
  %v963 = vpack.c.b16 %v918, %v917
  %v964 = vpack.c.b16 %v920, %v919
  %v965 = vpack.c.b16 %v922, %v921
  %v966 = vpack.c.b16 %v924, %v923
  %v967 = vpack.c.b16 %v926, %v925
  %v968 = vpack.c.b16 %v928, %v927
  %v969 = vpack.c.b16 %v930, %v929
  %v970 = vpack.c.b16 %v932, %v931
  %v971 = vpack.c.b16 %v934, %v933
  %v972 = vpack.c.b16 %v936, %v935
  %v973 = vpack.c.b16 %v938, %v937
  %v974 = vpack.c.b16 %v940, %v939
  %v975 = vpack.c.b16 %v942, %v941
  %v976 = vpack.c.b16 %v944, %v943
  %v977 = vpack.c.b16 %v946, %v945
  %v978 = vpack.c.b16 %v948, %v947
  %v979 = vpack.c.b16 %v950, %v949
  %v980 = vpack.c.b16 %v952, %v951
  %v981 = vpack.c.b16 %v954, %v953
  %v982 = vpack.c.b16 %v956, %v955
  %v983 = vpack.c.b16 %v958, %v957
  %v984 = vpack.c.b16 %v960, %v959
  %1009 = vst [vmem:[%s3] sm:$0xff] %v961
  %1010 = vst [vmem:[%s3 + $0x8] sm:$0xff] %v962
  %1011 = vst [vmem:[%s3 + $0x10] sm:$0xff] %v963
  %1012 = vst [vmem:[%s3 + $0x18] sm:$0xff] %v964
  %1013 = vst [vmem:[%s3 + $0x20] sm:$0xff] %v965
  %1014 = vst [vmem:[%s3 + $0x28] sm:$0xff] %v966
  %1015 = vst [vmem:[%s3 + $0x30] sm:$0xff] %v967
  %1016 = vst [vmem:[%s3 + $0x38] sm:$0xff] %v968
  %1017 = vst [vmem:[%s3 + $0x40] sm:$0xff] %v969
  %1018 = vst [vmem:[%s3 + $0x48] sm:$0xff] %v970
  %1019 = vst [vmem:[%s3 + $0x50] sm:$0xff] %v971
  %1020 = vst [vmem:[%s3 + $0x58] sm:$0xff] %v972
  %1021 = vst [vmem:[%s3 + $0x60] sm:$0xff] %v973
  %1022 = vst [vmem:[%s3 + $0x68] sm:$0xff] %v974
  %1023 = vst [vmem:[%s3 + $0x70] sm:$0xff] %v975
  %1024 = vst [vmem:[%s3 + $0x78] sm:$0xff] %v976
  %1025 = vst [vmem:[%s3 + $0x80] sm:$0xff] %v977
  %1026 = vst [vmem:[%s3 + $0x88] sm:$0xff] %v978
  %1027 = vst [vmem:[%s3 + $0x90] sm:$0xff] %v979
  %1028 = vst [vmem:[%s3 + $0x98] sm:$0xff] %v980
  %1029 = vst [vmem:[%s3 + $0xa0] sm:$0xff] %v981
  %1030 = vst [vmem:[%s3 + $0xa8] sm:$0xff] %v982
  %1031 = vst [vmem:[%s3 + $0xb0] sm:$0xff] %v983
  %1032 = vst [vmem:[%s3 + $0xb8] sm:$0xff] %v984
  // Predicated region
  $region14: #{emodel_bigru_forward.13} parent=0 // pred_check
    _
  $region15: #{emodel_bigru_forward.13} parent=0 // pred_check_branch
    %1034 = sbr.rel (0) target = $region17
  $region16: #{emodel_bigru_forward.13} parent=0 // pred_region
    _
  $region17: #{emodel_bigru_forward.13} parent=0 // pred_fallthru
    _
  // Predicated region
  $region18: #{emodel_bigru_forward.13} parent=0 // pred_check
    _
  $region19: #{emodel_bigru_forward.13} parent=0 // pred_check_branch
    %1036 = sbr.rel (0) target = $region21
  $region20: #{emodel_bigru_forward.13} parent=0 // pred_region
    _
  $region21: #{emodel_bigru_forward.13} parent=0 // pred_fallthru
    _

// kernel: emodel_bigru_forward.21
$region0: #{emodel_bigru_forward.21}
  #allocation0 [shape = 'u32[]', space=smem, size = 0x4, offset = 0x4, fixed_abs, tag = 'smem constant byte address 0x4 - core index']
  #allocation1 [shape = 'u32[144,128]{1,0:T(1,128)}', space=vmem, size = 0x12000, scoped, tag = 'internal scratch']
  #allocation2 [shape = 'f32[1,1]{1,0:T(1,128)S(1)}', space=vmem, size = 0x200, scoped, tag = 'scoped memory for emodel_bigru_forward.21']
  #allocation3 [shape = 'f32[1,1]{1,0:T(1,128)S(1)}', space=vmem, size = 0x200, scoped, tag = 'scoped memory for emodel_bigru_forward.21']
  %s0 = inlined_call_operand.vmem [shape: f32[8,8,256], index: 0, kind: input, shape index: {}]
  %s1 = inlined_call_operand.vmem [shape: bf16[256,256], index: 1, kind: input, shape index: {}]
  %s2 = inlined_call_operand.vmem [shape: f32[1,256], index: 2, kind: input, shape index: {}]
  %s3 = inlined_call_operand.vmem [shape: f32[1,256], index: 3, kind: input, shape index: {}]
  %s4 = inlined_call_operand.<no memory space> [shape: f32[1,1], index: 4, kind: input, shape index: {}]
  %s5 = inlined_call_operand.vmem [shape: bf16[256,128], index: 5, kind: input, shape index: {}]
  %s6 = inlined_call_operand.vmem [shape: f32[1,128], index: 6, kind: input, shape index: {}]
  %s7 = inlined_call_operand.vmem [shape: f32[1,128], index: 7, kind: input, shape index: {}]
  %s8 = inlined_call_operand.<no memory space> [shape: f32[1,1], index: 8, kind: input, shape index: {}]
  %s9 = inlined_call_operand.vmem [shape: f32[8,1], index: 9, kind: output, shape index: {}]
  %s10 = sld [smem:[#allocation0]]
  $region46: #{emodel_bigru_forward.21} parent=0
    _
  %s12 = ssub.s32 1, %s10
  %s13 = scalar_select 0, %s12, %s10
  %v14 = vstv %s4
  %15 = vst [vmem:[#allocation2] sm:$0x1] %v14
  %v16 = vstv %s8
  %17 = vst [vmem:[#allocation3] sm:$0x1] %v16
  // Predicated region
  $region2: #{emodel_bigru_forward.21} parent=0 // pred_check
    _
  $region3: #{emodel_bigru_forward.21} parent=0 // pred_check_branch
    %19 = sbr.rel (0) target = $region5
  $region4: #{emodel_bigru_forward.21} parent=0 // pred_region
    _
  $region5: #{emodel_bigru_forward.21} parent=0 // pred_fallthru
    _
  // Predicated region
  $region6: #{emodel_bigru_forward.21} parent=0 // pred_check
    _
  $region7: #{emodel_bigru_forward.21} parent=0 // pred_check_branch
    %21 = sbr.rel (0) target = $region9
  $region8: #{emodel_bigru_forward.21} parent=0 // pred_region
    _
  $region9: #{emodel_bigru_forward.21} parent=0 // pred_fallthru
    _
  // Predicated region
  $region10: #{emodel_bigru_forward.21} parent=0 // pred_check
    _
  $region11: #{emodel_bigru_forward.21} parent=0 // pred_check_branch
    %23 = sbr.rel (0) target = $region13
  $region12: #{emodel_bigru_forward.21} parent=0 // pred_region
    _
  $region13: #{emodel_bigru_forward.21} parent=0 // pred_fallthru
    _
  // Predicated region
  $region14: #{emodel_bigru_forward.21} parent=0 // pred_check
    _
  $region15: #{emodel_bigru_forward.21} parent=0 // pred_check_branch
    %25 = sbr.rel (0) target = $region17
  $region16: #{emodel_bigru_forward.21} parent=0 // pred_region
    _
  $region17: #{emodel_bigru_forward.21} parent=0 // pred_fallthru
    _
  // Predicated region
  $region18: #{emodel_bigru_forward.21} parent=0 // pred_check
    _
  $region19: #{emodel_bigru_forward.21} parent=0 // pred_check_branch
    %27 = sbr.rel (0) target = $region21
  $region20: #{emodel_bigru_forward.21} parent=0 // pred_region
    _
  $region21: #{emodel_bigru_forward.21} parent=0 // pred_fallthru
    _
  // Predicated region
  $region22: #{emodel_bigru_forward.21} parent=0 // pred_check
    _
  $region23: #{emodel_bigru_forward.21} parent=0 // pred_check_branch
    %29 = sbr.rel (0) target = $region25
  $region24: #{emodel_bigru_forward.21} parent=0 // pred_region
    _
  $region25: #{emodel_bigru_forward.21} parent=0 // pred_fallthru
    _
  // Predicated region
  $region26: #{emodel_bigru_forward.21} parent=0 // pred_check
    _
  $region27: #{emodel_bigru_forward.21} parent=0 // pred_check_branch
    %31 = sbr.rel (0) target = $region29
  $region28: #{emodel_bigru_forward.21} parent=0 // pred_region
    _
  $region29: #{emodel_bigru_forward.21} parent=0 // pred_fallthru
    _
  // Predicated region
  $region30: #{emodel_bigru_forward.21} parent=0 // pred_check
    _
  $region31: #{emodel_bigru_forward.21} parent=0 // pred_check_branch
    %33 = sbr.rel (0) target = $region33
  $region32: #{emodel_bigru_forward.21} parent=0 // pred_region
    _
  $region33: #{emodel_bigru_forward.21} parent=0 // pred_fallthru
    _
  // Predicated region
  $region34: #{emodel_bigru_forward.21} parent=0 // pred_check
    _
  $region35: #{emodel_bigru_forward.21} parent=0 // pred_check_branch
    %35 = sbr.rel (0) target = $region37
  $region36: #{emodel_bigru_forward.21} parent=0 // pred_region
    _
  $region37: #{emodel_bigru_forward.21} parent=0 // pred_fallthru
    _
  %v37 = vld [vmem:[%s0] sm:$0xff]
  %v38 = vld [vmem:[%s0 + $0x8] sm:$0xff]
  %v39 = vld [vmem:[%s0 + $0x10] sm:$0xff]
  %v40 = vld [vmem:[%s0 + $0x18] sm:$0xff]
  %v41 = vld [vmem:[%s0 + $0x20] sm:$0xff]
  %v42 = vld [vmem:[%s0 + $0x28] sm:$0xff]
  %v43 = vld [vmem:[%s0 + $0x30] sm:$0xff]
  %v44 = vld [vmem:[%s0 + $0x38] sm:$0xff]
  %v45 = vld [vmem:[%s0 + $0x40] sm:$0xff]
  %v46 = vld [vmem:[%s0 + $0x48] sm:$0xff]
  %v47 = vld [vmem:[%s0 + $0x50] sm:$0xff]
  %v48 = vld [vmem:[%s0 + $0x58] sm:$0xff]
  %v49 = vld [vmem:[%s0 + $0x60] sm:$0xff]
  %v50 = vld [vmem:[%s0 + $0x68] sm:$0xff]
  %v51 = vld [vmem:[%s0 + $0x70] sm:$0xff]
  %v52 = vld [vmem:[%s0 + $0x78] sm:$0xff]
  %v53 = vpack.c.bf16 %v39, %v37
  %v54 = vpack.c.bf16 %v40, %v38
  %v55 = vpack.c.bf16 %v43, %v41
  %v56 = vpack.c.bf16 %v44, %v42
  %v57 = vpack.c.bf16 %v47, %v45
  %v58 = vpack.c.bf16 %v48, %v46
  %v59 = vpack.c.bf16 %v51, %v49
  %v60 = vpack.c.bf16 %v52, %v50
  %v61 = vld [vmem:[%s1] sm:$0xff]
  %v62 = vld [vmem:[%s1 + $0x8] sm:$0xff]
  %v63 = vld [vmem:[%s1 + $0x10] sm:$0xff]
  %v64 = vld [vmem:[%s1 + $0x18] sm:$0xff]
  %v65 = vld [vmem:[%s1 + $0x20] sm:$0xff]
  %v66 = vld [vmem:[%s1 + $0x28] sm:$0xff]
  %v67 = vld [vmem:[%s1 + $0x30] sm:$0xff]
  %v68 = vld [vmem:[%s1 + $0x38] sm:$0xff]
  %v69 = vld [vmem:[%s1 + $0x40] sm:$0xff]
  %v70 = vld [vmem:[%s1 + $0x48] sm:$0xff]
  %v71 = vld [vmem:[%s1 + $0x50] sm:$0xff]
  %v72 = vld [vmem:[%s1 + $0x58] sm:$0xff]
  %v73 = vld [vmem:[%s1 + $0x60] sm:$0xff]
  %v74 = vld [vmem:[%s1 + $0x68] sm:$0xff]
  %v75 = vld [vmem:[%s1 + $0x70] sm:$0xff]
  %v76 = vld [vmem:[%s1 + $0x78] sm:$0xff]
  %v77 = vld [vmem:[%s1 + $0x80] sm:$0xff]
  %v78 = vld [vmem:[%s1 + $0x88] sm:$0xff]
  %v79 = vld [vmem:[%s1 + $0x90] sm:$0xff]
  %v80 = vld [vmem:[%s1 + $0x98] sm:$0xff]
  %v81 = vld [vmem:[%s1 + $0xa0] sm:$0xff]
  %v82 = vld [vmem:[%s1 + $0xa8] sm:$0xff]
  %v83 = vld [vmem:[%s1 + $0xb0] sm:$0xff]
  %v84 = vld [vmem:[%s1 + $0xb8] sm:$0xff]
  %v85 = vld [vmem:[%s1 + $0xc0] sm:$0xff]
  %v86 = vld [vmem:[%s1 + $0xc8] sm:$0xff]
  %v87 = vld [vmem:[%s1 + $0xd0] sm:$0xff]
  %v88 = vld [vmem:[%s1 + $0xd8] sm:$0xff]
  %v89 = vld [vmem:[%s1 + $0xe0] sm:$0xff]
  %v90 = vld [vmem:[%s1 + $0xe8] sm:$0xff]
  %v91 = vld [vmem:[%s1 + $0xf0] sm:$0xff]
  %v92 = vld [vmem:[%s1 + $0xf8] sm:$0xff]
  %v93 = vld [vmem:[%s2] sm:$0x3]
  %v95 = vlaneseq
  %v96 = vshrl.u32 %v95, 7
  %v97 = vsub.s32 0, %v96
  %v98 = vrot.slane %v93, %v97
  %v99 = vlaneseq
  %v100 = vshrl.u32 %v99, 7
  %v101 = vsub.s32 1, %v100
  %v102 = vrot.slane %v93, %v101
  %v137 = vunpack.c.l.b16 %v61
  %v138 = vunpack.c.h.b16 %v61
  %v139 = vunpack.c.l.b16 %v62
  %v140 = vunpack.c.h.b16 %v62
  %v141 = vunpack.c.l.b16 %v63
  %v142 = vunpack.c.h.b16 %v63
  %v143 = vunpack.c.l.b16 %v64
  %v144 = vunpack.c.h.b16 %v64
  %v145 = vunpack.c.l.b16 %v65
  %v146 = vunpack.c.h.b16 %v65
  %v147 = vunpack.c.l.b16 %v66
  %v148 = vunpack.c.h.b16 %v66
  %v149 = vunpack.c.l.b16 %v67
  %v150 = vunpack.c.h.b16 %v67
  %v151 = vunpack.c.l.b16 %v68
  %v152 = vunpack.c.h.b16 %v68
  %v153 = vunpack.c.l.b16 %v69
  %v154 = vunpack.c.h.b16 %v69
  %v155 = vunpack.c.l.b16 %v70
  %v156 = vunpack.c.h.b16 %v70
  %v157 = vunpack.c.l.b16 %v71
  %v158 = vunpack.c.h.b16 %v71
  %v159 = vunpack.c.l.b16 %v72
  %v160 = vunpack.c.h.b16 %v72
  %v161 = vunpack.c.l.b16 %v73
  %v162 = vunpack.c.h.b16 %v73
  %v163 = vunpack.c.l.b16 %v74
  %v164 = vunpack.c.h.b16 %v74
  %v165 = vunpack.c.l.b16 %v75
  %v166 = vunpack.c.h.b16 %v75
  %v167 = vunpack.c.l.b16 %v76
  %v168 = vunpack.c.h.b16 %v76
  %v169 = vunpack.c.l.b16 %v77
  %v170 = vunpack.c.h.b16 %v77
  %v171 = vunpack.c.l.b16 %v78
  %v172 = vunpack.c.h.b16 %v78
  %v173 = vunpack.c.l.b16 %v79
  %v174 = vunpack.c.h.b16 %v79
  %v175 = vunpack.c.l.b16 %v80
  %v176 = vunpack.c.h.b16 %v80
  %v177 = vunpack.c.l.b16 %v81
  %v178 = vunpack.c.h.b16 %v81
  %v179 = vunpack.c.l.b16 %v82
  %v180 = vunpack.c.h.b16 %v82
  %v181 = vunpack.c.l.b16 %v83
  %v182 = vunpack.c.h.b16 %v83
  %v183 = vunpack.c.l.b16 %v84
  %v184 = vunpack.c.h.b16 %v84
  %v185 = vunpack.c.l.b16 %v85
  %v186 = vunpack.c.h.b16 %v85
  %v187 = vunpack.c.l.b16 %v86
  %v188 = vunpack.c.h.b16 %v86
  %v189 = vunpack.c.l.b16 %v87
  %v190 = vunpack.c.h.b16 %v87
  %v191 = vunpack.c.l.b16 %v88
  %v192 = vunpack.c.h.b16 %v88
  %v193 = vunpack.c.l.b16 %v89
  %v194 = vunpack.c.h.b16 %v89
  %v195 = vunpack.c.l.b16 %v90
  %v196 = vunpack.c.h.b16 %v90
  %v197 = vunpack.c.l.b16 %v91
  %v198 = vunpack.c.h.b16 %v91
  %v199 = vunpack.c.l.b16 %v92
  %v200 = vunpack.c.h.b16 %v92
  %v201 = vpack.c.b16 %v139, %v137
  %v202 = vpack.c.b16 %v140, %v138
  %v203 = vpack.c.b16 %v143, %v141
  %v204 = vpack.c.b16 %v144, %v142
  %v205 = vpack.c.b16 %v147, %v145
  %v206 = vpack.c.b16 %v148, %v146
  %v207 = vpack.c.b16 %v151, %v149
  %v208 = vpack.c.b16 %v152, %v150
  %v209 = vpack.c.b16 %v155, %v153
  %v210 = vpack.c.b16 %v156, %v154
  %v211 = vpack.c.b16 %v159, %v157
  %v212 = vpack.c.b16 %v160, %v158
  %v213 = vpack.c.b16 %v163, %v161
  %v214 = vpack.c.b16 %v164, %v162
  %v215 = vpack.c.b16 %v167, %v165
  %v216 = vpack.c.b16 %v168, %v166
  %v217 = vpack.c.b16 %v171, %v169
  %v218 = vpack.c.b16 %v172, %v170
  %v219 = vpack.c.b16 %v175, %v173
  %v220 = vpack.c.b16 %v176, %v174
  %v221 = vpack.c.b16 %v179, %v177
  %v222 = vpack.c.b16 %v180, %v178
  %v223 = vpack.c.b16 %v183, %v181
  %v224 = vpack.c.b16 %v184, %v182
  %v225 = vpack.c.b16 %v187, %v185
  %v226 = vpack.c.b16 %v188, %v186
  %v227 = vpack.c.b16 %v191, %v189
  %v228 = vpack.c.b16 %v192, %v190
  %v229 = vpack.c.b16 %v195, %v193
  %v230 = vpack.c.b16 %v196, %v194
  %v231 = vpack.c.b16 %v199, %v197
  %v232 = vpack.c.b16 %v200, %v198
  %265 = vmatprep.subr.bf16.mxu0 %v202
  %266 = vmatpush1.bf16.msra.mxu0 %v201
  %267 = vmatprep.subr.bf16.mxu0 %v204
  %268 = vmatpush1.bf16.msra.mxu0 %v203
  %269 = vmatprep.subr.bf16.mxu0 %v206
  %270 = vmatpush1.bf16.msra.mxu0 %v205
  %271 = vmatprep.subr.bf16.mxu0 %v208
  %272 = vmatpush1.bf16.msra.mxu0 %v207
  %273 = vmatprep.subr.bf16.mxu0 %v210
  %274 = vmatpush1.bf16.msra.mxu0 %v209
  %275 = vmatprep.subr.bf16.mxu0 %v212
  %276 = vmatpush1.bf16.msra.mxu0 %v211
  %277 = vmatprep.subr.bf16.mxu0 %v214
  %278 = vmatpush1.bf16.msra.mxu0 %v213
  %279 = vmatprep.subr.bf16.mxu0 %v216
  %280 = vmatpush1.bf16.msra.mxu0 %v215
  %281 = vmatprep.subr.bf16.mxu0 %v218
  %282 = vmatpush1.bf16.msra.mxu0 %v217
  %283 = vmatprep.subr.bf16.mxu0 %v220
  %284 = vmatpush1.bf16.msra.mxu0 %v219
  %285 = vmatprep.subr.bf16.mxu0 %v222
  %286 = vmatpush1.bf16.msra.mxu0 %v221
  %287 = vmatprep.subr.bf16.mxu0 %v224
  %288 = vmatpush1.bf16.msra.mxu0 %v223
  %289 = vmatprep.subr.bf16.mxu0 %v226
  %290 = vmatpush1.bf16.msra.mxu0 %v225
  %291 = vmatprep.subr.bf16.mxu0 %v228
  %292 = vmatpush1.bf16.msra.mxu0 %v227
  %293 = vmatprep.subr.bf16.mxu0 %v230
  %294 = vmatpush1.bf16.msra.mxu0 %v229
  %295 = vmatprep.subr.bf16.mxu0 %v232
  %296 = vmatpush1.bf16.msra.mxu0 %v231
  %297 = vmatprep.mubr.bf16.mxu0 %v54
  %298 = vmatmul.mubr.bf16.gmra.mrb[0].mxu0 %v53
  %v299 = vpop.f32.mrb[0].mxu0
  %v300 = vadd.f32 %v98, %v299
  %v301 = vpop.f32.mrb[0].mxu0
  %v302 = vadd.f32 %v102, %v301
  %v303 = vpop.f32.mrb[0].mxu0
  %v304 = vadd.f32 %v98, %v303
  %v305 = vpop.f32.mrb[0].mxu0
  %v306 = vadd.f32 %v102, %v305
  %307 = vmatprep.mubr.bf16.mxu0 %v56
  %308 = vmatmul.mubr.bf16.gmra.mrb[0].mxu0 %v55
  %v309 = vpop.f32.mrb[0].mxu0
  %v310 = vadd.f32 %v98, %v309
  %v311 = vpop.f32.mrb[0].mxu0
  %v312 = vadd.f32 %v102, %v311
  %v313 = vpop.f32.mrb[0].mxu0
  %v314 = vadd.f32 %v98, %v313
  %v315 = vpop.f32.mrb[0].mxu0
  %v316 = vadd.f32 %v102, %v315
  %317 = vmatprep.mubr.bf16.mxu0 %v58
  %318 = vmatmul.mubr.bf16.gmra.mrb[0].mxu0 %v57
  %v319 = vpop.f32.mrb[0].mxu0
  %v320 = vadd.f32 %v98, %v319
  %v321 = vpop.f32.mrb[0].mxu0
  %v322 = vadd.f32 %v102, %v321
  %v323 = vpop.f32.mrb[0].mxu0
  %v324 = vadd.f32 %v98, %v323
  %v325 = vpop.f32.mrb[0].mxu0
  %v326 = vadd.f32 %v102, %v325
  %327 = vmatprep.mubr.bf16.mxu0 %v60
  %328 = vmatmul.mubr.bf16.gmra.mrb[0].mxu0 %v59
  %v329 = vpop.f32.mrb[0].mxu0
  %v330 = vadd.f32 %v98, %v329
  %v331 = vpop.f32.mrb[0].mxu0
  %v332 = vadd.f32 %v102, %v331
  %v333 = vpop.f32.mrb[0].mxu0
  %v334 = vadd.f32 %v98, %v333
  %v335 = vpop.f32.mrb[0].mxu0
  %v336 = vadd.f32 %v102, %v335
  %337 = vdwg.mxu0
  %v338 = vtanh.pop %v300
  %v339 = vtanh.pop %v302
  %v340 = vtanh.pop %v304
  %v341 = vtanh.pop %v306
  %v342 = vtanh.pop %v310
  %v343 = vtanh.pop %v312
  %v344 = vtanh.pop %v314
  %v345 = vtanh.pop %v316
  %v346 = vtanh.pop %v320
  %v347 = vtanh.pop %v322
  %v348 = vtanh.pop %v324
  %v349 = vtanh.pop %v326
  %v350 = vtanh.pop %v330
  %v351 = vtanh.pop %v332
  %v352 = vtanh.pop %v334
  %v353 = vtanh.pop %v336
  %v354 = vld [vmem:[%s3] sm:$0x3]
  %v356 = vlaneseq
  %v357 = vshrl.u32 %v356, 7
  %v358 = vsub.s32 0, %v357
  %v359 = vrot.slane %v354, %v358
  %v360 = vlaneseq
  %v361 = vshrl.u32 %v360, 7
  %v362 = vsub.s32 1, %v361
  %v363 = vrot.slane %v354, %v362
  %v366 = vmul.f32 %v338, %v359
  %v367 = vmul.f32 %v339, %v363
  %v368 = vmul.f32 %v340, %v359
  %v369 = vmul.f32 %v341, %v363
  %v370 = vmul.f32 %v342, %v359
  %v371 = vmul.f32 %v343, %v363
  %v372 = vmul.f32 %v344, %v359
  %v373 = vmul.f32 %v345, %v363
  %v374 = vmul.f32 %v346, %v359
  %v375 = vmul.f32 %v347, %v363
  %v376 = vmul.f32 %v348, %v359
  %v377 = vmul.f32 %v349, %v363
  %v378 = vmul.f32 %v350, %v359
  %v379 = vmul.f32 %v351, %v363
  %v380 = vmul.f32 %v352, %v359
  %v381 = vmul.f32 %v353, %v363
  %v382 = vadd.f32 %v366, %v367
  %383 = vadd.xlane.f32.xlu0 %v382
  %v384 = vpop.xlane.xlu0 %383
  %v385 = vadd.f32 %v368, %v369
  %386 = vadd.xlane.f32.xlu0 %v385
  %v387 = vpop.xlane.xlu0 %386
  %v388 = vadd.f32 %v370, %v371
  %389 = vadd.xlane.f32.xlu0 %v388
  %v390 = vpop.xlane.xlu0 %389
  %v391 = vadd.f32 %v372, %v373
  %392 = vadd.xlane.f32.xlu0 %v391
  %v393 = vpop.xlane.xlu0 %392
  %v394 = vadd.f32 %v374, %v375
  %395 = vadd.xlane.f32.xlu0 %v394
  %v396 = vpop.xlane.xlu0 %395
  %v397 = vadd.f32 %v376, %v377
  %398 = vadd.xlane.f32.xlu0 %v397
  %v399 = vpop.xlane.xlu0 %398
  %v400 = vadd.f32 %v378, %v379
  %401 = vadd.xlane.f32.xlu0 %v400
  %v402 = vpop.xlane.xlu0 %401
  %v403 = vadd.f32 %v380, %v381
  %404 = vadd.xlane.f32.xlu0 %v403
  %v405 = vpop.xlane.xlu0 %404
  %v406 = vld [vmem:[#allocation2] sm:$0x1]
  %v408 = vlaneseq
  %v409 = vshrl.u32 %v408, 7
  %v410 = vsub.s32 0, %v409
  %v411 = vrot.slane %v406, %v410
  %v413 = vadd.f32 %v384, %v411
  %v414 = vadd.f32 %v387, %v411
  %v415 = vadd.f32 %v390, %v411
  %v416 = vadd.f32 %v393, %v411
  %v417 = vadd.f32 %v396, %v411
  %v418 = vadd.f32 %v399, %v411
  %v419 = vadd.f32 %v402, %v411
  %v420 = vadd.f32 %v405, %v411
  %vm421 = vcmask 7168
  %v422 = vsel %vm421, %v413, -inf
  %v423 = vrot.slane %v422, 4
  %v424 = vmax.f32 %v422, %v423
  %v425 = vrot.slane %v424, 2
  %v426 = vmax.f32 %v424, %v425
  %v427 = vrot.slane %v426, 1
  %v428 = vmax.f32 %v426, %v427
  %v429 = vsel %vm421, %v414, -inf
  %v430 = vrot.slane %v429, 4
  %v431 = vmax.f32 %v429, %v430
  %v432 = vrot.slane %v431, 2
  %v433 = vmax.f32 %v431, %v432
  %v434 = vrot.slane %v433, 1
  %v435 = vmax.f32 %v433, %v434
  %v436 = vsel %vm421, %v415, -inf
  %v437 = vrot.slane %v436, 4
  %v438 = vmax.f32 %v436, %v437
  %v439 = vrot.slane %v438, 2
  %v440 = vmax.f32 %v438, %v439
  %v441 = vrot.slane %v440, 1
  %v442 = vmax.f32 %v440, %v441
  %v443 = vsel %vm421, %v416, -inf
  %v444 = vrot.slane %v443, 4
  %v445 = vmax.f32 %v443, %v444
  %v446 = vrot.slane %v445, 2
  %v447 = vmax.f32 %v445, %v446
  %v448 = vrot.slane %v447, 1
  %v449 = vmax.f32 %v447, %v448
  %v450 = vsel %vm421, %v417, -inf
  %v451 = vrot.slane %v450, 4
  %v452 = vmax.f32 %v450, %v451
  %v453 = vrot.slane %v452, 2
  %v454 = vmax.f32 %v452, %v453
  %v455 = vrot.slane %v454, 1
  %v456 = vmax.f32 %v454, %v455
  %v457 = vsel %vm421, %v418, -inf
  %v458 = vrot.slane %v457, 4
  %v459 = vmax.f32 %v457, %v458
  %v460 = vrot.slane %v459, 2
  %v461 = vmax.f32 %v459, %v460
  %v462 = vrot.slane %v461, 1
  %v463 = vmax.f32 %v461, %v462
  %v464 = vsel %vm421, %v419, -inf
  %v465 = vrot.slane %v464, 4
  %v466 = vmax.f32 %v464, %v465
  %v467 = vrot.slane %v466, 2
  %v468 = vmax.f32 %v466, %v467
  %v469 = vrot.slane %v468, 1
  %v470 = vmax.f32 %v468, %v469
  %v471 = vsel %vm421, %v420, -inf
  %v472 = vrot.slane %v471, 4
  %v473 = vmax.f32 %v471, %v472
  %v474 = vrot.slane %v473, 2
  %v475 = vmax.f32 %v473, %v474
  %v476 = vrot.slane %v475, 1
  %v477 = vmax.f32 %v475, %v476
  %v478 = vsub.f32 %v413, %v428
  %v479 = vsub.f32 %v414, %v435
  %v480 = vsub.f32 %v415, %v442
  %v481 = vsub.f32 %v416, %v449
  %v482 = vsub.f32 %v417, %v456
  %v483 = vsub.f32 %v418, %v463
  %v484 = vsub.f32 %v419, %v470
  %v485 = vsub.f32 %v420, %v477
  %v486 = vmul.f32 %v478, 1.442695
  %v487 = vpow.pop %v486
  %v488 = vmul.f32 %v479, 1.442695
  %v489 = vpow.pop %v488
  %v490 = vmul.f32 %v480, 1.442695
  %v491 = vpow.pop %v490
  %v492 = vmul.f32 %v481, 1.442695
  %v493 = vpow.pop %v492
  %v494 = vmul.f32 %v482, 1.442695
  %v495 = vpow.pop %v494
  %v496 = vmul.f32 %v483, 1.442695
  %v497 = vpow.pop %v496
  %v498 = vmul.f32 %v484, 1.442695
  %v499 = vpow.pop %v498
  %v500 = vmul.f32 %v485, 1.442695
  %v501 = vpow.pop %v500
  %v502 = vsel %vm421, %v487, 0.0
  %v503 = vrot.slane %v502, 4
  %v504 = vadd.f32 %v502, %v503
  %v505 = vrot.slane %v504, 2
  %v506 = vadd.f32 %v504, %v505
  %v507 = vrot.slane %v506, 1
  %v508 = vadd.f32 %v506, %v507
  %v509 = vsel %vm421, %v489, 0.0
  %v510 = vrot.slane %v509, 4
  %v511 = vadd.f32 %v509, %v510
  %v512 = vrot.slane %v511, 2
  %v513 = vadd.f32 %v511, %v512
  %v514 = vrot.slane %v513, 1
  %v515 = vadd.f32 %v513, %v514
  %v516 = vsel %vm421, %v491, 0.0
  %v517 = vrot.slane %v516, 4
  %v518 = vadd.f32 %v516, %v517
  %v519 = vrot.slane %v518, 2
  %v520 = vadd.f32 %v518, %v519
  %v521 = vrot.slane %v520, 1
  %v522 = vadd.f32 %v520, %v521
  %v523 = vsel %vm421, %v493, 0.0
  %v524 = vrot.slane %v523, 4
  %v525 = vadd.f32 %v523, %v524
  %v526 = vrot.slane %v525, 2
  %v527 = vadd.f32 %v525, %v526
  %v528 = vrot.slane %v527, 1
  %v529 = vadd.f32 %v527, %v528
  %v530 = vsel %vm421, %v495, 0.0
  %v531 = vrot.slane %v530, 4
  %v532 = vadd.f32 %v530, %v531
  %v533 = vrot.slane %v532, 2
  %v534 = vadd.f32 %v532, %v533
  %v535 = vrot.slane %v534, 1
  %v536 = vadd.f32 %v534, %v535
  %v537 = vsel %vm421, %v497, 0.0
  %v538 = vrot.slane %v537, 4
  %v539 = vadd.f32 %v537, %v538
  %v540 = vrot.slane %v539, 2
  %v541 = vadd.f32 %v539, %v540
  %v542 = vrot.slane %v541, 1
  %v543 = vadd.f32 %v541, %v542
  %v544 = vsel %vm421, %v499, 0.0
  %v545 = vrot.slane %v544, 4
  %v546 = vadd.f32 %v544, %v545
  %v547 = vrot.slane %v546, 2
  %v548 = vadd.f32 %v546, %v547
  %v549 = vrot.slane %v548, 1
  %v550 = vadd.f32 %v548, %v549
  %v551 = vsel %vm421, %v501, 0.0
  %v552 = vrot.slane %v551, 4
  %v553 = vadd.f32 %v551, %v552
  %v554 = vrot.slane %v553, 2
  %v555 = vadd.f32 %v553, %v554
  %v556 = vrot.slane %v555, 1
  %v557 = vadd.f32 %v555, %v556
  %v558 = vrcp.pop %v508
  %v559 = vrcp.pop %v515
  %v560 = vrcp.pop %v522
  %v561 = vrcp.pop %v529
  %v562 = vrcp.pop %v536
  %v563 = vrcp.pop %v543
  %v564 = vrcp.pop %v550
  %v565 = vrcp.pop %v557
  %v566 = vmul.f32 %v487, %v558
  %v567 = vmul.f32 %v489, %v559
  %v568 = vmul.f32 %v491, %v560
  %v569 = vmul.f32 %v493, %v561
  %v570 = vmul.f32 %v495, %v562
  %v571 = vmul.f32 %v497, %v563
  %v572 = vmul.f32 %v499, %v564
  %v573 = vmul.f32 %v501, %v565
  %575 = vset.pattern.permute.xlu0 0
  %576 = vperm.xlu0 %575, %v566
  %v577 = vpop.permute.xlu0 %576
  %580 = vset.pattern.permute.xlu0 0
  %581 = vperm.xlu0 %580, %v567
  %v582 = vpop.permute.xlu0 %581
  %585 = vset.pattern.permute.xlu0 0
  %586 = vperm.xlu0 %585, %v568
  %v587 = vpop.permute.xlu0 %586
  %590 = vset.pattern.permute.xlu0 0
  %591 = vperm.xlu0 %590, %v569
  %v592 = vpop.permute.xlu0 %591
  %595 = vset.pattern.permute.xlu0 0
  %596 = vperm.xlu0 %595, %v570
  %v597 = vpop.permute.xlu0 %596
  %600 = vset.pattern.permute.xlu0 0
  %601 = vperm.xlu0 %600, %v571
  %v602 = vpop.permute.xlu0 %601
  %605 = vset.pattern.permute.xlu0 0
  %606 = vperm.xlu0 %605, %v572
  %v607 = vpop.permute.xlu0 %606
  %610 = vset.pattern.permute.xlu0 0
  %611 = vperm.xlu0 %610, %v573
  %v612 = vpop.permute.xlu0 %611
  %v614 = vmul.f32 %v37, %v577
  %v615 = vmul.f32 %v38, %v577
  %v616 = vmul.f32 %v39, %v582
  %v617 = vmul.f32 %v40, %v582
  %v618 = vmul.f32 %v41, %v587
  %v619 = vmul.f32 %v42, %v587
  %v620 = vmul.f32 %v43, %v592
  %v621 = vmul.f32 %v44, %v592
  %v622 = vmul.f32 %v45, %v597
  %v623 = vmul.f32 %v46, %v597
  %v624 = vmul.f32 %v47, %v602
  %v625 = vmul.f32 %v48, %v602
  %v626 = vmul.f32 %v49, %v607
  %v627 = vmul.f32 %v50, %v607
  %v628 = vmul.f32 %v51, %v612
  %v629 = vmul.f32 %v52, %v612
  %v630 = vrot.slane %v614, 4
  %v631 = vadd.f32 %v614, %v630
  %v632 = vrot.slane %v631, 2
  %v633 = vadd.f32 %v631, %v632
  %v634 = vrot.slane %v633, 1
  %v635 = vadd.f32 %v633, %v634
  %v636 = vrot.slane %v615, 4
  %v637 = vadd.f32 %v615, %v636
  %v638 = vrot.slane %v637, 2
  %v639 = vadd.f32 %v637, %v638
  %v640 = vrot.slane %v639, 1
  %v641 = vadd.f32 %v639, %v640
  %v642 = vrot.slane %v616, 4
  %v643 = vadd.f32 %v616, %v642
  %v644 = vrot.slane %v643, 2
  %v645 = vadd.f32 %v643, %v644
  %v646 = vrot.slane %v645, 1
  %v647 = vadd.f32 %v645, %v646
  %v648 = vrot.slane %v617, 4
  %v649 = vadd.f32 %v617, %v648
  %v650 = vrot.slane %v649, 2
  %v651 = vadd.f32 %v649, %v650
  %v652 = vrot.slane %v651, 1
  %v653 = vadd.f32 %v651, %v652
  %v654 = vrot.slane %v618, 4
  %v655 = vadd.f32 %v618, %v654
  %v656 = vrot.slane %v655, 2
  %v657 = vadd.f32 %v655, %v656
  %v658 = vrot.slane %v657, 1
  %v659 = vadd.f32 %v657, %v658
  %v660 = vrot.slane %v619, 4
  %v661 = vadd.f32 %v619, %v660
  %v662 = vrot.slane %v661, 2
  %v663 = vadd.f32 %v661, %v662
  %v664 = vrot.slane %v663, 1
  %v665 = vadd.f32 %v663, %v664
  %v666 = vrot.slane %v620, 4
  %v667 = vadd.f32 %v620, %v666
  %v668 = vrot.slane %v667, 2
  %v669 = vadd.f32 %v667, %v668
  %v670 = vrot.slane %v669, 1
  %v671 = vadd.f32 %v669, %v670
  %v672 = vrot.slane %v621, 4
  %v673 = vadd.f32 %v621, %v672
  %v674 = vrot.slane %v673, 2
  %v675 = vadd.f32 %v673, %v674
  %v676 = vrot.slane %v675, 1
  %v677 = vadd.f32 %v675, %v676
  %v678 = vrot.slane %v622, 4
  %v679 = vadd.f32 %v622, %v678
  %v680 = vrot.slane %v679, 2
  %v681 = vadd.f32 %v679, %v680
  %v682 = vrot.slane %v681, 1
  %v683 = vadd.f32 %v681, %v682
  %v684 = vrot.slane %v623, 4
  %v685 = vadd.f32 %v623, %v684
  %v686 = vrot.slane %v685, 2
  %v687 = vadd.f32 %v685, %v686
  %v688 = vrot.slane %v687, 1
  %v689 = vadd.f32 %v687, %v688
  %v690 = vrot.slane %v624, 4
  %v691 = vadd.f32 %v624, %v690
  %v692 = vrot.slane %v691, 2
  %v693 = vadd.f32 %v691, %v692
  %v694 = vrot.slane %v693, 1
  %v695 = vadd.f32 %v693, %v694
  %v696 = vrot.slane %v625, 4
  %v697 = vadd.f32 %v625, %v696
  %v698 = vrot.slane %v697, 2
  %v699 = vadd.f32 %v697, %v698
  %v700 = vrot.slane %v699, 1
  %v701 = vadd.f32 %v699, %v700
  %v702 = vrot.slane %v626, 4
  %v703 = vadd.f32 %v626, %v702
  %v704 = vrot.slane %v703, 2
  %v705 = vadd.f32 %v703, %v704
  %v706 = vrot.slane %v705, 1
  %v707 = vadd.f32 %v705, %v706
  %v708 = vrot.slane %v627, 4
  %v709 = vadd.f32 %v627, %v708
  %v710 = vrot.slane %v709, 2
  %v711 = vadd.f32 %v709, %v710
  %v712 = vrot.slane %v711, 1
  %v713 = vadd.f32 %v711, %v712
  %v714 = vrot.slane %v628, 4
  %v715 = vadd.f32 %v628, %v714
  %v716 = vrot.slane %v715, 2
  %v717 = vadd.f32 %v715, %v716
  %v718 = vrot.slane %v717, 1
  %v719 = vadd.f32 %v717, %v718
  %v720 = vrot.slane %v629, 4
  %v721 = vadd.f32 %v629, %v720
  %v722 = vrot.slane %v721, 2
  %v723 = vadd.f32 %v721, %v722
  %v724 = vrot.slane %v723, 1
  %v725 = vadd.f32 %v723, %v724
  %v726 = vpack.c.bf16 %v635, %v635
  %v727 = vpack.c.bf16 %v641, %v641
  %v728 = vpack.c.bf16 %v647, %v647
  %v729 = vpack.c.bf16 %v653, %v653
  %v730 = vpack.c.bf16 %v659, %v659
  %v731 = vpack.c.bf16 %v665, %v665
  %v732 = vpack.c.bf16 %v671, %v671
  %v733 = vpack.c.bf16 %v677, %v677
  %v734 = vpack.c.bf16 %v683, %v683
  %v735 = vpack.c.bf16 %v689, %v689
  %v736 = vpack.c.bf16 %v695, %v695
  %v737 = vpack.c.bf16 %v701, %v701
  %v738 = vpack.c.bf16 %v707, %v707
  %v739 = vpack.c.bf16 %v713, %v713
  %v740 = vpack.c.bf16 %v719, %v719
  %v741 = vpack.c.bf16 %v725, %v725
  %v742 = vld [vmem:[%s5] sm:$0xf]
  %v743 = vld [vmem:[%s5 + $0x4] sm:$0xf]
  %v744 = vld [vmem:[%s5 + $0x8] sm:$0xf]
  %v745 = vld [vmem:[%s5 + $0xc] sm:$0xf]
  %v746 = vld [vmem:[%s5 + $0x10] sm:$0xf]
  %v747 = vld [vmem:[%s5 + $0x14] sm:$0xf]
  %v748 = vld [vmem:[%s5 + $0x18] sm:$0xf]
  %v749 = vld [vmem:[%s5 + $0x1c] sm:$0xf]
  %v750 = vld [vmem:[%s5 + $0x20] sm:$0xf]
  %v751 = vld [vmem:[%s5 + $0x24] sm:$0xf]
  %v752 = vld [vmem:[%s5 + $0x28] sm:$0xf]
  %v753 = vld [vmem:[%s5 + $0x2c] sm:$0xf]
  %v754 = vld [vmem:[%s5 + $0x30] sm:$0xf]
  %v755 = vld [vmem:[%s5 + $0x34] sm:$0xf]
  %v756 = vld [vmem:[%s5 + $0x38] sm:$0xf]
  %v757 = vld [vmem:[%s5 + $0x3c] sm:$0xf]
  %v758 = vld [vmem:[%s5 + $0x40] sm:$0xf]
  %v759 = vld [vmem:[%s5 + $0x44] sm:$0xf]
  %v760 = vld [vmem:[%s5 + $0x48] sm:$0xf]
  %v761 = vld [vmem:[%s5 + $0x4c] sm:$0xf]
  %v762 = vld [vmem:[%s5 + $0x50] sm:$0xf]
  %v763 = vld [vmem:[%s5 + $0x54] sm:$0xf]
  %v764 = vld [vmem:[%s5 + $0x58] sm:$0xf]
  %v765 = vld [vmem:[%s5 + $0x5c] sm:$0xf]
  %v766 = vld [vmem:[%s5 + $0x60] sm:$0xf]
  %v767 = vld [vmem:[%s5 + $0x64] sm:$0xf]
  %v768 = vld [vmem:[%s5 + $0x68] sm:$0xf]
  %v769 = vld [vmem:[%s5 + $0x6c] sm:$0xf]
  %v770 = vld [vmem:[%s5 + $0x70] sm:$0xf]
  %v771 = vld [vmem:[%s5 + $0x74] sm:$0xf]
  %v772 = vld [vmem:[%s5 + $0x78] sm:$0xf]
  %v773 = vld [vmem:[%s5 + $0x7c] sm:$0xf]
  %v774 = vld [vmem:[%s6] sm:$0x1]
  %v776 = vlaneseq
  %v777 = vshrl.u32 %v776, 7
  %v778 = vsub.s32 0, %v777
  %v779 = vrot.slane %v774, %v778
  %v797 = vunpack.c.l.b16 %v726
  %v798 = vunpack.c.l.b16 %v727
  %v799 = vunpack.c.l.b16 %v728
  %v800 = vunpack.c.l.b16 %v729
  %v801 = vunpack.c.l.b16 %v730
  %v802 = vunpack.c.l.b16 %v731
  %v803 = vunpack.c.l.b16 %v732
  %v804 = vunpack.c.l.b16 %v733
  %v805 = vunpack.c.l.b16 %v734
  %v806 = vunpack.c.l.b16 %v735
  %v807 = vunpack.c.l.b16 %v736
  %v808 = vunpack.c.l.b16 %v737
  %v809 = vunpack.c.l.b16 %v738
  %v810 = vunpack.c.l.b16 %v739
  %v811 = vunpack.c.l.b16 %v740
  %v812 = vunpack.c.l.b16 %v741
  %vm813 = vcmask 1041409
  %v814 = vsel %vm813, %v799, %v797
  %vm815 = vcmask 1042434
  %v816 = vsel %vm815, %v801, %v814
  %vm817 = vcmask 1043459
  %v818 = vsel %vm817, %v803, %v816
  %vm819 = vcmask 1044484
  %v820 = vsel %vm819, %v805, %v818
  %vm821 = vcmask 1045509
  %v822 = vsel %vm821, %v807, %v820
  %vm823 = vcmask 1046534
  %v824 = vsel %vm823, %v809, %v822
  %vm825 = vcmask 1047559
  %v826 = vsel %vm825, %v811, %v824
  %v827 = vsel %vm813, %v800, %v798
  %v828 = vsel %vm815, %v802, %v827
  %v829 = vsel %vm817, %v804, %v828
  %v830 = vsel %vm819, %v806, %v829
  %v831 = vsel %vm821, %v808, %v830
  %v832 = vsel %vm823, %v810, %v831
  %v833 = vsel %vm825, %v812, %v832
  %v834 = vpack.c.b16 %v826, %v826
  %v835 = vpack.c.b16 %v833, %v833
  %v870 = vunpack.c.l.b16 %v742
  %v871 = vunpack.c.l.b16 %v743
  %v872 = vunpack.c.l.b16 %v744
  %v873 = vunpack.c.l.b16 %v745
  %v874 = vunpack.c.l.b16 %v746
  %v875 = vunpack.c.l.b16 %v747
  %v876 = vunpack.c.l.b16 %v748
  %v877 = vunpack.c.l.b16 %v749
  %v878 = vunpack.c.l.b16 %v750
  %v879 = vunpack.c.l.b16 %v751
  %v880 = vunpack.c.l.b16 %v752
  %v881 = vunpack.c.l.b16 %v753
  %v882 = vunpack.c.l.b16 %v754
  %v883 = vunpack.c.l.b16 %v755
  %v884 = vunpack.c.l.b16 %v756
  %v885 = vunpack.c.l.b16 %v757
  %v886 = vunpack.c.l.b16 %v758
  %v887 = vunpack.c.l.b16 %v759
  %v888 = vunpack.c.l.b16 %v760
  %v889 = vunpack.c.l.b16 %v761
  %v890 = vunpack.c.l.b16 %v762
  %v891 = vunpack.c.l.b16 %v763
  %v892 = vunpack.c.l.b16 %v764
  %v893 = vunpack.c.l.b16 %v765
  %v894 = vunpack.c.l.b16 %v766
  %v895 = vunpack.c.l.b16 %v767
  %v896 = vunpack.c.l.b16 %v768
  %v897 = vunpack.c.l.b16 %v769
  %v898 = vunpack.c.l.b16 %v770
  %v899 = vunpack.c.l.b16 %v771
  %v900 = vunpack.c.l.b16 %v772
  %v901 = vunpack.c.l.b16 %v773
  %v902 = vpack.c.b16 %v871, %v870
  %v903 = vpack.c.b16 %v873, %v872
  %v904 = vpack.c.b16 %v875, %v874
  %v905 = vpack.c.b16 %v877, %v876
  %v906 = vpack.c.b16 %v879, %v878
  %v907 = vpack.c.b16 %v881, %v880
  %v908 = vpack.c.b16 %v883, %v882
  %v909 = vpack.c.b16 %v885, %v884
  %v910 = vpack.c.b16 %v887, %v886
  %v911 = vpack.c.b16 %v889, %v888
  %v912 = vpack.c.b16 %v891, %v890
  %v913 = vpack.c.b16 %v893, %v892
  %v914 = vpack.c.b16 %v895, %v894
  %v915 = vpack.c.b16 %v897, %v896
  %v916 = vpack.c.b16 %v899, %v898
  %v917 = vpack.c.b16 %v901, %v900
  %934 = vmatprep.subr.bf16.mxu0 0
  %935 = vmatpush1.bf16.msra.mxu0 %v902
  %936 = vmatprep.subr.bf16.mxu0 0
  %937 = vmatpush1.bf16.msra.mxu0 %v903
  %938 = vmatprep.subr.bf16.mxu0 0
  %939 = vmatpush1.bf16.msra.mxu0 %v904
  %940 = vmatprep.subr.bf16.mxu0 0
  %941 = vmatpush1.bf16.msra.mxu0 %v905
  %942 = vmatprep.subr.bf16.mxu0 0
  %943 = vmatpush1.bf16.msra.mxu0 %v906
  %944 = vmatprep.subr.bf16.mxu0 0
  %945 = vmatpush1.bf16.msra.mxu0 %v907
  %946 = vmatprep.subr.bf16.mxu0 0
  %947 = vmatpush1.bf16.msra.mxu0 %v908
  %948 = vmatprep.subr.bf16.mxu0 0
  %949 = vmatpush1.bf16.msra.mxu0 %v909
  %950 = vmatprep.subr.bf16.mxu0 0
  %951 = vmatpush1.bf16.msra.mxu0 %v910
  %952 = vmatprep.subr.bf16.mxu0 0
  %953 = vmatpush1.bf16.msra.mxu0 %v911
  %954 = vmatprep.subr.bf16.mxu0 0
  %955 = vmatpush1.bf16.msra.mxu0 %v912
  %956 = vmatprep.subr.bf16.mxu0 0
  %957 = vmatpush1.bf16.msra.mxu0 %v913
  %958 = vmatprep.subr.bf16.mxu0 0
  %959 = vmatpush1.bf16.msra.mxu0 %v914
  %960 = vmatprep.subr.bf16.mxu0 0
  %961 = vmatpush1.bf16.msra.mxu0 %v915
  %962 = vmatprep.subr.bf16.mxu0 0
  %963 = vmatpush1.bf16.msra.mxu0 %v916
  %964 = vmatprep.subr.bf16.mxu0 0
  %965 = vmatpush1.bf16.msra.mxu0 %v917
  %966 = vmatprep.mubr.bf16.mxu0 %v835
  %967 = vmatmul.mubr.bf16.gmra.mrb[0].mxu0 %v834
  %v968 = vpop.f32.mrb[0].mxu0
  %v969 = vadd.f32 %v779, %v968
  %v970 = vpop.f32.mrb[0].mxu0
  %v971 = vpop.f32.mrb[0].mxu0
  %v972 = vpop.f32.mrb[0].mxu0
  %973 = vdwg.mxu0
  %v974 = vmax.f32 %v969, 0.0
  %v975 = vld [vmem:[%s7] sm:$0x1]
  %v977 = vlaneseq
  %v978 = vshrl.u32 %v977, 7
  %v979 = vsub.s32 0, %v978
  %v980 = vrot.slane %v975, %v979
  %v982 = vmul.f32 %v974, %v980
  %983 = vadd.xlane.f32.xlu0 %v982
  %v984 = vpop.xlane.xlu0 %983
  %v985 = vld [vmem:[#allocation3] sm:$0x1]
  %v987 = vlaneseq
  %v988 = vshrl.u32 %v987, 7
  %v989 = vsub.s32 0, %v988
  %v990 = vrot.slane %v985, %v989
  %v992 = vadd.f32 %v984, %v990
  %993 = vst.msk [vmem:[%s9] sm:$0xff] %vm421, %v992
  // Predicated region
  $region38: #{emodel_bigru_forward.21} parent=0 // pred_check
    _
  $region39: #{emodel_bigru_forward.21} parent=0 // pred_check_branch
    %995 = sbr.rel (0) target = $region41
  $region40: #{emodel_bigru_forward.21} parent=0 // pred_region
    _
  $region41: #{emodel_bigru_forward.21} parent=0 // pred_fallthru
    _
  // Predicated region
  $region42: #{emodel_bigru_forward.21} parent=0 // pred_check
    _
  $region43: #{emodel_bigru_forward.21} parent=0 // pred_check_branch
    %997 = sbr.rel (0) target = $region45
  $region44: #{emodel_bigru_forward.21} parent=0 // pred_region
    _
  $region45: #{emodel_bigru_forward.21} parent=0 // pred_fallthru
    _

// kernel: emodel_bigru_forward.16
$region0: #{emodel_bigru_forward.16}
  #allocation0 [shape = 'u32[]', space=smem, size = 0x4, offset = 0x4, fixed_abs, tag = 'smem constant byte address 0x4 - core index']
  #allocation1 [shape = 'u32[144,128]{1,0:T(1,128)}', space=vmem, size = 0x12000, scoped, tag = 'internal scratch']
  %s0 = inlined_call_operand.vmem [shape: bf16[8,3,8,8,32], index: 0, kind: input, shape index: {}]
  %s1 = inlined_call_operand.vmem [shape: f32[8,8,256], index: 1, kind: input, shape index: {}]
  %s2 = inlined_call_operand.vmem [shape: bf16[8,32,256], index: 2, kind: input, shape index: {}]
  %s3 = inlined_call_operand.vmem [shape: f32[1,256], index: 3, kind: input, shape index: {}]
  %s4 = inlined_call_operand.vmem [shape: f32[1,256], index: 4, kind: input, shape index: {}]
  %s5 = inlined_call_operand.vmem [shape: f32[1,256], index: 5, kind: input, shape index: {}]
  %s6 = inlined_call_operand.vmem [shape: f32[8,8,256], index: 6, kind: output, shape index: {}]
  %s7 = sld [smem:[#allocation0]]
  $region57: #{emodel_bigru_forward.16} parent=0
    _
  %s9 = ssub.s32 1, %s7
  %s10 = scalar_select 0, %s9, %s7
  loop: start=0, step=1, limit=10
  $region2: #{emodel_bigru_forward.16} parent=0 // loop_pre_header
    _
  $region3: #{emodel_bigru_forward.16} parent=0 // loop_header
    %s12 = sphi 0, %s16
    %p13 = scmp.ge.s32.totalorder %s12, 10
    %s22 = sphi 0, %s24
    %s25 = sphi 0, %s22
    %s26 = sphi 0, %s25
    %s42 = sphi 0, %s26
    %s48 = sphi 0, %s50
    %s51 = sphi 0, %s48
    %s52 = sphi 0, %s51
    %s68 = sphi 0, %s52
    %s72 = sphi 0, %s72
    %s74 = sphi 0, %s72
    %s75 = sphi 0, %s74
    %s89 = sphi 0, %s75
    %s93 = sphi 0, %s93
    %s95 = sphi 0, %s93
    %s96 = sphi 0, %s95
    %s110 = sphi 0, %s96
    %s114 = sphi 0, %s114
    %s116 = sphi 0, %s114
    %s117 = sphi 0, %s116
    %s131 = sphi 0, %s117
    %s135 = sphi 0, %s135
    %s137 = sphi 0, %s135
    %s138 = sphi 0, %s137
    %s152 = sphi 0, %s138
    %s158 = sphi 0, %s160
    %s161 = sphi 0, %s158
    %s162 = sphi 0, %s161
    %s178 = sphi 0, %s162
  $region4: #{emodel_bigru_forward.16} parent=0 // loop_header_branch
    %15 = sbr.rel (%p13) target = $region8
  $region5: #{emodel_bigru_forward.16} parent=0 // loop_body
    %s17 = ssub.s32 %s12, 1
    %s18 = ssub.s32 %s12, 2
    %s19 = sadd.s32 %s12, 1
    %s20 = ssub.s32 %s12, %s19
    %p21 = scmp.eq.s32.totalorder %s20, 0
    %s23 = sadd.s32 %s22, 1
    %s24 = scalar_select %p21, %s22, %s23
    %p27 = pneg %p21
    %p28 = scmp.eq.s32.totalorder %s12, 7
    %p29 = por %p27, %p28
    %p30 = scmp.ne.s32.totalorder %s22, %s25
    %p31 = scmp.eq.s32.totalorder %s12, 0
    %p32 = por %p30, %p31
    %p33 = scmp.ne.s32.totalorder %s22, %s25
    %p34 = scmp.eq.s32.totalorder %s17, 7
    %p35 = por %p33, %p34
    %p36 = scmp.ne.s32.totalorder %s25, %s26
    %p37 = scmp.eq.s32.totalorder %s17, 0
    %p38 = por %p36, %p37
    %p39 = scmp.ne.s32.totalorder %s25, %s26
    %p40 = scmp.eq.s32.totalorder %s18, 7
    %p41 = por %p39, %p40
    %p43 = scmp.ne.s32.totalorder %s26, %s42
    %p44 = scmp.eq.s32.totalorder %s18, 0
    %p45 = por %p43, %p44
    %s46 = ssub.s32 %s12, %s19
    %p47 = scmp.eq.s32.totalorder %s46, 0
    %s49 = sadd.s32 %s48, 1
    %s50 = scalar_select %p47, %s48, %s49
    %p53 = pneg %p47
    %p54 = scmp.eq.s32.totalorder %s12, 7
    %p55 = por %p53, %p54
    %p56 = scmp.ne.s32.totalorder %s48, %s51
    %p57 = scmp.eq.s32.totalorder %s12, 0
    %p58 = por %p56, %p57
    %p59 = scmp.ne.s32.totalorder %s48, %s51
    %p60 = scmp.eq.s32.totalorder %s17, 7
    %p61 = por %p59, %p60
    %p62 = scmp.ne.s32.totalorder %s51, %s52
    %p63 = scmp.eq.s32.totalorder %s17, 0
    %p64 = por %p62, %p63
    %p65 = scmp.ne.s32.totalorder %s51, %s52
    %p66 = scmp.eq.s32.totalorder %s18, 7
    %p67 = por %p65, %p66
    %p69 = scmp.ne.s32.totalorder %s52, %s68
    %p70 = scmp.eq.s32.totalorder %s18, 0
    %p71 = por %p69, %p70
    %s73 = sadd.s32 %s72, 1
    %p76 = scmp.eq.s32.totalorder %s12, 7
    %p77 = scmp.ne.s32.totalorder %s72, %s74
    %p78 = scmp.eq.s32.totalorder %s12, 0
    %p79 = por %p77, %p78
    %p80 = scmp.ne.s32.totalorder %s72, %s74
    %p81 = scmp.eq.s32.totalorder %s17, 7
    %p82 = por %p80, %p81
    %p83 = scmp.ne.s32.totalorder %s74, %s75
    %p84 = scmp.eq.s32.totalorder %s17, 0
    %p85 = por %p83, %p84
    %p86 = scmp.ne.s32.totalorder %s74, %s75
    %p87 = scmp.eq.s32.totalorder %s18, 7
    %p88 = por %p86, %p87
    %p90 = scmp.ne.s32.totalorder %s75, %s89
    %p91 = scmp.eq.s32.totalorder %s18, 0
    %p92 = por %p90, %p91
    %s94 = sadd.s32 %s93, 1
    %p97 = scmp.eq.s32.totalorder %s12, 7
    %p98 = scmp.ne.s32.totalorder %s93, %s95
    %p99 = scmp.eq.s32.totalorder %s12, 0
    %p100 = por %p98, %p99
    %p101 = scmp.ne.s32.totalorder %s93, %s95
    %p102 = scmp.eq.s32.totalorder %s17, 7
    %p103 = por %p101, %p102
    %p104 = scmp.ne.s32.totalorder %s95, %s96
    %p105 = scmp.eq.s32.totalorder %s17, 0
    %p106 = por %p104, %p105
    %p107 = scmp.ne.s32.totalorder %s95, %s96
    %p108 = scmp.eq.s32.totalorder %s18, 7
    %p109 = por %p107, %p108
    %p111 = scmp.ne.s32.totalorder %s96, %s110
    %p112 = scmp.eq.s32.totalorder %s18, 0
    %p113 = por %p111, %p112
    %s115 = sadd.s32 %s114, 1
    %p118 = scmp.eq.s32.totalorder %s12, 7
    %p119 = scmp.ne.s32.totalorder %s114, %s116
    %p120 = scmp.eq.s32.totalorder %s12, 0
    %p121 = por %p119, %p120
    %p122 = scmp.ne.s32.totalorder %s114, %s116
    %p123 = scmp.eq.s32.totalorder %s17, 7
    %p124 = por %p122, %p123
    %p125 = scmp.ne.s32.totalorder %s116, %s117
    %p126 = scmp.eq.s32.totalorder %s17, 0
    %p127 = por %p125, %p126
    %p128 = scmp.ne.s32.totalorder %s116, %s117
    %p129 = scmp.eq.s32.totalorder %s18, 7
    %p130 = por %p128, %p129
    %p132 = scmp.ne.s32.totalorder %s117, %s131
    %p133 = scmp.eq.s32.totalorder %s18, 0
    %p134 = por %p132, %p133
    %s136 = sadd.s32 %s135, 1
    %p139 = scmp.eq.s32.totalorder %s12, 7
    %p140 = scmp.ne.s32.totalorder %s135, %s137
    %p141 = scmp.eq.s32.totalorder %s12, 0
    %p142 = por %p140, %p141
    %p143 = scmp.ne.s32.totalorder %s135, %s137
    %p144 = scmp.eq.s32.totalorder %s17, 7
    %p145 = por %p143, %p144
    %p146 = scmp.ne.s32.totalorder %s137, %s138
    %p147 = scmp.eq.s32.totalorder %s17, 0
    %p148 = por %p146, %p147
    %p149 = scmp.ne.s32.totalorder %s137, %s138
    %p150 = scmp.eq.s32.totalorder %s18, 7
    %p151 = por %p149, %p150
    %p153 = scmp.ne.s32.totalorder %s138, %s152
    %p154 = scmp.eq.s32.totalorder %s18, 0
    %p155 = por %p153, %p154
    %s156 = ssub.s32 %s12, %s19
    %p157 = scmp.eq.s32.totalorder %s156, 0
    %s159 = sadd.s32 %s158, 1
    %s160 = scalar_select %p157, %s158, %s159
    %p163 = pneg %p157
    %p164 = scmp.eq.s32.totalorder %s12, 7
    %p165 = por %p163, %p164
    %p166 = scmp.ne.s32.totalorder %s158, %s161
    %p167 = scmp.eq.s32.totalorder %s12, 0
    %p168 = por %p166, %p167
    %p169 = scmp.ne.s32.totalorder %s158, %s161
    %p170 = scmp.eq.s32.totalorder %s17, 7
    %p171 = por %p169, %p170
    %p172 = scmp.ne.s32.totalorder %s161, %s162
    %p173 = scmp.eq.s32.totalorder %s17, 0
    %p174 = por %p172, %p173
    %p175 = scmp.ne.s32.totalorder %s161, %s162
    %p176 = scmp.eq.s32.totalorder %s18, 7
    %p177 = por %p175, %p176
    %p179 = scmp.ne.s32.totalorder %s162, %s178
    %p180 = scmp.eq.s32.totalorder %s18, 0
    %p181 = por %p179, %p180
    %p182 = scmp.le.s32.totalorder 1, %s12
    %p183 = scmp.lt.s32.totalorder %s12, 9
    %p184 = pnand %p182, %p183
    %p185 = pneg %p184
    // Predicated region
    $region9: #{emodel_bigru_forward.16} parent=5 // pred_check
      _
    $region10: #{emodel_bigru_forward.16} parent=5 // pred_check_branch
      %187 = sbr.rel (%p184) target = $region12
    $region11: #{emodel_bigru_forward.16} parent=5 // pred_region
      %s188 = ssub.s32 %s12, 1
      // Predicated region
      $region13: #{emodel_bigru_forward.16} parent=11 // pred_check
        %p189 = pneg %p85
      $region14: #{emodel_bigru_forward.16} parent=11 // pred_check_branch
        %191 = sbr.rel (%p189) target = $region16
      $region15: #{emodel_bigru_forward.16} parent=11 // pred_region
        _
      $region16: #{emodel_bigru_forward.16} parent=11 // pred_fallthru
        _
      // Predicated region
      $region17: #{emodel_bigru_forward.16} parent=11 // pred_check
        %p192 = pneg %p106
      $region18: #{emodel_bigru_forward.16} parent=11 // pred_check_branch
        %194 = sbr.rel (%p192) target = $region20
      $region19: #{emodel_bigru_forward.16} parent=11 // pred_region
        _
      $region20: #{emodel_bigru_forward.16} parent=11 // pred_fallthru
        _
      // Predicated region
      $region21: #{emodel_bigru_forward.16} parent=11 // pred_check
        %p195 = pneg %p127
      $region22: #{emodel_bigru_forward.16} parent=11 // pred_check_branch
        %197 = sbr.rel (%p195) target = $region24
      $region23: #{emodel_bigru_forward.16} parent=11 // pred_region
        _
      $region24: #{emodel_bigru_forward.16} parent=11 // pred_fallthru
        _
      // Predicated region
      $region25: #{emodel_bigru_forward.16} parent=11 // pred_check
        %p198 = pneg %p148
      $region26: #{emodel_bigru_forward.16} parent=11 // pred_check_branch
        %200 = sbr.rel (%p198) target = $region28
      $region27: #{emodel_bigru_forward.16} parent=11 // pred_region
        _
      $region28: #{emodel_bigru_forward.16} parent=11 // pred_fallthru
        _
    $region12: #{emodel_bigru_forward.16} parent=5 // pred_fallthru
      _
    %p201 = scmp.lt.s32.totalorder %s12, 8
    // Predicated region
    $region29: #{emodel_bigru_forward.16} parent=5 // pred_check
      %p202 = pneg %p201
    $region30: #{emodel_bigru_forward.16} parent=5 // pred_check_branch
      %204 = sbr.rel (%p202) target = $region32
    $region31: #{emodel_bigru_forward.16} parent=5 // pred_region
      // Predicated region
      $region33: #{emodel_bigru_forward.16} parent=31 // pred_check
        %p205 = pneg %p32
      $region34: #{emodel_bigru_forward.16} parent=31 // pred_check_branch
        %207 = sbr.rel (%p205) target = $region36
      $region35: #{emodel_bigru_forward.16} parent=31 // pred_region
        %p208 = scmp.lt.s32.totalorder %s12, 7
        %s209 = scalar_select %p208, %s12, 7
        %s210 = smul.addr %s209, 24
        %s211 = smul.addr %s210, 4
        %s212 = scalar_lea.vmem %s0, %s211
      $region36: #{emodel_bigru_forward.16} parent=31 // pred_fallthru
        _
      // Predicated region
      $region37: #{emodel_bigru_forward.16} parent=31 // pred_check
        %p213 = pneg %p58
      $region38: #{emodel_bigru_forward.16} parent=31 // pred_check_branch
        %215 = sbr.rel (%p213) target = $region40
      $region39: #{emodel_bigru_forward.16} parent=31 // pred_region
        %p216 = scmp.lt.s32.totalorder %s12, 7
        %s217 = scalar_select %p216, %s12, 7
        %s218 = smul.addr %s217, 2
        %s219 = smul.addr %s218, 8
        %s220 = scalar_lea.vmem %s1, %s219
      $region40: #{emodel_bigru_forward.16} parent=31 // pred_fallthru
        _
    $region32: #{emodel_bigru_forward.16} parent=5 // pred_fallthru
      _
    %p221 = scmp.le.s32.totalorder 1, %s12
    %p222 = scmp.lt.s32.totalorder %s12, 9
    %p223 = pnand %p221, %p222
    %p224 = pneg %p223
    // Predicated region
    $region41: #{emodel_bigru_forward.16} parent=5 // pred_check
      _
    $region42: #{emodel_bigru_forward.16} parent=5 // pred_check_branch
      %226 = sbr.rel (%p223) target = $region44
    $region43: #{emodel_bigru_forward.16} parent=5 // pred_region
      %s227 = ssub.s32 %s12, 1
      %p228 = scmp.lt.s32.totalorder %s17, 7
      %s229 = scalar_select %p228, %s17, 7
      %s230 = smul.addr %s229, 24
      %s231 = smul.addr %s230, 4
      %s232 = scalar_lea.vmem %s0, %s231
      %p233 = pneg %p38
      %p234 = pneg %p35
      %p235 = scmp.lt.s32.totalorder %s17, 7
      %s236 = scalar_select %p235, %s17, 7
      %s237 = smul.addr %s236, 2
      %s238 = smul.addr %s237, 8
      %s239 = scalar_lea.vmem %s1, %s238
      %p240 = pneg %p64
      %p241 = pneg %p61
      %p242 = pneg %p85
      %p243 = pneg %p82
      %p244 = pneg %p106
      %p245 = pneg %p103
      %p246 = pneg %p127
      %p247 = pneg %p124
      %p248 = pneg %p148
      %p249 = pneg %p145
      %p250 = pneg %p174
      %p251 = pneg %p171
      %p252 = scmp.lt.s32.totalorder %s17, 7
      %s253 = scalar_select %p252, %s17, 7
      %s254 = smul.addr %s253, 2
      %s255 = smul.addr %s254, 8
      %s256 = scalar_lea.vmem %s6, %s255
      %p257 = scmp.lt.s32.totalorder %s17, 7
      %s258 = scalar_select %p257, %s17, 7
      %s259 = smul.addr %s258, 24
      %s260 = smul.addr %s259, 4
      %s261 = scalar_lea.vmem %s0, %s260
      %p262 = scmp.lt.s32.totalorder %s17, 7
      %s263 = scalar_select %p262, %s17, 7
      %s264 = smul.addr %s263, 2
      %s265 = smul.addr %s264, 8
      %s266 = scalar_lea.vmem %s1, %s265
      %p267 = scmp.lt.s32.totalorder %s17, 7
      %s268 = scalar_select %p267, %s17, 7
      %s269 = smul.addr %s268, 2
      %s270 = smul.addr %s269, 8
      %s271 = scalar_lea.vmem %s6, %s270
      %v273 = vld [vmem:[%s266] sm:$0xff]
      %v274 = vld [vmem:[%s266 + $0x8] sm:$0xff]
      %v275 = vld [vmem:[%s261] sm:$0xf]
      %s276 = scalar_lea.vmem %s261, 32
      %v277 = vld [vmem:[%s276] sm:$0xf]
      %s278 = scalar_lea.vmem %s261, 64
      %v279 = vld [vmem:[%s278] sm:$0xf]
      %vm280 = vcmask 261120
      %v282 = vsel %vm280, %v275, 0
      %v285 = vsel %vm280, %v277, 0
      %287 = vmatprep.subr.bf16.mxu0 0
      %288 = vmatpush1.bf16.xpose.msra.mxu0 %v285
      %289 = vmatprep.subr.bf16.mxu0 0
      %290 = vmatpush1.bf16.xpose.msra.mxu0 0
      %291 = vmatprep.subr.bf16.mxu0 0
      %292 = vmatpush1.bf16.xpose.msra.mxu0 0
      %293 = vmatprep.subr.bf16.mxu0 0
      %294 = vmatpush1.bf16.xpose.msra.mxu0 0
      %295 = vmatprep.subr.bf16.mxu0 0
      %296 = vmatpush1.bf16.xpose.msra.mxu0 0
      %297 = vmatprep.subr.bf16.mxu0 0
      %298 = vmatpush1.bf16.xpose.msra.mxu0 0
      %299 = vmatprep.subr.bf16.mxu0 0
      %300 = vmatpush1.bf16.xpose.msra.mxu0 0
      %301 = vmatprep.subr.bf16.mxu0 0
      %302 = vmatpush1.bf16.xpose.msra.mxu0 0
      %303 = vmatprep.subr.bf16.mxu0 0
      %304 = vmatpush1.bf16.xpose.msra.mxu0 0
      %305 = vmatprep.subr.bf16.mxu0 0
      %306 = vmatpush1.bf16.xpose.msra.mxu0 0
      %307 = vmatprep.subr.bf16.mxu0 0
      %308 = vmatpush1.bf16.xpose.msra.mxu0 0
      %309 = vmatprep.subr.bf16.mxu0 0
      %310 = vmatpush1.bf16.xpose.msra.mxu0 0
      %311 = vmatprep.subr.bf16.mxu0 0
      %312 = vmatpush1.bf16.xpose.msra.mxu0 0
      %313 = vmatprep.subr.bf16.mxu0 0
      %314 = vmatpush1.bf16.xpose.msra.mxu0 0
      %315 = vmatprep.subr.bf16.mxu0 0
      %316 = vmatpush1.bf16.xpose.msra.mxu0 0
      %317 = vmatprep.subr.bf16.mxu0 0
      %318 = vmatpush1.bf16.xpose.msra.mxu0 0
      %319 = vmatprep.mubr.bf16.mxu0 0
      %320 = vmatmul.mubr.bf16.gmra.mrb[0].mxu0 %v282
      %v321 = vpop.f32.mrb[0].mxu0
      %v322 = vadd.f32 0.0, %v321
      %v323 = vpop.f32.mrb[0].mxu0
      %v324 = vpop.f32.mrb[0].mxu0
      %v325 = vpop.f32.mrb[0].mxu0
      %326 = vdwg.mxu0
      %vm327 = vcmask 64512
      %v328 = vsel %vm327, %v322, -inf
      %329 = vmax.xlane.f32.xlu0 %v328
      %v330 = vpop.xlane.xlu0 %329
      %v331 = vsub.f32 %v322, %v330
      %v332 = vmul.f32 %v331, 1.442695
      %v333 = vpow.pop %v332
      %v334 = vsel %vm327, %v333, 0.0
      %335 = vadd.xlane.f32.xlu0 %v334
      %v336 = vpop.xlane.xlu0 %335
      %v337 = vrcp.pop %v336
      %v338 = vmul.f32 %v333, %v337
      %v339 = vpack.c.bf16 %v338, %v338
      %v341 = vsel %vm327, %v339, 0
      %vm343 = vcmask 1043456
      %v345 = vsel %vm343, %v279, 0
      %347 = vmatprep.subr.bf16.mxu0 0
      %348 = vmatpush1.bf16.msra.mxu0 %v345
      %349 = vmatprep.subr.bf16.mxu0 0
      %350 = vmatpush1.bf16.msra.mxu0 0
      %351 = vmatprep.subr.bf16.mxu0 0
      %352 = vmatpush1.bf16.msra.mxu0 0
      %353 = vmatprep.subr.bf16.mxu0 0
      %354 = vmatpush1.bf16.msra.mxu0 0
      %355 = vmatprep.subr.bf16.mxu0 0
      %356 = vmatpush1.bf16.msra.mxu0 0
      %357 = vmatprep.subr.bf16.mxu0 0
      %358 = vmatpush1.bf16.msra.mxu0 0
      %359 = vmatprep.subr.bf16.mxu0 0
      %360 = vmatpush1.bf16.msra.mxu0 0
      %361 = vmatprep.subr.bf16.mxu0 0
      %362 = vmatpush1.bf16.msra.mxu0 0
      %363 = vmatprep.subr.bf16.mxu0 0
      %364 = vmatpush1.bf16.msra.mxu0 0
      %365 = vmatprep.subr.bf16.mxu0 0
      %366 = vmatpush1.bf16.msra.mxu0 0
      %367 = vmatprep.subr.bf16.mxu0 0
      %368 = vmatpush1.bf16.msra.mxu0 0
      %369 = vmatprep.subr.bf16.mxu0 0
      %370 = vmatpush1.bf16.msra.mxu0 0
      %371 = vmatprep.subr.bf16.mxu0 0
      %372 = vmatpush1.bf16.msra.mxu0 0
      %373 = vmatprep.subr.bf16.mxu0 0
      %374 = vmatpush1.bf16.msra.mxu0 0
      %375 = vmatprep.subr.bf16.mxu0 0
      %376 = vmatpush1.bf16.msra.mxu0 0
      %377 = vmatprep.subr.bf16.mxu0 0
      %378 = vmatpush1.bf16.msra.mxu0 0
      %379 = vmatprep.mubr.bf16.mxu0 0
      %380 = vmatmul.mubr.bf16.gmra.mrb[0].mxu0 %v341
      %v381 = vpop.f32.mrb[0].mxu0
      %v382 = vadd.f32 0.0, %v381
      %v383 = vpop.f32.mrb[0].mxu0
      %v384 = vpop.f32.mrb[0].mxu0
      %v385 = vpop.f32.mrb[0].mxu0
      %386 = vdwg.mxu0
      %v387 = vpack.c.bf16 %v382, %v382
      %v388 = vld [vmem:[%s2] sm:$0xff]
      %v389 = vld [vmem:[%s2 + $0x8] sm:$0xff]
      %v390 = vld [vmem:[%s2 + $0x10] sm:$0xff]
      %v391 = vld [vmem:[%s2 + $0x18] sm:$0xff]
      %s392 = scalar_lea.vmem %s261, 4
      %v393 = vld [vmem:[%s392] sm:$0xf]
      %s394 = scalar_lea.vmem %s261, 36
      %v395 = vld [vmem:[%s394] sm:$0xf]
      %s396 = scalar_lea.vmem %s261, 68
      %v397 = vld [vmem:[%s396] sm:$0xf]
      %v399 = vsel %vm280, %v393, 0
      %v402 = vsel %vm280, %v395, 0
      %404 = vmatprep.subr.bf16.mxu0 0
      %405 = vmatpush1.bf16.xpose.msra.mxu0 %v402
      %406 = vmatprep.subr.bf16.mxu0 0
      %407 = vmatpush1.bf16.xpose.msra.mxu0 0
      %408 = vmatprep.subr.bf16.mxu0 0
      %409 = vmatpush1.bf16.xpose.msra.mxu0 0
      %410 = vmatprep.subr.bf16.mxu0 0
      %411 = vmatpush1.bf16.xpose.msra.mxu0 0
      %412 = vmatprep.subr.bf16.mxu0 0
      %413 = vmatpush1.bf16.xpose.msra.mxu0 0
      %414 = vmatprep.subr.bf16.mxu0 0
      %415 = vmatpush1.bf16.xpose.msra.mxu0 0
      %416 = vmatprep.subr.bf16.mxu0 0
      %417 = vmatpush1.bf16.xpose.msra.mxu0 0
      %418 = vmatprep.subr.bf16.mxu0 0
      %419 = vmatpush1.bf16.xpose.msra.mxu0 0
      %420 = vmatprep.subr.bf16.mxu0 0
      %421 = vmatpush1.bf16.xpose.msra.mxu0 0
      %422 = vmatprep.subr.bf16.mxu0 0
      %423 = vmatpush1.bf16.xpose.msra.mxu0 0
      %424 = vmatprep.subr.bf16.mxu0 0
      %425 = vmatpush1.bf16.xpose.msra.mxu0 0
      %426 = vmatprep.subr.bf16.mxu0 0
      %427 = vmatpush1.bf16.xpose.msra.mxu0 0
      %428 = vmatprep.subr.bf16.mxu0 0
      %429 = vmatpush1.bf16.xpose.msra.mxu0 0
      %430 = vmatprep.subr.bf16.mxu0 0
      %431 = vmatpush1.bf16.xpose.msra.mxu0 0
      %432 = vmatprep.subr.bf16.mxu0 0
      %433 = vmatpush1.bf16.xpose.msra.mxu0 0
      %434 = vmatprep.subr.bf16.mxu0 0
      %435 = vmatpush1.bf16.xpose.msra.mxu0 0
      %436 = vmatprep.mubr.bf16.mxu0 0
      %437 = vmatmul.mubr.bf16.gmra.mrb[0].mxu0 %v399
      %v438 = vpop.f32.mrb[0].mxu0
      %v439 = vadd.f32 0.0, %v438
      %v440 = vpop.f32.mrb[0].mxu0
      %v441 = vpop.f32.mrb[0].mxu0
      %v442 = vpop.f32.mrb[0].mxu0
      %443 = vdwg.mxu0
      %v444 = vsel %vm327, %v439, -inf
      %445 = vmax.xlane.f32.xlu0 %v444
      %v446 = vpop.xlane.xlu0 %445
      %v447 = vsub.f32 %v439, %v446
      %v448 = vmul.f32 %v447, 1.442695
      %v449 = vpow.pop %v448
      %v450 = vsel %vm327, %v449, 0.0
      %451 = vadd.xlane.f32.xlu0 %v450
      %v452 = vpop.xlane.xlu0 %451
      %v453 = vrcp.pop %v452
      %v454 = vmul.f32 %v449, %v453
      %v455 = vpack.c.bf16 %v454, %v454
      %v457 = vsel %vm327, %v455, 0
      %v460 = vsel %vm343, %v397, 0
      %462 = vmatprep.subr.bf16.mxu0 0
      %463 = vmatpush1.bf16.msra.mxu0 %v460
      %464 = vmatprep.subr.bf16.mxu0 0
      %465 = vmatpush1.bf16.msra.mxu0 0
      %466 = vmatprep.subr.bf16.mxu0 0
      %467 = vmatpush1.bf16.msra.mxu0 0
      %468 = vmatprep.subr.bf16.mxu0 0
      %469 = vmatpush1.bf16.msra.mxu0 0
      %470 = vmatprep.subr.bf16.mxu0 0
      %471 = vmatpush1.bf16.msra.mxu0 0
      %472 = vmatprep.subr.bf16.mxu0 0
      %473 = vmatpush1.bf16.msra.mxu0 0
      %474 = vmatprep.subr.bf16.mxu0 0
      %475 = vmatpush1.bf16.msra.mxu0 0
      %476 = vmatprep.subr.bf16.mxu0 0
      %477 = vmatpush1.bf16.msra.mxu0 0
      %478 = vmatprep.subr.bf16.mxu0 0
      %479 = vmatpush1.bf16.msra.mxu0 0
      %480 = vmatprep.subr.bf16.mxu0 0
      %481 = vmatpush1.bf16.msra.mxu0 0
      %482 = vmatprep.subr.bf16.mxu0 0
      %483 = vmatpush1.bf16.msra.mxu0 0
      %484 = vmatprep.subr.bf16.mxu0 0
      %485 = vmatpush1.bf16.msra.mxu0 0
      %486 = vmatprep.subr.bf16.mxu0 0
      %487 = vmatpush1.bf16.msra.mxu0 0
      %488 = vmatprep.subr.bf16.mxu0 0
      %489 = vmatpush1.bf16.msra.mxu0 0
      %490 = vmatprep.subr.bf16.mxu0 0
      %491 = vmatpush1.bf16.msra.mxu0 0
      %492 = vmatprep.subr.bf16.mxu0 0
      %493 = vmatpush1.bf16.msra.mxu0 0
      %494 = vmatprep.mubr.bf16.mxu0 0
      %495 = vmatmul.mubr.bf16.gmra.mrb[0].mxu0 %v457
      %v496 = vpop.f32.mrb[0].mxu0
      %v497 = vadd.f32 0.0, %v496
      %v498 = vpop.f32.mrb[0].mxu0
      %v499 = vpop.f32.mrb[0].mxu0
      %v500 = vpop.f32.mrb[0].mxu0
      %501 = vdwg.mxu0
      %v502 = vpack.c.bf16 %v497, %v497
      %s503 = scalar_lea.vmem %s2, 32
      %v504 = vld [vmem:[%s503] sm:$0xff]
      %v505 = vld [vmem:[%s503 + $0x8] sm:$0xff]
      %v506 = vld [vmem:[%s503 + $0x10] sm:$0xff]
      %v507 = vld [vmem:[%s503 + $0x18] sm:$0xff]
      %v512 = vunpack.c.l.b16 %v504
      %v513 = vunpack.c.h.b16 %v504
      %v514 = vunpack.c.l.b16 %v505
      %v515 = vunpack.c.h.b16 %v505
      %v516 = vunpack.c.l.b16 %v506
      %v517 = vunpack.c.h.b16 %v506
      %v518 = vunpack.c.l.b16 %v507
      %v519 = vunpack.c.h.b16 %v507
      %v520 = vpack.c.b16 %v514, %v512
      %v521 = vpack.c.b16 %v515, %v513
      %v522 = vpack.c.b16 %v518, %v516
      %v523 = vpack.c.b16 %v519, %v517
      %v529 = vsel %vm280, %v502, 0
      %531 = vmatprep.subr.bf16.mxu0 %v521
      %532 = vmatpush1.bf16.msra.mxu0 %v520
      %533 = vmatprep.subr.bf16.mxu0 %v523
      %534 = vmatpush1.bf16.msra.mxu0 %v522
      %535 = vmatprep.subr.bf16.mxu0 0
      %536 = vmatpush1.bf16.msra.mxu0 0
      %537 = vmatprep.subr.bf16.mxu0 0
      %538 = vmatpush1.bf16.msra.mxu0 0
      %539 = vmatprep.subr.bf16.mxu0 0
      %540 = vmatpush1.bf16.msra.mxu0 0
      %541 = vmatprep.subr.bf16.mxu0 0
      %542 = vmatpush1.bf16.msra.mxu0 0
      %543 = vmatprep.subr.bf16.mxu0 0
      %544 = vmatpush1.bf16.msra.mxu0 0
      %545 = vmatprep.subr.bf16.mxu0 0
      %546 = vmatpush1.bf16.msra.mxu0 0
      %547 = vmatprep.subr.bf16.mxu0 0
      %548 = vmatpush1.bf16.msra.mxu0 0
      %549 = vmatprep.subr.bf16.mxu0 0
      %550 = vmatpush1.bf16.msra.mxu0 0
      %551 = vmatprep.subr.bf16.mxu0 0
      %552 = vmatpush1.bf16.msra.mxu0 0
      %553 = vmatprep.subr.bf16.mxu0 0
      %554 = vmatpush1.bf16.msra.mxu0 0
      %555 = vmatprep.subr.bf16.mxu0 0
      %556 = vmatpush1.bf16.msra.mxu0 0
      %557 = vmatprep.subr.bf16.mxu0 0
      %558 = vmatpush1.bf16.msra.mxu0 0
      %559 = vmatprep.subr.bf16.mxu0 0
      %560 = vmatpush1.bf16.msra.mxu0 0
      %561 = vmatprep.subr.bf16.mxu0 0
      %562 = vmatpush1.bf16.msra.mxu0 0
      %563 = vmatprep.mubr.bf16.mxu0 0
      %564 = vmatmul.mubr.bf16.gmra.mrb[0].mxu0 %v529
      %v565 = vpop.f32.mrb[0].mxu0
      %v566 = vadd.f32 0.0, %v565
      %v567 = vpop.f32.mrb[0].mxu0
      %v568 = vadd.f32 0.0, %v567
      %v569 = vpop.f32.mrb[0].mxu0
      %v570 = vpop.f32.mrb[0].mxu0
      %571 = vdwg.mxu0
      %v576 = vunpack.c.l.b16 %v388
      %v577 = vunpack.c.h.b16 %v388
      %v578 = vunpack.c.l.b16 %v389
      %v579 = vunpack.c.h.b16 %v389
      %v580 = vunpack.c.l.b16 %v390
      %v581 = vunpack.c.h.b16 %v390
      %v582 = vunpack.c.l.b16 %v391
      %v583 = vunpack.c.h.b16 %v391
      %v584 = vpack.c.b16 %v578, %v576
      %v585 = vpack.c.b16 %v579, %v577
      %v586 = vpack.c.b16 %v582, %v580
      %v587 = vpack.c.b16 %v583, %v581
      %v593 = vsel %vm280, %v387, 0
      %595 = vmatprep.subr.bf16.mxu0 %v585
      %596 = vmatpush1.bf16.msra.mxu0 %v584
      %597 = vmatprep.subr.bf16.mxu0 %v587
      %598 = vmatpush1.bf16.msra.mxu0 %v586
      %599 = vmatprep.subr.bf16.mxu0 0
      %600 = vmatpush1.bf16.msra.mxu0 0
      %601 = vmatprep.subr.bf16.mxu0 0
      %602 = vmatpush1.bf16.msra.mxu0 0
      %603 = vmatprep.subr.bf16.mxu0 0
      %604 = vmatpush1.bf16.msra.mxu0 0
      %605 = vmatprep.subr.bf16.mxu0 0
      %606 = vmatpush1.bf16.msra.mxu0 0
      %607 = vmatprep.subr.bf16.mxu0 0
      %608 = vmatpush1.bf16.msra.mxu0 0
      %609 = vmatprep.subr.bf16.mxu0 0
      %610 = vmatpush1.bf16.msra.mxu0 0
      %611 = vmatprep.subr.bf16.mxu0 0
      %612 = vmatpush1.bf16.msra.mxu0 0
      %613 = vmatprep.subr.bf16.mxu0 0
      %614 = vmatpush1.bf16.msra.mxu0 0
      %615 = vmatprep.subr.bf16.mxu0 0
      %616 = vmatpush1.bf16.msra.mxu0 0
      %617 = vmatprep.subr.bf16.mxu0 0
      %618 = vmatpush1.bf16.msra.mxu0 0
      %619 = vmatprep.subr.bf16.mxu0 0
      %620 = vmatpush1.bf16.msra.mxu0 0
      %621 = vmatprep.subr.bf16.mxu0 0
      %622 = vmatpush1.bf16.msra.mxu0 0
      %623 = vmatprep.subr.bf16.mxu0 0
      %624 = vmatpush1.bf16.msra.mxu0 0
      %625 = vmatprep.subr.bf16.mxu0 0
      %626 = vmatpush1.bf16.msra.mxu0 0
      %627 = vmatprep.mubr.bf16.mxu0 0
      %628 = vmatmul.mubr.bf16.gmra.mrb[0].mxu0 %v593
      %v629 = vpop.f32.mrb[0].mxu0
      %v630 = vadd.f32 %v566, %v629
      %v631 = vpop.f32.mrb[0].mxu0
      %v632 = vadd.f32 %v568, %v631
      %v633 = vpop.f32.mrb[0].mxu0
      %v634 = vpop.f32.mrb[0].mxu0
      %635 = vdwg.mxu0
      %s636 = scalar_lea.vmem %s261, 8
      %v637 = vld [vmem:[%s636] sm:$0xf]
      %s638 = scalar_lea.vmem %s261, 40
      %v639 = vld [vmem:[%s638] sm:$0xf]
      %s640 = scalar_lea.vmem %s261, 72
      %v641 = vld [vmem:[%s640] sm:$0xf]
      %v643 = vsel %vm280, %v637, 0
      %v646 = vsel %vm280, %v639, 0
      %648 = vmatprep.subr.bf16.mxu0 0
      %649 = vmatpush1.bf16.xpose.msra.mxu0 %v646
      %650 = vmatprep.subr.bf16.mxu0 0
      %651 = vmatpush1.bf16.xpose.msra.mxu0 0
      %652 = vmatprep.subr.bf16.mxu0 0
      %653 = vmatpush1.bf16.xpose.msra.mxu0 0
      %654 = vmatprep.subr.bf16.mxu0 0
      %655 = vmatpush1.bf16.xpose.msra.mxu0 0
      %656 = vmatprep.subr.bf16.mxu0 0
      %657 = vmatpush1.bf16.xpose.msra.mxu0 0
      %658 = vmatprep.subr.bf16.mxu0 0
      %659 = vmatpush1.bf16.xpose.msra.mxu0 0
      %660 = vmatprep.subr.bf16.mxu0 0
      %661 = vmatpush1.bf16.xpose.msra.mxu0 0
      %662 = vmatprep.subr.bf16.mxu0 0
      %663 = vmatpush1.bf16.xpose.msra.mxu0 0
      %664 = vmatprep.subr.bf16.mxu0 0
      %665 = vmatpush1.bf16.xpose.msra.mxu0 0
      %666 = vmatprep.subr.bf16.mxu0 0
      %667 = vmatpush1.bf16.xpose.msra.mxu0 0
      %668 = vmatprep.subr.bf16.mxu0 0
      %669 = vmatpush1.bf16.xpose.msra.mxu0 0
      %670 = vmatprep.subr.bf16.mxu0 0
      %671 = vmatpush1.bf16.xpose.msra.mxu0 0
      %672 = vmatprep.subr.bf16.mxu0 0
      %673 = vmatpush1.bf16.xpose.msra.mxu0 0
      %674 = vmatprep.subr.bf16.mxu0 0
      %675 = vmatpush1.bf16.xpose.msra.mxu0 0
      %676 = vmatprep.subr.bf16.mxu0 0
      %677 = vmatpush1.bf16.xpose.msra.mxu0 0
      %678 = vmatprep.subr.bf16.mxu0 0
      %679 = vmatpush1.bf16.xpose.msra.mxu0 0
      %680 = vmatprep.mubr.bf16.mxu0 0
      %681 = vmatmul.mubr.bf16.gmra.mrb[0].mxu0 %v643
      %v682 = vpop.f32.mrb[0].mxu0
      %v683 = vadd.f32 0.0, %v682
      %v684 = vpop.f32.mrb[0].mxu0
      %v685 = vpop.f32.mrb[0].mxu0
      %v686 = vpop.f32.mrb[0].mxu0
      %687 = vdwg.mxu0
      %v688 = vsel %vm327, %v683, -inf
      %689 = vmax.xlane.f32.xlu0 %v688
      %v690 = vpop.xlane.xlu0 %689
      %v691 = vsub.f32 %v683, %v690
      %v692 = vmul.f32 %v691, 1.442695
      %v693 = vpow.pop %v692
      %v694 = vsel %vm327, %v693, 0.0
      %695 = vadd.xlane.f32.xlu0 %v694
      %v696 = vpop.xlane.xlu0 %695
      %v697 = vrcp.pop %v696
      %v698 = vmul.f32 %v693, %v697
      %v699 = vpack.c.bf16 %v698, %v698
      %v701 = vsel %vm327, %v699, 0
      %v704 = vsel %vm343, %v641, 0
      %706 = vmatprep.subr.bf16.mxu0 0
      %707 = vmatpush1.bf16.msra.mxu0 %v704
      %708 = vmatprep.subr.bf16.mxu0 0
      %709 = vmatpush1.bf16.msra.mxu0 0
      %710 = vmatprep.subr.bf16.mxu0 0
      %711 = vmatpush1.bf16.msra.mxu0 0
      %712 = vmatprep.subr.bf16.mxu0 0
      %713 = vmatpush1.bf16.msra.mxu0 0
      %714 = vmatprep.subr.bf16.mxu0 0
      %715 = vmatpush1.bf16.msra.mxu0 0
      %716 = vmatprep.subr.bf16.mxu0 0
      %717 = vmatpush1.bf16.msra.mxu0 0
      %718 = vmatprep.subr.bf16.mxu0 0
      %719 = vmatpush1.bf16.msra.mxu0 0
      %720 = vmatprep.subr.bf16.mxu0 0
      %721 = vmatpush1.bf16.msra.mxu0 0
      %722 = vmatprep.subr.bf16.mxu0 0
      %723 = vmatpush1.bf16.msra.mxu0 0
      %724 = vmatprep.subr.bf16.mxu0 0
      %725 = vmatpush1.bf16.msra.mxu0 0
      %726 = vmatprep.subr.bf16.mxu0 0
      %727 = vmatpush1.bf16.msra.mxu0 0
      %728 = vmatprep.subr.bf16.mxu0 0
      %729 = vmatpush1.bf16.msra.mxu0 0
      %730 = vmatprep.subr.bf16.mxu0 0
      %731 = vmatpush1.bf16.msra.mxu0 0
      %732 = vmatprep.subr.bf16.mxu0 0
      %733 = vmatpush1.bf16.msra.mxu0 0
      %734 = vmatprep.subr.bf16.mxu0 0
      %735 = vmatpush1.bf16.msra.mxu0 0
      %736 = vmatprep.subr.bf16.mxu0 0
      %737 = vmatpush1.bf16.msra.mxu0 0
      %738 = vmatprep.mubr.bf16.mxu0 0
      %739 = vmatmul.mubr.bf16.gmra.mrb[0].mxu0 %v701
      %v740 = vpop.f32.mrb[0].mxu0
      %v741 = vadd.f32 0.0, %v740
      %v742 = vpop.f32.mrb[0].mxu0
      %v743 = vpop.f32.mrb[0].mxu0
      %v744 = vpop.f32.mrb[0].mxu0
      %745 = vdwg.mxu0
      %v746 = vpack.c.bf16 %v741, %v741
      %s747 = scalar_lea.vmem %s2, 64
      %v748 = vld [vmem:[%s747] sm:$0xff]
      %v749 = vld [vmem:[%s747 + $0x8] sm:$0xff]
      %v750 = vld [vmem:[%s747 + $0x10] sm:$0xff]
      %v751 = vld [vmem:[%s747 + $0x18] sm:$0xff]
      %v756 = vunpack.c.l.b16 %v748
      %v757 = vunpack.c.h.b16 %v748
      %v758 = vunpack.c.l.b16 %v749
      %v759 = vunpack.c.h.b16 %v749
      %v760 = vunpack.c.l.b16 %v750
      %v761 = vunpack.c.h.b16 %v750
      %v762 = vunpack.c.l.b16 %v751
      %v763 = vunpack.c.h.b16 %v751
      %v764 = vpack.c.b16 %v758, %v756
      %v765 = vpack.c.b16 %v759, %v757
      %v766 = vpack.c.b16 %v762, %v760
      %v767 = vpack.c.b16 %v763, %v761
      %v773 = vsel %vm280, %v746, 0
      %775 = vmatprep.subr.bf16.mxu0 %v765
      %776 = vmatpush1.bf16.msra.mxu0 %v764
      %777 = vmatprep.subr.bf16.mxu0 %v767
      %778 = vmatpush1.bf16.msra.mxu0 %v766
      %779 = vmatprep.subr.bf16.mxu0 0
      %780 = vmatpush1.bf16.msra.mxu0 0
      %781 = vmatprep.subr.bf16.mxu0 0
      %782 = vmatpush1.bf16.msra.mxu0 0
      %783 = vmatprep.subr.bf16.mxu0 0
      %784 = vmatpush1.bf16.msra.mxu0 0
      %785 = vmatprep.subr.bf16.mxu0 0
      %786 = vmatpush1.bf16.msra.mxu0 0
      %787 = vmatprep.subr.bf16.mxu0 0
      %788 = vmatpush1.bf16.msra.mxu0 0
      %789 = vmatprep.subr.bf16.mxu0 0
      %790 = vmatpush1.bf16.msra.mxu0 0
      %791 = vmatprep.subr.bf16.mxu0 0
      %792 = vmatpush1.bf16.msra.mxu0 0
      %793 = vmatprep.subr.bf16.mxu0 0
      %794 = vmatpush1.bf16.msra.mxu0 0
      %795 = vmatprep.subr.bf16.mxu0 0
      %796 = vmatpush1.bf16.msra.mxu0 0
      %797 = vmatprep.subr.bf16.mxu0 0
      %798 = vmatpush1.bf16.msra.mxu0 0
      %799 = vmatprep.subr.bf16.mxu0 0
      %800 = vmatpush1.bf16.msra.mxu0 0
      %801 = vmatprep.subr.bf16.mxu0 0
      %802 = vmatpush1.bf16.msra.mxu0 0
      %803 = vmatprep.subr.bf16.mxu0 0
      %804 = vmatpush1.bf16.msra.mxu0 0
      %805 = vmatprep.subr.bf16.mxu0 0
      %806 = vmatpush1.bf16.msra.mxu0 0
      %807 = vmatprep.mubr.bf16.mxu0 0
      %808 = vmatmul.mubr.bf16.gmra.mrb[0].mxu0 %v773
      %v809 = vpop.f32.mrb[0].mxu0
      %v810 = vadd.f32 0.0, %v809
      %v811 = vpop.f32.mrb[0].mxu0
      %v812 = vadd.f32 0.0, %v811
      %v813 = vpop.f32.mrb[0].mxu0
      %v814 = vpop.f32.mrb[0].mxu0
      %815 = vdwg.mxu0
      %v816 = vadd.f32 %v630, %v810
      %v817 = vadd.f32 %v632, %v812
      %s818 = scalar_lea.vmem %s261, 12
      %v819 = vld [vmem:[%s818] sm:$0xf]
      %s820 = scalar_lea.vmem %s261, 44
      %v821 = vld [vmem:[%s820] sm:$0xf]
      %s822 = scalar_lea.vmem %s261, 76
      %v823 = vld [vmem:[%s822] sm:$0xf]
      %v825 = vsel %vm280, %v819, 0
      %v828 = vsel %vm280, %v821, 0
      %830 = vmatprep.subr.bf16.mxu0 0
      %831 = vmatpush1.bf16.xpose.msra.mxu0 %v828
      %832 = vmatprep.subr.bf16.mxu0 0
      %833 = vmatpush1.bf16.xpose.msra.mxu0 0
      %834 = vmatprep.subr.bf16.mxu0 0
      %835 = vmatpush1.bf16.xpose.msra.mxu0 0
      %836 = vmatprep.subr.bf16.mxu0 0
      %837 = vmatpush1.bf16.xpose.msra.mxu0 0
      %838 = vmatprep.subr.bf16.mxu0 0
      %839 = vmatpush1.bf16.xpose.msra.mxu0 0
      %840 = vmatprep.subr.bf16.mxu0 0
      %841 = vmatpush1.bf16.xpose.msra.mxu0 0
      %842 = vmatprep.subr.bf16.mxu0 0
      %843 = vmatpush1.bf16.xpose.msra.mxu0 0
      %844 = vmatprep.subr.bf16.mxu0 0
      %845 = vmatpush1.bf16.xpose.msra.mxu0 0
      %846 = vmatprep.subr.bf16.mxu0 0
      %847 = vmatpush1.bf16.xpose.msra.mxu0 0
      %848 = vmatprep.subr.bf16.mxu0 0
      %849 = vmatpush1.bf16.xpose.msra.mxu0 0
      %850 = vmatprep.subr.bf16.mxu0 0
      %851 = vmatpush1.bf16.xpose.msra.mxu0 0
      %852 = vmatprep.subr.bf16.mxu0 0
      %853 = vmatpush1.bf16.xpose.msra.mxu0 0
      %854 = vmatprep.subr.bf16.mxu0 0
      %855 = vmatpush1.bf16.xpose.msra.mxu0 0
      %856 = vmatprep.subr.bf16.mxu0 0
      %857 = vmatpush1.bf16.xpose.msra.mxu0 0
      %858 = vmatprep.subr.bf16.mxu0 0
      %859 = vmatpush1.bf16.xpose.msra.mxu0 0
      %860 = vmatprep.subr.bf16.mxu0 0
      %861 = vmatpush1.bf16.xpose.msra.mxu0 0
      %862 = vmatprep.mubr.bf16.mxu0 0
      %863 = vmatmul.mubr.bf16.gmra.mrb[0].mxu0 %v825
      %v864 = vpop.f32.mrb[0].mxu0
      %v865 = vadd.f32 0.0, %v864
      %v866 = vpop.f32.mrb[0].mxu0
      %v867 = vpop.f32.mrb[0].mxu0
      %v868 = vpop.f32.mrb[0].mxu0
      %869 = vdwg.mxu0
      %v870 = vsel %vm327, %v865, -inf
      %871 = vmax.xlane.f32.xlu0 %v870
      %v872 = vpop.xlane.xlu0 %871
      %v873 = vsub.f32 %v865, %v872
      %v874 = vmul.f32 %v873, 1.442695
      %v875 = vpow.pop %v874
      %v876 = vsel %vm327, %v875, 0.0
      %877 = vadd.xlane.f32.xlu0 %v876
      %v878 = vpop.xlane.xlu0 %877
      %v879 = vrcp.pop %v878
      %v880 = vmul.f32 %v875, %v879
      %v881 = vpack.c.bf16 %v880, %v880
      %v883 = vsel %vm327, %v881, 0
      %v886 = vsel %vm343, %v823, 0
      %888 = vmatprep.subr.bf16.mxu0 0
      %889 = vmatpush1.bf16.msra.mxu0 %v886
      %890 = vmatprep.subr.bf16.mxu0 0
      %891 = vmatpush1.bf16.msra.mxu0 0
      %892 = vmatprep.subr.bf16.mxu0 0
      %893 = vmatpush1.bf16.msra.mxu0 0
      %894 = vmatprep.subr.bf16.mxu0 0
      %895 = vmatpush1.bf16.msra.mxu0 0
      %896 = vmatprep.subr.bf16.mxu0 0
      %897 = vmatpush1.bf16.msra.mxu0 0
      %898 = vmatprep.subr.bf16.mxu0 0
      %899 = vmatpush1.bf16.msra.mxu0 0
      %900 = vmatprep.subr.bf16.mxu0 0
      %901 = vmatpush1.bf16.msra.mxu0 0
      %902 = vmatprep.subr.bf16.mxu0 0
      %903 = vmatpush1.bf16.msra.mxu0 0
      %904 = vmatprep.subr.bf16.mxu0 0
      %905 = vmatpush1.bf16.msra.mxu0 0
      %906 = vmatprep.subr.bf16.mxu0 0
      %907 = vmatpush1.bf16.msra.mxu0 0
      %908 = vmatprep.subr.bf16.mxu0 0
      %909 = vmatpush1.bf16.msra.mxu0 0
      %910 = vmatprep.subr.bf16.mxu0 0
      %911 = vmatpush1.bf16.msra.mxu0 0
      %912 = vmatprep.subr.bf16.mxu0 0
      %913 = vmatpush1.bf16.msra.mxu0 0
      %914 = vmatprep.subr.bf16.mxu0 0
      %915 = vmatpush1.bf16.msra.mxu0 0
      %916 = vmatprep.subr.bf16.mxu0 0
      %917 = vmatpush1.bf16.msra.mxu0 0
      %918 = vmatprep.subr.bf16.mxu0 0
      %919 = vmatpush1.bf16.msra.mxu0 0
      %920 = vmatprep.mubr.bf16.mxu0 0
      %921 = vmatmul.mubr.bf16.gmra.mrb[0].mxu0 %v883
      %v922 = vpop.f32.mrb[0].mxu0
      %v923 = vadd.f32 0.0, %v922
      %v924 = vpop.f32.mrb[0].mxu0
      %v925 = vpop.f32.mrb[0].mxu0
      %v926 = vpop.f32.mrb[0].mxu0
      %927 = vdwg.mxu0
      %v928 = vpack.c.bf16 %v923, %v923
      %s929 = scalar_lea.vmem %s2, 96
      %v930 = vld [vmem:[%s929] sm:$0xff]
      %v931 = vld [vmem:[%s929 + $0x8] sm:$0xff]
      %v932 = vld [vmem:[%s929 + $0x10] sm:$0xff]
      %v933 = vld [vmem:[%s929 + $0x18] sm:$0xff]
      %v938 = vunpack.c.l.b16 %v930
      %v939 = vunpack.c.h.b16 %v930
      %v940 = vunpack.c.l.b16 %v931
      %v941 = vunpack.c.h.b16 %v931
      %v942 = vunpack.c.l.b16 %v932
      %v943 = vunpack.c.h.b16 %v932
      %v944 = vunpack.c.l.b16 %v933
      %v945 = vunpack.c.h.b16 %v933
      %v946 = vpack.c.b16 %v940, %v938
      %v947 = vpack.c.b16 %v941, %v939
      %v948 = vpack.c.b16 %v944, %v942
      %v949 = vpack.c.b16 %v945, %v943
      %v955 = vsel %vm280, %v928, 0
      %957 = vmatprep.subr.bf16.mxu0 %v947
      %958 = vmatpush1.bf16.msra.mxu0 %v946
      %959 = vmatprep.subr.bf16.mxu0 %v949
      %960 = vmatpush1.bf16.msra.mxu0 %v948
      %961 = vmatprep.subr.bf16.mxu0 0
      %962 = vmatpush1.bf16.msra.mxu0 0
      %963 = vmatprep.subr.bf16.mxu0 0
      %964 = vmatpush1.bf16.msra.mxu0 0
      %965 = vmatprep.subr.bf16.mxu0 0
      %966 = vmatpush1.bf16.msra.mxu0 0
      %967 = vmatprep.subr.bf16.mxu0 0
      %968 = vmatpush1.bf16.msra.mxu0 0
      %969 = vmatprep.subr.bf16.mxu0 0
      %970 = vmatpush1.bf16.msra.mxu0 0
      %971 = vmatprep.subr.bf16.mxu0 0
      %972 = vmatpush1.bf16.msra.mxu0 0
      %973 = vmatprep.subr.bf16.mxu0 0
      %974 = vmatpush1.bf16.msra.mxu0 0
      %975 = vmatprep.subr.bf16.mxu0 0
      %976 = vmatpush1.bf16.msra.mxu0 0
      %977 = vmatprep.subr.bf16.mxu0 0
      %978 = vmatpush1.bf16.msra.mxu0 0
      %979 = vmatprep.subr.bf16.mxu0 0
      %980 = vmatpush1.bf16.msra.mxu0 0
      %981 = vmatprep.subr.bf16.mxu0 0
      %982 = vmatpush1.bf16.msra.mxu0 0
      %983 = vmatprep.subr.bf16.mxu0 0
      %984 = vmatpush1.bf16.msra.mxu0 0
      %985 = vmatprep.subr.bf16.mxu0 0
      %986 = vmatpush1.bf16.msra.mxu0 0
      %987 = vmatprep.subr.bf16.mxu0 0
      %988 = vmatpush1.bf16.msra.mxu0 0
      %989 = vmatprep.mubr.bf16.mxu0 0
      %990 = vmatmul.mubr.bf16.gmra.mrb[0].mxu0 %v955
      %v991 = vpop.f32.mrb[0].mxu0
      %v992 = vadd.f32 0.0, %v991
      %v993 = vpop.f32.mrb[0].mxu0
      %v994 = vadd.f32 0.0, %v993
      %v995 = vpop.f32.mrb[0].mxu0
      %v996 = vpop.f32.mrb[0].mxu0
      %997 = vdwg.mxu0
      %v998 = vadd.f32 %v816, %v992
      %v999 = vadd.f32 %v817, %v994
      %s1000 = scalar_lea.vmem %s261, 16
      %v1001 = vld [vmem:[%s1000] sm:$0xf]
      %s1002 = scalar_lea.vmem %s261, 48
      %v1003 = vld [vmem:[%s1002] sm:$0xf]
      %s1004 = scalar_lea.vmem %s261, 80
      %v1005 = vld [vmem:[%s1004] sm:$0xf]
      %v1007 = vsel %vm280, %v1001, 0
      %v1010 = vsel %vm280, %v1003, 0
      %1012 = vmatprep.subr.bf16.mxu0 0
      %1013 = vmatpush1.bf16.xpose.msra.mxu0 %v1010
      %1014 = vmatprep.subr.bf16.mxu0 0
      %1015 = vmatpush1.bf16.xpose.msra.mxu0 0
      %1016 = vmatprep.subr.bf16.mxu0 0
      %1017 = vmatpush1.bf16.xpose.msra.mxu0 0
      %1018 = vmatprep.subr.bf16.mxu0 0
      %1019 = vmatpush1.bf16.xpose.msra.mxu0 0
      %1020 = vmatprep.subr.bf16.mxu0 0
      %1021 = vmatpush1.bf16.xpose.msra.mxu0 0
      %1022 = vmatprep.subr.bf16.mxu0 0
      %1023 = vmatpush1.bf16.xpose.msra.mxu0 0
      %1024 = vmatprep.subr.bf16.mxu0 0
      %1025 = vmatpush1.bf16.xpose.msra.mxu0 0
      %1026 = vmatprep.subr.bf16.mxu0 0
      %1027 = vmatpush1.bf16.xpose.msra.mxu0 0
      %1028 = vmatprep.subr.bf16.mxu0 0
      %1029 = vmatpush1.bf16.xpose.msra.mxu0 0
      %1030 = vmatprep.subr.bf16.mxu0 0
      %1031 = vmatpush1.bf16.xpose.msra.mxu0 0
      %1032 = vmatprep.subr.bf16.mxu0 0
      %1033 = vmatpush1.bf16.xpose.msra.mxu0 0
      %1034 = vmatprep.subr.bf16.mxu0 0
      %1035 = vmatpush1.bf16.xpose.msra.mxu0 0
      %1036 = vmatprep.subr.bf16.mxu0 0
      %1037 = vmatpush1.bf16.xpose.msra.mxu0 0
      %1038 = vmatprep.subr.bf16.mxu0 0
      %1039 = vmatpush1.bf16.xpose.msra.mxu0 0
      %1040 = vmatprep.subr.bf16.mxu0 0
      %1041 = vmatpush1.bf16.xpose.msra.mxu0 0
      %1042 = vmatprep.subr.bf16.mxu0 0
      %1043 = vmatpush1.bf16.xpose.msra.mxu0 0
      %1044 = vmatprep.mubr.bf16.mxu0 0
      %1045 = vmatmul.mubr.bf16.gmra.mrb[0].mxu0 %v1007
      %v1046 = vpop.f32.mrb[0].mxu0
      %v1047 = vadd.f32 0.0, %v1046
      %v1048 = vpop.f32.mrb[0].mxu0
      %v1049 = vpop.f32.mrb[0].mxu0
      %v1050 = vpop.f32.mrb[0].mxu0
      %1051 = vdwg.mxu0
      %v1052 = vsel %vm327, %v1047, -inf
      %1053 = vmax.xlane.f32.xlu0 %v1052
      %v1054 = vpop.xlane.xlu0 %1053
      %v1055 = vsub.f32 %v1047, %v1054
      %v1056 = vmul.f32 %v1055, 1.442695
      %v1057 = vpow.pop %v1056
      %v1058 = vsel %vm327, %v1057, 0.0
      %1059 = vadd.xlane.f32.xlu0 %v1058
      %v1060 = vpop.xlane.xlu0 %1059
      %v1061 = vrcp.pop %v1060
      %v1062 = vmul.f32 %v1057, %v1061
      %v1063 = vpack.c.bf16 %v1062, %v1062
      %v1065 = vsel %vm327, %v1063, 0
      %v1068 = vsel %vm343, %v1005, 0
      %1070 = vmatprep.subr.bf16.mxu0 0
      %1071 = vmatpush1.bf16.msra.mxu0 %v1068
      %1072 = vmatprep.subr.bf16.mxu0 0
      %1073 = vmatpush1.bf16.msra.mxu0 0
      %1074 = vmatprep.subr.bf16.mxu0 0
      %1075 = vmatpush1.bf16.msra.mxu0 0
      %1076 = vmatprep.subr.bf16.mxu0 0
      %1077 = vmatpush1.bf16.msra.mxu0 0
      %1078 = vmatprep.subr.bf16.mxu0 0
      %1079 = vmatpush1.bf16.msra.mxu0 0
      %1080 = vmatprep.subr.bf16.mxu0 0
      %1081 = vmatpush1.bf16.msra.mxu0 0
      %1082 = vmatprep.subr.bf16.mxu0 0
      %1083 = vmatpush1.bf16.msra.mxu0 0
      %1084 = vmatprep.subr.bf16.mxu0 0
      %1085 = vmatpush1.bf16.msra.mxu0 0
      %1086 = vmatprep.subr.bf16.mxu0 0
      %1087 = vmatpush1.bf16.msra.mxu0 0
      %1088 = vmatprep.subr.bf16.mxu0 0
      %1089 = vmatpush1.bf16.msra.mxu0 0
      %1090 = vmatprep.subr.bf16.mxu0 0
      %1091 = vmatpush1.bf16.msra.mxu0 0
      %1092 = vmatprep.subr.bf16.mxu0 0
      %1093 = vmatpush1.bf16.msra.mxu0 0
      %1094 = vmatprep.subr.bf16.mxu0 0
      %1095 = vmatpush1.bf16.msra.mxu0 0
      %1096 = vmatprep.subr.bf16.mxu0 0
      %1097 = vmatpush1.bf16.msra.mxu0 0
      %1098 = vmatprep.subr.bf16.mxu0 0
      %1099 = vmatpush1.bf16.msra.mxu0 0
      %1100 = vmatprep.subr.bf16.mxu0 0
      %1101 = vmatpush1.bf16.msra.mxu0 0
      %1102 = vmatprep.mubr.bf16.mxu0 0
      %1103 = vmatmul.mubr.bf16.gmra.mrb[0].mxu0 %v1065
      %v1104 = vpop.f32.mrb[0].mxu0
      %v1105 = vadd.f32 0.0, %v1104
      %v1106 = vpop.f32.mrb[0].mxu0
      %v1107 = vpop.f32.mrb[0].mxu0
      %v1108 = vpop.f32.mrb[0].mxu0
      %1109 = vdwg.mxu0
      %v1110 = vpack.c.bf16 %v1105, %v1105
      %s1111 = scalar_lea.vmem %s2, 128
      %v1112 = vld [vmem:[%s1111] sm:$0xff]
      %v1113 = vld [vmem:[%s1111 + $0x8] sm:$0xff]
      %v1114 = vld [vmem:[%s1111 + $0x10] sm:$0xff]
      %v1115 = vld [vmem:[%s1111 + $0x18] sm:$0xff]
      %v1120 = vunpack.c.l.b16 %v1112
      %v1121 = vunpack.c.h.b16 %v1112
      %v1122 = vunpack.c.l.b16 %v1113
      %v1123 = vunpack.c.h.b16 %v1113
      %v1124 = vunpack.c.l.b16 %v1114
      %v1125 = vunpack.c.h.b16 %v1114
      %v1126 = vunpack.c.l.b16 %v1115
      %v1127 = vunpack.c.h.b16 %v1115
      %v1128 = vpack.c.b16 %v1122, %v1120
      %v1129 = vpack.c.b16 %v1123, %v1121
      %v1130 = vpack.c.b16 %v1126, %v1124
      %v1131 = vpack.c.b16 %v1127, %v1125
      %v1137 = vsel %vm280, %v1110, 0
      %1139 = vmatprep.subr.bf16.mxu0 %v1129
      %1140 = vmatpush1.bf16.msra.mxu0 %v1128
      %1141 = vmatprep.subr.bf16.mxu0 %v1131
      %1142 = vmatpush1.bf16.msra.mxu0 %v1130
      %1143 = vmatprep.subr.bf16.mxu0 0
      %1144 = vmatpush1.bf16.msra.mxu0 0
      %1145 = vmatprep.subr.bf16.mxu0 0
      %1146 = vmatpush1.bf16.msra.mxu0 0
      %1147 = vmatprep.subr.bf16.mxu0 0
      %1148 = vmatpush1.bf16.msra.mxu0 0
      %1149 = vmatprep.subr.bf16.mxu0 0
      %1150 = vmatpush1.bf16.msra.mxu0 0
      %1151 = vmatprep.subr.bf16.mxu0 0
      %1152 = vmatpush1.bf16.msra.mxu0 0
      %1153 = vmatprep.subr.bf16.mxu0 0
      %1154 = vmatpush1.bf16.msra.mxu0 0
      %1155 = vmatprep.subr.bf16.mxu0 0
      %1156 = vmatpush1.bf16.msra.mxu0 0
      %1157 = vmatprep.subr.bf16.mxu0 0
      %1158 = vmatpush1.bf16.msra.mxu0 0
      %1159 = vmatprep.subr.bf16.mxu0 0
      %1160 = vmatpush1.bf16.msra.mxu0 0
      %1161 = vmatprep.subr.bf16.mxu0 0
      %1162 = vmatpush1.bf16.msra.mxu0 0
      %1163 = vmatprep.subr.bf16.mxu0 0
      %1164 = vmatpush1.bf16.msra.mxu0 0
      %1165 = vmatprep.subr.bf16.mxu0 0
      %1166 = vmatpush1.bf16.msra.mxu0 0
      %1167 = vmatprep.subr.bf16.mxu0 0
      %1168 = vmatpush1.bf16.msra.mxu0 0
      %1169 = vmatprep.subr.bf16.mxu0 0
      %1170 = vmatpush1.bf16.msra.mxu0 0
      %1171 = vmatprep.mubr.bf16.mxu0 0
      %1172 = vmatmul.mubr.bf16.gmra.mrb[0].mxu0 %v1137
      %v1173 = vpop.f32.mrb[0].mxu0
      %v1174 = vadd.f32 0.0, %v1173
      %v1175 = vpop.f32.mrb[0].mxu0
      %v1176 = vadd.f32 0.0, %v1175
      %v1177 = vpop.f32.mrb[0].mxu0
      %v1178 = vpop.f32.mrb[0].mxu0
      %1179 = vdwg.mxu0
      %v1180 = vadd.f32 %v998, %v1174
      %v1181 = vadd.f32 %v999, %v1176
      %s1182 = scalar_lea.vmem %s261, 20
      %v1183 = vld [vmem:[%s1182] sm:$0xf]
      %s1184 = scalar_lea.vmem %s261, 52
      %v1185 = vld [vmem:[%s1184] sm:$0xf]
      %s1186 = scalar_lea.vmem %s261, 84
      %v1187 = vld [vmem:[%s1186] sm:$0xf]
      %v1189 = vsel %vm280, %v1183, 0
      %v1192 = vsel %vm280, %v1185, 0
      %1194 = vmatprep.subr.bf16.mxu0 0
      %1195 = vmatpush1.bf16.xpose.msra.mxu0 %v1192
      %1196 = vmatprep.subr.bf16.mxu0 0
      %1197 = vmatpush1.bf16.xpose.msra.mxu0 0
      %1198 = vmatprep.subr.bf16.mxu0 0
      %1199 = vmatpush1.bf16.xpose.msra.mxu0 0
      %1200 = vmatprep.subr.bf16.mxu0 0
      %1201 = vmatpush1.bf16.xpose.msra.mxu0 0
      %1202 = vmatprep.subr.bf16.mxu0 0
      %1203 = vmatpush1.bf16.xpose.msra.mxu0 0
      %1204 = vmatprep.subr.bf16.mxu0 0
      %1205 = vmatpush1.bf16.xpose.msra.mxu0 0
      %1206 = vmatprep.subr.bf16.mxu0 0
      %1207 = vmatpush1.bf16.xpose.msra.mxu0 0
      %1208 = vmatprep.subr.bf16.mxu0 0
      %1209 = vmatpush1.bf16.xpose.msra.mxu0 0
      %1210 = vmatprep.subr.bf16.mxu0 0
      %1211 = vmatpush1.bf16.xpose.msra.mxu0 0
      %1212 = vmatprep.subr.bf16.mxu0 0
      %1213 = vmatpush1.bf16.xpose.msra.mxu0 0
      %1214 = vmatprep.subr.bf16.mxu0 0
      %1215 = vmatpush1.bf16.xpose.msra.mxu0 0
      %1216 = vmatprep.subr.bf16.mxu0 0
      %1217 = vmatpush1.bf16.xpose.msra.mxu0 0
      %1218 = vmatprep.subr.bf16.mxu0 0
      %1219 = vmatpush1.bf16.xpose.msra.mxu0 0
      %1220 = vmatprep.subr.bf16.mxu0 0
      %1221 = vmatpush1.bf16.xpose.msra.mxu0 0
      %1222 = vmatprep.subr.bf16.mxu0 0
      %1223 = vmatpush1.bf16.xpose.msra.mxu0 0
      %1224 = vmatprep.subr.bf16.mxu0 0
      %1225 = vmatpush1.bf16.xpose.msra.mxu0 0
      %1226 = vmatprep.mubr.bf16.mxu0 0
      %1227 = vmatmul.mubr.bf16.gmra.mrb[0].mxu0 %v1189
      %v1228 = vpop.f32.mrb[0].mxu0
      %v1229 = vadd.f32 0.0, %v1228
      %v1230 = vpop.f32.mrb[0].mxu0
      %v1231 = vpop.f32.mrb[0].mxu0
      %v1232 = vpop.f32.mrb[0].mxu0
      %1233 = vdwg.mxu0
      %v1234 = vsel %vm327, %v1229, -inf
      %1235 = vmax.xlane.f32.xlu0 %v1234
      %v1236 = vpop.xlane.xlu0 %1235
      %v1237 = vsub.f32 %v1229, %v1236
      %v1238 = vmul.f32 %v1237, 1.442695
      %v1239 = vpow.pop %v1238
      %v1240 = vsel %vm327, %v1239, 0.0
      %1241 = vadd.xlane.f32.xlu0 %v1240
      %v1242 = vpop.xlane.xlu0 %1241
      %v1243 = vrcp.pop %v1242
      %v1244 = vmul.f32 %v1239, %v1243
      %v1245 = vpack.c.bf16 %v1244, %v1244
      %v1247 = vsel %vm327, %v1245, 0
      %v1250 = vsel %vm343, %v1187, 0
      %1252 = vmatprep.subr.bf16.mxu0 0
      %1253 = vmatpush1.bf16.msra.mxu0 %v1250
      %1254 = vmatprep.subr.bf16.mxu0 0
      %1255 = vmatpush1.bf16.msra.mxu0 0
      %1256 = vmatprep.subr.bf16.mxu0 0
      %1257 = vmatpush1.bf16.msra.mxu0 0
      %1258 = vmatprep.subr.bf16.mxu0 0
      %1259 = vmatpush1.bf16.msra.mxu0 0
      %1260 = vmatprep.subr.bf16.mxu0 0
      %1261 = vmatpush1.bf16.msra.mxu0 0
      %1262 = vmatprep.subr.bf16.mxu0 0
      %1263 = vmatpush1.bf16.msra.mxu0 0
      %1264 = vmatprep.subr.bf16.mxu0 0
      %1265 = vmatpush1.bf16.msra.mxu0 0
      %1266 = vmatprep.subr.bf16.mxu0 0
      %1267 = vmatpush1.bf16.msra.mxu0 0
      %1268 = vmatprep.subr.bf16.mxu0 0
      %1269 = vmatpush1.bf16.msra.mxu0 0
      %1270 = vmatprep.subr.bf16.mxu0 0
      %1271 = vmatpush1.bf16.msra.mxu0 0
      %1272 = vmatprep.subr.bf16.mxu0 0
      %1273 = vmatpush1.bf16.msra.mxu0 0
      %1274 = vmatprep.subr.bf16.mxu0 0
      %1275 = vmatpush1.bf16.msra.mxu0 0
      %1276 = vmatprep.subr.bf16.mxu0 0
      %1277 = vmatpush1.bf16.msra.mxu0 0
      %1278 = vmatprep.subr.bf16.mxu0 0
      %1279 = vmatpush1.bf16.msra.mxu0 0
      %1280 = vmatprep.subr.bf16.mxu0 0
      %1281 = vmatpush1.bf16.msra.mxu0 0
      %1282 = vmatprep.subr.bf16.mxu0 0
      %1283 = vmatpush1.bf16.msra.mxu0 0
      %1284 = vmatprep.mubr.bf16.mxu0 0
      %1285 = vmatmul.mubr.bf16.gmra.mrb[0].mxu0 %v1247
      %v1286 = vpop.f32.mrb[0].mxu0
      %v1287 = vadd.f32 0.0, %v1286
      %v1288 = vpop.f32.mrb[0].mxu0
      %v1289 = vpop.f32.mrb[0].mxu0
      %v1290 = vpop.f32.mrb[0].mxu0
      %1291 = vdwg.mxu0
      %v1292 = vpack.c.bf16 %v1287, %v1287
      %s1293 = scalar_lea.vmem %s2, 160
      %v1294 = vld [vmem:[%s1293] sm:$0xff]
      %v1295 = vld [vmem:[%s1293 + $0x8] sm:$0xff]
      %v1296 = vld [vmem:[%s1293 + $0x10] sm:$0xff]
      %v1297 = vld [vmem:[%s1293 + $0x18] sm:$0xff]
      %v1302 = vunpack.c.l.b16 %v1294
      %v1303 = vunpack.c.h.b16 %v1294
      %v1304 = vunpack.c.l.b16 %v1295
      %v1305 = vunpack.c.h.b16 %v1295
      %v1306 = vunpack.c.l.b16 %v1296
      %v1307 = vunpack.c.h.b16 %v1296
      %v1308 = vunpack.c.l.b16 %v1297
      %v1309 = vunpack.c.h.b16 %v1297
      %v1310 = vpack.c.b16 %v1304, %v1302
      %v1311 = vpack.c.b16 %v1305, %v1303
      %v1312 = vpack.c.b16 %v1308, %v1306
      %v1313 = vpack.c.b16 %v1309, %v1307
      %v1319 = vsel %vm280, %v1292, 0
      %1321 = vmatprep.subr.bf16.mxu0 %v1311
      %1322 = vmatpush1.bf16.msra.mxu0 %v1310
      %1323 = vmatprep.subr.bf16.mxu0 %v1313
      %1324 = vmatpush1.bf16.msra.mxu0 %v1312
      %1325 = vmatprep.subr.bf16.mxu0 0
      %1326 = vmatpush1.bf16.msra.mxu0 0
      %1327 = vmatprep.subr.bf16.mxu0 0
      %1328 = vmatpush1.bf16.msra.mxu0 0
      %1329 = vmatprep.subr.bf16.mxu0 0
      %1330 = vmatpush1.bf16.msra.mxu0 0
      %1331 = vmatprep.subr.bf16.mxu0 0
      %1332 = vmatpush1.bf16.msra.mxu0 0
      %1333 = vmatprep.subr.bf16.mxu0 0
      %1334 = vmatpush1.bf16.msra.mxu0 0
      %1335 = vmatprep.subr.bf16.mxu0 0
      %1336 = vmatpush1.bf16.msra.mxu0 0
      %1337 = vmatprep.subr.bf16.mxu0 0
      %1338 = vmatpush1.bf16.msra.mxu0 0
      %1339 = vmatprep.subr.bf16.mxu0 0
      %1340 = vmatpush1.bf16.msra.mxu0 0
      %1341 = vmatprep.subr.bf16.mxu0 0
      %1342 = vmatpush1.bf16.msra.mxu0 0
      %1343 = vmatprep.subr.bf16.mxu0 0
      %1344 = vmatpush1.bf16.msra.mxu0 0
      %1345 = vmatprep.subr.bf16.mxu0 0
      %1346 = vmatpush1.bf16.msra.mxu0 0
      %1347 = vmatprep.subr.bf16.mxu0 0
      %1348 = vmatpush1.bf16.msra.mxu0 0
      %1349 = vmatprep.subr.bf16.mxu0 0
      %1350 = vmatpush1.bf16.msra.mxu0 0
      %1351 = vmatprep.subr.bf16.mxu0 0
      %1352 = vmatpush1.bf16.msra.mxu0 0
      %1353 = vmatprep.mubr.bf16.mxu0 0
      %1354 = vmatmul.mubr.bf16.gmra.mrb[0].mxu0 %v1319
      %v1355 = vpop.f32.mrb[0].mxu0
      %v1356 = vadd.f32 0.0, %v1355
      %v1357 = vpop.f32.mrb[0].mxu0
      %v1358 = vadd.f32 0.0, %v1357
      %v1359 = vpop.f32.mrb[0].mxu0
      %v1360 = vpop.f32.mrb[0].mxu0
      %1361 = vdwg.mxu0
      %v1362 = vadd.f32 %v1180, %v1356
      %v1363 = vadd.f32 %v1181, %v1358
      %s1364 = scalar_lea.vmem %s261, 24
      %v1365 = vld [vmem:[%s1364] sm:$0xf]
      %s1366 = scalar_lea.vmem %s261, 56
      %v1367 = vld [vmem:[%s1366] sm:$0xf]
      %s1368 = scalar_lea.vmem %s261, 88
      %v1369 = vld [vmem:[%s1368] sm:$0xf]
      %v1371 = vsel %vm280, %v1365, 0
      %v1374 = vsel %vm280, %v1367, 0
      %1376 = vmatprep.subr.bf16.mxu0 0
      %1377 = vmatpush1.bf16.xpose.msra.mxu0 %v1374
      %1378 = vmatprep.subr.bf16.mxu0 0
      %1379 = vmatpush1.bf16.xpose.msra.mxu0 0
      %1380 = vmatprep.subr.bf16.mxu0 0
      %1381 = vmatpush1.bf16.xpose.msra.mxu0 0
      %1382 = vmatprep.subr.bf16.mxu0 0
      %1383 = vmatpush1.bf16.xpose.msra.mxu0 0
      %1384 = vmatprep.subr.bf16.mxu0 0
      %1385 = vmatpush1.bf16.xpose.msra.mxu0 0
      %1386 = vmatprep.subr.bf16.mxu0 0
      %1387 = vmatpush1.bf16.xpose.msra.mxu0 0
      %1388 = vmatprep.subr.bf16.mxu0 0
      %1389 = vmatpush1.bf16.xpose.msra.mxu0 0
      %1390 = vmatprep.subr.bf16.mxu0 0
      %1391 = vmatpush1.bf16.xpose.msra.mxu0 0
      %1392 = vmatprep.subr.bf16.mxu0 0
      %1393 = vmatpush1.bf16.xpose.msra.mxu0 0
      %1394 = vmatprep.subr.bf16.mxu0 0
      %1395 = vmatpush1.bf16.xpose.msra.mxu0 0
      %1396 = vmatprep.subr.bf16.mxu0 0
      %1397 = vmatpush1.bf16.xpose.msra.mxu0 0
      %1398 = vmatprep.subr.bf16.mxu0 0
      %1399 = vmatpush1.bf16.xpose.msra.mxu0 0
      %1400 = vmatprep.subr.bf16.mxu0 0
      %1401 = vmatpush1.bf16.xpose.msra.mxu0 0
      %1402 = vmatprep.subr.bf16.mxu0 0
      %1403 = vmatpush1.bf16.xpose.msra.mxu0 0
      %1404 = vmatprep.subr.bf16.mxu0 0
      %1405 = vmatpush1.bf16.xpose.msra.mxu0 0
      %1406 = vmatprep.subr.bf16.mxu0 0
      %1407 = vmatpush1.bf16.xpose.msra.mxu0 0
      %1408 = vmatprep.mubr.bf16.mxu0 0
      %1409 = vmatmul.mubr.bf16.gmra.mrb[0].mxu0 %v1371
      %v1410 = vpop.f32.mrb[0].mxu0
      %v1411 = vadd.f32 0.0, %v1410
      %v1412 = vpop.f32.mrb[0].mxu0
      %v1413 = vpop.f32.mrb[0].mxu0
      %v1414 = vpop.f32.mrb[0].mxu0
      %1415 = vdwg.mxu0
      %v1416 = vsel %vm327, %v1411, -inf
      %1417 = vmax.xlane.f32.xlu0 %v1416
      %v1418 = vpop.xlane.xlu0 %1417
      %v1419 = vsub.f32 %v1411, %v1418
      %v1420 = vmul.f32 %v1419, 1.442695
      %v1421 = vpow.pop %v1420
      %v1422 = vsel %vm327, %v1421, 0.0
      %1423 = vadd.xlane.f32.xlu0 %v1422
      %v1424 = vpop.xlane.xlu0 %1423
      %v1425 = vrcp.pop %v1424
      %v1426 = vmul.f32 %v1421, %v1425
      %v1427 = vpack.c.bf16 %v1426, %v1426
      %v1429 = vsel %vm327, %v1427, 0
      %v1432 = vsel %vm343, %v1369, 0
      %1434 = vmatprep.subr.bf16.mxu0 0
      %1435 = vmatpush1.bf16.msra.mxu0 %v1432
      %1436 = vmatprep.subr.bf16.mxu0 0
      %1437 = vmatpush1.bf16.msra.mxu0 0
      %1438 = vmatprep.subr.bf16.mxu0 0
      %1439 = vmatpush1.bf16.msra.mxu0 0
      %1440 = vmatprep.subr.bf16.mxu0 0
      %1441 = vmatpush1.bf16.msra.mxu0 0
      %1442 = vmatprep.subr.bf16.mxu0 0
      %1443 = vmatpush1.bf16.msra.mxu0 0
      %1444 = vmatprep.subr.bf16.mxu0 0
      %1445 = vmatpush1.bf16.msra.mxu0 0
      %1446 = vmatprep.subr.bf16.mxu0 0
      %1447 = vmatpush1.bf16.msra.mxu0 0
      %1448 = vmatprep.subr.bf16.mxu0 0
      %1449 = vmatpush1.bf16.msra.mxu0 0
      %1450 = vmatprep.subr.bf16.mxu0 0
      %1451 = vmatpush1.bf16.msra.mxu0 0
      %1452 = vmatprep.subr.bf16.mxu0 0
      %1453 = vmatpush1.bf16.msra.mxu0 0
      %1454 = vmatprep.subr.bf16.mxu0 0
      %1455 = vmatpush1.bf16.msra.mxu0 0
      %1456 = vmatprep.subr.bf16.mxu0 0
      %1457 = vmatpush1.bf16.msra.mxu0 0
      %1458 = vmatprep.subr.bf16.mxu0 0
      %1459 = vmatpush1.bf16.msra.mxu0 0
      %1460 = vmatprep.subr.bf16.mxu0 0
      %1461 = vmatpush1.bf16.msra.mxu0 0
      %1462 = vmatprep.subr.bf16.mxu0 0
      %1463 = vmatpush1.bf16.msra.mxu0 0
      %1464 = vmatprep.subr.bf16.mxu0 0
      %1465 = vmatpush1.bf16.msra.mxu0 0
      %1466 = vmatprep.mubr.bf16.mxu0 0
      %1467 = vmatmul.mubr.bf16.gmra.mrb[0].mxu0 %v1429
      %v1468 = vpop.f32.mrb[0].mxu0
      %v1469 = vadd.f32 0.0, %v1468
      %v1470 = vpop.f32.mrb[0].mxu0
      %v1471 = vpop.f32.mrb[0].mxu0
      %v1472 = vpop.f32.mrb[0].mxu0
      %1473 = vdwg.mxu0
      %v1474 = vpack.c.bf16 %v1469, %v1469
      %s1475 = scalar_lea.vmem %s2, 192
      %v1476 = vld [vmem:[%s1475] sm:$0xff]
      %v1477 = vld [vmem:[%s1475 + $0x8] sm:$0xff]
      %v1478 = vld [vmem:[%s1475 + $0x10] sm:$0xff]
      %v1479 = vld [vmem:[%s1475 + $0x18] sm:$0xff]
      %v1484 = vunpack.c.l.b16 %v1476
      %v1485 = vunpack.c.h.b16 %v1476
      %v1486 = vunpack.c.l.b16 %v1477
      %v1487 = vunpack.c.h.b16 %v1477
      %v1488 = vunpack.c.l.b16 %v1478
      %v1489 = vunpack.c.h.b16 %v1478
      %v1490 = vunpack.c.l.b16 %v1479
      %v1491 = vunpack.c.h.b16 %v1479
      %v1492 = vpack.c.b16 %v1486, %v1484
      %v1493 = vpack.c.b16 %v1487, %v1485
      %v1494 = vpack.c.b16 %v1490, %v1488
      %v1495 = vpack.c.b16 %v1491, %v1489
      %v1501 = vsel %vm280, %v1474, 0
      %1503 = vmatprep.subr.bf16.mxu0 %v1493
      %1504 = vmatpush1.bf16.msra.mxu0 %v1492
      %1505 = vmatprep.subr.bf16.mxu0 %v1495
      %1506 = vmatpush1.bf16.msra.mxu0 %v1494
      %1507 = vmatprep.subr.bf16.mxu0 0
      %1508 = vmatpush1.bf16.msra.mxu0 0
      %1509 = vmatprep.subr.bf16.mxu0 0
      %1510 = vmatpush1.bf16.msra.mxu0 0
      %1511 = vmatprep.subr.bf16.mxu0 0
      %1512 = vmatpush1.bf16.msra.mxu0 0
      %1513 = vmatprep.subr.bf16.mxu0 0
      %1514 = vmatpush1.bf16.msra.mxu0 0
      %1515 = vmatprep.subr.bf16.mxu0 0
      %1516 = vmatpush1.bf16.msra.mxu0 0
      %1517 = vmatprep.subr.bf16.mxu0 0
      %1518 = vmatpush1.bf16.msra.mxu0 0
      %1519 = vmatprep.subr.bf16.mxu0 0
      %1520 = vmatpush1.bf16.msra.mxu0 0
      %1521 = vmatprep.subr.bf16.mxu0 0
      %1522 = vmatpush1.bf16.msra.mxu0 0
      %1523 = vmatprep.subr.bf16.mxu0 0
      %1524 = vmatpush1.bf16.msra.mxu0 0
      %1525 = vmatprep.subr.bf16.mxu0 0
      %1526 = vmatpush1.bf16.msra.mxu0 0
      %1527 = vmatprep.subr.bf16.mxu0 0
      %1528 = vmatpush1.bf16.msra.mxu0 0
      %1529 = vmatprep.subr.bf16.mxu0 0
      %1530 = vmatpush1.bf16.msra.mxu0 0
      %1531 = vmatprep.subr.bf16.mxu0 0
      %1532 = vmatpush1.bf16.msra.mxu0 0
      %1533 = vmatprep.subr.bf16.mxu0 0
      %1534 = vmatpush1.bf16.msra.mxu0 0
      %1535 = vmatprep.mubr.bf16.mxu0 0
      %1536 = vmatmul.mubr.bf16.gmra.mrb[0].mxu0 %v1501
      %v1537 = vpop.f32.mrb[0].mxu0
      %v1538 = vadd.f32 0.0, %v1537
      %v1539 = vpop.f32.mrb[0].mxu0
      %v1540 = vadd.f32 0.0, %v1539
      %v1541 = vpop.f32.mrb[0].mxu0
      %v1542 = vpop.f32.mrb[0].mxu0
      %1543 = vdwg.mxu0
      %v1544 = vadd.f32 %v1362, %v1538
      %v1545 = vadd.f32 %v1363, %v1540
      %s1546 = scalar_lea.vmem %s261, 28
      %v1547 = vld [vmem:[%s1546] sm:$0xf]
      %s1548 = scalar_lea.vmem %s261, 60
      %v1549 = vld [vmem:[%s1548] sm:$0xf]
      %s1550 = scalar_lea.vmem %s261, 92
      %v1551 = vld [vmem:[%s1550] sm:$0xf]
      %v1553 = vsel %vm280, %v1547, 0
      %v1556 = vsel %vm280, %v1549, 0
      %1558 = vmatprep.subr.bf16.mxu0 0
      %1559 = vmatpush1.bf16.xpose.msra.mxu0 %v1556
      %1560 = vmatprep.subr.bf16.mxu0 0
      %1561 = vmatpush1.bf16.xpose.msra.mxu0 0
      %1562 = vmatprep.subr.bf16.mxu0 0
      %1563 = vmatpush1.bf16.xpose.msra.mxu0 0
      %1564 = vmatprep.subr.bf16.mxu0 0
      %1565 = vmatpush1.bf16.xpose.msra.mxu0 0
      %1566 = vmatprep.subr.bf16.mxu0 0
      %1567 = vmatpush1.bf16.xpose.msra.mxu0 0
      %1568 = vmatprep.subr.bf16.mxu0 0
      %1569 = vmatpush1.bf16.xpose.msra.mxu0 0
      %1570 = vmatprep.subr.bf16.mxu0 0
      %1571 = vmatpush1.bf16.xpose.msra.mxu0 0
      %1572 = vmatprep.subr.bf16.mxu0 0
      %1573 = vmatpush1.bf16.xpose.msra.mxu0 0
      %1574 = vmatprep.subr.bf16.mxu0 0
      %1575 = vmatpush1.bf16.xpose.msra.mxu0 0
      %1576 = vmatprep.subr.bf16.mxu0 0
      %1577 = vmatpush1.bf16.xpose.msra.mxu0 0
      %1578 = vmatprep.subr.bf16.mxu0 0
      %1579 = vmatpush1.bf16.xpose.msra.mxu0 0
      %1580 = vmatprep.subr.bf16.mxu0 0
      %1581 = vmatpush1.bf16.xpose.msra.mxu0 0
      %1582 = vmatprep.subr.bf16.mxu0 0
      %1583 = vmatpush1.bf16.xpose.msra.mxu0 0
      %1584 = vmatprep.subr.bf16.mxu0 0
      %1585 = vmatpush1.bf16.xpose.msra.mxu0 0
      %1586 = vmatprep.subr.bf16.mxu0 0
      %1587 = vmatpush1.bf16.xpose.msra.mxu0 0
      %1588 = vmatprep.subr.bf16.mxu0 0
      %1589 = vmatpush1.bf16.xpose.msra.mxu0 0
      %1590 = vmatprep.mubr.bf16.mxu0 0
      %1591 = vmatmul.mubr.bf16.gmra.mrb[0].mxu0 %v1553
      %v1592 = vpop.f32.mrb[0].mxu0
      %v1593 = vadd.f32 0.0, %v1592
      %v1594 = vpop.f32.mrb[0].mxu0
      %v1595 = vpop.f32.mrb[0].mxu0
      %v1596 = vpop.f32.mrb[0].mxu0
      %1597 = vdwg.mxu0
      %v1598 = vsel %vm327, %v1593, -inf
      %1599 = vmax.xlane.f32.xlu0 %v1598
      %v1600 = vpop.xlane.xlu0 %1599
      %v1601 = vsub.f32 %v1593, %v1600
      %v1602 = vmul.f32 %v1601, 1.442695
      %v1603 = vpow.pop %v1602
      %v1604 = vsel %vm327, %v1603, 0.0
      %1605 = vadd.xlane.f32.xlu0 %v1604
      %v1606 = vpop.xlane.xlu0 %1605
      %v1607 = vrcp.pop %v1606
      %v1608 = vmul.f32 %v1603, %v1607
      %v1609 = vpack.c.bf16 %v1608, %v1608
      %v1611 = vsel %vm327, %v1609, 0
      %v1614 = vsel %vm343, %v1551, 0
      %1616 = vmatprep.subr.bf16.mxu0 0
      %1617 = vmatpush1.bf16.msra.mxu0 %v1614
      %1618 = vmatprep.subr.bf16.mxu0 0
      %1619 = vmatpush1.bf16.msra.mxu0 0
      %1620 = vmatprep.subr.bf16.mxu0 0
      %1621 = vmatpush1.bf16.msra.mxu0 0
      %1622 = vmatprep.subr.bf16.mxu0 0
      %1623 = vmatpush1.bf16.msra.mxu0 0
      %1624 = vmatprep.subr.bf16.mxu0 0
      %1625 = vmatpush1.bf16.msra.mxu0 0
      %1626 = vmatprep.subr.bf16.mxu0 0
      %1627 = vmatpush1.bf16.msra.mxu0 0
      %1628 = vmatprep.subr.bf16.mxu0 0
      %1629 = vmatpush1.bf16.msra.mxu0 0
      %1630 = vmatprep.subr.bf16.mxu0 0
      %1631 = vmatpush1.bf16.msra.mxu0 0
      %1632 = vmatprep.subr.bf16.mxu0 0
      %1633 = vmatpush1.bf16.msra.mxu0 0
      %1634 = vmatprep.subr.bf16.mxu0 0
      %1635 = vmatpush1.bf16.msra.mxu0 0
      %1636 = vmatprep.subr.bf16.mxu0 0
      %1637 = vmatpush1.bf16.msra.mxu0 0
      %1638 = vmatprep.subr.bf16.mxu0 0
      %1639 = vmatpush1.bf16.msra.mxu0 0
      %1640 = vmatprep.subr.bf16.mxu0 0
      %1641 = vmatpush1.bf16.msra.mxu0 0
      %1642 = vmatprep.subr.bf16.mxu0 0
      %1643 = vmatpush1.bf16.msra.mxu0 0
      %1644 = vmatprep.subr.bf16.mxu0 0
      %1645 = vmatpush1.bf16.msra.mxu0 0
      %1646 = vmatprep.subr.bf16.mxu0 0
      %1647 = vmatpush1.bf16.msra.mxu0 0
      %1648 = vmatprep.mubr.bf16.mxu0 0
      %1649 = vmatmul.mubr.bf16.gmra.mrb[0].mxu0 %v1611
      %v1650 = vpop.f32.mrb[0].mxu0
      %v1651 = vadd.f32 0.0, %v1650
      %v1652 = vpop.f32.mrb[0].mxu0
      %v1653 = vpop.f32.mrb[0].mxu0
      %v1654 = vpop.f32.mrb[0].mxu0
      %1655 = vdwg.mxu0
      %v1656 = vpack.c.bf16 %v1651, %v1651
      %s1657 = scalar_lea.vmem %s2, 224
      %v1658 = vld [vmem:[%s1657] sm:$0xff]
      %v1659 = vld [vmem:[%s1657 + $0x8] sm:$0xff]
      %v1660 = vld [vmem:[%s1657 + $0x10] sm:$0xff]
      %v1661 = vld [vmem:[%s1657 + $0x18] sm:$0xff]
      %v1666 = vunpack.c.l.b16 %v1658
      %v1667 = vunpack.c.h.b16 %v1658
      %v1668 = vunpack.c.l.b16 %v1659
      %v1669 = vunpack.c.h.b16 %v1659
      %v1670 = vunpack.c.l.b16 %v1660
      %v1671 = vunpack.c.h.b16 %v1660
      %v1672 = vunpack.c.l.b16 %v1661
      %v1673 = vunpack.c.h.b16 %v1661
      %v1674 = vpack.c.b16 %v1668, %v1666
      %v1675 = vpack.c.b16 %v1669, %v1667
      %v1676 = vpack.c.b16 %v1672, %v1670
      %v1677 = vpack.c.b16 %v1673, %v1671
      %v1683 = vsel %vm280, %v1656, 0
      %1685 = vmatprep.subr.bf16.mxu0 %v1675
      %1686 = vmatpush1.bf16.msra.mxu0 %v1674
      %1687 = vmatprep.subr.bf16.mxu0 %v1677
      %1688 = vmatpush1.bf16.msra.mxu0 %v1676
      %1689 = vmatprep.subr.bf16.mxu0 0
      %1690 = vmatpush1.bf16.msra.mxu0 0
      %1691 = vmatprep.subr.bf16.mxu0 0
      %1692 = vmatpush1.bf16.msra.mxu0 0
      %1693 = vmatprep.subr.bf16.mxu0 0
      %1694 = vmatpush1.bf16.msra.mxu0 0
      %1695 = vmatprep.subr.bf16.mxu0 0
      %1696 = vmatpush1.bf16.msra.mxu0 0
      %1697 = vmatprep.subr.bf16.mxu0 0
      %1698 = vmatpush1.bf16.msra.mxu0 0
      %1699 = vmatprep.subr.bf16.mxu0 0
      %1700 = vmatpush1.bf16.msra.mxu0 0
      %1701 = vmatprep.subr.bf16.mxu0 0
      %1702 = vmatpush1.bf16.msra.mxu0 0
      %1703 = vmatprep.subr.bf16.mxu0 0
      %1704 = vmatpush1.bf16.msra.mxu0 0
      %1705 = vmatprep.subr.bf16.mxu0 0
      %1706 = vmatpush1.bf16.msra.mxu0 0
      %1707 = vmatprep.subr.bf16.mxu0 0
      %1708 = vmatpush1.bf16.msra.mxu0 0
      %1709 = vmatprep.subr.bf16.mxu0 0
      %1710 = vmatpush1.bf16.msra.mxu0 0
      %1711 = vmatprep.subr.bf16.mxu0 0
      %1712 = vmatpush1.bf16.msra.mxu0 0
      %1713 = vmatprep.subr.bf16.mxu0 0
      %1714 = vmatpush1.bf16.msra.mxu0 0
      %1715 = vmatprep.subr.bf16.mxu0 0
      %1716 = vmatpush1.bf16.msra.mxu0 0
      %1717 = vmatprep.mubr.bf16.mxu0 0
      %1718 = vmatmul.mubr.bf16.gmra.mrb[0].mxu0 %v1683
      %v1719 = vpop.f32.mrb[0].mxu0
      %v1720 = vadd.f32 0.0, %v1719
      %v1721 = vpop.f32.mrb[0].mxu0
      %v1722 = vadd.f32 0.0, %v1721
      %v1723 = vpop.f32.mrb[0].mxu0
      %v1724 = vpop.f32.mrb[0].mxu0
      %1725 = vdwg.mxu0
      %v1726 = vadd.f32 %v1544, %v1720
      %v1727 = vadd.f32 %v1545, %v1722
      %v1728 = vld [vmem:[%s3] sm:$0x3]
      %v1730 = vlaneseq
      %v1731 = vshrl.u32 %v1730, 7
      %v1732 = vsub.s32 0, %v1731
      %v1733 = vrot.slane %v1728, %v1732
      %v1734 = vlaneseq
      %v1735 = vshrl.u32 %v1734, 7
      %v1736 = vsub.s32 1, %v1735
      %v1737 = vrot.slane %v1728, %v1736
      %v1740 = vadd.f32 %v1726, %v1733
      %v1741 = vadd.f32 %v1727, %v1737
      %v1742 = vadd.f32 %v1740, %v273
      %v1743 = vadd.f32 %v1741, %v274
      %v1744 = vadd.f32 %v1742, %v1743
      %1745 = vadd.xlane.f32.xlu0 %v1744
      %v1746 = vpop.xlane.xlu0 %1745
      %v1747 = vrcp.pop 256.0
      %v1748 = vmul.f32 %v1746, %v1747
      %v1749 = vsub.f32 %v1742, %v1748
      %v1750 = vsub.f32 %v1743, %v1748
      %v1751 = vmul.f32 %v1749, %v1749
      %v1752 = vmul.f32 %v1750, %v1750
      %v1753 = vadd.f32 %v1751, %v1752
      %1754 = vadd.xlane.f32.xlu0 %v1753
      %v1755 = vpop.xlane.xlu0 %1754
      %v1756 = vmul.f32 %v1755, %v1747
      %v1757 = vadd.f32 %v1756, 1e-05
      %v1758 = vrsqrt.pop %v1757
      %v1759 = vmul.f32 %v1749, %v1758
      %v1760 = vmul.f32 %v1750, %v1758
      %v1761 = vld [vmem:[%s4] sm:$0x3]
      %v1763 = vlaneseq
      %v1764 = vshrl.u32 %v1763, 7
      %v1765 = vsub.s32 0, %v1764
      %v1766 = vrot.slane %v1761, %v1765
      %v1767 = vlaneseq
      %v1768 = vshrl.u32 %v1767, 7
      %v1769 = vsub.s32 1, %v1768
      %v1770 = vrot.slane %v1761, %v1769
      %v1773 = vmul.f32 %v1759, %v1766
      %v1774 = vmul.f32 %v1760, %v1770
      %v1775 = vld [vmem:[%s5] sm:$0x3]
      %v1777 = vlaneseq
      %v1778 = vshrl.u32 %v1777, 7
      %v1779 = vsub.s32 0, %v1778
      %v1780 = vrot.slane %v1775, %v1779
      %v1781 = vlaneseq
      %v1782 = vshrl.u32 %v1781, 7
      %v1783 = vsub.s32 1, %v1782
      %v1784 = vrot.slane %v1775, %v1783
      %v1787 = vadd.f32 %v1773, %v1780
      %v1788 = vadd.f32 %v1774, %v1784
      %1789 = vst [vmem:[%s271] sm:$0xff] %v1787
      %1790 = vst [vmem:[%s271 + $0x8] sm:$0xff] %v1788
      %p1791 = scmp.lt.s32.totalorder %s17, 7
      %s1792 = scalar_select %p1791, %s17, 7
      %s1793 = smul.addr %s1792, 2
      %s1794 = smul.addr %s1793, 8
      %s1795 = scalar_lea.vmem %s6, %s1794
      // Predicated region
      $region45: #{emodel_bigru_forward.16} parent=43 // pred_check
        %p1796 = pneg %p171
      $region46: #{emodel_bigru_forward.16} parent=43 // pred_check_branch
        %1798 = sbr.rel (%p1796) target = $region48
      $region47: #{emodel_bigru_forward.16} parent=43 // pred_region
        _
      $region48: #{emodel_bigru_forward.16} parent=43 // pred_fallthru
        _
    $region44: #{emodel_bigru_forward.16} parent=5 // pred_fallthru
      _
    %p1799 = scmp.le.s32.totalorder 2, %s12
    // Predicated region
    $region49: #{emodel_bigru_forward.16} parent=5 // pred_check
      %p1800 = pneg %p1799
    $region50: #{emodel_bigru_forward.16} parent=5 // pred_check_branch
      %1802 = sbr.rel (%p1800) target = $region52
    $region51: #{emodel_bigru_forward.16} parent=5 // pred_region
      %s1803 = ssub.s32 %s12, 2
      // Predicated region
      $region53: #{emodel_bigru_forward.16} parent=51 // pred_check
        %p1804 = pneg %p177
      $region54: #{emodel_bigru_forward.16} parent=51 // pred_check_branch
        %1806 = sbr.rel (%p1804) target = $region56
      $region55: #{emodel_bigru_forward.16} parent=51 // pred_region
        %p1807 = scmp.lt.s32.totalorder %s18, 7
        %s1808 = scalar_select %p1807, %s18, 7
        %s1809 = smul.addr %s1808, 2
        %s1810 = smul.addr %s1809, 8
        %s1811 = scalar_lea.vmem %s6, %s1810
      $region56: #{emodel_bigru_forward.16} parent=51 // pred_fallthru
        _
    $region52: #{emodel_bigru_forward.16} parent=5 // pred_fallthru
      _
  $region6: #{emodel_bigru_forward.16} parent=0 // loop_footer
    %s16 = sadd.s32 1, %s12
  $region7: #{emodel_bigru_forward.16} parent=0 // loop_footer_branch
    %11 = sbr.rel target = $region3
  $region8: #{emodel_bigru_forward.16} parent=0 // loop_exit
    _

// kernel: emodel_bigru_forward.17
$region0: #{emodel_bigru_forward.17}
  #allocation0 [shape = 'u32[]', space=smem, size = 0x4, offset = 0x4, fixed_abs, tag = 'smem constant byte address 0x4 - core index']
  #allocation1 [shape = 'u32[144,128]{1,0:T(1,128)}', space=vmem, size = 0x12000, scoped, tag = 'internal scratch']
  %s0 = inlined_call_operand.vmem [shape: f32[64,256], index: 0, kind: input, shape index: {}]
  %s1 = inlined_call_operand.vmem [shape: bf16[256,2048], index: 1, kind: input, shape index: {}]
  %s2 = inlined_call_operand.vmem [shape: f32[1,2048], index: 2, kind: input, shape index: {}]
  %s3 = inlined_call_operand.vmem [shape: bf16[2048,256], index: 3, kind: input, shape index: {}]
  %s4 = inlined_call_operand.vmem [shape: f32[1,256], index: 4, kind: input, shape index: {}]
  %s5 = inlined_call_operand.vmem [shape: f32[1,256], index: 5, kind: input, shape index: {}]
  %s6 = inlined_call_operand.vmem [shape: f32[1,256], index: 6, kind: input, shape index: {}]
  %s7 = inlined_call_operand.vmem [shape: f32[64,256], index: 7, kind: output, shape index: {}]
  %s8 = sld [smem:[#allocation0]]
  $region38: #{emodel_bigru_forward.17} parent=0
    _
  %s10 = ssub.s32 1, %s8
  %s11 = scalar_select 0, %s10, %s8
  // Predicated region
  $region2: #{emodel_bigru_forward.17} parent=0 // pred_check
    _
  $region3: #{emodel_bigru_forward.17} parent=0 // pred_check_branch
    %13 = sbr.rel (0) target = $region5
  $region4: #{emodel_bigru_forward.17} parent=0 // pred_region
    _
  $region5: #{emodel_bigru_forward.17} parent=0 // pred_fallthru
    _
  // Predicated region
  $region6: #{emodel_bigru_forward.17} parent=0 // pred_check
    _
  $region7: #{emodel_bigru_forward.17} parent=0 // pred_check_branch
    %15 = sbr.rel (0) target = $region9
  $region8: #{emodel_bigru_forward.17} parent=0 // pred_region
    _
  $region9: #{emodel_bigru_forward.17} parent=0 // pred_fallthru
    _
  // Predicated region
  $region10: #{emodel_bigru_forward.17} parent=0 // pred_check
    _
  $region11: #{emodel_bigru_forward.17} parent=0 // pred_check_branch
    %17 = sbr.rel (0) target = $region13
  $region12: #{emodel_bigru_forward.17} parent=0 // pred_region
    _
  $region13: #{emodel_bigru_forward.17} parent=0 // pred_fallthru
    _
  // Predicated region
  $region14: #{emodel_bigru_forward.17} parent=0 // pred_check
    _
  $region15: #{emodel_bigru_forward.17} parent=0 // pred_check_branch
    %19 = sbr.rel (0) target = $region17
  $region16: #{emodel_bigru_forward.17} parent=0 // pred_region
    _
  $region17: #{emodel_bigru_forward.17} parent=0 // pred_fallthru
    _
  // Predicated region
  $region18: #{emodel_bigru_forward.17} parent=0 // pred_check
    _
  $region19: #{emodel_bigru_forward.17} parent=0 // pred_check_branch
    %21 = sbr.rel (0) target = $region21
  $region20: #{emodel_bigru_forward.17} parent=0 // pred_region
    _
  $region21: #{emodel_bigru_forward.17} parent=0 // pred_fallthru
    _
  // Predicated region
  $region22: #{emodel_bigru_forward.17} parent=0 // pred_check
    _
  $region23: #{emodel_bigru_forward.17} parent=0 // pred_check_branch
    %23 = sbr.rel (0) target = $region25
  $region24: #{emodel_bigru_forward.17} parent=0 // pred_region
    _
  $region25: #{emodel_bigru_forward.17} parent=0 // pred_fallthru
    _
  // Predicated region
  $region26: #{emodel_bigru_forward.17} parent=0 // pred_check
    _
  $region27: #{emodel_bigru_forward.17} parent=0 // pred_check_branch
    %25 = sbr.rel (0) target = $region29
  $region28: #{emodel_bigru_forward.17} parent=0 // pred_region
    _
  $region29: #{emodel_bigru_forward.17} parent=0 // pred_fallthru
    _
  %v26 = vld [vmem:[%s0] sm:$0xff]
  %v27 = vld [vmem:[%s0 + $0x8] sm:$0xff]
  %v28 = vld [vmem:[%s0 + $0x10] sm:$0xff]
  %v29 = vld [vmem:[%s0 + $0x18] sm:$0xff]
  %v30 = vld [vmem:[%s0 + $0x20] sm:$0xff]
  %v31 = vld [vmem:[%s0 + $0x28] sm:$0xff]
  %v32 = vld [vmem:[%s0 + $0x30] sm:$0xff]
  %v33 = vld [vmem:[%s0 + $0x38] sm:$0xff]
  %v34 = vld [vmem:[%s0 + $0x40] sm:$0xff]
  %v35 = vld [vmem:[%s0 + $0x48] sm:$0xff]
  %v36 = vld [vmem:[%s0 + $0x50] sm:$0xff]
  %v37 = vld [vmem:[%s0 + $0x58] sm:$0xff]
  %v38 = vld [vmem:[%s0 + $0x60] sm:$0xff]
  %v39 = vld [vmem:[%s0 + $0x68] sm:$0xff]
  %v40 = vld [vmem:[%s0 + $0x70] sm:$0xff]
  %v41 = vld [vmem:[%s0 + $0x78] sm:$0xff]
  %v42 = vpack.c.bf16 %v28, %v26
  %v43 = vpack.c.bf16 %v29, %v27
  %v44 = vpack.c.bf16 %v32, %v30
  %v45 = vpack.c.bf16 %v33, %v31
  %v46 = vpack.c.bf16 %v36, %v34
  %v47 = vpack.c.bf16 %v37, %v35
  %v48 = vpack.c.bf16 %v40, %v38
  %v49 = vpack.c.bf16 %v41, %v39
  %v50 = vld [vmem:[%s1] sm:$0xff]
  %v51 = vld [vmem:[%s1 + $0x8] sm:$0xff]
  %v52 = vld [vmem:[%s1 + $0x10] sm:$0xff]
  %v53 = vld [vmem:[%s1 + $0x18] sm:$0xff]
  %v54 = vld [vmem:[%s1 + $0x20] sm:$0xff]
  %v55 = vld [vmem:[%s1 + $0x28] sm:$0xff]
  %v56 = vld [vmem:[%s1 + $0x30] sm:$0xff]
  %v57 = vld [vmem:[%s1 + $0x38] sm:$0xff]
  %v58 = vld [vmem:[%s1 + $0x40] sm:$0xff]
  %v59 = vld [vmem:[%s1 + $0x48] sm:$0xff]
  %v60 = vld [vmem:[%s1 + $0x50] sm:$0xff]
  %v61 = vld [vmem:[%s1 + $0x58] sm:$0xff]
  %v62 = vld [vmem:[%s1 + $0x60] sm:$0xff]
  %v63 = vld [vmem:[%s1 + $0x68] sm:$0xff]
  %v64 = vld [vmem:[%s1 + $0x70] sm:$0xff]
  %v65 = vld [vmem:[%s1 + $0x78] sm:$0xff]
  %v66 = vld [vmem:[%s1 + $0x80] sm:$0xff]
  %v67 = vld [vmem:[%s1 + $0x88] sm:$0xff]
  %v68 = vld [vmem:[%s1 + $0x90] sm:$0xff]
  %v69 = vld [vmem:[%s1 + $0x98] sm:$0xff]
  %v70 = vld [vmem:[%s1 + $0xa0] sm:$0xff]
  %v71 = vld [vmem:[%s1 + $0xa8] sm:$0xff]
  %v72 = vld [vmem:[%s1 + $0xb0] sm:$0xff]
  %v73 = vld [vmem:[%s1 + $0xb8] sm:$0xff]
  %v74 = vld [vmem:[%s1 + $0xc0] sm:$0xff]
  %v75 = vld [vmem:[%s1 + $0xc8] sm:$0xff]
  %v76 = vld [vmem:[%s1 + $0xd0] sm:$0xff]
  %v77 = vld [vmem:[%s1 + $0xd8] sm:$0xff]
  %v78 = vld [vmem:[%s1 + $0xe0] sm:$0xff]
  %v79 = vld [vmem:[%s1 + $0xe8] sm:$0xff]
  %v80 = vld [vmem:[%s1 + $0xf0] sm:$0xff]
  %v81 = vld [vmem:[%s1 + $0xf8] sm:$0xff]
  %v82 = vld [vmem:[%s1 + $0x100] sm:$0xff]
  %v83 = vld [vmem:[%s1 + $0x108] sm:$0xff]
  %v84 = vld [vmem:[%s1 + $0x110] sm:$0xff]
  %v85 = vld [vmem:[%s1 + $0x118] sm:$0xff]
  %v86 = vld [vmem:[%s1 + $0x120] sm:$0xff]
  %v87 = vld [vmem:[%s1 + $0x128] sm:$0xff]
  %v88 = vld [vmem:[%s1 + $0x130] sm:$0xff]
  %v89 = vld [vmem:[%s1 + $0x138] sm:$0xff]
  %v90 = vld [vmem:[%s1 + $0x140] sm:$0xff]
  %v91 = vld [vmem:[%s1 + $0x148] sm:$0xff]
  %v92 = vld [vmem:[%s1 + $0x150] sm:$0xff]
  %v93 = vld [vmem:[%s1 + $0x158] sm:$0xff]
  %v94 = vld [vmem:[%s1 + $0x160] sm:$0xff]
  %v95 = vld [vmem:[%s1 + $0x168] sm:$0xff]
  %v96 = vld [vmem:[%s1 + $0x170] sm:$0xff]
  %v97 = vld [vmem:[%s1 + $0x178] sm:$0xff]
  %v98 = vld [vmem:[%s1 + $0x180] sm:$0xff]
  %v99 = vld [vmem:[%s1 + $0x188] sm:$0xff]
  %v100 = vld [vmem:[%s1 + $0x190] sm:$0xff]
  %v101 = vld [vmem:[%s1 + $0x198] sm:$0xff]
  %v102 = vld [vmem:[%s1 + $0x1a0] sm:$0xff]
  %v103 = vld [vmem:[%s1 + $0x1a8] sm:$0xff]
  %v104 = vld [vmem:[%s1 + $0x1b0] sm:$0xff]
  %v105 = vld [vmem:[%s1 + $0x1b8] sm:$0xff]
  %v106 = vld [vmem:[%s1 + $0x1c0] sm:$0xff]
  %v107 = vld [vmem:[%s1 + $0x1c8] sm:$0xff]
  %v108 = vld [vmem:[%s1 + $0x1d0] sm:$0xff]
  %v109 = vld [vmem:[%s1 + $0x1d8] sm:$0xff]
  %v110 = vld [vmem:[%s1 + $0x1e0] sm:$0xff]
  %v111 = vld [vmem:[%s1 + $0x1e8] sm:$0xff]
  %v112 = vld [vmem:[%s1 + $0x1f0] sm:$0xff]
  %v113 = vld [vmem:[%s1 + $0x1f8] sm:$0xff]
  %v114 = vld [vmem:[%s1 + $0x200] sm:$0xff]
  %v115 = vld [vmem:[%s1 + $0x208] sm:$0xff]
  %v116 = vld [vmem:[%s1 + $0x210] sm:$0xff]
  %v117 = vld [vmem:[%s1 + $0x218] sm:$0xff]
  %v118 = vld [vmem:[%s1 + $0x220] sm:$0xff]
  %v119 = vld [vmem:[%s1 + $0x228] sm:$0xff]
  %v120 = vld [vmem:[%s1 + $0x230] sm:$0xff]
  %v121 = vld [vmem:[%s1 + $0x238] sm:$0xff]
  %v122 = vld [vmem:[%s1 + $0x240] sm:$0xff]
  %v123 = vld [vmem:[%s1 + $0x248] sm:$0xff]
  %v124 = vld [vmem:[%s1 + $0x250] sm:$0xff]
  %v125 = vld [vmem:[%s1 + $0x258] sm:$0xff]
  %v126 = vld [vmem:[%s1 + $0x260] sm:$0xff]
  %v127 = vld [vmem:[%s1 + $0x268] sm:$0xff]
  %v128 = vld [vmem:[%s1 + $0x270] sm:$0xff]
  %v129 = vld [vmem:[%s1 + $0x278] sm:$0xff]
  %v130 = vld [vmem:[%s1 + $0x280] sm:$0xff]
  %v131 = vld [vmem:[%s1 + $0x288] sm:$0xff]
  %v132 = vld [vmem:[%s1 + $0x290] sm:$0xff]
  %v133 = vld [vmem:[%s1 + $0x298] sm:$0xff]
  %v134 = vld [vmem:[%s1 + $0x2a0] sm:$0xff]
  %v135 = vld [vmem:[%s1 + $0x2a8] sm:$0xff]
  %v136 = vld [vmem:[%s1 + $0x2b0] sm:$0xff]
  %v137 = vld [vmem:[%s1 + $0x2b8] sm:$0xff]
  %v138 = vld [vmem:[%s1 + $0x2c0] sm:$0xff]
  %v139 = vld [vmem:[%s1 + $0x2c8] sm:$0xff]
  %v140 = vld [vmem:[%s1 + $0x2d0] sm:$0xff]
  %v141 = vld [vmem:[%s1 + $0x2d8] sm:$0xff]
  %v142 = vld [vmem:[%s1 + $0x2e0] sm:$0xff]
  %v143 = vld [vmem:[%s1 + $0x2e8] sm:$0xff]
  %v144 = vld [vmem:[%s1 + $0x2f0] sm:$0xff]
  %v145 = vld [vmem:[%s1 + $0x2f8] sm:$0xff]
  %v146 = vld [vmem:[%s1 + $0x300] sm:$0xff]
  %v147 = vld [vmem:[%s1 + $0x308] sm:$0xff]
  %v148 = vld [vmem:[%s1 + $0x310] sm:$0xff]
  %v149 = vld [vmem:[%s1 + $0x318] sm:$0xff]
  %v150 = vld [vmem:[%s1 + $0x320] sm:$0xff]
  %v151 = vld [vmem:[%s1 + $0x328] sm:$0xff]
  %v152 = vld [vmem:[%s1 + $0x330] sm:$0xff]
  %v153 = vld [vmem:[%s1 + $0x338] sm:$0xff]
  %v154 = vld [vmem:[%s1 + $0x340] sm:$0xff]
  %v155 = vld [vmem:[%s1 + $0x348] sm:$0xff]
  %v156 = vld [vmem:[%s1 + $0x350] sm:$0xff]
  %v157 = vld [vmem:[%s1 + $0x358] sm:$0xff]
  %v158 = vld [vmem:[%s1 + $0x360] sm:$0xff]
  %v159 = vld [vmem:[%s1 + $0x368] sm:$0xff]
  %v160 = vld [vmem:[%s1 + $0x370] sm:$0xff]
  %v161 = vld [vmem:[%s1 + $0x378] sm:$0xff]
  %v162 = vld [vmem:[%s1 + $0x380] sm:$0xff]
  %v163 = vld [vmem:[%s1 + $0x388] sm:$0xff]
  %v164 = vld [vmem:[%s1 + $0x390] sm:$0xff]
  %v165 = vld [vmem:[%s1 + $0x398] sm:$0xff]
  %v166 = vld [vmem:[%s1 + $0x3a0] sm:$0xff]
  %v167 = vld [vmem:[%s1 + $0x3a8] sm:$0xff]
  %v168 = vld [vmem:[%s1 + $0x3b0] sm:$0xff]
  %v169 = vld [vmem:[%s1 + $0x3b8] sm:$0xff]
  %v170 = vld [vmem:[%s1 + $0x3c0] sm:$0xff]
  %v171 = vld [vmem:[%s1 + $0x3c8] sm:$0xff]
  %v172 = vld [vmem:[%s1 + $0x3d0] sm:$0xff]
  %v173 = vld [vmem:[%s1 + $0x3d8] sm:$0xff]
  %v174 = vld [vmem:[%s1 + $0x3e0] sm:$0xff]
  %v175 = vld [vmem:[%s1 + $0x3e8] sm:$0xff]
  %v176 = vld [vmem:[%s1 + $0x3f0] sm:$0xff]
  %v177 = vld [vmem:[%s1 + $0x3f8] sm:$0xff]
  %v178 = vld [vmem:[%s1 + $0x400] sm:$0xff]
  %v179 = vld [vmem:[%s1 + $0x408] sm:$0xff]
  %v180 = vld [vmem:[%s1 + $0x410] sm:$0xff]
  %v181 = vld [vmem:[%s1 + $0x418] sm:$0xff]
  %v182 = vld [vmem:[%s1 + $0x420] sm:$0xff]
  %v183 = vld [vmem:[%s1 + $0x428] sm:$0xff]
  %v184 = vld [vmem:[%s1 + $0x430] sm:$0xff]
  %v185 = vld [vmem:[%s1 + $0x438] sm:$0xff]
  %v186 = vld [vmem:[%s1 + $0x440] sm:$0xff]
  %v187 = vld [vmem:[%s1 + $0x448] sm:$0xff]
  %v188 = vld [vmem:[%s1 + $0x450] sm:$0xff]
  %v189 = vld [vmem:[%s1 + $0x458] sm:$0xff]
  %v190 = vld [vmem:[%s1 + $0x460] sm:$0xff]
  %v191 = vld [vmem:[%s1 + $0x468] sm:$0xff]
  %v192 = vld [vmem:[%s1 + $0x470] sm:$0xff]
  %v193 = vld [vmem:[%s1 + $0x478] sm:$0xff]
  %v194 = vld [vmem:[%s1 + $0x480] sm:$0xff]
  %v195 = vld [vmem:[%s1 + $0x488] sm:$0xff]
  %v196 = vld [vmem:[%s1 + $0x490] sm:$0xff]
  %v197 = vld [vmem:[%s1 + $0x498] sm:$0xff]
  %v198 = vld [vmem:[%s1 + $0x4a0] sm:$0xff]
  %v199 = vld [vmem:[%s1 + $0x4a8] sm:$0xff]
  %v200 = vld [vmem:[%s1 + $0x4b0] sm:$0xff]
  %v201 = vld [vmem:[%s1 + $0x4b8] sm:$0xff]
  %v202 = vld [vmem:[%s1 + $0x4c0] sm:$0xff]
  %v203 = vld [vmem:[%s1 + $0x4c8] sm:$0xff]
  %v204 = vld [vmem:[%s1 + $0x4d0] sm:$0xff]
  %v205 = vld [vmem:[%s1 + $0x4d8] sm:$0xff]
  %v206 = vld [vmem:[%s1 + $0x4e0] sm:$0xff]
  %v207 = vld [vmem:[%s1 + $0x4e8] sm:$0xff]
  %v208 = vld [vmem:[%s1 + $0x4f0] sm:$0xff]
  %v209 = vld [vmem:[%s1 + $0x4f8] sm:$0xff]
  %v210 = vld [vmem:[%s1 + $0x500] sm:$0xff]
  %v211 = vld [vmem:[%s1 + $0x508] sm:$0xff]
  %v212 = vld [vmem:[%s1 + $0x510] sm:$0xff]
  %v213 = vld [vmem:[%s1 + $0x518] sm:$0xff]
  %v214 = vld [vmem:[%s1 + $0x520] sm:$0xff]
  %v215 = vld [vmem:[%s1 + $0x528] sm:$0xff]
  %v216 = vld [vmem:[%s1 + $0x530] sm:$0xff]
  %v217 = vld [vmem:[%s1 + $0x538] sm:$0xff]
  %v218 = vld [vmem:[%s1 + $0x540] sm:$0xff]
  %v219 = vld [vmem:[%s1 + $0x548] sm:$0xff]
  %v220 = vld [vmem:[%s1 + $0x550] sm:$0xff]
  %v221 = vld [vmem:[%s1 + $0x558] sm:$0xff]
  %v222 = vld [vmem:[%s1 + $0x560] sm:$0xff]
  %v223 = vld [vmem:[%s1 + $0x568] sm:$0xff]
  %v224 = vld [vmem:[%s1 + $0x570] sm:$0xff]
  %v225 = vld [vmem:[%s1 + $0x578] sm:$0xff]
  %v226 = vld [vmem:[%s1 + $0x580] sm:$0xff]
  %v227 = vld [vmem:[%s1 + $0x588] sm:$0xff]
  %v228 = vld [vmem:[%s1 + $0x590] sm:$0xff]
  %v229 = vld [vmem:[%s1 + $0x598] sm:$0xff]
  %v230 = vld [vmem:[%s1 + $0x5a0] sm:$0xff]
  %v231 = vld [vmem:[%s1 + $0x5a8] sm:$0xff]
  %v232 = vld [vmem:[%s1 + $0x5b0] sm:$0xff]
  %v233 = vld [vmem:[%s1 + $0x5b8] sm:$0xff]
  %v234 = vld [vmem:[%s1 + $0x5c0] sm:$0xff]
  %v235 = vld [vmem:[%s1 + $0x5c8] sm:$0xff]
  %v236 = vld [vmem:[%s1 + $0x5d0] sm:$0xff]
  %v237 = vld [vmem:[%s1 + $0x5d8] sm:$0xff]
  %v238 = vld [vmem:[%s1 + $0x5e0] sm:$0xff]
  %v239 = vld [vmem:[%s1 + $0x5e8] sm:$0xff]
  %v240 = vld [vmem:[%s1 + $0x5f0] sm:$0xff]
  %v241 = vld [vmem:[%s1 + $0x5f8] sm:$0xff]
  %v242 = vld [vmem:[%s1 + $0x600] sm:$0xff]
  %v243 = vld [vmem:[%s1 + $0x608] sm:$0xff]
  %v244 = vld [vmem:[%s1 + $0x610] sm:$0xff]
  %v245 = vld [vmem:[%s1 + $0x618] sm:$0xff]
  %v246 = vld [vmem:[%s1 + $0x620] sm:$0xff]
  %v247 = vld [vmem:[%s1 + $0x628] sm:$0xff]
  %v248 = vld [vmem:[%s1 + $0x630] sm:$0xff]
  %v249 = vld [vmem:[%s1 + $0x638] sm:$0xff]
  %v250 = vld [vmem:[%s1 + $0x640] sm:$0xff]
  %v251 = vld [vmem:[%s1 + $0x648] sm:$0xff]
  %v252 = vld [vmem:[%s1 + $0x650] sm:$0xff]
  %v253 = vld [vmem:[%s1 + $0x658] sm:$0xff]
  %v254 = vld [vmem:[%s1 + $0x660] sm:$0xff]
  %v255 = vld [vmem:[%s1 + $0x668] sm:$0xff]
  %v256 = vld [vmem:[%s1 + $0x670] sm:$0xff]
  %v257 = vld [vmem:[%s1 + $0x678] sm:$0xff]
  %v258 = vld [vmem:[%s1 + $0x680] sm:$0xff]
  %v259 = vld [vmem:[%s1 + $0x688] sm:$0xff]
  %v260 = vld [vmem:[%s1 + $0x690] sm:$0xff]
  %v261 = vld [vmem:[%s1 + $0x698] sm:$0xff]
  %v262 = vld [vmem:[%s1 + $0x6a0] sm:$0xff]
  %v263 = vld [vmem:[%s1 + $0x6a8] sm:$0xff]
  %v264 = vld [vmem:[%s1 + $0x6b0] sm:$0xff]
  %v265 = vld [vmem:[%s1 + $0x6b8] sm:$0xff]
  %v266 = vld [vmem:[%s1 + $0x6c0] sm:$0xff]
  %v267 = vld [vmem:[%s1 + $0x6c8] sm:$0xff]
  %v268 = vld [vmem:[%s1 + $0x6d0] sm:$0xff]
  %v269 = vld [vmem:[%s1 + $0x6d8] sm:$0xff]
  %v270 = vld [vmem:[%s1 + $0x6e0] sm:$0xff]
  %v271 = vld [vmem:[%s1 + $0x6e8] sm:$0xff]
  %v272 = vld [vmem:[%s1 + $0x6f0] sm:$0xff]
  %v273 = vld [vmem:[%s1 + $0x6f8] sm:$0xff]
  %v274 = vld [vmem:[%s1 + $0x700] sm:$0xff]
  %v275 = vld [vmem:[%s1 + $0x708] sm:$0xff]
  %v276 = vld [vmem:[%s1 + $0x710] sm:$0xff]
  %v277 = vld [vmem:[%s1 + $0x718] sm:$0xff]
  %v278 = vld [vmem:[%s1 + $0x720] sm:$0xff]
  %v279 = vld [vmem:[%s1 + $0x728] sm:$0xff]
  %v280 = vld [vmem:[%s1 + $0x730] sm:$0xff]
  %v281 = vld [vmem:[%s1 + $0x738] sm:$0xff]
  %v282 = vld [vmem:[%s1 + $0x740] sm:$0xff]
  %v283 = vld [vmem:[%s1 + $0x748] sm:$0xff]
  %v284 = vld [vmem:[%s1 + $0x750] sm:$0xff]
  %v285 = vld [vmem:[%s1 + $0x758] sm:$0xff]
  %v286 = vld [vmem:[%s1 + $0x760] sm:$0xff]
  %v287 = vld [vmem:[%s1 + $0x768] sm:$0xff]
  %v288 = vld [vmem:[%s1 + $0x770] sm:$0xff]
  %v289 = vld [vmem:[%s1 + $0x778] sm:$0xff]
  %v290 = vld [vmem:[%s1 + $0x780] sm:$0xff]
  %v291 = vld [vmem:[%s1 + $0x788] sm:$0xff]
  %v292 = vld [vmem:[%s1 + $0x790] sm:$0xff]
  %v293 = vld [vmem:[%s1 + $0x798] sm:$0xff]
  %v294 = vld [vmem:[%s1 + $0x7a0] sm:$0xff]
  %v295 = vld [vmem:[%s1 + $0x7a8] sm:$0xff]
  %v296 = vld [vmem:[%s1 + $0x7b0] sm:$0xff]
  %v297 = vld [vmem:[%s1 + $0x7b8] sm:$0xff]
  %v298 = vld [vmem:[%s1 + $0x7c0] sm:$0xff]
  %v299 = vld [vmem:[%s1 + $0x7c8] sm:$0xff]
  %v300 = vld [vmem:[%s1 + $0x7d0] sm:$0xff]
  %v301 = vld [vmem:[%s1 + $0x7d8] sm:$0xff]
  %v302 = vld [vmem:[%s1 + $0x7e0] sm:$0xff]
  %v303 = vld [vmem:[%s1 + $0x7e8] sm:$0xff]
  %v304 = vld [vmem:[%s1 + $0x7f0] sm:$0xff]
  %v305 = vld [vmem:[%s1 + $0x7f8] sm:$0xff]
  %v306 = vld [vmem:[%s2] sm:$0xff]
  %v307 = vld [vmem:[%s2 + $0x8] sm:$0xff]
  %v310 = vlaneseq
  %v311 = vshrl.u32 %v310, 7
  %v312 = vsub.s32 0, %v311
  %v313 = vrot.slane %v306, %v312
  %v314 = vlaneseq
  %v315 = vshrl.u32 %v314, 7
  %v316 = vsub.s32 1, %v315
  %v317 = vrot.slane %v306, %v316
  %v318 = vlaneseq
  %v319 = vshrl.u32 %v318, 7
  %v320 = vsub.s32 2, %v319
  %v321 = vrot.slane %v306, %v320
  %v322 = vlaneseq
  %v323 = vshrl.u32 %v322, 7
  %v324 = vsub.s32 3, %v323
  %v325 = vrot.slane %v306, %v324
  %v326 = vlaneseq
  %v327 = vshrl.u32 %v326, 7
  %v328 = vsub.s32 4, %v327
  %v329 = vrot.slane %v306, %v328
  %v330 = vlaneseq
  %v331 = vshrl.u32 %v330, 7
  %v332 = vsub.s32 5, %v331
  %v333 = vrot.slane %v306, %v332
  %v334 = vlaneseq
  %v335 = vshrl.u32 %v334, 7
  %v336 = vsub.s32 6, %v335
  %v337 = vrot.slane %v306, %v336
  %v338 = vlaneseq
  %v339 = vshrl.u32 %v338, 7
  %v340 = vsub.s32 7, %v339
  %v341 = vrot.slane %v306, %v340
  %v342 = vlaneseq
  %v343 = vshrl.u32 %v342, 7
  %v344 = vsub.s32 0, %v343
  %v345 = vrot.slane %v307, %v344
  %v346 = vlaneseq
  %v347 = vshrl.u32 %v346, 7
  %v348 = vsub.s32 1, %v347
  %v349 = vrot.slane %v307, %v348
  %v350 = vlaneseq
  %v351 = vshrl.u32 %v350, 7
  %v352 = vsub.s32 2, %v351
  %v353 = vrot.slane %v307, %v352
  %v354 = vlaneseq
  %v355 = vshrl.u32 %v354, 7
  %v356 = vsub.s32 3, %v355
  %v357 = vrot.slane %v307, %v356
  %v358 = vlaneseq
  %v359 = vshrl.u32 %v358, 7
  %v360 = vsub.s32 4, %v359
  %v361 = vrot.slane %v307, %v360
  %v362 = vlaneseq
  %v363 = vshrl.u32 %v362, 7
  %v364 = vsub.s32 5, %v363
  %v365 = vrot.slane %v307, %v364
  %v366 = vlaneseq
  %v367 = vshrl.u32 %v366, 7
  %v368 = vsub.s32 6, %v367
  %v369 = vrot.slane %v307, %v368
  %v370 = vlaneseq
  %v371 = vshrl.u32 %v370, 7
  %v372 = vsub.s32 7, %v371
  %v373 = vrot.slane %v307, %v372
  %v646 = vunpack.c.l.b16 %v50
  %v647 = vunpack.c.h.b16 %v50
  %v648 = vunpack.c.l.b16 %v51
  %v649 = vunpack.c.h.b16 %v51
  %v650 = vunpack.c.l.b16 %v52
  %v651 = vunpack.c.h.b16 %v52
  %v652 = vunpack.c.l.b16 %v53
  %v653 = vunpack.c.h.b16 %v53
  %v654 = vunpack.c.l.b16 %v54
  %v655 = vunpack.c.h.b16 %v54
  %v656 = vunpack.c.l.b16 %v55
  %v657 = vunpack.c.h.b16 %v55
  %v658 = vunpack.c.l.b16 %v56
  %v659 = vunpack.c.h.b16 %v56
  %v660 = vunpack.c.l.b16 %v57
  %v661 = vunpack.c.h.b16 %v57
  %v662 = vunpack.c.l.b16 %v58
  %v663 = vunpack.c.h.b16 %v58
  %v664 = vunpack.c.l.b16 %v59
  %v665 = vunpack.c.h.b16 %v59
  %v666 = vunpack.c.l.b16 %v60
  %v667 = vunpack.c.h.b16 %v60
  %v668 = vunpack.c.l.b16 %v61
  %v669 = vunpack.c.h.b16 %v61
  %v670 = vunpack.c.l.b16 %v62
  %v671 = vunpack.c.h.b16 %v62
  %v672 = vunpack.c.l.b16 %v63
  %v673 = vunpack.c.h.b16 %v63
  %v674 = vunpack.c.l.b16 %v64
  %v675 = vunpack.c.h.b16 %v64
  %v676 = vunpack.c.l.b16 %v65
  %v677 = vunpack.c.h.b16 %v65
  %v678 = vunpack.c.l.b16 %v66
  %v679 = vunpack.c.h.b16 %v66
  %v680 = vunpack.c.l.b16 %v67
  %v681 = vunpack.c.h.b16 %v67
  %v682 = vunpack.c.l.b16 %v68
  %v683 = vunpack.c.h.b16 %v68
  %v684 = vunpack.c.l.b16 %v69
  %v685 = vunpack.c.h.b16 %v69
  %v686 = vunpack.c.l.b16 %v70
  %v687 = vunpack.c.h.b16 %v70
  %v688 = vunpack.c.l.b16 %v71
  %v689 = vunpack.c.h.b16 %v71
  %v690 = vunpack.c.l.b16 %v72
  %v691 = vunpack.c.h.b16 %v72
  %v692 = vunpack.c.l.b16 %v73
  %v693 = vunpack.c.h.b16 %v73
  %v694 = vunpack.c.l.b16 %v74
  %v695 = vunpack.c.h.b16 %v74
  %v696 = vunpack.c.l.b16 %v75
  %v697 = vunpack.c.h.b16 %v75
  %v698 = vunpack.c.l.b16 %v76
  %v699 = vunpack.c.h.b16 %v76
  %v700 = vunpack.c.l.b16 %v77
  %v701 = vunpack.c.h.b16 %v77
  %v702 = vunpack.c.l.b16 %v78
  %v703 = vunpack.c.h.b16 %v78
  %v704 = vunpack.c.l.b16 %v79
  %v705 = vunpack.c.h.b16 %v79
  %v706 = vunpack.c.l.b16 %v80
  %v707 = vunpack.c.h.b16 %v80
  %v708 = vunpack.c.l.b16 %v81
  %v709 = vunpack.c.h.b16 %v81
  %v710 = vunpack.c.l.b16 %v82
  %v711 = vunpack.c.h.b16 %v82
  %v712 = vunpack.c.l.b16 %v83
  %v713 = vunpack.c.h.b16 %v83
  %v714 = vunpack.c.l.b16 %v84
  %v715 = vunpack.c.h.b16 %v84
  %v716 = vunpack.c.l.b16 %v85
  %v717 = vunpack.c.h.b16 %v85
  %v718 = vunpack.c.l.b16 %v86
  %v719 = vunpack.c.h.b16 %v86
  %v720 = vunpack.c.l.b16 %v87
  %v721 = vunpack.c.h.b16 %v87
  %v722 = vunpack.c.l.b16 %v88
  %v723 = vunpack.c.h.b16 %v88
  %v724 = vunpack.c.l.b16 %v89
  %v725 = vunpack.c.h.b16 %v89
  %v726 = vunpack.c.l.b16 %v90
  %v727 = vunpack.c.h.b16 %v90
  %v728 = vunpack.c.l.b16 %v91
  %v729 = vunpack.c.h.b16 %v91
  %v730 = vunpack.c.l.b16 %v92
  %v731 = vunpack.c.h.b16 %v92
  %v732 = vunpack.c.l.b16 %v93
  %v733 = vunpack.c.h.b16 %v93
  %v734 = vunpack.c.l.b16 %v94
  %v735 = vunpack.c.h.b16 %v94
  %v736 = vunpack.c.l.b16 %v95
  %v737 = vunpack.c.h.b16 %v95
  %v738 = vunpack.c.l.b16 %v96
  %v739 = vunpack.c.h.b16 %v96
  %v740 = vunpack.c.l.b16 %v97
  %v741 = vunpack.c.h.b16 %v97
  %v742 = vunpack.c.l.b16 %v98
  %v743 = vunpack.c.h.b16 %v98
  %v744 = vunpack.c.l.b16 %v99
  %v745 = vunpack.c.h.b16 %v99
  %v746 = vunpack.c.l.b16 %v100
  %v747 = vunpack.c.h.b16 %v100
  %v748 = vunpack.c.l.b16 %v101
  %v749 = vunpack.c.h.b16 %v101
  %v750 = vunpack.c.l.b16 %v102
  %v751 = vunpack.c.h.b16 %v102
  %v752 = vunpack.c.l.b16 %v103
  %v753 = vunpack.c.h.b16 %v103
  %v754 = vunpack.c.l.b16 %v104
  %v755 = vunpack.c.h.b16 %v104
  %v756 = vunpack.c.l.b16 %v105
  %v757 = vunpack.c.h.b16 %v105
  %v758 = vunpack.c.l.b16 %v106
  %v759 = vunpack.c.h.b16 %v106
  %v760 = vunpack.c.l.b16 %v107
  %v761 = vunpack.c.h.b16 %v107
  %v762 = vunpack.c.l.b16 %v108
  %v763 = vunpack.c.h.b16 %v108
  %v764 = vunpack.c.l.b16 %v109
  %v765 = vunpack.c.h.b16 %v109
  %v766 = vunpack.c.l.b16 %v110
  %v767 = vunpack.c.h.b16 %v110
  %v768 = vunpack.c.l.b16 %v111
  %v769 = vunpack.c.h.b16 %v111
  %v770 = vunpack.c.l.b16 %v112
  %v771 = vunpack.c.h.b16 %v112
  %v772 = vunpack.c.l.b16 %v113
  %v773 = vunpack.c.h.b16 %v113
  %v774 = vunpack.c.l.b16 %v114
  %v775 = vunpack.c.h.b16 %v114
  %v776 = vunpack.c.l.b16 %v115
  %v777 = vunpack.c.h.b16 %v115
  %v778 = vunpack.c.l.b16 %v116
  %v779 = vunpack.c.h.b16 %v116
  %v780 = vunpack.c.l.b16 %v117
  %v781 = vunpack.c.h.b16 %v117
  %v782 = vunpack.c.l.b16 %v118
  %v783 = vunpack.c.h.b16 %v118
  %v784 = vunpack.c.l.b16 %v119
  %v785 = vunpack.c.h.b16 %v119
  %v786 = vunpack.c.l.b16 %v120
  %v787 = vunpack.c.h.b16 %v120
  %v788 = vunpack.c.l.b16 %v121
  %v789 = vunpack.c.h.b16 %v121
  %v790 = vunpack.c.l.b16 %v122
  %v791 = vunpack.c.h.b16 %v122
  %v792 = vunpack.c.l.b16 %v123
  %v793 = vunpack.c.h.b16 %v123
  %v794 = vunpack.c.l.b16 %v124
  %v795 = vunpack.c.h.b16 %v124
  %v796 = vunpack.c.l.b16 %v125
  %v797 = vunpack.c.h.b16 %v125
  %v798 = vunpack.c.l.b16 %v126
  %v799 = vunpack.c.h.b16 %v126
  %v800 = vunpack.c.l.b16 %v127
  %v801 = vunpack.c.h.b16 %v127
  %v802 = vunpack.c.l.b16 %v128
  %v803 = vunpack.c.h.b16 %v128
  %v804 = vunpack.c.l.b16 %v129
  %v805 = vunpack.c.h.b16 %v129
  %v806 = vunpack.c.l.b16 %v130
  %v807 = vunpack.c.h.b16 %v130
  %v808 = vunpack.c.l.b16 %v131
  %v809 = vunpack.c.h.b16 %v131
  %v810 = vunpack.c.l.b16 %v132
  %v811 = vunpack.c.h.b16 %v132
  %v812 = vunpack.c.l.b16 %v133
  %v813 = vunpack.c.h.b16 %v133
  %v814 = vunpack.c.l.b16 %v134
  %v815 = vunpack.c.h.b16 %v134
  %v816 = vunpack.c.l.b16 %v135
  %v817 = vunpack.c.h.b16 %v135
  %v818 = vunpack.c.l.b16 %v136
  %v819 = vunpack.c.h.b16 %v136
  %v820 = vunpack.c.l.b16 %v137
  %v821 = vunpack.c.h.b16 %v137
  %v822 = vunpack.c.l.b16 %v138
  %v823 = vunpack.c.h.b16 %v138
  %v824 = vunpack.c.l.b16 %v139
  %v825 = vunpack.c.h.b16 %v139
  %v826 = vunpack.c.l.b16 %v140
  %v827 = vunpack.c.h.b16 %v140
  %v828 = vunpack.c.l.b16 %v141
  %v829 = vunpack.c.h.b16 %v141
  %v830 = vunpack.c.l.b16 %v142
  %v831 = vunpack.c.h.b16 %v142
  %v832 = vunpack.c.l.b16 %v143
  %v833 = vunpack.c.h.b16 %v143
  %v834 = vunpack.c.l.b16 %v144
  %v835 = vunpack.c.h.b16 %v144
  %v836 = vunpack.c.l.b16 %v145
  %v837 = vunpack.c.h.b16 %v145
  %v838 = vunpack.c.l.b16 %v146
  %v839 = vunpack.c.h.b16 %v146
  %v840 = vunpack.c.l.b16 %v147
  %v841 = vunpack.c.h.b16 %v147
  %v842 = vunpack.c.l.b16 %v148
  %v843 = vunpack.c.h.b16 %v148
  %v844 = vunpack.c.l.b16 %v149
  %v845 = vunpack.c.h.b16 %v149
  %v846 = vunpack.c.l.b16 %v150
  %v847 = vunpack.c.h.b16 %v150
  %v848 = vunpack.c.l.b16 %v151
  %v849 = vunpack.c.h.b16 %v151
  %v850 = vunpack.c.l.b16 %v152
  %v851 = vunpack.c.h.b16 %v152
  %v852 = vunpack.c.l.b16 %v153
  %v853 = vunpack.c.h.b16 %v153
  %v854 = vunpack.c.l.b16 %v154
  %v855 = vunpack.c.h.b16 %v154
  %v856 = vunpack.c.l.b16 %v155
  %v857 = vunpack.c.h.b16 %v155
  %v858 = vunpack.c.l.b16 %v156
  %v859 = vunpack.c.h.b16 %v156
  %v860 = vunpack.c.l.b16 %v157
  %v861 = vunpack.c.h.b16 %v157
  %v862 = vunpack.c.l.b16 %v158
  %v863 = vunpack.c.h.b16 %v158
  %v864 = vunpack.c.l.b16 %v159
  %v865 = vunpack.c.h.b16 %v159
  %v866 = vunpack.c.l.b16 %v160
  %v867 = vunpack.c.h.b16 %v160
  %v868 = vunpack.c.l.b16 %v161
  %v869 = vunpack.c.h.b16 %v161
  %v870 = vunpack.c.l.b16 %v162
  %v871 = vunpack.c.h.b16 %v162
  %v872 = vunpack.c.l.b16 %v163
  %v873 = vunpack.c.h.b16 %v163
  %v874 = vunpack.c.l.b16 %v164
  %v875 = vunpack.c.h.b16 %v164
  %v876 = vunpack.c.l.b16 %v165
  %v877 = vunpack.c.h.b16 %v165
  %v878 = vunpack.c.l.b16 %v166
  %v879 = vunpack.c.h.b16 %v166
  %v880 = vunpack.c.l.b16 %v167
  %v881 = vunpack.c.h.b16 %v167
  %v882 = vunpack.c.l.b16 %v168
  %v883 = vunpack.c.h.b16 %v168
  %v884 = vunpack.c.l.b16 %v169
  %v885 = vunpack.c.h.b16 %v169
  %v886 = vunpack.c.l.b16 %v170
  %v887 = vunpack.c.h.b16 %v170
  %v888 = vunpack.c.l.b16 %v171
  %v889 = vunpack.c.h.b16 %v171
  %v890 = vunpack.c.l.b16 %v172
  %v891 = vunpack.c.h.b16 %v172
  %v892 = vunpack.c.l.b16 %v173
  %v893 = vunpack.c.h.b16 %v173
  %v894 = vunpack.c.l.b16 %v174
  %v895 = vunpack.c.h.b16 %v174
  %v896 = vunpack.c.l.b16 %v175
  %v897 = vunpack.c.h.b16 %v175
  %v898 = vunpack.c.l.b16 %v176
  %v899 = vunpack.c.h.b16 %v176
  %v900 = vunpack.c.l.b16 %v177
  %v901 = vunpack.c.h.b16 %v177
  %v902 = vunpack.c.l.b16 %v178
  %v903 = vunpack.c.h.b16 %v178
  %v904 = vunpack.c.l.b16 %v179
  %v905 = vunpack.c.h.b16 %v179
  %v906 = vunpack.c.l.b16 %v180
  %v907 = vunpack.c.h.b16 %v180
  %v908 = vunpack.c.l.b16 %v181
  %v909 = vunpack.c.h.b16 %v181
  %v910 = vunpack.c.l.b16 %v182
  %v911 = vunpack.c.h.b16 %v182
  %v912 = vunpack.c.l.b16 %v183
  %v913 = vunpack.c.h.b16 %v183
  %v914 = vunpack.c.l.b16 %v184
  %v915 = vunpack.c.h.b16 %v184
  %v916 = vunpack.c.l.b16 %v185
  %v917 = vunpack.c.h.b16 %v185
  %v918 = vunpack.c.l.b16 %v186
  %v919 = vunpack.c.h.b16 %v186
  %v920 = vunpack.c.l.b16 %v187
  %v921 = vunpack.c.h.b16 %v187
  %v922 = vunpack.c.l.b16 %v188
  %v923 = vunpack.c.h.b16 %v188
  %v924 = vunpack.c.l.b16 %v189
  %v925 = vunpack.c.h.b16 %v189
  %v926 = vunpack.c.l.b16 %v190
  %v927 = vunpack.c.h.b16 %v190
  %v928 = vunpack.c.l.b16 %v191
  %v929 = vunpack.c.h.b16 %v191
  %v930 = vunpack.c.l.b16 %v192
  %v931 = vunpack.c.h.b16 %v192
  %v932 = vunpack.c.l.b16 %v193
  %v933 = vunpack.c.h.b16 %v193
  %v934 = vunpack.c.l.b16 %v194
  %v935 = vunpack.c.h.b16 %v194
  %v936 = vunpack.c.l.b16 %v195
  %v937 = vunpack.c.h.b16 %v195
  %v938 = vunpack.c.l.b16 %v196
  %v939 = vunpack.c.h.b16 %v196
  %v940 = vunpack.c.l.b16 %v197
  %v941 = vunpack.c.h.b16 %v197
  %v942 = vunpack.c.l.b16 %v198
  %v943 = vunpack.c.h.b16 %v198
  %v944 = vunpack.c.l.b16 %v199
  %v945 = vunpack.c.h.b16 %v199
  %v946 = vunpack.c.l.b16 %v200
  %v947 = vunpack.c.h.b16 %v200
  %v948 = vunpack.c.l.b16 %v201
  %v949 = vunpack.c.h.b16 %v201
  %v950 = vunpack.c.l.b16 %v202
  %v951 = vunpack.c.h.b16 %v202
  %v952 = vunpack.c.l.b16 %v203
  %v953 = vunpack.c.h.b16 %v203
  %v954 = vunpack.c.l.b16 %v204
  %v955 = vunpack.c.h.b16 %v204
  %v956 = vunpack.c.l.b16 %v205
  %v957 = vunpack.c.h.b16 %v205
  %v958 = vunpack.c.l.b16 %v206
  %v959 = vunpack.c.h.b16 %v206
  %v960 = vunpack.c.l.b16 %v207
  %v961 = vunpack.c.h.b16 %v207
  %v962 = vunpack.c.l.b16 %v208
  %v963 = vunpack.c.h.b16 %v208
  %v964 = vunpack.c.l.b16 %v209
  %v965 = vunpack.c.h.b16 %v209
  %v966 = vunpack.c.l.b16 %v210
  %v967 = vunpack.c.h.b16 %v210
  %v968 = vunpack.c.l.b16 %v211
  %v969 = vunpack.c.h.b16 %v211
  %v970 = vunpack.c.l.b16 %v212
  %v971 = vunpack.c.h.b16 %v212
  %v972 = vunpack.c.l.b16 %v213
  %v973 = vunpack.c.h.b16 %v213
  %v974 = vunpack.c.l.b16 %v214
  %v975 = vunpack.c.h.b16 %v214
  %v976 = vunpack.c.l.b16 %v215
  %v977 = vunpack.c.h.b16 %v215
  %v978 = vunpack.c.l.b16 %v216
  %v979 = vunpack.c.h.b16 %v216
  %v980 = vunpack.c.l.b16 %v217
  %v981 = vunpack.c.h.b16 %v217
  %v982 = vunpack.c.l.b16 %v218
  %v983 = vunpack.c.h.b16 %v218
  %v984 = vunpack.c.l.b16 %v219
  %v985 = vunpack.c.h.b16 %v219
  %v986 = vunpack.c.l.b16 %v220
  %v987 = vunpack.c.h.b16 %v220
  %v988 = vunpack.c.l.b16 %v221
  %v989 = vunpack.c.h.b16 %v221
  %v990 = vunpack.c.l.b16 %v222
  %v991 = vunpack.c.h.b16 %v222
  %v992 = vunpack.c.l.b16 %v223
  %v993 = vunpack.c.h.b16 %v223
  %v994 = vunpack.c.l.b16 %v224
  %v995 = vunpack.c.h.b16 %v224
  %v996 = vunpack.c.l.b16 %v225
  %v997 = vunpack.c.h.b16 %v225
  %v998 = vunpack.c.l.b16 %v226
  %v999 = vunpack.c.h.b16 %v226
  %v1000 = vunpack.c.l.b16 %v227
  %v1001 = vunpack.c.h.b16 %v227
  %v1002 = vunpack.c.l.b16 %v228
  %v1003 = vunpack.c.h.b16 %v228
  %v1004 = vunpack.c.l.b16 %v229
  %v1005 = vunpack.c.h.b16 %v229
  %v1006 = vunpack.c.l.b16 %v230
  %v1007 = vunpack.c.h.b16 %v230
  %v1008 = vunpack.c.l.b16 %v231
  %v1009 = vunpack.c.h.b16 %v231
  %v1010 = vunpack.c.l.b16 %v232
  %v1011 = vunpack.c.h.b16 %v232
  %v1012 = vunpack.c.l.b16 %v233
  %v1013 = vunpack.c.h.b16 %v233
  %v1014 = vunpack.c.l.b16 %v234
  %v1015 = vunpack.c.h.b16 %v234
  %v1016 = vunpack.c.l.b16 %v235
  %v1017 = vunpack.c.h.b16 %v235
  %v1018 = vunpack.c.l.b16 %v236
  %v1019 = vunpack.c.h.b16 %v236
  %v1020 = vunpack.c.l.b16 %v237
  %v1021 = vunpack.c.h.b16 %v237
  %v1022 = vunpack.c.l.b16 %v238
  %v1023 = vunpack.c.h.b16 %v238
  %v1024 = vunpack.c.l.b16 %v239
  %v1025 = vunpack.c.h.b16 %v239
  %v1026 = vunpack.c.l.b16 %v240
  %v1027 = vunpack.c.h.b16 %v240
  %v1028 = vunpack.c.l.b16 %v241
  %v1029 = vunpack.c.h.b16 %v241
  %v1030 = vunpack.c.l.b16 %v242
  %v1031 = vunpack.c.h.b16 %v242
  %v1032 = vunpack.c.l.b16 %v243
  %v1033 = vunpack.c.h.b16 %v243
  %v1034 = vunpack.c.l.b16 %v244
  %v1035 = vunpack.c.h.b16 %v244
  %v1036 = vunpack.c.l.b16 %v245
  %v1037 = vunpack.c.h.b16 %v245
  %v1038 = vunpack.c.l.b16 %v246
  %v1039 = vunpack.c.h.b16 %v246
  %v1040 = vunpack.c.l.b16 %v247
  %v1041 = vunpack.c.h.b16 %v247
  %v1042 = vunpack.c.l.b16 %v248
  %v1043 = vunpack.c.h.b16 %v248
  %v1044 = vunpack.c.l.b16 %v249
  %v1045 = vunpack.c.h.b16 %v249
  %v1046 = vunpack.c.l.b16 %v250
  %v1047 = vunpack.c.h.b16 %v250
  %v1048 = vunpack.c.l.b16 %v251
  %v1049 = vunpack.c.h.b16 %v251
  %v1050 = vunpack.c.l.b16 %v252
  %v1051 = vunpack.c.h.b16 %v252
  %v1052 = vunpack.c.l.b16 %v253
  %v1053 = vunpack.c.h.b16 %v253
  %v1054 = vunpack.c.l.b16 %v254
  %v1055 = vunpack.c.h.b16 %v254
  %v1056 = vunpack.c.l.b16 %v255
  %v1057 = vunpack.c.h.b16 %v255
  %v1058 = vunpack.c.l.b16 %v256
  %v1059 = vunpack.c.h.b16 %v256
  %v1060 = vunpack.c.l.b16 %v257
  %v1061 = vunpack.c.h.b16 %v257
  %v1062 = vunpack.c.l.b16 %v258
  %v1063 = vunpack.c.h.b16 %v258
  %v1064 = vunpack.c.l.b16 %v259
  %v1065 = vunpack.c.h.b16 %v259
  %v1066 = vunpack.c.l.b16 %v260
  %v1067 = vunpack.c.h.b16 %v260
  %v1068 = vunpack.c.l.b16 %v261
  %v1069 = vunpack.c.h.b16 %v261
  %v1070 = vunpack.c.l.b16 %v262
  %v1071 = vunpack.c.h.b16 %v262
  %v1072 = vunpack.c.l.b16 %v263
  %v1073 = vunpack.c.h.b16 %v263
  %v1074 = vunpack.c.l.b16 %v264
  %v1075 = vunpack.c.h.b16 %v264
  %v1076 = vunpack.c.l.b16 %v265
  %v1077 = vunpack.c.h.b16 %v265
  %v1078 = vunpack.c.l.b16 %v266
  %v1079 = vunpack.c.h.b16 %v266
  %v1080 = vunpack.c.l.b16 %v267
  %v1081 = vunpack.c.h.b16 %v267
  %v1082 = vunpack.c.l.b16 %v268
  %v1083 = vunpack.c.h.b16 %v268
  %v1084 = vunpack.c.l.b16 %v269
  %v1085 = vunpack.c.h.b16 %v269
  %v1086 = vunpack.c.l.b16 %v270
  %v1087 = vunpack.c.h.b16 %v270
  %v1088 = vunpack.c.l.b16 %v271
  %v1089 = vunpack.c.h.b16 %v271
  %v1090 = vunpack.c.l.b16 %v272
  %v1091 = vunpack.c.h.b16 %v272
  %v1092 = vunpack.c.l.b16 %v273
  %v1093 = vunpack.c.h.b16 %v273
  %v1094 = vunpack.c.l.b16 %v274
  %v1095 = vunpack.c.h.b16 %v274
  %v1096 = vunpack.c.l.b16 %v275
  %v1097 = vunpack.c.h.b16 %v275
  %v1098 = vunpack.c.l.b16 %v276
  %v1099 = vunpack.c.h.b16 %v276
  %v1100 = vunpack.c.l.b16 %v277
  %v1101 = vunpack.c.h.b16 %v277
  %v1102 = vunpack.c.l.b16 %v278
  %v1103 = vunpack.c.h.b16 %v278
  %v1104 = vunpack.c.l.b16 %v279
  %v1105 = vunpack.c.h.b16 %v279
  %v1106 = vunpack.c.l.b16 %v280
  %v1107 = vunpack.c.h.b16 %v280
  %v1108 = vunpack.c.l.b16 %v281
  %v1109 = vunpack.c.h.b16 %v281
  %v1110 = vunpack.c.l.b16 %v282
  %v1111 = vunpack.c.h.b16 %v282
  %v1112 = vunpack.c.l.b16 %v283
  %v1113 = vunpack.c.h.b16 %v283
  %v1114 = vunpack.c.l.b16 %v284
  %v1115 = vunpack.c.h.b16 %v284
  %v1116 = vunpack.c.l.b16 %v285
  %v1117 = vunpack.c.h.b16 %v285
  %v1118 = vunpack.c.l.b16 %v286
  %v1119 = vunpack.c.h.b16 %v286
  %v1120 = vunpack.c.l.b16 %v287
  %v1121 = vunpack.c.h.b16 %v287
  %v1122 = vunpack.c.l.b16 %v288
  %v1123 = vunpack.c.h.b16 %v288
  %v1124 = vunpack.c.l.b16 %v289
  %v1125 = vunpack.c.h.b16 %v289
  %v1126 = vunpack.c.l.b16 %v290
  %v1127 = vunpack.c.h.b16 %v290
  %v1128 = vunpack.c.l.b16 %v291
  %v1129 = vunpack.c.h.b16 %v291
  %v1130 = vunpack.c.l.b16 %v292
  %v1131 = vunpack.c.h.b16 %v292
  %v1132 = vunpack.c.l.b16 %v293
  %v1133 = vunpack.c.h.b16 %v293
  %v1134 = vunpack.c.l.b16 %v294
  %v1135 = vunpack.c.h.b16 %v294
  %v1136 = vunpack.c.l.b16 %v295
  %v1137 = vunpack.c.h.b16 %v295
  %v1138 = vunpack.c.l.b16 %v296
  %v1139 = vunpack.c.h.b16 %v296
  %v1140 = vunpack.c.l.b16 %v297
  %v1141 = vunpack.c.h.b16 %v297
  %v1142 = vunpack.c.l.b16 %v298
  %v1143 = vunpack.c.h.b16 %v298
  %v1144 = vunpack.c.l.b16 %v299
  %v1145 = vunpack.c.h.b16 %v299
  %v1146 = vunpack.c.l.b16 %v300
  %v1147 = vunpack.c.h.b16 %v300
  %v1148 = vunpack.c.l.b16 %v301
  %v1149 = vunpack.c.h.b16 %v301
  %v1150 = vunpack.c.l.b16 %v302
  %v1151 = vunpack.c.h.b16 %v302
  %v1152 = vunpack.c.l.b16 %v303
  %v1153 = vunpack.c.h.b16 %v303
  %v1154 = vunpack.c.l.b16 %v304
  %v1155 = vunpack.c.h.b16 %v304
  %v1156 = vunpack.c.l.b16 %v305
  %v1157 = vunpack.c.h.b16 %v305
  %v1158 = vpack.c.b16 %v662, %v646
  %v1159 = vpack.c.b16 %v663, %v647
  %v1160 = vpack.c.b16 %v664, %v648
  %v1161 = vpack.c.b16 %v665, %v649
  %v1162 = vpack.c.b16 %v666, %v650
  %v1163 = vpack.c.b16 %v667, %v651
  %v1164 = vpack.c.b16 %v668, %v652
  %v1165 = vpack.c.b16 %v669, %v653
  %v1166 = vpack.c.b16 %v670, %v654
  %v1167 = vpack.c.b16 %v671, %v655
  %v1168 = vpack.c.b16 %v672, %v656
  %v1169 = vpack.c.b16 %v673, %v657
  %v1170 = vpack.c.b16 %v674, %v658
  %v1171 = vpack.c.b16 %v675, %v659
  %v1172 = vpack.c.b16 %v676, %v660
  %v1173 = vpack.c.b16 %v677, %v661
  %v1174 = vpack.c.b16 %v694, %v678
  %v1175 = vpack.c.b16 %v695, %v679
  %v1176 = vpack.c.b16 %v696, %v680
  %v1177 = vpack.c.b16 %v697, %v681
  %v1178 = vpack.c.b16 %v698, %v682
  %v1179 = vpack.c.b16 %v699, %v683
  %v1180 = vpack.c.b16 %v700, %v684
  %v1181 = vpack.c.b16 %v701, %v685
  %v1182 = vpack.c.b16 %v702, %v686
  %v1183 = vpack.c.b16 %v703, %v687
  %v1184 = vpack.c.b16 %v704, %v688
  %v1185 = vpack.c.b16 %v705, %v689
  %v1186 = vpack.c.b16 %v706, %v690
  %v1187 = vpack.c.b16 %v707, %v691
  %v1188 = vpack.c.b16 %v708, %v692
  %v1189 = vpack.c.b16 %v709, %v693
  %v1190 = vpack.c.b16 %v726, %v710
  %v1191 = vpack.c.b16 %v727, %v711
  %v1192 = vpack.c.b16 %v728, %v712
  %v1193 = vpack.c.b16 %v729, %v713
  %v1194 = vpack.c.b16 %v730, %v714
  %v1195 = vpack.c.b16 %v731, %v715
  %v1196 = vpack.c.b16 %v732, %v716
  %v1197 = vpack.c.b16 %v733, %v717
  %v1198 = vpack.c.b16 %v734, %v718
  %v1199 = vpack.c.b16 %v735, %v719
  %v1200 = vpack.c.b16 %v736, %v720
  %v1201 = vpack.c.b16 %v737, %v721
  %v1202 = vpack.c.b16 %v738, %v722
  %v1203 = vpack.c.b16 %v739, %v723
  %v1204 = vpack.c.b16 %v740, %v724
  %v1205 = vpack.c.b16 %v741, %v725
  %v1206 = vpack.c.b16 %v758, %v742
  %v1207 = vpack.c.b16 %v759, %v743
  %v1208 = vpack.c.b16 %v760, %v744
  %v1209 = vpack.c.b16 %v761, %v745
  %v1210 = vpack.c.b16 %v762, %v746
  %v1211 = vpack.c.b16 %v763, %v747
  %v1212 = vpack.c.b16 %v764, %v748
  %v1213 = vpack.c.b16 %v765, %v749
  %v1214 = vpack.c.b16 %v766, %v750
  %v1215 = vpack.c.b16 %v767, %v751
  %v1216 = vpack.c.b16 %v768, %v752
  %v1217 = vpack.c.b16 %v769, %v753
  %v1218 = vpack.c.b16 %v770, %v754
  %v1219 = vpack.c.b16 %v771, %v755
  %v1220 = vpack.c.b16 %v772, %v756
  %v1221 = vpack.c.b16 %v773, %v757
  %v1222 = vpack.c.b16 %v790, %v774
  %v1223 = vpack.c.b16 %v791, %v775
  %v1224 = vpack.c.b16 %v792, %v776
  %v1225 = vpack.c.b16 %v793, %v777
  %v1226 = vpack.c.b16 %v794, %v778
  %v1227 = vpack.c.b16 %v795, %v779
  %v1228 = vpack.c.b16 %v796, %v780
  %v1229 = vpack.c.b16 %v797, %v781
  %v1230 = vpack.c.b16 %v798, %v782
  %v1231 = vpack.c.b16 %v799, %v783
  %v1232 = vpack.c.b16 %v800, %v784
  %v1233 = vpack.c.b16 %v801, %v785
  %v1234 = vpack.c.b16 %v802, %v786
  %v1235 = vpack.c.b16 %v803, %v787
  %v1236 = vpack.c.b16 %v804, %v788
  %v1237 = vpack.c.b16 %v805, %v789
  %v1238 = vpack.c.b16 %v822, %v806
  %v1239 = vpack.c.b16 %v823, %v807
  %v1240 = vpack.c.b16 %v824, %v808
  %v1241 = vpack.c.b16 %v825, %v809
  %v1242 = vpack.c.b16 %v826, %v810
  %v1243 = vpack.c.b16 %v827, %v811
  %v1244 = vpack.c.b16 %v828, %v812
  %v1245 = vpack.c.b16 %v829, %v813
  %v1246 = vpack.c.b16 %v830, %v814
  %v1247 = vpack.c.b16 %v831, %v815
  %v1248 = vpack.c.b16 %v832, %v816
  %v1249 = vpack.c.b16 %v833, %v817
  %v1250 = vpack.c.b16 %v834, %v818
  %v1251 = vpack.c.b16 %v835, %v819
  %v1252 = vpack.c.b16 %v836, %v820
  %v1253 = vpack.c.b16 %v837, %v821
  %v1254 = vpack.c.b16 %v854, %v838
  %v1255 = vpack.c.b16 %v855, %v839
  %v1256 = vpack.c.b16 %v856, %v840
  %v1257 = vpack.c.b16 %v857, %v841
  %v1258 = vpack.c.b16 %v858, %v842
  %v1259 = vpack.c.b16 %v859, %v843
  %v1260 = vpack.c.b16 %v860, %v844
  %v1261 = vpack.c.b16 %v861, %v845
  %v1262 = vpack.c.b16 %v862, %v846
  %v1263 = vpack.c.b16 %v863, %v847
  %v1264 = vpack.c.b16 %v864, %v848
  %v1265 = vpack.c.b16 %v865, %v849
  %v1266 = vpack.c.b16 %v866, %v850
  %v1267 = vpack.c.b16 %v867, %v851
  %v1268 = vpack.c.b16 %v868, %v852
  %v1269 = vpack.c.b16 %v869, %v853
  %v1270 = vpack.c.b16 %v886, %v870
  %v1271 = vpack.c.b16 %v887, %v871
  %v1272 = vpack.c.b16 %v888, %v872
  %v1273 = vpack.c.b16 %v889, %v873
  %v1274 = vpack.c.b16 %v890, %v874
  %v1275 = vpack.c.b16 %v891, %v875
  %v1276 = vpack.c.b16 %v892, %v876
  %v1277 = vpack.c.b16 %v893, %v877
  %v1278 = vpack.c.b16 %v894, %v878
  %v1279 = vpack.c.b16 %v895, %v879
  %v1280 = vpack.c.b16 %v896, %v880
  %v1281 = vpack.c.b16 %v897, %v881
  %v1282 = vpack.c.b16 %v898, %v882
  %v1283 = vpack.c.b16 %v899, %v883
  %v1284 = vpack.c.b16 %v900, %v884
  %v1285 = vpack.c.b16 %v901, %v885
  %v1286 = vpack.c.b16 %v918, %v902
  %v1287 = vpack.c.b16 %v919, %v903
  %v1288 = vpack.c.b16 %v920, %v904
  %v1289 = vpack.c.b16 %v921, %v905
  %v1290 = vpack.c.b16 %v922, %v906
  %v1291 = vpack.c.b16 %v923, %v907
  %v1292 = vpack.c.b16 %v924, %v908
  %v1293 = vpack.c.b16 %v925, %v909
  %v1294 = vpack.c.b16 %v926, %v910
  %v1295 = vpack.c.b16 %v927, %v911
  %v1296 = vpack.c.b16 %v928, %v912
  %v1297 = vpack.c.b16 %v929, %v913
  %v1298 = vpack.c.b16 %v930, %v914
  %v1299 = vpack.c.b16 %v931, %v915
  %v1300 = vpack.c.b16 %v932, %v916
  %v1301 = vpack.c.b16 %v933, %v917
  %v1302 = vpack.c.b16 %v950, %v934
  %v1303 = vpack.c.b16 %v951, %v935
  %v1304 = vpack.c.b16 %v952, %v936
  %v1305 = vpack.c.b16 %v953, %v937
  %v1306 = vpack.c.b16 %v954, %v938
  %v1307 = vpack.c.b16 %v955, %v939
  %v1308 = vpack.c.b16 %v956, %v940
  %v1309 = vpack.c.b16 %v957, %v941
  %v1310 = vpack.c.b16 %v958, %v942
  %v1311 = vpack.c.b16 %v959, %v943
  %v1312 = vpack.c.b16 %v960, %v944
  %v1313 = vpack.c.b16 %v961, %v945
  %v1314 = vpack.c.b16 %v962, %v946
  %v1315 = vpack.c.b16 %v963, %v947
  %v1316 = vpack.c.b16 %v964, %v948
  %v1317 = vpack.c.b16 %v965, %v949
  %v1318 = vpack.c.b16 %v982, %v966
  %v1319 = vpack.c.b16 %v983, %v967
  %v1320 = vpack.c.b16 %v984, %v968
  %v1321 = vpack.c.b16 %v985, %v969
  %v1322 = vpack.c.b16 %v986, %v970
  %v1323 = vpack.c.b16 %v987, %v971
  %v1324 = vpack.c.b16 %v988, %v972
  %v1325 = vpack.c.b16 %v989, %v973
  %v1326 = vpack.c.b16 %v990, %v974
  %v1327 = vpack.c.b16 %v991, %v975
  %v1328 = vpack.c.b16 %v992, %v976
  %v1329 = vpack.c.b16 %v993, %v977
  %v1330 = vpack.c.b16 %v994, %v978
  %v1331 = vpack.c.b16 %v995, %v979
  %v1332 = vpack.c.b16 %v996, %v980
  %v1333 = vpack.c.b16 %v997, %v981
  %v1334 = vpack.c.b16 %v1014, %v998
  %v1335 = vpack.c.b16 %v1015, %v999
  %v1336 = vpack.c.b16 %v1016, %v1000
  %v1337 = vpack.c.b16 %v1017, %v1001
  %v1338 = vpack.c.b16 %v1018, %v1002
  %v1339 = vpack.c.b16 %v1019, %v1003
  %v1340 = vpack.c.b16 %v1020, %v1004
  %v1341 = vpack.c.b16 %v1021, %v1005
  %v1342 = vpack.c.b16 %v1022, %v1006
  %v1343 = vpack.c.b16 %v1023, %v1007
  %v1344 = vpack.c.b16 %v1024, %v1008
  %v1345 = vpack.c.b16 %v1025, %v1009
  %v1346 = vpack.c.b16 %v1026, %v1010
  %v1347 = vpack.c.b16 %v1027, %v1011
  %v1348 = vpack.c.b16 %v1028, %v1012
  %v1349 = vpack.c.b16 %v1029, %v1013
  %v1350 = vpack.c.b16 %v1046, %v1030
  %v1351 = vpack.c.b16 %v1047, %v1031
  %v1352 = vpack.c.b16 %v1048, %v1032
  %v1353 = vpack.c.b16 %v1049, %v1033
  %v1354 = vpack.c.b16 %v1050, %v1034
  %v1355 = vpack.c.b16 %v1051, %v1035
  %v1356 = vpack.c.b16 %v1052, %v1036
  %v1357 = vpack.c.b16 %v1053, %v1037
  %v1358 = vpack.c.b16 %v1054, %v1038
  %v1359 = vpack.c.b16 %v1055, %v1039
  %v1360 = vpack.c.b16 %v1056, %v1040
  %v1361 = vpack.c.b16 %v1057, %v1041
  %v1362 = vpack.c.b16 %v1058, %v1042
  %v1363 = vpack.c.b16 %v1059, %v1043
  %v1364 = vpack.c.b16 %v1060, %v1044
  %v1365 = vpack.c.b16 %v1061, %v1045
  %v1366 = vpack.c.b16 %v1078, %v1062
  %v1367 = vpack.c.b16 %v1079, %v1063
  %v1368 = vpack.c.b16 %v1080, %v1064
  %v1369 = vpack.c.b16 %v1081, %v1065
  %v1370 = vpack.c.b16 %v1082, %v1066
  %v1371 = vpack.c.b16 %v1083, %v1067
  %v1372 = vpack.c.b16 %v1084, %v1068
  %v1373 = vpack.c.b16 %v1085, %v1069
  %v1374 = vpack.c.b16 %v1086, %v1070
  %v1375 = vpack.c.b16 %v1087, %v1071
  %v1376 = vpack.c.b16 %v1088, %v1072
  %v1377 = vpack.c.b16 %v1089, %v1073
  %v1378 = vpack.c.b16 %v1090, %v1074
  %v1379 = vpack.c.b16 %v1091, %v1075
  %v1380 = vpack.c.b16 %v1092, %v1076
  %v1381 = vpack.c.b16 %v1093, %v1077
  %v1382 = vpack.c.b16 %v1110, %v1094
  %v1383 = vpack.c.b16 %v1111, %v1095
  %v1384 = vpack.c.b16 %v1112, %v1096
  %v1385 = vpack.c.b16 %v1113, %v1097
  %v1386 = vpack.c.b16 %v1114, %v1098
  %v1387 = vpack.c.b16 %v1115, %v1099
  %v1388 = vpack.c.b16 %v1116, %v1100
  %v1389 = vpack.c.b16 %v1117, %v1101
  %v1390 = vpack.c.b16 %v1118, %v1102
  %v1391 = vpack.c.b16 %v1119, %v1103
  %v1392 = vpack.c.b16 %v1120, %v1104
  %v1393 = vpack.c.b16 %v1121, %v1105
  %v1394 = vpack.c.b16 %v1122, %v1106
  %v1395 = vpack.c.b16 %v1123, %v1107
  %v1396 = vpack.c.b16 %v1124, %v1108
  %v1397 = vpack.c.b16 %v1125, %v1109
  %v1398 = vpack.c.b16 %v1142, %v1126
  %v1399 = vpack.c.b16 %v1143, %v1127
  %v1400 = vpack.c.b16 %v1144, %v1128
  %v1401 = vpack.c.b16 %v1145, %v1129
  %v1402 = vpack.c.b16 %v1146, %v1130
  %v1403 = vpack.c.b16 %v1147, %v1131
  %v1404 = vpack.c.b16 %v1148, %v1132
  %v1405 = vpack.c.b16 %v1149, %v1133
  %v1406 = vpack.c.b16 %v1150, %v1134
  %v1407 = vpack.c.b16 %v1151, %v1135
  %v1408 = vpack.c.b16 %v1152, %v1136
  %v1409 = vpack.c.b16 %v1153, %v1137
  %v1410 = vpack.c.b16 %v1154, %v1138
  %v1411 = vpack.c.b16 %v1155, %v1139
  %v1412 = vpack.c.b16 %v1156, %v1140
  %v1413 = vpack.c.b16 %v1157, %v1141
  %1670 = vmatprep.subr.bf16.mxu0 %v1159
  %1671 = vmatpush1.bf16.msra.mxu0 %v1158
  %1672 = vmatprep.subr.bf16.mxu0 %v1175
  %1673 = vmatpush1.bf16.msra.mxu0 %v1174
  %1674 = vmatprep.subr.bf16.mxu0 %v1191
  %1675 = vmatpush1.bf16.msra.mxu0 %v1190
  %1676 = vmatprep.subr.bf16.mxu0 %v1207
  %1677 = vmatpush1.bf16.msra.mxu0 %v1206
  %1678 = vmatprep.subr.bf16.mxu0 %v1223
  %1679 = vmatpush1.bf16.msra.mxu0 %v1222
  %1680 = vmatprep.subr.bf16.mxu0 %v1239
  %1681 = vmatpush1.bf16.msra.mxu0 %v1238
  %1682 = vmatprep.subr.bf16.mxu0 %v1255
  %1683 = vmatpush1.bf16.msra.mxu0 %v1254
  %1684 = vmatprep.subr.bf16.mxu0 %v1271
  %1685 = vmatpush1.bf16.msra.mxu0 %v1270
  %1686 = vmatprep.subr.bf16.mxu0 %v1287
  %1687 = vmatpush1.bf16.msra.mxu0 %v1286
  %1688 = vmatprep.subr.bf16.mxu0 %v1303
  %1689 = vmatpush1.bf16.msra.mxu0 %v1302
  %1690 = vmatprep.subr.bf16.mxu0 %v1319
  %1691 = vmatpush1.bf16.msra.mxu0 %v1318
  %1692 = vmatprep.subr.bf16.mxu0 %v1335
  %1693 = vmatpush1.bf16.msra.mxu0 %v1334
  %1694 = vmatprep.subr.bf16.mxu0 %v1351
  %1695 = vmatpush1.bf16.msra.mxu0 %v1350
  %1696 = vmatprep.subr.bf16.mxu0 %v1367
  %1697 = vmatpush1.bf16.msra.mxu0 %v1366
  %1698 = vmatprep.subr.bf16.mxu0 %v1383
  %1699 = vmatpush1.bf16.msra.mxu0 %v1382
  %1700 = vmatprep.subr.bf16.mxu0 %v1399
  %1701 = vmatpush1.bf16.msra.mxu0 %v1398
  %1702 = vmatprep.mubr.bf16.mxu0 %v43
  %1703 = vmatmul.mubr.bf16.gmra.mrb[0].mxu0 %v42
  %v1704 = vpop.f32.mrb[0].mxu0
  %v1705 = vadd.f32 %v313, %v1704
  %v1706 = vpop.f32.mrb[0].mxu0
  %v1707 = vadd.f32 %v317, %v1706
  %v1708 = vpop.f32.mrb[0].mxu0
  %v1709 = vadd.f32 %v313, %v1708
  %v1710 = vpop.f32.mrb[0].mxu0
  %v1711 = vadd.f32 %v317, %v1710
  %1712 = vmatprep.mubr.bf16.mxu0 %v45
  %1713 = vmatmul.mubr.bf16.gmra.mrb[0].mxu0 %v44
  %v1714 = vpop.f32.mrb[0].mxu0
  %v1715 = vadd.f32 %v313, %v1714
  %v1716 = vpop.f32.mrb[0].mxu0
  %v1717 = vadd.f32 %v317, %v1716
  %v1718 = vpop.f32.mrb[0].mxu0
  %v1719 = vadd.f32 %v313, %v1718
  %v1720 = vpop.f32.mrb[0].mxu0
  %v1721 = vadd.f32 %v317, %v1720
  %1722 = vmatprep.mubr.bf16.mxu0 %v47
  %1723 = vmatmul.mubr.bf16.gmra.mrb[0].mxu0 %v46
  %v1724 = vpop.f32.mrb[0].mxu0
  %v1725 = vadd.f32 %v313, %v1724
  %v1726 = vpop.f32.mrb[0].mxu0
  %v1727 = vadd.f32 %v317, %v1726
  %v1728 = vpop.f32.mrb[0].mxu0
  %v1729 = vadd.f32 %v313, %v1728
  %v1730 = vpop.f32.mrb[0].mxu0
  %v1731 = vadd.f32 %v317, %v1730
  %1732 = vmatprep.mubr.bf16.mxu0 %v49
  %1733 = vmatmul.mubr.bf16.gmra.mrb[0].mxu0 %v48
  %v1734 = vpop.f32.mrb[0].mxu0
  %v1735 = vadd.f32 %v313, %v1734
  %v1736 = vpop.f32.mrb[0].mxu0
  %v1737 = vadd.f32 %v317, %v1736
  %v1738 = vpop.f32.mrb[0].mxu0
  %v1739 = vadd.f32 %v313, %v1738
  %v1740 = vpop.f32.mrb[0].mxu0
  %v1741 = vadd.f32 %v317, %v1740
  %1742 = vdwg.mxu0
  %1743 = vmatprep.subr.bf16.mxu0 %v1161
  %1744 = vmatpush1.bf16.msra.mxu0 %v1160
  %1745 = vmatprep.subr.bf16.mxu0 %v1177
  %1746 = vmatpush1.bf16.msra.mxu0 %v1176
  %1747 = vmatprep.subr.bf16.mxu0 %v1193
  %1748 = vmatpush1.bf16.msra.mxu0 %v1192
  %1749 = vmatprep.subr.bf16.mxu0 %v1209
  %1750 = vmatpush1.bf16.msra.mxu0 %v1208
  %1751 = vmatprep.subr.bf16.mxu0 %v1225
  %1752 = vmatpush1.bf16.msra.mxu0 %v1224
  %1753 = vmatprep.subr.bf16.mxu0 %v1241
  %1754 = vmatpush1.bf16.msra.mxu0 %v1240
  %1755 = vmatprep.subr.bf16.mxu0 %v1257
  %1756 = vmatpush1.bf16.msra.mxu0 %v1256
  %1757 = vmatprep.subr.bf16.mxu0 %v1273
  %1758 = vmatpush1.bf16.msra.mxu0 %v1272
  %1759 = vmatprep.subr.bf16.mxu0 %v1289
  %1760 = vmatpush1.bf16.msra.mxu0 %v1288
  %1761 = vmatprep.subr.bf16.mxu0 %v1305
  %1762 = vmatpush1.bf16.msra.mxu0 %v1304
  %1763 = vmatprep.subr.bf16.mxu0 %v1321
  %1764 = vmatpush1.bf16.msra.mxu0 %v1320
  %1765 = vmatprep.subr.bf16.mxu0 %v1337
  %1766 = vmatpush1.bf16.msra.mxu0 %v1336
  %1767 = vmatprep.subr.bf16.mxu0 %v1353
  %1768 = vmatpush1.bf16.msra.mxu0 %v1352
  %1769 = vmatprep.subr.bf16.mxu0 %v1369
  %1770 = vmatpush1.bf16.msra.mxu0 %v1368
  %1771 = vmatprep.subr.bf16.mxu0 %v1385
  %1772 = vmatpush1.bf16.msra.mxu0 %v1384
  %1773 = vmatprep.subr.bf16.mxu0 %v1401
  %1774 = vmatpush1.bf16.msra.mxu0 %v1400
  %1775 = vmatprep.mubr.bf16.mxu0 %v43
  %1776 = vmatmul.mubr.bf16.gmra.mrb[0].mxu0 %v42
  %v1777 = vpop.f32.mrb[0].mxu0
  %v1778 = vadd.f32 %v321, %v1777
  %v1779 = vpop.f32.mrb[0].mxu0
  %v1780 = vadd.f32 %v325, %v1779
  %v1781 = vpop.f32.mrb[0].mxu0
  %v1782 = vadd.f32 %v321, %v1781
  %v1783 = vpop.f32.mrb[0].mxu0
  %v1784 = vadd.f32 %v325, %v1783
  %1785 = vmatprep.mubr.bf16.mxu0 %v45
  %1786 = vmatmul.mubr.bf16.gmra.mrb[0].mxu0 %v44
  %v1787 = vpop.f32.mrb[0].mxu0
  %v1788 = vadd.f32 %v321, %v1787
  %v1789 = vpop.f32.mrb[0].mxu0
  %v1790 = vadd.f32 %v325, %v1789
  %v1791 = vpop.f32.mrb[0].mxu0
  %v1792 = vadd.f32 %v321, %v1791
  %v1793 = vpop.f32.mrb[0].mxu0
  %v1794 = vadd.f32 %v325, %v1793
  %1795 = vmatprep.mubr.bf16.mxu0 %v47
  %1796 = vmatmul.mubr.bf16.gmra.mrb[0].mxu0 %v46
  %v1797 = vpop.f32.mrb[0].mxu0
  %v1798 = vadd.f32 %v321, %v1797
  %v1799 = vpop.f32.mrb[0].mxu0
  %v1800 = vadd.f32 %v325, %v1799
  %v1801 = vpop.f32.mrb[0].mxu0
  %v1802 = vadd.f32 %v321, %v1801
  %v1803 = vpop.f32.mrb[0].mxu0
  %v1804 = vadd.f32 %v325, %v1803
  %1805 = vmatprep.mubr.bf16.mxu0 %v49
  %1806 = vmatmul.mubr.bf16.gmra.mrb[0].mxu0 %v48
  %v1807 = vpop.f32.mrb[0].mxu0
  %v1808 = vadd.f32 %v321, %v1807
  %v1809 = vpop.f32.mrb[0].mxu0
  %v1810 = vadd.f32 %v325, %v1809
  %v1811 = vpop.f32.mrb[0].mxu0
  %v1812 = vadd.f32 %v321, %v1811
  %v1813 = vpop.f32.mrb[0].mxu0
  %v1814 = vadd.f32 %v325, %v1813
  %1815 = vdwg.mxu0
  %1816 = vmatprep.subr.bf16.mxu0 %v1163
  %1817 = vmatpush1.bf16.msra.mxu0 %v1162
  %1818 = vmatprep.subr.bf16.mxu0 %v1179
  %1819 = vmatpush1.bf16.msra.mxu0 %v1178
  %1820 = vmatprep.subr.bf16.mxu0 %v1195
  %1821 = vmatpush1.bf16.msra.mxu0 %v1194
  %1822 = vmatprep.subr.bf16.mxu0 %v1211
  %1823 = vmatpush1.bf16.msra.mxu0 %v1210
  %1824 = vmatprep.subr.bf16.mxu0 %v1227
  %1825 = vmatpush1.bf16.msra.mxu0 %v1226
  %1826 = vmatprep.subr.bf16.mxu0 %v1243
  %1827 = vmatpush1.bf16.msra.mxu0 %v1242
  %1828 = vmatprep.subr.bf16.mxu0 %v1259
  %1829 = vmatpush1.bf16.msra.mxu0 %v1258
  %1830 = vmatprep.subr.bf16.mxu0 %v1275
  %1831 = vmatpush1.bf16.msra.mxu0 %v1274
  %1832 = vmatprep.subr.bf16.mxu0 %v1291
  %1833 = vmatpush1.bf16.msra.mxu0 %v1290
  %1834 = vmatprep.subr.bf16.mxu0 %v1307
  %1835 = vmatpush1.bf16.msra.mxu0 %v1306
  %1836 = vmatprep.subr.bf16.mxu0 %v1323
  %1837 = vmatpush1.bf16.msra.mxu0 %v1322
  %1838 = vmatprep.subr.bf16.mxu0 %v1339
  %1839 = vmatpush1.bf16.msra.mxu0 %v1338
  %1840 = vmatprep.subr.bf16.mxu0 %v1355
  %1841 = vmatpush1.bf16.msra.mxu0 %v1354
  %1842 = vmatprep.subr.bf16.mxu0 %v1371
  %1843 = vmatpush1.bf16.msra.mxu0 %v1370
  %1844 = vmatprep.subr.bf16.mxu0 %v1387
  %1845 = vmatpush1.bf16.msra.mxu0 %v1386
  %1846 = vmatprep.subr.bf16.mxu0 %v1403
  %1847 = vmatpush1.bf16.msra.mxu0 %v1402
  %1848 = vmatprep.mubr.bf16.mxu0 %v43
  %1849 = vmatmul.mubr.bf16.gmra.mrb[0].mxu0 %v42
  %v1850 = vpop.f32.mrb[0].mxu0
  %v1851 = vadd.f32 %v329, %v1850
  %v1852 = vpop.f32.mrb[0].mxu0
  %v1853 = vadd.f32 %v333, %v1852
  %v1854 = vpop.f32.mrb[0].mxu0
  %v1855 = vadd.f32 %v329, %v1854
  %v1856 = vpop.f32.mrb[0].mxu0
  %v1857 = vadd.f32 %v333, %v1856
  %1858 = vmatprep.mubr.bf16.mxu0 %v45
  %1859 = vmatmul.mubr.bf16.gmra.mrb[0].mxu0 %v44
  %v1860 = vpop.f32.mrb[0].mxu0
  %v1861 = vadd.f32 %v329, %v1860
  %v1862 = vpop.f32.mrb[0].mxu0
  %v1863 = vadd.f32 %v333, %v1862
  %v1864 = vpop.f32.mrb[0].mxu0
  %v1865 = vadd.f32 %v329, %v1864
  %v1866 = vpop.f32.mrb[0].mxu0
  %v1867 = vadd.f32 %v333, %v1866
  %1868 = vmatprep.mubr.bf16.mxu0 %v47
  %1869 = vmatmul.mubr.bf16.gmra.mrb[0].mxu0 %v46
  %v1870 = vpop.f32.mrb[0].mxu0
  %v1871 = vadd.f32 %v329, %v1870
  %v1872 = vpop.f32.mrb[0].mxu0
  %v1873 = vadd.f32 %v333, %v1872
  %v1874 = vpop.f32.mrb[0].mxu0
  %v1875 = vadd.f32 %v329, %v1874
  %v1876 = vpop.f32.mrb[0].mxu0
  %v1877 = vadd.f32 %v333, %v1876
  %1878 = vmatprep.mubr.bf16.mxu0 %v49
  %1879 = vmatmul.mubr.bf16.gmra.mrb[0].mxu0 %v48
  %v1880 = vpop.f32.mrb[0].mxu0
  %v1881 = vadd.f32 %v329, %v1880
  %v1882 = vpop.f32.mrb[0].mxu0
  %v1883 = vadd.f32 %v333, %v1882
  %v1884 = vpop.f32.mrb[0].mxu0
  %v1885 = vadd.f32 %v329, %v1884
  %v1886 = vpop.f32.mrb[0].mxu0
  %v1887 = vadd.f32 %v333, %v1886
  %1888 = vdwg.mxu0
  %1889 = vmatprep.subr.bf16.mxu0 %v1165
  %1890 = vmatpush1.bf16.msra.mxu0 %v1164
  %1891 = vmatprep.subr.bf16.mxu0 %v1181
  %1892 = vmatpush1.bf16.msra.mxu0 %v1180
  %1893 = vmatprep.subr.bf16.mxu0 %v1197
  %1894 = vmatpush1.bf16.msra.mxu0 %v1196
  %1895 = vmatprep.subr.bf16.mxu0 %v1213
  %1896 = vmatpush1.bf16.msra.mxu0 %v1212
  %1897 = vmatprep.subr.bf16.mxu0 %v1229
  %1898 = vmatpush1.bf16.msra.mxu0 %v1228
  %1899 = vmatprep.subr.bf16.mxu0 %v1245
  %1900 = vmatpush1.bf16.msra.mxu0 %v1244
  %1901 = vmatprep.subr.bf16.mxu0 %v1261
  %1902 = vmatpush1.bf16.msra.mxu0 %v1260
  %1903 = vmatprep.subr.bf16.mxu0 %v1277
  %1904 = vmatpush1.bf16.msra.mxu0 %v1276
  %1905 = vmatprep.subr.bf16.mxu0 %v1293
  %1906 = vmatpush1.bf16.msra.mxu0 %v1292
  %1907 = vmatprep.subr.bf16.mxu0 %v1309
  %1908 = vmatpush1.bf16.msra.mxu0 %v1308
  %1909 = vmatprep.subr.bf16.mxu0 %v1325
  %1910 = vmatpush1.bf16.msra.mxu0 %v1324
  %1911 = vmatprep.subr.bf16.mxu0 %v1341
  %1912 = vmatpush1.bf16.msra.mxu0 %v1340
  %1913 = vmatprep.subr.bf16.mxu0 %v1357
  %1914 = vmatpush1.bf16.msra.mxu0 %v1356
  %1915 = vmatprep.subr.bf16.mxu0 %v1373
  %1916 = vmatpush1.bf16.msra.mxu0 %v1372
  %1917 = vmatprep.subr.bf16.mxu0 %v1389
  %1918 = vmatpush1.bf16.msra.mxu0 %v1388
  %1919 = vmatprep.subr.bf16.mxu0 %v1405
  %1920 = vmatpush1.bf16.msra.mxu0 %v1404
  %1921 = vmatprep.mubr.bf16.mxu0 %v43
  %1922 = vmatmul.mubr.bf16.gmra.mrb[0].mxu0 %v42
  %v1923 = vpop.f32.mrb[0].mxu0
  %v1924 = vadd.f32 %v337, %v1923
  %v1925 = vpop.f32.mrb[0].mxu0
  %v1926 = vadd.f32 %v341, %v1925
  %v1927 = vpop.f32.mrb[0].mxu0
  %v1928 = vadd.f32 %v337, %v1927
  %v1929 = vpop.f32.mrb[0].mxu0
  %v1930 = vadd.f32 %v341, %v1929
  %1931 = vmatprep.mubr.bf16.mxu0 %v45
  %1932 = vmatmul.mubr.bf16.gmra.mrb[0].mxu0 %v44
  %v1933 = vpop.f32.mrb[0].mxu0
  %v1934 = vadd.f32 %v337, %v1933
  %v1935 = vpop.f32.mrb[0].mxu0
  %v1936 = vadd.f32 %v341, %v1935
  %v1937 = vpop.f32.mrb[0].mxu0
  %v1938 = vadd.f32 %v337, %v1937
  %v1939 = vpop.f32.mrb[0].mxu0
  %v1940 = vadd.f32 %v341, %v1939
  %1941 = vmatprep.mubr.bf16.mxu0 %v47
  %1942 = vmatmul.mubr.bf16.gmra.mrb[0].mxu0 %v46
  %v1943 = vpop.f32.mrb[0].mxu0
  %v1944 = vadd.f32 %v337, %v1943
  %v1945 = vpop.f32.mrb[0].mxu0
  %v1946 = vadd.f32 %v341, %v1945
  %v1947 = vpop.f32.mrb[0].mxu0
  %v1948 = vadd.f32 %v337, %v1947
  %v1949 = vpop.f32.mrb[0].mxu0
  %v1950 = vadd.f32 %v341, %v1949
  %1951 = vmatprep.mubr.bf16.mxu0 %v49
  %1952 = vmatmul.mubr.bf16.gmra.mrb[0].mxu0 %v48
  %v1953 = vpop.f32.mrb[0].mxu0
  %v1954 = vadd.f32 %v337, %v1953
  %v1955 = vpop.f32.mrb[0].mxu0
  %v1956 = vadd.f32 %v341, %v1955
  %v1957 = vpop.f32.mrb[0].mxu0
  %v1958 = vadd.f32 %v337, %v1957
  %v1959 = vpop.f32.mrb[0].mxu0
  %v1960 = vadd.f32 %v341, %v1959
  %1961 = vdwg.mxu0
  %1962 = vmatprep.subr.bf16.mxu0 %v1167
  %1963 = vmatpush1.bf16.msra.mxu0 %v1166
  %1964 = vmatprep.subr.bf16.mxu0 %v1183
  %1965 = vmatpush1.bf16.msra.mxu0 %v1182
  %1966 = vmatprep.subr.bf16.mxu0 %v1199
  %1967 = vmatpush1.bf16.msra.mxu0 %v1198
  %1968 = vmatprep.subr.bf16.mxu0 %v1215
  %1969 = vmatpush1.bf16.msra.mxu0 %v1214
  %1970 = vmatprep.subr.bf16.mxu0 %v1231
  %1971 = vmatpush1.bf16.msra.mxu0 %v1230
  %1972 = vmatprep.subr.bf16.mxu0 %v1247
  %1973 = vmatpush1.bf16.msra.mxu0 %v1246
  %1974 = vmatprep.subr.bf16.mxu0 %v1263
  %1975 = vmatpush1.bf16.msra.mxu0 %v1262
  %1976 = vmatprep.subr.bf16.mxu0 %v1279
  %1977 = vmatpush1.bf16.msra.mxu0 %v1278
  %1978 = vmatprep.subr.bf16.mxu0 %v1295
  %1979 = vmatpush1.bf16.msra.mxu0 %v1294
  %1980 = vmatprep.subr.bf16.mxu0 %v1311
  %1981 = vmatpush1.bf16.msra.mxu0 %v1310
  %1982 = vmatprep.subr.bf16.mxu0 %v1327
  %1983 = vmatpush1.bf16.msra.mxu0 %v1326
  %1984 = vmatprep.subr.bf16.mxu0 %v1343
  %1985 = vmatpush1.bf16.msra.mxu0 %v1342
  %1986 = vmatprep.subr.bf16.mxu0 %v1359
  %1987 = vmatpush1.bf16.msra.mxu0 %v1358
  %1988 = vmatprep.subr.bf16.mxu0 %v1375
  %1989 = vmatpush1.bf16.msra.mxu0 %v1374
  %1990 = vmatprep.subr.bf16.mxu0 %v1391
  %1991 = vmatpush1.bf16.msra.mxu0 %v1390
  %1992 = vmatprep.subr.bf16.mxu0 %v1407
  %1993 = vmatpush1.bf16.msra.mxu0 %v1406
  %1994 = vmatprep.mubr.bf16.mxu0 %v43
  %1995 = vmatmul.mubr.bf16.gmra.mrb[0].mxu0 %v42
  %v1996 = vpop.f32.mrb[0].mxu0
  %v1997 = vadd.f32 %v345, %v1996
  %v1998 = vpop.f32.mrb[0].mxu0
  %v1999 = vadd.f32 %v349, %v1998
  %v2000 = vpop.f32.mrb[0].mxu0
  %v2001 = vadd.f32 %v345, %v2000
  %v2002 = vpop.f32.mrb[0].mxu0
  %v2003 = vadd.f32 %v349, %v2002
  %2004 = vmatprep.mubr.bf16.mxu0 %v45
  %2005 = vmatmul.mubr.bf16.gmra.mrb[0].mxu0 %v44
  %v2006 = vpop.f32.mrb[0].mxu0
  %v2007 = vadd.f32 %v345, %v2006
  %v2008 = vpop.f32.mrb[0].mxu0
  %v2009 = vadd.f32 %v349, %v2008
  %v2010 = vpop.f32.mrb[0].mxu0
  %v2011 = vadd.f32 %v345, %v2010
  %v2012 = vpop.f32.mrb[0].mxu0
  %v2013 = vadd.f32 %v349, %v2012
  %2014 = vmatprep.mubr.bf16.mxu0 %v47
  %2015 = vmatmul.mubr.bf16.gmra.mrb[0].mxu0 %v46
  %v2016 = vpop.f32.mrb[0].mxu0
  %v2017 = vadd.f32 %v345, %v2016
  %v2018 = vpop.f32.mrb[0].mxu0
  %v2019 = vadd.f32 %v349, %v2018
  %v2020 = vpop.f32.mrb[0].mxu0
  %v2021 = vadd.f32 %v345, %v2020
  %v2022 = vpop.f32.mrb[0].mxu0
  %v2023 = vadd.f32 %v349, %v2022
  %2024 = vmatprep.mubr.bf16.mxu0 %v49
  %2025 = vmatmul.mubr.bf16.gmra.mrb[0].mxu0 %v48
  %v2026 = vpop.f32.mrb[0].mxu0
  %v2027 = vadd.f32 %v345, %v2026
  %v2028 = vpop.f32.mrb[0].mxu0
  %v2029 = vadd.f32 %v349, %v2028
  %v2030 = vpop.f32.mrb[0].mxu0
  %v2031 = vadd.f32 %v345, %v2030
  %v2032 = vpop.f32.mrb[0].mxu0
  %v2033 = vadd.f32 %v349, %v2032
  %2034 = vdwg.mxu0
  %2035 = vmatprep.subr.bf16.mxu0 %v1169
  %2036 = vmatpush1.bf16.msra.mxu0 %v1168
  %2037 = vmatprep.subr.bf16.mxu0 %v1185
  %2038 = vmatpush1.bf16.msra.mxu0 %v1184
  %2039 = vmatprep.subr.bf16.mxu0 %v1201
  %2040 = vmatpush1.bf16.msra.mxu0 %v1200
  %2041 = vmatprep.subr.bf16.mxu0 %v1217
  %2042 = vmatpush1.bf16.msra.mxu0 %v1216
  %2043 = vmatprep.subr.bf16.mxu0 %v1233
  %2044 = vmatpush1.bf16.msra.mxu0 %v1232
  %2045 = vmatprep.subr.bf16.mxu0 %v1249
  %2046 = vmatpush1.bf16.msra.mxu0 %v1248
  %2047 = vmatprep.subr.bf16.mxu0 %v1265
  %2048 = vmatpush1.bf16.msra.mxu0 %v1264
  %2049 = vmatprep.subr.bf16.mxu0 %v1281
  %2050 = vmatpush1.bf16.msra.mxu0 %v1280
  %2051 = vmatprep.subr.bf16.mxu0 %v1297
  %2052 = vmatpush1.bf16.msra.mxu0 %v1296
  %2053 = vmatprep.subr.bf16.mxu0 %v1313
  %2054 = vmatpush1.bf16.msra.mxu0 %v1312
  %2055 = vmatprep.subr.bf16.mxu0 %v1329
  %2056 = vmatpush1.bf16.msra.mxu0 %v1328
  %2057 = vmatprep.subr.bf16.mxu0 %v1345
  %2058 = vmatpush1.bf16.msra.mxu0 %v1344
  %2059 = vmatprep.subr.bf16.mxu0 %v1361
  %2060 = vmatpush1.bf16.msra.mxu0 %v1360
  %2061 = vmatprep.subr.bf16.mxu0 %v1377
  %2062 = vmatpush1.bf16.msra.mxu0 %v1376
  %2063 = vmatprep.subr.bf16.mxu0 %v1393
  %2064 = vmatpush1.bf16.msra.mxu0 %v1392
  %2065 = vmatprep.subr.bf16.mxu0 %v1409
  %2066 = vmatpush1.bf16.msra.mxu0 %v1408
  %2067 = vmatprep.mubr.bf16.mxu0 %v43
  %2068 = vmatmul.mubr.bf16.gmra.mrb[0].mxu0 %v42
  %v2069 = vpop.f32.mrb[0].mxu0
  %v2070 = vadd.f32 %v353, %v2069
  %v2071 = vpop.f32.mrb[0].mxu0
  %v2072 = vadd.f32 %v357, %v2071
  %v2073 = vpop.f32.mrb[0].mxu0
  %v2074 = vadd.f32 %v353, %v2073
  %v2075 = vpop.f32.mrb[0].mxu0
  %v2076 = vadd.f32 %v357, %v2075
  %2077 = vmatprep.mubr.bf16.mxu0 %v45
  %2078 = vmatmul.mubr.bf16.gmra.mrb[0].mxu0 %v44
  %v2079 = vpop.f32.mrb[0].mxu0
  %v2080 = vadd.f32 %v353, %v2079
  %v2081 = vpop.f32.mrb[0].mxu0
  %v2082 = vadd.f32 %v357, %v2081
  %v2083 = vpop.f32.mrb[0].mxu0
  %v2084 = vadd.f32 %v353, %v2083
  %v2085 = vpop.f32.mrb[0].mxu0
  %v2086 = vadd.f32 %v357, %v2085
  %2087 = vmatprep.mubr.bf16.mxu0 %v47
  %2088 = vmatmul.mubr.bf16.gmra.mrb[0].mxu0 %v46
  %v2089 = vpop.f32.mrb[0].mxu0
  %v2090 = vadd.f32 %v353, %v2089
  %v2091 = vpop.f32.mrb[0].mxu0
  %v2092 = vadd.f32 %v357, %v2091
  %v2093 = vpop.f32.mrb[0].mxu0
  %v2094 = vadd.f32 %v353, %v2093
  %v2095 = vpop.f32.mrb[0].mxu0
  %v2096 = vadd.f32 %v357, %v2095
  %2097 = vmatprep.mubr.bf16.mxu0 %v49
  %2098 = vmatmul.mubr.bf16.gmra.mrb[0].mxu0 %v48
  %v2099 = vpop.f32.mrb[0].mxu0
  %v2100 = vadd.f32 %v353, %v2099
  %v2101 = vpop.f32.mrb[0].mxu0
  %v2102 = vadd.f32 %v357, %v2101
  %v2103 = vpop.f32.mrb[0].mxu0
  %v2104 = vadd.f32 %v353, %v2103
  %v2105 = vpop.f32.mrb[0].mxu0
  %v2106 = vadd.f32 %v357, %v2105
  %2107 = vdwg.mxu0
  %2108 = vmatprep.subr.bf16.mxu0 %v1171
  %2109 = vmatpush1.bf16.msra.mxu0 %v1170
  %2110 = vmatprep.subr.bf16.mxu0 %v1187
  %2111 = vmatpush1.bf16.msra.mxu0 %v1186
  %2112 = vmatprep.subr.bf16.mxu0 %v1203
  %2113 = vmatpush1.bf16.msra.mxu0 %v1202
  %2114 = vmatprep.subr.bf16.mxu0 %v1219
  %2115 = vmatpush1.bf16.msra.mxu0 %v1218
  %2116 = vmatprep.subr.bf16.mxu0 %v1235
  %2117 = vmatpush1.bf16.msra.mxu0 %v1234
  %2118 = vmatprep.subr.bf16.mxu0 %v1251
  %2119 = vmatpush1.bf16.msra.mxu0 %v1250
  %2120 = vmatprep.subr.bf16.mxu0 %v1267
  %2121 = vmatpush1.bf16.msra.mxu0 %v1266
  %2122 = vmatprep.subr.bf16.mxu0 %v1283
  %2123 = vmatpush1.bf16.msra.mxu0 %v1282
  %2124 = vmatprep.subr.bf16.mxu0 %v1299
  %2125 = vmatpush1.bf16.msra.mxu0 %v1298
  %2126 = vmatprep.subr.bf16.mxu0 %v1315
  %2127 = vmatpush1.bf16.msra.mxu0 %v1314
  %2128 = vmatprep.subr.bf16.mxu0 %v1331
  %2129 = vmatpush1.bf16.msra.mxu0 %v1330
  %2130 = vmatprep.subr.bf16.mxu0 %v1347
  %2131 = vmatpush1.bf16.msra.mxu0 %v1346
  %2132 = vmatprep.subr.bf16.mxu0 %v1363
  %2133 = vmatpush1.bf16.msra.mxu0 %v1362
  %2134 = vmatprep.subr.bf16.mxu0 %v1379
  %2135 = vmatpush1.bf16.msra.mxu0 %v1378
  %2136 = vmatprep.subr.bf16.mxu0 %v1395
  %2137 = vmatpush1.bf16.msra.mxu0 %v1394
  %2138 = vmatprep.subr.bf16.mxu0 %v1411
  %2139 = vmatpush1.bf16.msra.mxu0 %v1410
  %2140 = vmatprep.mubr.bf16.mxu0 %v43
  %2141 = vmatmul.mubr.bf16.gmra.mrb[0].mxu0 %v42
  %v2142 = vpop.f32.mrb[0].mxu0
  %v2143 = vadd.f32 %v361, %v2142
  %v2144 = vpop.f32.mrb[0].mxu0
  %v2145 = vadd.f32 %v365, %v2144
  %v2146 = vpop.f32.mrb[0].mxu0
  %v2147 = vadd.f32 %v361, %v2146
  %v2148 = vpop.f32.mrb[0].mxu0
  %v2149 = vadd.f32 %v365, %v2148
  %2150 = vmatprep.mubr.bf16.mxu0 %v45
  %2151 = vmatmul.mubr.bf16.gmra.mrb[0].mxu0 %v44
  %v2152 = vpop.f32.mrb[0].mxu0
  %v2153 = vadd.f32 %v361, %v2152
  %v2154 = vpop.f32.mrb[0].mxu0
  %v2155 = vadd.f32 %v365, %v2154
  %v2156 = vpop.f32.mrb[0].mxu0
  %v2157 = vadd.f32 %v361, %v2156
  %v2158 = vpop.f32.mrb[0].mxu0
  %v2159 = vadd.f32 %v365, %v2158
  %2160 = vmatprep.mubr.bf16.mxu0 %v47
  %2161 = vmatmul.mubr.bf16.gmra.mrb[0].mxu0 %v46
  %v2162 = vpop.f32.mrb[0].mxu0
  %v2163 = vadd.f32 %v361, %v2162
  %v2164 = vpop.f32.mrb[0].mxu0
  %v2165 = vadd.f32 %v365, %v2164
  %v2166 = vpop.f32.mrb[0].mxu0
  %v2167 = vadd.f32 %v361, %v2166
  %v2168 = vpop.f32.mrb[0].mxu0
  %v2169 = vadd.f32 %v365, %v2168
  %2170 = vmatprep.mubr.bf16.mxu0 %v49
  %2171 = vmatmul.mubr.bf16.gmra.mrb[0].mxu0 %v48
  %v2172 = vpop.f32.mrb[0].mxu0
  %v2173 = vadd.f32 %v361, %v2172
  %v2174 = vpop.f32.mrb[0].mxu0
  %v2175 = vadd.f32 %v365, %v2174
  %v2176 = vpop.f32.mrb[0].mxu0
  %v2177 = vadd.f32 %v361, %v2176
  %v2178 = vpop.f32.mrb[0].mxu0
  %v2179 = vadd.f32 %v365, %v2178
  %2180 = vdwg.mxu0
  %2181 = vmatprep.subr.bf16.mxu0 %v1173
  %2182 = vmatpush1.bf16.msra.mxu0 %v1172
  %2183 = vmatprep.subr.bf16.mxu0 %v1189
  %2184 = vmatpush1.bf16.msra.mxu0 %v1188
  %2185 = vmatprep.subr.bf16.mxu0 %v1205
  %2186 = vmatpush1.bf16.msra.mxu0 %v1204
  %2187 = vmatprep.subr.bf16.mxu0 %v1221
  %2188 = vmatpush1.bf16.msra.mxu0 %v1220
  %2189 = vmatprep.subr.bf16.mxu0 %v1237
  %2190 = vmatpush1.bf16.msra.mxu0 %v1236
  %2191 = vmatprep.subr.bf16.mxu0 %v1253
  %2192 = vmatpush1.bf16.msra.mxu0 %v1252
  %2193 = vmatprep.subr.bf16.mxu0 %v1269
  %2194 = vmatpush1.bf16.msra.mxu0 %v1268
  %2195 = vmatprep.subr.bf16.mxu0 %v1285
  %2196 = vmatpush1.bf16.msra.mxu0 %v1284
  %2197 = vmatprep.subr.bf16.mxu0 %v1301
  %2198 = vmatpush1.bf16.msra.mxu0 %v1300
  %2199 = vmatprep.subr.bf16.mxu0 %v1317
  %2200 = vmatpush1.bf16.msra.mxu0 %v1316
  %2201 = vmatprep.subr.bf16.mxu0 %v1333
  %2202 = vmatpush1.bf16.msra.mxu0 %v1332
  %2203 = vmatprep.subr.bf16.mxu0 %v1349
  %2204 = vmatpush1.bf16.msra.mxu0 %v1348
  %2205 = vmatprep.subr.bf16.mxu0 %v1365
  %2206 = vmatpush1.bf16.msra.mxu0 %v1364
  %2207 = vmatprep.subr.bf16.mxu0 %v1381
  %2208 = vmatpush1.bf16.msra.mxu0 %v1380
  %2209 = vmatprep.subr.bf16.mxu0 %v1397
  %2210 = vmatpush1.bf16.msra.mxu0 %v1396
  %2211 = vmatprep.subr.bf16.mxu0 %v1413
  %2212 = vmatpush1.bf16.msra.mxu0 %v1412
  %2213 = vmatprep.mubr.bf16.mxu0 %v43
  %2214 = vmatmul.mubr.bf16.gmra.mrb[0].mxu0 %v42
  %v2215 = vpop.f32.mrb[0].mxu0
  %v2216 = vadd.f32 %v369, %v2215
  %v2217 = vpop.f32.mrb[0].mxu0
  %v2218 = vadd.f32 %v373, %v2217
  %v2219 = vpop.f32.mrb[0].mxu0
  %v2220 = vadd.f32 %v369, %v2219
  %v2221 = vpop.f32.mrb[0].mxu0
  %v2222 = vadd.f32 %v373, %v2221
  %2223 = vmatprep.mubr.bf16.mxu0 %v45
  %2224 = vmatmul.mubr.bf16.gmra.mrb[0].mxu0 %v44
  %v2225 = vpop.f32.mrb[0].mxu0
  %v2226 = vadd.f32 %v369, %v2225
  %v2227 = vpop.f32.mrb[0].mxu0
  %v2228 = vadd.f32 %v373, %v2227
  %v2229 = vpop.f32.mrb[0].mxu0
  %v2230 = vadd.f32 %v369, %v2229
  %v2231 = vpop.f32.mrb[0].mxu0
  %v2232 = vadd.f32 %v373, %v2231
  %2233 = vmatprep.mubr.bf16.mxu0 %v47
  %2234 = vmatmul.mubr.bf16.gmra.mrb[0].mxu0 %v46
  %v2235 = vpop.f32.mrb[0].mxu0
  %v2236 = vadd.f32 %v369, %v2235
  %v2237 = vpop.f32.mrb[0].mxu0
  %v2238 = vadd.f32 %v373, %v2237
  %v2239 = vpop.f32.mrb[0].mxu0
  %v2240 = vadd.f32 %v369, %v2239
  %v2241 = vpop.f32.mrb[0].mxu0
  %v2242 = vadd.f32 %v373, %v2241
  %2243 = vmatprep.mubr.bf16.mxu0 %v49
  %2244 = vmatmul.mubr.bf16.gmra.mrb[0].mxu0 %v48
  %v2245 = vpop.f32.mrb[0].mxu0
  %v2246 = vadd.f32 %v369, %v2245
  %v2247 = vpop.f32.mrb[0].mxu0
  %v2248 = vadd.f32 %v373, %v2247
  %v2249 = vpop.f32.mrb[0].mxu0
  %v2250 = vadd.f32 %v369, %v2249
  %v2251 = vpop.f32.mrb[0].mxu0
  %v2252 = vadd.f32 %v373, %v2251
  %2253 = vdwg.mxu0
  %v2254 = vmax.f32 %v1705, 0.0
  %v2255 = vmax.f32 %v1707, 0.0
  %v2256 = vmax.f32 %v1778, 0.0
  %v2257 = vmax.f32 %v1780, 0.0
  %v2258 = vmax.f32 %v1851, 0.0
  %v2259 = vmax.f32 %v1853, 0.0
  %v2260 = vmax.f32 %v1924, 0.0
  %v2261 = vmax.f32 %v1926, 0.0
  %v2262 = vmax.f32 %v1997, 0.0
  %v2263 = vmax.f32 %v1999, 0.0
  %v2264 = vmax.f32 %v2070, 0.0
  %v2265 = vmax.f32 %v2072, 0.0
  %v2266 = vmax.f32 %v2143, 0.0
  %v2267 = vmax.f32 %v2145, 0.0
  %v2268 = vmax.f32 %v2216, 0.0
  %v2269 = vmax.f32 %v2218, 0.0
  %v2270 = vmax.f32 %v1709, 0.0
  %v2271 = vmax.f32 %v1711, 0.0
  %v2272 = vmax.f32 %v1782, 0.0
  %v2273 = vmax.f32 %v1784, 0.0
  %v2274 = vmax.f32 %v1855, 0.0
  %v2275 = vmax.f32 %v1857, 0.0
  %v2276 = vmax.f32 %v1928, 0.0
  %v2277 = vmax.f32 %v1930, 0.0
  %v2278 = vmax.f32 %v2001, 0.0
  %v2279 = vmax.f32 %v2003, 0.0
  %v2280 = vmax.f32 %v2074, 0.0
  %v2281 = vmax.f32 %v2076, 0.0
  %v2282 = vmax.f32 %v2147, 0.0
  %v2283 = vmax.f32 %v2149, 0.0
  %v2284 = vmax.f32 %v2220, 0.0
  %v2285 = vmax.f32 %v2222, 0.0
  %v2286 = vmax.f32 %v1715, 0.0
  %v2287 = vmax.f32 %v1717, 0.0
  %v2288 = vmax.f32 %v1788, 0.0
  %v2289 = vmax.f32 %v1790, 0.0
  %v2290 = vmax.f32 %v1861, 0.0
  %v2291 = vmax.f32 %v1863, 0.0
  %v2292 = vmax.f32 %v1934, 0.0
  %v2293 = vmax.f32 %v1936, 0.0
  %v2294 = vmax.f32 %v2007, 0.0
  %v2295 = vmax.f32 %v2009, 0.0
  %v2296 = vmax.f32 %v2080, 0.0
  %v2297 = vmax.f32 %v2082, 0.0
  %v2298 = vmax.f32 %v2153, 0.0
  %v2299 = vmax.f32 %v2155, 0.0
  %v2300 = vmax.f32 %v2226, 0.0
  %v2301 = vmax.f32 %v2228, 0.0
  %v2302 = vmax.f32 %v1719, 0.0
  %v2303 = vmax.f32 %v1721, 0.0
  %v2304 = vmax.f32 %v1792, 0.0
  %v2305 = vmax.f32 %v1794, 0.0
  %v2306 = vmax.f32 %v1865, 0.0
  %v2307 = vmax.f32 %v1867, 0.0
  %v2308 = vmax.f32 %v1938, 0.0
  %v2309 = vmax.f32 %v1940, 0.0
  %v2310 = vmax.f32 %v2011, 0.0
  %v2311 = vmax.f32 %v2013, 0.0
  %v2312 = vmax.f32 %v2084, 0.0
  %v2313 = vmax.f32 %v2086, 0.0
  %v2314 = vmax.f32 %v2157, 0.0
  %v2315 = vmax.f32 %v2159, 0.0
  %v2316 = vmax.f32 %v2230, 0.0
  %v2317 = vmax.f32 %v2232, 0.0
  %v2318 = vmax.f32 %v1725, 0.0
  %v2319 = vmax.f32 %v1727, 0.0
  %v2320 = vmax.f32 %v1798, 0.0
  %v2321 = vmax.f32 %v1800, 0.0
  %v2322 = vmax.f32 %v1871, 0.0
  %v2323 = vmax.f32 %v1873, 0.0
  %v2324 = vmax.f32 %v1944, 0.0
  %v2325 = vmax.f32 %v1946, 0.0
  %v2326 = vmax.f32 %v2017, 0.0
  %v2327 = vmax.f32 %v2019, 0.0
  %v2328 = vmax.f32 %v2090, 0.0
  %v2329 = vmax.f32 %v2092, 0.0
  %v2330 = vmax.f32 %v2163, 0.0
  %v2331 = vmax.f32 %v2165, 0.0
  %v2332 = vmax.f32 %v2236, 0.0
  %v2333 = vmax.f32 %v2238, 0.0
  %v2334 = vmax.f32 %v1729, 0.0
  %v2335 = vmax.f32 %v1731, 0.0
  %v2336 = vmax.f32 %v1802, 0.0
  %v2337 = vmax.f32 %v1804, 0.0
  %v2338 = vmax.f32 %v1875, 0.0
  %v2339 = vmax.f32 %v1877, 0.0
  %v2340 = vmax.f32 %v1948, 0.0
  %v2341 = vmax.f32 %v1950, 0.0
  %v2342 = vmax.f32 %v2021, 0.0
  %v2343 = vmax.f32 %v2023, 0.0
  %v2344 = vmax.f32 %v2094, 0.0
  %v2345 = vmax.f32 %v2096, 0.0
  %v2346 = vmax.f32 %v2167, 0.0
  %v2347 = vmax.f32 %v2169, 0.0
  %v2348 = vmax.f32 %v2240, 0.0
  %v2349 = vmax.f32 %v2242, 0.0
  %v2350 = vmax.f32 %v1735, 0.0
  %v2351 = vmax.f32 %v1737, 0.0
  %v2352 = vmax.f32 %v1808, 0.0
  %v2353 = vmax.f32 %v1810, 0.0
  %v2354 = vmax.f32 %v1881, 0.0
  %v2355 = vmax.f32 %v1883, 0.0
  %v2356 = vmax.f32 %v1954, 0.0
  %v2357 = vmax.f32 %v1956, 0.0
  %v2358 = vmax.f32 %v2027, 0.0
  %v2359 = vmax.f32 %v2029, 0.0
  %v2360 = vmax.f32 %v2100, 0.0
  %v2361 = vmax.f32 %v2102, 0.0
  %v2362 = vmax.f32 %v2173, 0.0
  %v2363 = vmax.f32 %v2175, 0.0
  %v2364 = vmax.f32 %v2246, 0.0
  %v2365 = vmax.f32 %v2248, 0.0
  %v2366 = vmax.f32 %v1739, 0.0
  %v2367 = vmax.f32 %v1741, 0.0
  %v2368 = vmax.f32 %v1812, 0.0
  %v2369 = vmax.f32 %v1814, 0.0
  %v2370 = vmax.f32 %v1885, 0.0
  %v2371 = vmax.f32 %v1887, 0.0
  %v2372 = vmax.f32 %v1958, 0.0
  %v2373 = vmax.f32 %v1960, 0.0
  %v2374 = vmax.f32 %v2031, 0.0
  %v2375 = vmax.f32 %v2033, 0.0
  %v2376 = vmax.f32 %v2104, 0.0
  %v2377 = vmax.f32 %v2106, 0.0
  %v2378 = vmax.f32 %v2177, 0.0
  %v2379 = vmax.f32 %v2179, 0.0
  %v2380 = vmax.f32 %v2250, 0.0
  %v2381 = vmax.f32 %v2252, 0.0
  %v2382 = vpack.c.bf16 %v2270, %v2254
  %v2383 = vpack.c.bf16 %v2271, %v2255
  %v2384 = vpack.c.bf16 %v2272, %v2256
  %v2385 = vpack.c.bf16 %v2273, %v2257
  %v2386 = vpack.c.bf16 %v2274, %v2258
  %v2387 = vpack.c.bf16 %v2275, %v2259
  %v2388 = vpack.c.bf16 %v2276, %v2260
  %v2389 = vpack.c.bf16 %v2277, %v2261
  %v2390 = vpack.c.bf16 %v2278, %v2262
  %v2391 = vpack.c.bf16 %v2279, %v2263
  %v2392 = vpack.c.bf16 %v2280, %v2264
  %v2393 = vpack.c.bf16 %v2281, %v2265
  %v2394 = vpack.c.bf16 %v2282, %v2266
  %v2395 = vpack.c.bf16 %v2283, %v2267
  %v2396 = vpack.c.bf16 %v2284, %v2268
  %v2397 = vpack.c.bf16 %v2285, %v2269
  %v2398 = vpack.c.bf16 %v2302, %v2286
  %v2399 = vpack.c.bf16 %v2303, %v2287
  %v2400 = vpack.c.bf16 %v2304, %v2288
  %v2401 = vpack.c.bf16 %v2305, %v2289
  %v2402 = vpack.c.bf16 %v2306, %v2290
  %v2403 = vpack.c.bf16 %v2307, %v2291
  %v2404 = vpack.c.bf16 %v2308, %v2292
  %v2405 = vpack.c.bf16 %v2309, %v2293
  %v2406 = vpack.c.bf16 %v2310, %v2294
  %v2407 = vpack.c.bf16 %v2311, %v2295
  %v2408 = vpack.c.bf16 %v2312, %v2296
  %v2409 = vpack.c.bf16 %v2313, %v2297
  %v2410 = vpack.c.bf16 %v2314, %v2298
  %v2411 = vpack.c.bf16 %v2315, %v2299
  %v2412 = vpack.c.bf16 %v2316, %v2300
  %v2413 = vpack.c.bf16 %v2317, %v2301
  %v2414 = vpack.c.bf16 %v2334, %v2318
  %v2415 = vpack.c.bf16 %v2335, %v2319
  %v2416 = vpack.c.bf16 %v2336, %v2320
  %v2417 = vpack.c.bf16 %v2337, %v2321
  %v2418 = vpack.c.bf16 %v2338, %v2322
  %v2419 = vpack.c.bf16 %v2339, %v2323
  %v2420 = vpack.c.bf16 %v2340, %v2324
  %v2421 = vpack.c.bf16 %v2341, %v2325
  %v2422 = vpack.c.bf16 %v2342, %v2326
  %v2423 = vpack.c.bf16 %v2343, %v2327
  %v2424 = vpack.c.bf16 %v2344, %v2328
  %v2425 = vpack.c.bf16 %v2345, %v2329
  %v2426 = vpack.c.bf16 %v2346, %v2330
  %v2427 = vpack.c.bf16 %v2347, %v2331
  %v2428 = vpack.c.bf16 %v2348, %v2332
  %v2429 = vpack.c.bf16 %v2349, %v2333
  %v2430 = vpack.c.bf16 %v2366, %v2350
  %v2431 = vpack.c.bf16 %v2367, %v2351
  %v2432 = vpack.c.bf16 %v2368, %v2352
  %v2433 = vpack.c.bf16 %v2369, %v2353
  %v2434 = vpack.c.bf16 %v2370, %v2354
  %v2435 = vpack.c.bf16 %v2371, %v2355
  %v2436 = vpack.c.bf16 %v2372, %v2356
  %v2437 = vpack.c.bf16 %v2373, %v2357
  %v2438 = vpack.c.bf16 %v2374, %v2358
  %v2439 = vpack.c.bf16 %v2375, %v2359
  %v2440 = vpack.c.bf16 %v2376, %v2360
  %v2441 = vpack.c.bf16 %v2377, %v2361
  %v2442 = vpack.c.bf16 %v2378, %v2362
  %v2443 = vpack.c.bf16 %v2379, %v2363
  %v2444 = vpack.c.bf16 %v2380, %v2364
  %v2445 = vpack.c.bf16 %v2381, %v2365
  %v2446 = vld [vmem:[%s3] sm:$0xff]
  %v2447 = vld [vmem:[%s3 + $0x8] sm:$0xff]
  %v2448 = vld [vmem:[%s3 + $0x10] sm:$0xff]
  %v2449 = vld [vmem:[%s3 + $0x18] sm:$0xff]
  %v2450 = vld [vmem:[%s3 + $0x20] sm:$0xff]
  %v2451 = vld [vmem:[%s3 + $0x28] sm:$0xff]
  %v2452 = vld [vmem:[%s3 + $0x30] sm:$0xff]
  %v2453 = vld [vmem:[%s3 + $0x38] sm:$0xff]
  %v2454 = vld [vmem:[%s3 + $0x40] sm:$0xff]
  %v2455 = vld [vmem:[%s3 + $0x48] sm:$0xff]
  %v2456 = vld [vmem:[%s3 + $0x50] sm:$0xff]
  %v2457 = vld [vmem:[%s3 + $0x58] sm:$0xff]
  %v2458 = vld [vmem:[%s3 + $0x60] sm:$0xff]
  %v2459 = vld [vmem:[%s3 + $0x68] sm:$0xff]
  %v2460 = vld [vmem:[%s3 + $0x70] sm:$0xff]
  %v2461 = vld [vmem:[%s3 + $0x78] sm:$0xff]
  %v2462 = vld [vmem:[%s3 + $0x80] sm:$0xff]
  %v2463 = vld [vmem:[%s3 + $0x88] sm:$0xff]
  %v2464 = vld [vmem:[%s3 + $0x90] sm:$0xff]
  %v2465 = vld [vmem:[%s3 + $0x98] sm:$0xff]
  %v2466 = vld [vmem:[%s3 + $0xa0] sm:$0xff]
  %v2467 = vld [vmem:[%s3 + $0xa8] sm:$0xff]
  %v2468 = vld [vmem:[%s3 + $0xb0] sm:$0xff]
  %v2469 = vld [vmem:[%s3 + $0xb8] sm:$0xff]
  %v2470 = vld [vmem:[%s3 + $0xc0] sm:$0xff]
  %v2471 = vld [vmem:[%s3 + $0xc8] sm:$0xff]
  %v2472 = vld [vmem:[%s3 + $0xd0] sm:$0xff]
  %v2473 = vld [vmem:[%s3 + $0xd8] sm:$0xff]
  %v2474 = vld [vmem:[%s3 + $0xe0] sm:$0xff]
  %v2475 = vld [vmem:[%s3 + $0xe8] sm:$0xff]
  %v2476 = vld [vmem:[%s3 + $0xf0] sm:$0xff]
  %v2477 = vld [vmem:[%s3 + $0xf8] sm:$0xff]
  %v2478 = vld [vmem:[%s3 + $0x100] sm:$0xff]
  %v2479 = vld [vmem:[%s3 + $0x108] sm:$0xff]
  %v2480 = vld [vmem:[%s3 + $0x110] sm:$0xff]
  %v2481 = vld [vmem:[%s3 + $0x118] sm:$0xff]
  %v2482 = vld [vmem:[%s3 + $0x120] sm:$0xff]
  %v2483 = vld [vmem:[%s3 + $0x128] sm:$0xff]
  %v2484 = vld [vmem:[%s3 + $0x130] sm:$0xff]
  %v2485 = vld [vmem:[%s3 + $0x138] sm:$0xff]
  %v2486 = vld [vmem:[%s3 + $0x140] sm:$0xff]
  %v2487 = vld [vmem:[%s3 + $0x148] sm:$0xff]
  %v2488 = vld [vmem:[%s3 + $0x150] sm:$0xff]
  %v2489 = vld [vmem:[%s3 + $0x158] sm:$0xff]
  %v2490 = vld [vmem:[%s3 + $0x160] sm:$0xff]
  %v2491 = vld [vmem:[%s3 + $0x168] sm:$0xff]
  %v2492 = vld [vmem:[%s3 + $0x170] sm:$0xff]
  %v2493 = vld [vmem:[%s3 + $0x178] sm:$0xff]
  %v2494 = vld [vmem:[%s3 + $0x180] sm:$0xff]
  %v2495 = vld [vmem:[%s3 + $0x188] sm:$0xff]
  %v2496 = vld [vmem:[%s3 + $0x190] sm:$0xff]
  %v2497 = vld [vmem:[%s3 + $0x198] sm:$0xff]
  %v2498 = vld [vmem:[%s3 + $0x1a0] sm:$0xff]
  %v2499 = vld [vmem:[%s3 + $0x1a8] sm:$0xff]
  %v2500 = vld [vmem:[%s3 + $0x1b0] sm:$0xff]
  %v2501 = vld [vmem:[%s3 + $0x1b8] sm:$0xff]
  %v2502 = vld [vmem:[%s3 + $0x1c0] sm:$0xff]
  %v2503 = vld [vmem:[%s3 + $0x1c8] sm:$0xff]
  %v2504 = vld [vmem:[%s3 + $0x1d0] sm:$0xff]
  %v2505 = vld [vmem:[%s3 + $0x1d8] sm:$0xff]
  %v2506 = vld [vmem:[%s3 + $0x1e0] sm:$0xff]
  %v2507 = vld [vmem:[%s3 + $0x1e8] sm:$0xff]
  %v2508 = vld [vmem:[%s3 + $0x1f0] sm:$0xff]
  %v2509 = vld [vmem:[%s3 + $0x1f8] sm:$0xff]
  %v2510 = vld [vmem:[%s3 + $0x200] sm:$0xff]
  %v2511 = vld [vmem:[%s3 + $0x208] sm:$0xff]
  %v2512 = vld [vmem:[%s3 + $0x210] sm:$0xff]
  %v2513 = vld [vmem:[%s3 + $0x218] sm:$0xff]
  %v2514 = vld [vmem:[%s3 + $0x220] sm:$0xff]
  %v2515 = vld [vmem:[%s3 + $0x228] sm:$0xff]
  %v2516 = vld [vmem:[%s3 + $0x230] sm:$0xff]
  %v2517 = vld [vmem:[%s3 + $0x238] sm:$0xff]
  %v2518 = vld [vmem:[%s3 + $0x240] sm:$0xff]
  %v2519 = vld [vmem:[%s3 + $0x248] sm:$0xff]
  %v2520 = vld [vmem:[%s3 + $0x250] sm:$0xff]
  %v2521 = vld [vmem:[%s3 + $0x258] sm:$0xff]
  %v2522 = vld [vmem:[%s3 + $0x260] sm:$0xff]
  %v2523 = vld [vmem:[%s3 + $0x268] sm:$0xff]
  %v2524 = vld [vmem:[%s3 + $0x270] sm:$0xff]
  %v2525 = vld [vmem:[%s3 + $0x278] sm:$0xff]
  %v2526 = vld [vmem:[%s3 + $0x280] sm:$0xff]
  %v2527 = vld [vmem:[%s3 + $0x288] sm:$0xff]
  %v2528 = vld [vmem:[%s3 + $0x290] sm:$0xff]
  %v2529 = vld [vmem:[%s3 + $0x298] sm:$0xff]
  %v2530 = vld [vmem:[%s3 + $0x2a0] sm:$0xff]
  %v2531 = vld [vmem:[%s3 + $0x2a8] sm:$0xff]
  %v2532 = vld [vmem:[%s3 + $0x2b0] sm:$0xff]
  %v2533 = vld [vmem:[%s3 + $0x2b8] sm:$0xff]
  %v2534 = vld [vmem:[%s3 + $0x2c0] sm:$0xff]
  %v2535 = vld [vmem:[%s3 + $0x2c8] sm:$0xff]
  %v2536 = vld [vmem:[%s3 + $0x2d0] sm:$0xff]
  %v2537 = vld [vmem:[%s3 + $0x2d8] sm:$0xff]
  %v2538 = vld [vmem:[%s3 + $0x2e0] sm:$0xff]
  %v2539 = vld [vmem:[%s3 + $0x2e8] sm:$0xff]
  %v2540 = vld [vmem:[%s3 + $0x2f0] sm:$0xff]
  %v2541 = vld [vmem:[%s3 + $0x2f8] sm:$0xff]
  %v2542 = vld [vmem:[%s3 + $0x300] sm:$0xff]
  %v2543 = vld [vmem:[%s3 + $0x308] sm:$0xff]
  %v2544 = vld [vmem:[%s3 + $0x310] sm:$0xff]
  %v2545 = vld [vmem:[%s3 + $0x318] sm:$0xff]
  %v2546 = vld [vmem:[%s3 + $0x320] sm:$0xff]
  %v2547 = vld [vmem:[%s3 + $0x328] sm:$0xff]
  %v2548 = vld [vmem:[%s3 + $0x330] sm:$0xff]
  %v2549 = vld [vmem:[%s3 + $0x338] sm:$0xff]
  %v2550 = vld [vmem:[%s3 + $0x340] sm:$0xff]
  %v2551 = vld [vmem:[%s3 + $0x348] sm:$0xff]
  %v2552 = vld [vmem:[%s3 + $0x350] sm:$0xff]
  %v2553 = vld [vmem:[%s3 + $0x358] sm:$0xff]
  %v2554 = vld [vmem:[%s3 + $0x360] sm:$0xff]
  %v2555 = vld [vmem:[%s3 + $0x368] sm:$0xff]
  %v2556 = vld [vmem:[%s3 + $0x370] sm:$0xff]
  %v2557 = vld [vmem:[%s3 + $0x378] sm:$0xff]
  %v2558 = vld [vmem:[%s3 + $0x380] sm:$0xff]
  %v2559 = vld [vmem:[%s3 + $0x388] sm:$0xff]
  %v2560 = vld [vmem:[%s3 + $0x390] sm:$0xff]
  %v2561 = vld [vmem:[%s3 + $0x398] sm:$0xff]
  %v2562 = vld [vmem:[%s3 + $0x3a0] sm:$0xff]
  %v2563 = vld [vmem:[%s3 + $0x3a8] sm:$0xff]
  %v2564 = vld [vmem:[%s3 + $0x3b0] sm:$0xff]
  %v2565 = vld [vmem:[%s3 + $0x3b8] sm:$0xff]
  %v2566 = vld [vmem:[%s3 + $0x3c0] sm:$0xff]
  %v2567 = vld [vmem:[%s3 + $0x3c8] sm:$0xff]
  %v2568 = vld [vmem:[%s3 + $0x3d0] sm:$0xff]
  %v2569 = vld [vmem:[%s3 + $0x3d8] sm:$0xff]
  %v2570 = vld [vmem:[%s3 + $0x3e0] sm:$0xff]
  %v2571 = vld [vmem:[%s3 + $0x3e8] sm:$0xff]
  %v2572 = vld [vmem:[%s3 + $0x3f0] sm:$0xff]
  %v2573 = vld [vmem:[%s3 + $0x3f8] sm:$0xff]
  %v2574 = vld [vmem:[%s3 + $0x400] sm:$0xff]
  %v2575 = vld [vmem:[%s3 + $0x408] sm:$0xff]
  %v2576 = vld [vmem:[%s3 + $0x410] sm:$0xff]
  %v2577 = vld [vmem:[%s3 + $0x418] sm:$0xff]
  %v2578 = vld [vmem:[%s3 + $0x420] sm:$0xff]
  %v2579 = vld [vmem:[%s3 + $0x428] sm:$0xff]
  %v2580 = vld [vmem:[%s3 + $0x430] sm:$0xff]
  %v2581 = vld [vmem:[%s3 + $0x438] sm:$0xff]
  %v2582 = vld [vmem:[%s3 + $0x440] sm:$0xff]
  %v2583 = vld [vmem:[%s3 + $0x448] sm:$0xff]
  %v2584 = vld [vmem:[%s3 + $0x450] sm:$0xff]
  %v2585 = vld [vmem:[%s3 + $0x458] sm:$0xff]
  %v2586 = vld [vmem:[%s3 + $0x460] sm:$0xff]
  %v2587 = vld [vmem:[%s3 + $0x468] sm:$0xff]
  %v2588 = vld [vmem:[%s3 + $0x470] sm:$0xff]
  %v2589 = vld [vmem:[%s3 + $0x478] sm:$0xff]
  %v2590 = vld [vmem:[%s3 + $0x480] sm:$0xff]
  %v2591 = vld [vmem:[%s3 + $0x488] sm:$0xff]
  %v2592 = vld [vmem:[%s3 + $0x490] sm:$0xff]
  %v2593 = vld [vmem:[%s3 + $0x498] sm:$0xff]
  %v2594 = vld [vmem:[%s3 + $0x4a0] sm:$0xff]
  %v2595 = vld [vmem:[%s3 + $0x4a8] sm:$0xff]
  %v2596 = vld [vmem:[%s3 + $0x4b0] sm:$0xff]
  %v2597 = vld [vmem:[%s3 + $0x4b8] sm:$0xff]
  %v2598 = vld [vmem:[%s3 + $0x4c0] sm:$0xff]
  %v2599 = vld [vmem:[%s3 + $0x4c8] sm:$0xff]
  %v2600 = vld [vmem:[%s3 + $0x4d0] sm:$0xff]
  %v2601 = vld [vmem:[%s3 + $0x4d8] sm:$0xff]
  %v2602 = vld [vmem:[%s3 + $0x4e0] sm:$0xff]
  %v2603 = vld [vmem:[%s3 + $0x4e8] sm:$0xff]
  %v2604 = vld [vmem:[%s3 + $0x4f0] sm:$0xff]
  %v2605 = vld [vmem:[%s3 + $0x4f8] sm:$0xff]
  %v2606 = vld [vmem:[%s3 + $0x500] sm:$0xff]
  %v2607 = vld [vmem:[%s3 + $0x508] sm:$0xff]
  %v2608 = vld [vmem:[%s3 + $0x510] sm:$0xff]
  %v2609 = vld [vmem:[%s3 + $0x518] sm:$0xff]
  %v2610 = vld [vmem:[%s3 + $0x520] sm:$0xff]
  %v2611 = vld [vmem:[%s3 + $0x528] sm:$0xff]
  %v2612 = vld [vmem:[%s3 + $0x530] sm:$0xff]
  %v2613 = vld [vmem:[%s3 + $0x538] sm:$0xff]
  %v2614 = vld [vmem:[%s3 + $0x540] sm:$0xff]
  %v2615 = vld [vmem:[%s3 + $0x548] sm:$0xff]
  %v2616 = vld [vmem:[%s3 + $0x550] sm:$0xff]
  %v2617 = vld [vmem:[%s3 + $0x558] sm:$0xff]
  %v2618 = vld [vmem:[%s3 + $0x560] sm:$0xff]
  %v2619 = vld [vmem:[%s3 + $0x568] sm:$0xff]
  %v2620 = vld [vmem:[%s3 + $0x570] sm:$0xff]
  %v2621 = vld [vmem:[%s3 + $0x578] sm:$0xff]
  %v2622 = vld [vmem:[%s3 + $0x580] sm:$0xff]
  %v2623 = vld [vmem:[%s3 + $0x588] sm:$0xff]
  %v2624 = vld [vmem:[%s3 + $0x590] sm:$0xff]
  %v2625 = vld [vmem:[%s3 + $0x598] sm:$0xff]
  %v2626 = vld [vmem:[%s3 + $0x5a0] sm:$0xff]
  %v2627 = vld [vmem:[%s3 + $0x5a8] sm:$0xff]
  %v2628 = vld [vmem:[%s3 + $0x5b0] sm:$0xff]
  %v2629 = vld [vmem:[%s3 + $0x5b8] sm:$0xff]
  %v2630 = vld [vmem:[%s3 + $0x5c0] sm:$0xff]
  %v2631 = vld [vmem:[%s3 + $0x5c8] sm:$0xff]
  %v2632 = vld [vmem:[%s3 + $0x5d0] sm:$0xff]
  %v2633 = vld [vmem:[%s3 + $0x5d8] sm:$0xff]
  %v2634 = vld [vmem:[%s3 + $0x5e0] sm:$0xff]
  %v2635 = vld [vmem:[%s3 + $0x5e8] sm:$0xff]
  %v2636 = vld [vmem:[%s3 + $0x5f0] sm:$0xff]
  %v2637 = vld [vmem:[%s3 + $0x5f8] sm:$0xff]
  %v2638 = vld [vmem:[%s3 + $0x600] sm:$0xff]
  %v2639 = vld [vmem:[%s3 + $0x608] sm:$0xff]
  %v2640 = vld [vmem:[%s3 + $0x610] sm:$0xff]
  %v2641 = vld [vmem:[%s3 + $0x618] sm:$0xff]
  %v2642 = vld [vmem:[%s3 + $0x620] sm:$0xff]
  %v2643 = vld [vmem:[%s3 + $0x628] sm:$0xff]
  %v2644 = vld [vmem:[%s3 + $0x630] sm:$0xff]
  %v2645 = vld [vmem:[%s3 + $0x638] sm:$0xff]
  %v2646 = vld [vmem:[%s3 + $0x640] sm:$0xff]
  %v2647 = vld [vmem:[%s3 + $0x648] sm:$0xff]
  %v2648 = vld [vmem:[%s3 + $0x650] sm:$0xff]
  %v2649 = vld [vmem:[%s3 + $0x658] sm:$0xff]
  %v2650 = vld [vmem:[%s3 + $0x660] sm:$0xff]
  %v2651 = vld [vmem:[%s3 + $0x668] sm:$0xff]
  %v2652 = vld [vmem:[%s3 + $0x670] sm:$0xff]
  %v2653 = vld [vmem:[%s3 + $0x678] sm:$0xff]
  %v2654 = vld [vmem:[%s3 + $0x680] sm:$0xff]
  %v2655 = vld [vmem:[%s3 + $0x688] sm:$0xff]
  %v2656 = vld [vmem:[%s3 + $0x690] sm:$0xff]
  %v2657 = vld [vmem:[%s3 + $0x698] sm:$0xff]
  %v2658 = vld [vmem:[%s3 + $0x6a0] sm:$0xff]
  %v2659 = vld [vmem:[%s3 + $0x6a8] sm:$0xff]
  %v2660 = vld [vmem:[%s3 + $0x6b0] sm:$0xff]
  %v2661 = vld [vmem:[%s3 + $0x6b8] sm:$0xff]
  %v2662 = vld [vmem:[%s3 + $0x6c0] sm:$0xff]
  %v2663 = vld [vmem:[%s3 + $0x6c8] sm:$0xff]
  %v2664 = vld [vmem:[%s3 + $0x6d0] sm:$0xff]
  %v2665 = vld [vmem:[%s3 + $0x6d8] sm:$0xff]
  %v2666 = vld [vmem:[%s3 + $0x6e0] sm:$0xff]
  %v2667 = vld [vmem:[%s3 + $0x6e8] sm:$0xff]
  %v2668 = vld [vmem:[%s3 + $0x6f0] sm:$0xff]
  %v2669 = vld [vmem:[%s3 + $0x6f8] sm:$0xff]
  %v2670 = vld [vmem:[%s3 + $0x700] sm:$0xff]
  %v2671 = vld [vmem:[%s3 + $0x708] sm:$0xff]
  %v2672 = vld [vmem:[%s3 + $0x710] sm:$0xff]
  %v2673 = vld [vmem:[%s3 + $0x718] sm:$0xff]
  %v2674 = vld [vmem:[%s3 + $0x720] sm:$0xff]
  %v2675 = vld [vmem:[%s3 + $0x728] sm:$0xff]
  %v2676 = vld [vmem:[%s3 + $0x730] sm:$0xff]
  %v2677 = vld [vmem:[%s3 + $0x738] sm:$0xff]
  %v2678 = vld [vmem:[%s3 + $0x740] sm:$0xff]
  %v2679 = vld [vmem:[%s3 + $0x748] sm:$0xff]
  %v2680 = vld [vmem:[%s3 + $0x750] sm:$0xff]
  %v2681 = vld [vmem:[%s3 + $0x758] sm:$0xff]
  %v2682 = vld [vmem:[%s3 + $0x760] sm:$0xff]
  %v2683 = vld [vmem:[%s3 + $0x768] sm:$0xff]
  %v2684 = vld [vmem:[%s3 + $0x770] sm:$0xff]
  %v2685 = vld [vmem:[%s3 + $0x778] sm:$0xff]
  %v2686 = vld [vmem:[%s3 + $0x780] sm:$0xff]
  %v2687 = vld [vmem:[%s3 + $0x788] sm:$0xff]
  %v2688 = vld [vmem:[%s3 + $0x790] sm:$0xff]
  %v2689 = vld [vmem:[%s3 + $0x798] sm:$0xff]
  %v2690 = vld [vmem:[%s3 + $0x7a0] sm:$0xff]
  %v2691 = vld [vmem:[%s3 + $0x7a8] sm:$0xff]
  %v2692 = vld [vmem:[%s3 + $0x7b0] sm:$0xff]
  %v2693 = vld [vmem:[%s3 + $0x7b8] sm:$0xff]
  %v2694 = vld [vmem:[%s3 + $0x7c0] sm:$0xff]
  %v2695 = vld [vmem:[%s3 + $0x7c8] sm:$0xff]
  %v2696 = vld [vmem:[%s3 + $0x7d0] sm:$0xff]
  %v2697 = vld [vmem:[%s3 + $0x7d8] sm:$0xff]
  %v2698 = vld [vmem:[%s3 + $0x7e0] sm:$0xff]
  %v2699 = vld [vmem:[%s3 + $0x7e8] sm:$0xff]
  %v2700 = vld [vmem:[%s3 + $0x7f0] sm:$0xff]
  %v2701 = vld [vmem:[%s3 + $0x7f8] sm:$0xff]
  %v2702 = vld [vmem:[%s4] sm:$0x3]
  %v2704 = vlaneseq
  %v2705 = vshrl.u32 %v2704, 7
  %v2706 = vsub.s32 0, %v2705
  %v2707 = vrot.slane %v2702, %v2706
  %v2708 = vlaneseq
  %v2709 = vshrl.u32 %v2708, 7
  %v2710 = vsub.s32 1, %v2709
  %v2711 = vrot.slane %v2702, %v2710
  %v2970 = vunpack.c.l.b16 %v2446
  %v2971 = vunpack.c.h.b16 %v2446
  %v2972 = vunpack.c.l.b16 %v2447
  %v2973 = vunpack.c.h.b16 %v2447
  %v2974 = vunpack.c.l.b16 %v2448
  %v2975 = vunpack.c.h.b16 %v2448
  %v2976 = vunpack.c.l.b16 %v2449
  %v2977 = vunpack.c.h.b16 %v2449
  %v2978 = vunpack.c.l.b16 %v2450
  %v2979 = vunpack.c.h.b16 %v2450
  %v2980 = vunpack.c.l.b16 %v2451
  %v2981 = vunpack.c.h.b16 %v2451
  %v2982 = vunpack.c.l.b16 %v2452
  %v2983 = vunpack.c.h.b16 %v2452
  %v2984 = vunpack.c.l.b16 %v2453
  %v2985 = vunpack.c.h.b16 %v2453
  %v2986 = vunpack.c.l.b16 %v2454
  %v2987 = vunpack.c.h.b16 %v2454
  %v2988 = vunpack.c.l.b16 %v2455
  %v2989 = vunpack.c.h.b16 %v2455
  %v2990 = vunpack.c.l.b16 %v2456
  %v2991 = vunpack.c.h.b16 %v2456
  %v2992 = vunpack.c.l.b16 %v2457
  %v2993 = vunpack.c.h.b16 %v2457
  %v2994 = vunpack.c.l.b16 %v2458
  %v2995 = vunpack.c.h.b16 %v2458
  %v2996 = vunpack.c.l.b16 %v2459
  %v2997 = vunpack.c.h.b16 %v2459
  %v2998 = vunpack.c.l.b16 %v2460
  %v2999 = vunpack.c.h.b16 %v2460
  %v3000 = vunpack.c.l.b16 %v2461
  %v3001 = vunpack.c.h.b16 %v2461
  %v3002 = vunpack.c.l.b16 %v2462
  %v3003 = vunpack.c.h.b16 %v2462
  %v3004 = vunpack.c.l.b16 %v2463
  %v3005 = vunpack.c.h.b16 %v2463
  %v3006 = vunpack.c.l.b16 %v2464
  %v3007 = vunpack.c.h.b16 %v2464
  %v3008 = vunpack.c.l.b16 %v2465
  %v3009 = vunpack.c.h.b16 %v2465
  %v3010 = vunpack.c.l.b16 %v2466
  %v3011 = vunpack.c.h.b16 %v2466
  %v3012 = vunpack.c.l.b16 %v2467
  %v3013 = vunpack.c.h.b16 %v2467
  %v3014 = vunpack.c.l.b16 %v2468
  %v3015 = vunpack.c.h.b16 %v2468
  %v3016 = vunpack.c.l.b16 %v2469
  %v3017 = vunpack.c.h.b16 %v2469
  %v3018 = vunpack.c.l.b16 %v2470
  %v3019 = vunpack.c.h.b16 %v2470
  %v3020 = vunpack.c.l.b16 %v2471
  %v3021 = vunpack.c.h.b16 %v2471
  %v3022 = vunpack.c.l.b16 %v2472
  %v3023 = vunpack.c.h.b16 %v2472
  %v3024 = vunpack.c.l.b16 %v2473
  %v3025 = vunpack.c.h.b16 %v2473
  %v3026 = vunpack.c.l.b16 %v2474
  %v3027 = vunpack.c.h.b16 %v2474
  %v3028 = vunpack.c.l.b16 %v2475
  %v3029 = vunpack.c.h.b16 %v2475
  %v3030 = vunpack.c.l.b16 %v2476
  %v3031 = vunpack.c.h.b16 %v2476
  %v3032 = vunpack.c.l.b16 %v2477
  %v3033 = vunpack.c.h.b16 %v2477
  %v3034 = vunpack.c.l.b16 %v2478
  %v3035 = vunpack.c.h.b16 %v2478
  %v3036 = vunpack.c.l.b16 %v2479
  %v3037 = vunpack.c.h.b16 %v2479
  %v3038 = vunpack.c.l.b16 %v2480
  %v3039 = vunpack.c.h.b16 %v2480
  %v3040 = vunpack.c.l.b16 %v2481
  %v3041 = vunpack.c.h.b16 %v2481
  %v3042 = vunpack.c.l.b16 %v2482
  %v3043 = vunpack.c.h.b16 %v2482
  %v3044 = vunpack.c.l.b16 %v2483
  %v3045 = vunpack.c.h.b16 %v2483
  %v3046 = vunpack.c.l.b16 %v2484
  %v3047 = vunpack.c.h.b16 %v2484
  %v3048 = vunpack.c.l.b16 %v2485
  %v3049 = vunpack.c.h.b16 %v2485
  %v3050 = vunpack.c.l.b16 %v2486
  %v3051 = vunpack.c.h.b16 %v2486
  %v3052 = vunpack.c.l.b16 %v2487
  %v3053 = vunpack.c.h.b16 %v2487
  %v3054 = vunpack.c.l.b16 %v2488
  %v3055 = vunpack.c.h.b16 %v2488
  %v3056 = vunpack.c.l.b16 %v2489
  %v3057 = vunpack.c.h.b16 %v2489
  %v3058 = vunpack.c.l.b16 %v2490
  %v3059 = vunpack.c.h.b16 %v2490
  %v3060 = vunpack.c.l.b16 %v2491
  %v3061 = vunpack.c.h.b16 %v2491
  %v3062 = vunpack.c.l.b16 %v2492
  %v3063 = vunpack.c.h.b16 %v2492
  %v3064 = vunpack.c.l.b16 %v2493
  %v3065 = vunpack.c.h.b16 %v2493
  %v3066 = vunpack.c.l.b16 %v2494
  %v3067 = vunpack.c.h.b16 %v2494
  %v3068 = vunpack.c.l.b16 %v2495
  %v3069 = vunpack.c.h.b16 %v2495
  %v3070 = vunpack.c.l.b16 %v2496
  %v3071 = vunpack.c.h.b16 %v2496
  %v3072 = vunpack.c.l.b16 %v2497
  %v3073 = vunpack.c.h.b16 %v2497
  %v3074 = vunpack.c.l.b16 %v2498
  %v3075 = vunpack.c.h.b16 %v2498
  %v3076 = vunpack.c.l.b16 %v2499
  %v3077 = vunpack.c.h.b16 %v2499
  %v3078 = vunpack.c.l.b16 %v2500
  %v3079 = vunpack.c.h.b16 %v2500
  %v3080 = vunpack.c.l.b16 %v2501
  %v3081 = vunpack.c.h.b16 %v2501
  %v3082 = vunpack.c.l.b16 %v2502
  %v3083 = vunpack.c.h.b16 %v2502
  %v3084 = vunpack.c.l.b16 %v2503
  %v3085 = vunpack.c.h.b16 %v2503
  %v3086 = vunpack.c.l.b16 %v2504
  %v3087 = vunpack.c.h.b16 %v2504
  %v3088 = vunpack.c.l.b16 %v2505
  %v3089 = vunpack.c.h.b16 %v2505
  %v3090 = vunpack.c.l.b16 %v2506
  %v3091 = vunpack.c.h.b16 %v2506
  %v3092 = vunpack.c.l.b16 %v2507
  %v3093 = vunpack.c.h.b16 %v2507
  %v3094 = vunpack.c.l.b16 %v2508
  %v3095 = vunpack.c.h.b16 %v2508
  %v3096 = vunpack.c.l.b16 %v2509
  %v3097 = vunpack.c.h.b16 %v2509
  %v3098 = vunpack.c.l.b16 %v2510
  %v3099 = vunpack.c.h.b16 %v2510
  %v3100 = vunpack.c.l.b16 %v2511
  %v3101 = vunpack.c.h.b16 %v2511
  %v3102 = vunpack.c.l.b16 %v2512
  %v3103 = vunpack.c.h.b16 %v2512
  %v3104 = vunpack.c.l.b16 %v2513
  %v3105 = vunpack.c.h.b16 %v2513
  %v3106 = vunpack.c.l.b16 %v2514
  %v3107 = vunpack.c.h.b16 %v2514
  %v3108 = vunpack.c.l.b16 %v2515
  %v3109 = vunpack.c.h.b16 %v2515
  %v3110 = vunpack.c.l.b16 %v2516
  %v3111 = vunpack.c.h.b16 %v2516
  %v3112 = vunpack.c.l.b16 %v2517
  %v3113 = vunpack.c.h.b16 %v2517
  %v3114 = vunpack.c.l.b16 %v2518
  %v3115 = vunpack.c.h.b16 %v2518
  %v3116 = vunpack.c.l.b16 %v2519
  %v3117 = vunpack.c.h.b16 %v2519
  %v3118 = vunpack.c.l.b16 %v2520
  %v3119 = vunpack.c.h.b16 %v2520
  %v3120 = vunpack.c.l.b16 %v2521
  %v3121 = vunpack.c.h.b16 %v2521
  %v3122 = vunpack.c.l.b16 %v2522
  %v3123 = vunpack.c.h.b16 %v2522
  %v3124 = vunpack.c.l.b16 %v2523
  %v3125 = vunpack.c.h.b16 %v2523
  %v3126 = vunpack.c.l.b16 %v2524
  %v3127 = vunpack.c.h.b16 %v2524
  %v3128 = vunpack.c.l.b16 %v2525
  %v3129 = vunpack.c.h.b16 %v2525
  %v3130 = vunpack.c.l.b16 %v2526
  %v3131 = vunpack.c.h.b16 %v2526
  %v3132 = vunpack.c.l.b16 %v2527
  %v3133 = vunpack.c.h.b16 %v2527
  %v3134 = vunpack.c.l.b16 %v2528
  %v3135 = vunpack.c.h.b16 %v2528
  %v3136 = vunpack.c.l.b16 %v2529
  %v3137 = vunpack.c.h.b16 %v2529
  %v3138 = vunpack.c.l.b16 %v2530
  %v3139 = vunpack.c.h.b16 %v2530
  %v3140 = vunpack.c.l.b16 %v2531
  %v3141 = vunpack.c.h.b16 %v2531
  %v3142 = vunpack.c.l.b16 %v2532
  %v3143 = vunpack.c.h.b16 %v2532
  %v3144 = vunpack.c.l.b16 %v2533
  %v3145 = vunpack.c.h.b16 %v2533
  %v3146 = vunpack.c.l.b16 %v2534
  %v3147 = vunpack.c.h.b16 %v2534
  %v3148 = vunpack.c.l.b16 %v2535
  %v3149 = vunpack.c.h.b16 %v2535
  %v3150 = vunpack.c.l.b16 %v2536
  %v3151 = vunpack.c.h.b16 %v2536
  %v3152 = vunpack.c.l.b16 %v2537
  %v3153 = vunpack.c.h.b16 %v2537
  %v3154 = vunpack.c.l.b16 %v2538
  %v3155 = vunpack.c.h.b16 %v2538
  %v3156 = vunpack.c.l.b16 %v2539
  %v3157 = vunpack.c.h.b16 %v2539
  %v3158 = vunpack.c.l.b16 %v2540
  %v3159 = vunpack.c.h.b16 %v2540
  %v3160 = vunpack.c.l.b16 %v2541
  %v3161 = vunpack.c.h.b16 %v2541
  %v3162 = vunpack.c.l.b16 %v2542
  %v3163 = vunpack.c.h.b16 %v2542
  %v3164 = vunpack.c.l.b16 %v2543
  %v3165 = vunpack.c.h.b16 %v2543
  %v3166 = vunpack.c.l.b16 %v2544
  %v3167 = vunpack.c.h.b16 %v2544
  %v3168 = vunpack.c.l.b16 %v2545
  %v3169 = vunpack.c.h.b16 %v2545
  %v3170 = vunpack.c.l.b16 %v2546
  %v3171 = vunpack.c.h.b16 %v2546
  %v3172 = vunpack.c.l.b16 %v2547
  %v3173 = vunpack.c.h.b16 %v2547
  %v3174 = vunpack.c.l.b16 %v2548
  %v3175 = vunpack.c.h.b16 %v2548
  %v3176 = vunpack.c.l.b16 %v2549
  %v3177 = vunpack.c.h.b16 %v2549
  %v3178 = vunpack.c.l.b16 %v2550
  %v3179 = vunpack.c.h.b16 %v2550
  %v3180 = vunpack.c.l.b16 %v2551
  %v3181 = vunpack.c.h.b16 %v2551
  %v3182 = vunpack.c.l.b16 %v2552
  %v3183 = vunpack.c.h.b16 %v2552
  %v3184 = vunpack.c.l.b16 %v2553
  %v3185 = vunpack.c.h.b16 %v2553
  %v3186 = vunpack.c.l.b16 %v2554
  %v3187 = vunpack.c.h.b16 %v2554
  %v3188 = vunpack.c.l.b16 %v2555
  %v3189 = vunpack.c.h.b16 %v2555
  %v3190 = vunpack.c.l.b16 %v2556
  %v3191 = vunpack.c.h.b16 %v2556
  %v3192 = vunpack.c.l.b16 %v2557
  %v3193 = vunpack.c.h.b16 %v2557
  %v3194 = vunpack.c.l.b16 %v2558
  %v3195 = vunpack.c.h.b16 %v2558
  %v3196 = vunpack.c.l.b16 %v2559
  %v3197 = vunpack.c.h.b16 %v2559
  %v3198 = vunpack.c.l.b16 %v2560
  %v3199 = vunpack.c.h.b16 %v2560
  %v3200 = vunpack.c.l.b16 %v2561
  %v3201 = vunpack.c.h.b16 %v2561
  %v3202 = vunpack.c.l.b16 %v2562
  %v3203 = vunpack.c.h.b16 %v2562
  %v3204 = vunpack.c.l.b16 %v2563
  %v3205 = vunpack.c.h.b16 %v2563
  %v3206 = vunpack.c.l.b16 %v2564
  %v3207 = vunpack.c.h.b16 %v2564
  %v3208 = vunpack.c.l.b16 %v2565
  %v3209 = vunpack.c.h.b16 %v2565
  %v3210 = vunpack.c.l.b16 %v2566
  %v3211 = vunpack.c.h.b16 %v2566
  %v3212 = vunpack.c.l.b16 %v2567
  %v3213 = vunpack.c.h.b16 %v2567
  %v3214 = vunpack.c.l.b16 %v2568
  %v3215 = vunpack.c.h.b16 %v2568
  %v3216 = vunpack.c.l.b16 %v2569
  %v3217 = vunpack.c.h.b16 %v2569
  %v3218 = vunpack.c.l.b16 %v2570
  %v3219 = vunpack.c.h.b16 %v2570
  %v3220 = vunpack.c.l.b16 %v2571
  %v3221 = vunpack.c.h.b16 %v2571
  %v3222 = vunpack.c.l.b16 %v2572
  %v3223 = vunpack.c.h.b16 %v2572
  %v3224 = vunpack.c.l.b16 %v2573
  %v3225 = vunpack.c.h.b16 %v2573
  %v3226 = vunpack.c.l.b16 %v2574
  %v3227 = vunpack.c.h.b16 %v2574
  %v3228 = vunpack.c.l.b16 %v2575
  %v3229 = vunpack.c.h.b16 %v2575
  %v3230 = vunpack.c.l.b16 %v2576
  %v3231 = vunpack.c.h.b16 %v2576
  %v3232 = vunpack.c.l.b16 %v2577
  %v3233 = vunpack.c.h.b16 %v2577
  %v3234 = vunpack.c.l.b16 %v2578
  %v3235 = vunpack.c.h.b16 %v2578
  %v3236 = vunpack.c.l.b16 %v2579
  %v3237 = vunpack.c.h.b16 %v2579
  %v3238 = vunpack.c.l.b16 %v2580
  %v3239 = vunpack.c.h.b16 %v2580
  %v3240 = vunpack.c.l.b16 %v2581
  %v3241 = vunpack.c.h.b16 %v2581
  %v3242 = vunpack.c.l.b16 %v2582
  %v3243 = vunpack.c.h.b16 %v2582
  %v3244 = vunpack.c.l.b16 %v2583
  %v3245 = vunpack.c.h.b16 %v2583
  %v3246 = vunpack.c.l.b16 %v2584
  %v3247 = vunpack.c.h.b16 %v2584
  %v3248 = vunpack.c.l.b16 %v2585
  %v3249 = vunpack.c.h.b16 %v2585
  %v3250 = vunpack.c.l.b16 %v2586
  %v3251 = vunpack.c.h.b16 %v2586
  %v3252 = vunpack.c.l.b16 %v2587
  %v3253 = vunpack.c.h.b16 %v2587
  %v3254 = vunpack.c.l.b16 %v2588
  %v3255 = vunpack.c.h.b16 %v2588
  %v3256 = vunpack.c.l.b16 %v2589
  %v3257 = vunpack.c.h.b16 %v2589
  %v3258 = vunpack.c.l.b16 %v2590
  %v3259 = vunpack.c.h.b16 %v2590
  %v3260 = vunpack.c.l.b16 %v2591
  %v3261 = vunpack.c.h.b16 %v2591
  %v3262 = vunpack.c.l.b16 %v2592
  %v3263 = vunpack.c.h.b16 %v2592
  %v3264 = vunpack.c.l.b16 %v2593
  %v3265 = vunpack.c.h.b16 %v2593
  %v3266 = vunpack.c.l.b16 %v2594
  %v3267 = vunpack.c.h.b16 %v2594
  %v3268 = vunpack.c.l.b16 %v2595
  %v3269 = vunpack.c.h.b16 %v2595
  %v3270 = vunpack.c.l.b16 %v2596
  %v3271 = vunpack.c.h.b16 %v2596
  %v3272 = vunpack.c.l.b16 %v2597
  %v3273 = vunpack.c.h.b16 %v2597
  %v3274 = vunpack.c.l.b16 %v2598
  %v3275 = vunpack.c.h.b16 %v2598
  %v3276 = vunpack.c.l.b16 %v2599
  %v3277 = vunpack.c.h.b16 %v2599
  %v3278 = vunpack.c.l.b16 %v2600
  %v3279 = vunpack.c.h.b16 %v2600
  %v3280 = vunpack.c.l.b16 %v2601
  %v3281 = vunpack.c.h.b16 %v2601
  %v3282 = vunpack.c.l.b16 %v2602
  %v3283 = vunpack.c.h.b16 %v2602
  %v3284 = vunpack.c.l.b16 %v2603
  %v3285 = vunpack.c.h.b16 %v2603
  %v3286 = vunpack.c.l.b16 %v2604
  %v3287 = vunpack.c.h.b16 %v2604
  %v3288 = vunpack.c.l.b16 %v2605
  %v3289 = vunpack.c.h.b16 %v2605
  %v3290 = vunpack.c.l.b16 %v2606
  %v3291 = vunpack.c.h.b16 %v2606
  %v3292 = vunpack.c.l.b16 %v2607
  %v3293 = vunpack.c.h.b16 %v2607
  %v3294 = vunpack.c.l.b16 %v2608
  %v3295 = vunpack.c.h.b16 %v2608
  %v3296 = vunpack.c.l.b16 %v2609
  %v3297 = vunpack.c.h.b16 %v2609
  %v3298 = vunpack.c.l.b16 %v2610
  %v3299 = vunpack.c.h.b16 %v2610
  %v3300 = vunpack.c.l.b16 %v2611
  %v3301 = vunpack.c.h.b16 %v2611
  %v3302 = vunpack.c.l.b16 %v2612
  %v3303 = vunpack.c.h.b16 %v2612
  %v3304 = vunpack.c.l.b16 %v2613
  %v3305 = vunpack.c.h.b16 %v2613
  %v3306 = vunpack.c.l.b16 %v2614
  %v3307 = vunpack.c.h.b16 %v2614
  %v3308 = vunpack.c.l.b16 %v2615
  %v3309 = vunpack.c.h.b16 %v2615
  %v3310 = vunpack.c.l.b16 %v2616
  %v3311 = vunpack.c.h.b16 %v2616
  %v3312 = vunpack.c.l.b16 %v2617
  %v3313 = vunpack.c.h.b16 %v2617
  %v3314 = vunpack.c.l.b16 %v2618
  %v3315 = vunpack.c.h.b16 %v2618
  %v3316 = vunpack.c.l.b16 %v2619
  %v3317 = vunpack.c.h.b16 %v2619
  %v3318 = vunpack.c.l.b16 %v2620
  %v3319 = vunpack.c.h.b16 %v2620
  %v3320 = vunpack.c.l.b16 %v2621
  %v3321 = vunpack.c.h.b16 %v2621
  %v3322 = vunpack.c.l.b16 %v2622
  %v3323 = vunpack.c.h.b16 %v2622
  %v3324 = vunpack.c.l.b16 %v2623
  %v3325 = vunpack.c.h.b16 %v2623
  %v3326 = vunpack.c.l.b16 %v2624
  %v3327 = vunpack.c.h.b16 %v2624
  %v3328 = vunpack.c.l.b16 %v2625
  %v3329 = vunpack.c.h.b16 %v2625
  %v3330 = vunpack.c.l.b16 %v2626
  %v3331 = vunpack.c.h.b16 %v2626
  %v3332 = vunpack.c.l.b16 %v2627
  %v3333 = vunpack.c.h.b16 %v2627
  %v3334 = vunpack.c.l.b16 %v2628
  %v3335 = vunpack.c.h.b16 %v2628
  %v3336 = vunpack.c.l.b16 %v2629
  %v3337 = vunpack.c.h.b16 %v2629
  %v3338 = vunpack.c.l.b16 %v2630
  %v3339 = vunpack.c.h.b16 %v2630
  %v3340 = vunpack.c.l.b16 %v2631
  %v3341 = vunpack.c.h.b16 %v2631
  %v3342 = vunpack.c.l.b16 %v2632
  %v3343 = vunpack.c.h.b16 %v2632
  %v3344 = vunpack.c.l.b16 %v2633
  %v3345 = vunpack.c.h.b16 %v2633
  %v3346 = vunpack.c.l.b16 %v2634
  %v3347 = vunpack.c.h.b16 %v2634
  %v3348 = vunpack.c.l.b16 %v2635
  %v3349 = vunpack.c.h.b16 %v2635
  %v3350 = vunpack.c.l.b16 %v2636
  %v3351 = vunpack.c.h.b16 %v2636
  %v3352 = vunpack.c.l.b16 %v2637
  %v3353 = vunpack.c.h.b16 %v2637
  %v3354 = vunpack.c.l.b16 %v2638
  %v3355 = vunpack.c.h.b16 %v2638
  %v3356 = vunpack.c.l.b16 %v2639
  %v3357 = vunpack.c.h.b16 %v2639
  %v3358 = vunpack.c.l.b16 %v2640
  %v3359 = vunpack.c.h.b16 %v2640
  %v3360 = vunpack.c.l.b16 %v2641
  %v3361 = vunpack.c.h.b16 %v2641
  %v3362 = vunpack.c.l.b16 %v2642
  %v3363 = vunpack.c.h.b16 %v2642
  %v3364 = vunpack.c.l.b16 %v2643
  %v3365 = vunpack.c.h.b16 %v2643
  %v3366 = vunpack.c.l.b16 %v2644
  %v3367 = vunpack.c.h.b16 %v2644
  %v3368 = vunpack.c.l.b16 %v2645
  %v3369 = vunpack.c.h.b16 %v2645
  %v3370 = vunpack.c.l.b16 %v2646
  %v3371 = vunpack.c.h.b16 %v2646
  %v3372 = vunpack.c.l.b16 %v2647
  %v3373 = vunpack.c.h.b16 %v2647
  %v3374 = vunpack.c.l.b16 %v2648
  %v3375 = vunpack.c.h.b16 %v2648
  %v3376 = vunpack.c.l.b16 %v2649
  %v3377 = vunpack.c.h.b16 %v2649
  %v3378 = vunpack.c.l.b16 %v2650
  %v3379 = vunpack.c.h.b16 %v2650
  %v3380 = vunpack.c.l.b16 %v2651
  %v3381 = vunpack.c.h.b16 %v2651
  %v3382 = vunpack.c.l.b16 %v2652
  %v3383 = vunpack.c.h.b16 %v2652
  %v3384 = vunpack.c.l.b16 %v2653
  %v3385 = vunpack.c.h.b16 %v2653
  %v3386 = vunpack.c.l.b16 %v2654
  %v3387 = vunpack.c.h.b16 %v2654
  %v3388 = vunpack.c.l.b16 %v2655
  %v3389 = vunpack.c.h.b16 %v2655
  %v3390 = vunpack.c.l.b16 %v2656
  %v3391 = vunpack.c.h.b16 %v2656
  %v3392 = vunpack.c.l.b16 %v2657
  %v3393 = vunpack.c.h.b16 %v2657
  %v3394 = vunpack.c.l.b16 %v2658
  %v3395 = vunpack.c.h.b16 %v2658
  %v3396 = vunpack.c.l.b16 %v2659
  %v3397 = vunpack.c.h.b16 %v2659
  %v3398 = vunpack.c.l.b16 %v2660
  %v3399 = vunpack.c.h.b16 %v2660
  %v3400 = vunpack.c.l.b16 %v2661
  %v3401 = vunpack.c.h.b16 %v2661
  %v3402 = vunpack.c.l.b16 %v2662
  %v3403 = vunpack.c.h.b16 %v2662
  %v3404 = vunpack.c.l.b16 %v2663
  %v3405 = vunpack.c.h.b16 %v2663
  %v3406 = vunpack.c.l.b16 %v2664
  %v3407 = vunpack.c.h.b16 %v2664
  %v3408 = vunpack.c.l.b16 %v2665
  %v3409 = vunpack.c.h.b16 %v2665
  %v3410 = vunpack.c.l.b16 %v2666
  %v3411 = vunpack.c.h.b16 %v2666
  %v3412 = vunpack.c.l.b16 %v2667
  %v3413 = vunpack.c.h.b16 %v2667
  %v3414 = vunpack.c.l.b16 %v2668
  %v3415 = vunpack.c.h.b16 %v2668
  %v3416 = vunpack.c.l.b16 %v2669
  %v3417 = vunpack.c.h.b16 %v2669
  %v3418 = vunpack.c.l.b16 %v2670
  %v3419 = vunpack.c.h.b16 %v2670
  %v3420 = vunpack.c.l.b16 %v2671
  %v3421 = vunpack.c.h.b16 %v2671
  %v3422 = vunpack.c.l.b16 %v2672
  %v3423 = vunpack.c.h.b16 %v2672
  %v3424 = vunpack.c.l.b16 %v2673
  %v3425 = vunpack.c.h.b16 %v2673
  %v3426 = vunpack.c.l.b16 %v2674
  %v3427 = vunpack.c.h.b16 %v2674
  %v3428 = vunpack.c.l.b16 %v2675
  %v3429 = vunpack.c.h.b16 %v2675
  %v3430 = vunpack.c.l.b16 %v2676
  %v3431 = vunpack.c.h.b16 %v2676
  %v3432 = vunpack.c.l.b16 %v2677
  %v3433 = vunpack.c.h.b16 %v2677
  %v3434 = vunpack.c.l.b16 %v2678
  %v3435 = vunpack.c.h.b16 %v2678
  %v3436 = vunpack.c.l.b16 %v2679
  %v3437 = vunpack.c.h.b16 %v2679
  %v3438 = vunpack.c.l.b16 %v2680
  %v3439 = vunpack.c.h.b16 %v2680
  %v3440 = vunpack.c.l.b16 %v2681
  %v3441 = vunpack.c.h.b16 %v2681
  %v3442 = vunpack.c.l.b16 %v2682
  %v3443 = vunpack.c.h.b16 %v2682
  %v3444 = vunpack.c.l.b16 %v2683
  %v3445 = vunpack.c.h.b16 %v2683
  %v3446 = vunpack.c.l.b16 %v2684
  %v3447 = vunpack.c.h.b16 %v2684
  %v3448 = vunpack.c.l.b16 %v2685
  %v3449 = vunpack.c.h.b16 %v2685
  %v3450 = vunpack.c.l.b16 %v2686
  %v3451 = vunpack.c.h.b16 %v2686
  %v3452 = vunpack.c.l.b16 %v2687
  %v3453 = vunpack.c.h.b16 %v2687
  %v3454 = vunpack.c.l.b16 %v2688
  %v3455 = vunpack.c.h.b16 %v2688
  %v3456 = vunpack.c.l.b16 %v2689
  %v3457 = vunpack.c.h.b16 %v2689
  %v3458 = vunpack.c.l.b16 %v2690
  %v3459 = vunpack.c.h.b16 %v2690
  %v3460 = vunpack.c.l.b16 %v2691
  %v3461 = vunpack.c.h.b16 %v2691
  %v3462 = vunpack.c.l.b16 %v2692
  %v3463 = vunpack.c.h.b16 %v2692
  %v3464 = vunpack.c.l.b16 %v2693
  %v3465 = vunpack.c.h.b16 %v2693
  %v3466 = vunpack.c.l.b16 %v2694
  %v3467 = vunpack.c.h.b16 %v2694
  %v3468 = vunpack.c.l.b16 %v2695
  %v3469 = vunpack.c.h.b16 %v2695
  %v3470 = vunpack.c.l.b16 %v2696
  %v3471 = vunpack.c.h.b16 %v2696
  %v3472 = vunpack.c.l.b16 %v2697
  %v3473 = vunpack.c.h.b16 %v2697
  %v3474 = vunpack.c.l.b16 %v2698
  %v3475 = vunpack.c.h.b16 %v2698
  %v3476 = vunpack.c.l.b16 %v2699
  %v3477 = vunpack.c.h.b16 %v2699
  %v3478 = vunpack.c.l.b16 %v2700
  %v3479 = vunpack.c.h.b16 %v2700
  %v3480 = vunpack.c.l.b16 %v2701
  %v3481 = vunpack.c.h.b16 %v2701
  %v3482 = vpack.c.b16 %v2972, %v2970
  %v3483 = vpack.c.b16 %v2973, %v2971
  %v3484 = vpack.c.b16 %v2976, %v2974
  %v3485 = vpack.c.b16 %v2977, %v2975
  %v3486 = vpack.c.b16 %v2980, %v2978
  %v3487 = vpack.c.b16 %v2981, %v2979
  %v3488 = vpack.c.b16 %v2984, %v2982
  %v3489 = vpack.c.b16 %v2985, %v2983
  %v3490 = vpack.c.b16 %v2988, %v2986
  %v3491 = vpack.c.b16 %v2989, %v2987
  %v3492 = vpack.c.b16 %v2992, %v2990
  %v3493 = vpack.c.b16 %v2993, %v2991
  %v3494 = vpack.c.b16 %v2996, %v2994
  %v3495 = vpack.c.b16 %v2997, %v2995
  %v3496 = vpack.c.b16 %v3000, %v2998
  %v3497 = vpack.c.b16 %v3001, %v2999
  %v3498 = vpack.c.b16 %v3004, %v3002
  %v3499 = vpack.c.b16 %v3005, %v3003
  %v3500 = vpack.c.b16 %v3008, %v3006
  %v3501 = vpack.c.b16 %v3009, %v3007
  %v3502 = vpack.c.b16 %v3012, %v3010
  %v3503 = vpack.c.b16 %v3013, %v3011
  %v3504 = vpack.c.b16 %v3016, %v3014
  %v3505 = vpack.c.b16 %v3017, %v3015
  %v3506 = vpack.c.b16 %v3020, %v3018
  %v3507 = vpack.c.b16 %v3021, %v3019
  %v3508 = vpack.c.b16 %v3024, %v3022
  %v3509 = vpack.c.b16 %v3025, %v3023
  %v3510 = vpack.c.b16 %v3028, %v3026
  %v3511 = vpack.c.b16 %v3029, %v3027
  %v3512 = vpack.c.b16 %v3032, %v3030
  %v3513 = vpack.c.b16 %v3033, %v3031
  %v3514 = vpack.c.b16 %v3036, %v3034
  %v3515 = vpack.c.b16 %v3037, %v3035
  %v3516 = vpack.c.b16 %v3040, %v3038
  %v3517 = vpack.c.b16 %v3041, %v3039
  %v3518 = vpack.c.b16 %v3044, %v3042
  %v3519 = vpack.c.b16 %v3045, %v3043
  %v3520 = vpack.c.b16 %v3048, %v3046
  %v3521 = vpack.c.b16 %v3049, %v3047
  %v3522 = vpack.c.b16 %v3052, %v3050
  %v3523 = vpack.c.b16 %v3053, %v3051
  %v3524 = vpack.c.b16 %v3056, %v3054
  %v3525 = vpack.c.b16 %v3057, %v3055
  %v3526 = vpack.c.b16 %v3060, %v3058
  %v3527 = vpack.c.b16 %v3061, %v3059
  %v3528 = vpack.c.b16 %v3064, %v3062
  %v3529 = vpack.c.b16 %v3065, %v3063
  %v3530 = vpack.c.b16 %v3068, %v3066
  %v3531 = vpack.c.b16 %v3069, %v3067
  %v3532 = vpack.c.b16 %v3072, %v3070
  %v3533 = vpack.c.b16 %v3073, %v3071
  %v3534 = vpack.c.b16 %v3076, %v3074
  %v3535 = vpack.c.b16 %v3077, %v3075
  %v3536 = vpack.c.b16 %v3080, %v3078
  %v3537 = vpack.c.b16 %v3081, %v3079
  %v3538 = vpack.c.b16 %v3084, %v3082
  %v3539 = vpack.c.b16 %v3085, %v3083
  %v3540 = vpack.c.b16 %v3088, %v3086
  %v3541 = vpack.c.b16 %v3089, %v3087
  %v3542 = vpack.c.b16 %v3092, %v3090
  %v3543 = vpack.c.b16 %v3093, %v3091
  %v3544 = vpack.c.b16 %v3096, %v3094
  %v3545 = vpack.c.b16 %v3097, %v3095
  %v3546 = vpack.c.b16 %v3100, %v3098
  %v3547 = vpack.c.b16 %v3101, %v3099
  %v3548 = vpack.c.b16 %v3104, %v3102
  %v3549 = vpack.c.b16 %v3105, %v3103
  %v3550 = vpack.c.b16 %v3108, %v3106
  %v3551 = vpack.c.b16 %v3109, %v3107
  %v3552 = vpack.c.b16 %v3112, %v3110
  %v3553 = vpack.c.b16 %v3113, %v3111
  %v3554 = vpack.c.b16 %v3116, %v3114
  %v3555 = vpack.c.b16 %v3117, %v3115
  %v3556 = vpack.c.b16 %v3120, %v3118
  %v3557 = vpack.c.b16 %v3121, %v3119
  %v3558 = vpack.c.b16 %v3124, %v3122
  %v3559 = vpack.c.b16 %v3125, %v3123
  %v3560 = vpack.c.b16 %v3128, %v3126
  %v3561 = vpack.c.b16 %v3129, %v3127
  %v3562 = vpack.c.b16 %v3132, %v3130
  %v3563 = vpack.c.b16 %v3133, %v3131
  %v3564 = vpack.c.b16 %v3136, %v3134
  %v3565 = vpack.c.b16 %v3137, %v3135
  %v3566 = vpack.c.b16 %v3140, %v3138
  %v3567 = vpack.c.b16 %v3141, %v3139
  %v3568 = vpack.c.b16 %v3144, %v3142
  %v3569 = vpack.c.b16 %v3145, %v3143
  %v3570 = vpack.c.b16 %v3148, %v3146
  %v3571 = vpack.c.b16 %v3149, %v3147
  %v3572 = vpack.c.b16 %v3152, %v3150
  %v3573 = vpack.c.b16 %v3153, %v3151
  %v3574 = vpack.c.b16 %v3156, %v3154
  %v3575 = vpack.c.b16 %v3157, %v3155
  %v3576 = vpack.c.b16 %v3160, %v3158
  %v3577 = vpack.c.b16 %v3161, %v3159
  %v3578 = vpack.c.b16 %v3164, %v3162
  %v3579 = vpack.c.b16 %v3165, %v3163
  %v3580 = vpack.c.b16 %v3168, %v3166
  %v3581 = vpack.c.b16 %v3169, %v3167
  %v3582 = vpack.c.b16 %v3172, %v3170
  %v3583 = vpack.c.b16 %v3173, %v3171
  %v3584 = vpack.c.b16 %v3176, %v3174
  %v3585 = vpack.c.b16 %v3177, %v3175
  %v3586 = vpack.c.b16 %v3180, %v3178
  %v3587 = vpack.c.b16 %v3181, %v3179
  %v3588 = vpack.c.b16 %v3184, %v3182
  %v3589 = vpack.c.b16 %v3185, %v3183
  %v3590 = vpack.c.b16 %v3188, %v3186
  %v3591 = vpack.c.b16 %v3189, %v3187
  %v3592 = vpack.c.b16 %v3192, %v3190
  %v3593 = vpack.c.b16 %v3193, %v3191
  %v3594 = vpack.c.b16 %v3196, %v3194
  %v3595 = vpack.c.b16 %v3197, %v3195
  %v3596 = vpack.c.b16 %v3200, %v3198
  %v3597 = vpack.c.b16 %v3201, %v3199
  %v3598 = vpack.c.b16 %v3204, %v3202
  %v3599 = vpack.c.b16 %v3205, %v3203
  %v3600 = vpack.c.b16 %v3208, %v3206
  %v3601 = vpack.c.b16 %v3209, %v3207
  %v3602 = vpack.c.b16 %v3212, %v3210
  %v3603 = vpack.c.b16 %v3213, %v3211
  %v3604 = vpack.c.b16 %v3216, %v3214
  %v3605 = vpack.c.b16 %v3217, %v3215
  %v3606 = vpack.c.b16 %v3220, %v3218
  %v3607 = vpack.c.b16 %v3221, %v3219
  %v3608 = vpack.c.b16 %v3224, %v3222
  %v3609 = vpack.c.b16 %v3225, %v3223
  %v3610 = vpack.c.b16 %v3228, %v3226
  %v3611 = vpack.c.b16 %v3229, %v3227
  %v3612 = vpack.c.b16 %v3232, %v3230
  %v3613 = vpack.c.b16 %v3233, %v3231
  %v3614 = vpack.c.b16 %v3236, %v3234
  %v3615 = vpack.c.b16 %v3237, %v3235
  %v3616 = vpack.c.b16 %v3240, %v3238
  %v3617 = vpack.c.b16 %v3241, %v3239
  %v3618 = vpack.c.b16 %v3244, %v3242
  %v3619 = vpack.c.b16 %v3245, %v3243
  %v3620 = vpack.c.b16 %v3248, %v3246
  %v3621 = vpack.c.b16 %v3249, %v3247
  %v3622 = vpack.c.b16 %v3252, %v3250
  %v3623 = vpack.c.b16 %v3253, %v3251
  %v3624 = vpack.c.b16 %v3256, %v3254
  %v3625 = vpack.c.b16 %v3257, %v3255
  %v3626 = vpack.c.b16 %v3260, %v3258
  %v3627 = vpack.c.b16 %v3261, %v3259
  %v3628 = vpack.c.b16 %v3264, %v3262
  %v3629 = vpack.c.b16 %v3265, %v3263
  %v3630 = vpack.c.b16 %v3268, %v3266
  %v3631 = vpack.c.b16 %v3269, %v3267
  %v3632 = vpack.c.b16 %v3272, %v3270
  %v3633 = vpack.c.b16 %v3273, %v3271
  %v3634 = vpack.c.b16 %v3276, %v3274
  %v3635 = vpack.c.b16 %v3277, %v3275
  %v3636 = vpack.c.b16 %v3280, %v3278
  %v3637 = vpack.c.b16 %v3281, %v3279
  %v3638 = vpack.c.b16 %v3284, %v3282
  %v3639 = vpack.c.b16 %v3285, %v3283
  %v3640 = vpack.c.b16 %v3288, %v3286
  %v3641 = vpack.c.b16 %v3289, %v3287
  %v3642 = vpack.c.b16 %v3292, %v3290
  %v3643 = vpack.c.b16 %v3293, %v3291
  %v3644 = vpack.c.b16 %v3296, %v3294
  %v3645 = vpack.c.b16 %v3297, %v3295
  %v3646 = vpack.c.b16 %v3300, %v3298
  %v3647 = vpack.c.b16 %v3301, %v3299
  %v3648 = vpack.c.b16 %v3304, %v3302
  %v3649 = vpack.c.b16 %v3305, %v3303
  %v3650 = vpack.c.b16 %v3308, %v3306
  %v3651 = vpack.c.b16 %v3309, %v3307
  %v3652 = vpack.c.b16 %v3312, %v3310
  %v3653 = vpack.c.b16 %v3313, %v3311
  %v3654 = vpack.c.b16 %v3316, %v3314
  %v3655 = vpack.c.b16 %v3317, %v3315
  %v3656 = vpack.c.b16 %v3320, %v3318
  %v3657 = vpack.c.b16 %v3321, %v3319
  %v3658 = vpack.c.b16 %v3324, %v3322
  %v3659 = vpack.c.b16 %v3325, %v3323
  %v3660 = vpack.c.b16 %v3328, %v3326
  %v3661 = vpack.c.b16 %v3329, %v3327
  %v3662 = vpack.c.b16 %v3332, %v3330
  %v3663 = vpack.c.b16 %v3333, %v3331
  %v3664 = vpack.c.b16 %v3336, %v3334
  %v3665 = vpack.c.b16 %v3337, %v3335
  %v3666 = vpack.c.b16 %v3340, %v3338
  %v3667 = vpack.c.b16 %v3341, %v3339
  %v3668 = vpack.c.b16 %v3344, %v3342
  %v3669 = vpack.c.b16 %v3345, %v3343
  %v3670 = vpack.c.b16 %v3348, %v3346
  %v3671 = vpack.c.b16 %v3349, %v3347
  %v3672 = vpack.c.b16 %v3352, %v3350
  %v3673 = vpack.c.b16 %v3353, %v3351
  %v3674 = vpack.c.b16 %v3356, %v3354
  %v3675 = vpack.c.b16 %v3357, %v3355
  %v3676 = vpack.c.b16 %v3360, %v3358
  %v3677 = vpack.c.b16 %v3361, %v3359
  %v3678 = vpack.c.b16 %v3364, %v3362
  %v3679 = vpack.c.b16 %v3365, %v3363
  %v3680 = vpack.c.b16 %v3368, %v3366
  %v3681 = vpack.c.b16 %v3369, %v3367
  %v3682 = vpack.c.b16 %v3372, %v3370
  %v3683 = vpack.c.b16 %v3373, %v3371
  %v3684 = vpack.c.b16 %v3376, %v3374
  %v3685 = vpack.c.b16 %v3377, %v3375
  %v3686 = vpack.c.b16 %v3380, %v3378
  %v3687 = vpack.c.b16 %v3381, %v3379
  %v3688 = vpack.c.b16 %v3384, %v3382
  %v3689 = vpack.c.b16 %v3385, %v3383
  %v3690 = vpack.c.b16 %v3388, %v3386
  %v3691 = vpack.c.b16 %v3389, %v3387
  %v3692 = vpack.c.b16 %v3392, %v3390
  %v3693 = vpack.c.b16 %v3393, %v3391
  %v3694 = vpack.c.b16 %v3396, %v3394
  %v3695 = vpack.c.b16 %v3397, %v3395
  %v3696 = vpack.c.b16 %v3400, %v3398
  %v3697 = vpack.c.b16 %v3401, %v3399
  %v3698 = vpack.c.b16 %v3404, %v3402
  %v3699 = vpack.c.b16 %v3405, %v3403
  %v3700 = vpack.c.b16 %v3408, %v3406
  %v3701 = vpack.c.b16 %v3409, %v3407
  %v3702 = vpack.c.b16 %v3412, %v3410
  %v3703 = vpack.c.b16 %v3413, %v3411
  %v3704 = vpack.c.b16 %v3416, %v3414
  %v3705 = vpack.c.b16 %v3417, %v3415
  %v3706 = vpack.c.b16 %v3420, %v3418
  %v3707 = vpack.c.b16 %v3421, %v3419
  %v3708 = vpack.c.b16 %v3424, %v3422
  %v3709 = vpack.c.b16 %v3425, %v3423
  %v3710 = vpack.c.b16 %v3428, %v3426
  %v3711 = vpack.c.b16 %v3429, %v3427
  %v3712 = vpack.c.b16 %v3432, %v3430
  %v3713 = vpack.c.b16 %v3433, %v3431
  %v3714 = vpack.c.b16 %v3436, %v3434
  %v3715 = vpack.c.b16 %v3437, %v3435
  %v3716 = vpack.c.b16 %v3440, %v3438
  %v3717 = vpack.c.b16 %v3441, %v3439
  %v3718 = vpack.c.b16 %v3444, %v3442
  %v3719 = vpack.c.b16 %v3445, %v3443
  %v3720 = vpack.c.b16 %v3448, %v3446
  %v3721 = vpack.c.b16 %v3449, %v3447
  %v3722 = vpack.c.b16 %v3452, %v3450
  %v3723 = vpack.c.b16 %v3453, %v3451
  %v3724 = vpack.c.b16 %v3456, %v3454
  %v3725 = vpack.c.b16 %v3457, %v3455
  %v3726 = vpack.c.b16 %v3460, %v3458
  %v3727 = vpack.c.b16 %v3461, %v3459
  %v3728 = vpack.c.b16 %v3464, %v3462
  %v3729 = vpack.c.b16 %v3465, %v3463
  %v3730 = vpack.c.b16 %v3468, %v3466
  %v3731 = vpack.c.b16 %v3469, %v3467
  %v3732 = vpack.c.b16 %v3472, %v3470
  %v3733 = vpack.c.b16 %v3473, %v3471
  %v3734 = vpack.c.b16 %v3476, %v3474
  %v3735 = vpack.c.b16 %v3477, %v3475
  %v3736 = vpack.c.b16 %v3480, %v3478
  %v3737 = vpack.c.b16 %v3481, %v3479
  %3994 = vmatprep.subr.bf16.mxu0 %v3483
  %3995 = vmatpush1.bf16.msra.mxu0 %v3482
  %3996 = vmatprep.subr.bf16.mxu0 %v3485
  %3997 = vmatpush1.bf16.msra.mxu0 %v3484
  %3998 = vmatprep.subr.bf16.mxu0 %v3487
  %3999 = vmatpush1.bf16.msra.mxu0 %v3486
  %4000 = vmatprep.subr.bf16.mxu0 %v3489
  %4001 = vmatpush1.bf16.msra.mxu0 %v3488
  %4002 = vmatprep.subr.bf16.mxu0 %v3491
  %4003 = vmatpush1.bf16.msra.mxu0 %v3490
  %4004 = vmatprep.subr.bf16.mxu0 %v3493
  %4005 = vmatpush1.bf16.msra.mxu0 %v3492
  %4006 = vmatprep.subr.bf16.mxu0 %v3495
  %4007 = vmatpush1.bf16.msra.mxu0 %v3494
  %4008 = vmatprep.subr.bf16.mxu0 %v3497
  %4009 = vmatpush1.bf16.msra.mxu0 %v3496
  %4010 = vmatprep.subr.bf16.mxu0 %v3499
  %4011 = vmatpush1.bf16.msra.mxu0 %v3498
  %4012 = vmatprep.subr.bf16.mxu0 %v3501
  %4013 = vmatpush1.bf16.msra.mxu0 %v3500
  %4014 = vmatprep.subr.bf16.mxu0 %v3503
  %4015 = vmatpush1.bf16.msra.mxu0 %v3502
  %4016 = vmatprep.subr.bf16.mxu0 %v3505
  %4017 = vmatpush1.bf16.msra.mxu0 %v3504
  %4018 = vmatprep.subr.bf16.mxu0 %v3507
  %4019 = vmatpush1.bf16.msra.mxu0 %v3506
  %4020 = vmatprep.subr.bf16.mxu0 %v3509
  %4021 = vmatpush1.bf16.msra.mxu0 %v3508
  %4022 = vmatprep.subr.bf16.mxu0 %v3511
  %4023 = vmatpush1.bf16.msra.mxu0 %v3510
  %4024 = vmatprep.subr.bf16.mxu0 %v3513
  %4025 = vmatpush1.bf16.msra.mxu0 %v3512
  %4026 = vmatprep.mubr.bf16.mxu0 %v2383
  %4027 = vmatmul.mubr.bf16.gmra.mrb[0].mxu0 %v2382
  %v4028 = vpop.f32.mrb[0].mxu0
  %v4029 = vadd.f32 %v2707, %v4028
  %v4030 = vpop.f32.mrb[0].mxu0
  %v4031 = vadd.f32 %v2711, %v4030
  %v4032 = vpop.f32.mrb[0].mxu0
  %v4033 = vadd.f32 %v2707, %v4032
  %v4034 = vpop.f32.mrb[0].mxu0
  %v4035 = vadd.f32 %v2711, %v4034
  %4036 = vmatprep.mubr.bf16.mxu0 %v2399
  %4037 = vmatmul.mubr.bf16.gmra.mrb[0].mxu0 %v2398
  %v4038 = vpop.f32.mrb[0].mxu0
  %v4039 = vadd.f32 %v2707, %v4038
  %v4040 = vpop.f32.mrb[0].mxu0
  %v4041 = vadd.f32 %v2711, %v4040
  %v4042 = vpop.f32.mrb[0].mxu0
  %v4043 = vadd.f32 %v2707, %v4042
  %v4044 = vpop.f32.mrb[0].mxu0
  %v4045 = vadd.f32 %v2711, %v4044
  %4046 = vmatprep.mubr.bf16.mxu0 %v2415
  %4047 = vmatmul.mubr.bf16.gmra.mrb[0].mxu0 %v2414
  %v4048 = vpop.f32.mrb[0].mxu0
  %v4049 = vadd.f32 %v2707, %v4048
  %v4050 = vpop.f32.mrb[0].mxu0
  %v4051 = vadd.f32 %v2711, %v4050
  %v4052 = vpop.f32.mrb[0].mxu0
  %v4053 = vadd.f32 %v2707, %v4052
  %v4054 = vpop.f32.mrb[0].mxu0
  %v4055 = vadd.f32 %v2711, %v4054
  %4056 = vmatprep.mubr.bf16.mxu0 %v2431
  %4057 = vmatmul.mubr.bf16.gmra.mrb[0].mxu0 %v2430
  %v4058 = vpop.f32.mrb[0].mxu0
  %v4059 = vadd.f32 %v2707, %v4058
  %v4060 = vpop.f32.mrb[0].mxu0
  %v4061 = vadd.f32 %v2711, %v4060
  %v4062 = vpop.f32.mrb[0].mxu0
  %v4063 = vadd.f32 %v2707, %v4062
  %v4064 = vpop.f32.mrb[0].mxu0
  %v4065 = vadd.f32 %v2711, %v4064
  %4066 = vdwg.mxu0
  %4067 = vmatprep.subr.bf16.mxu0 %v3515
  %4068 = vmatpush1.bf16.msra.mxu0 %v3514
  %4069 = vmatprep.subr.bf16.mxu0 %v3517
  %4070 = vmatpush1.bf16.msra.mxu0 %v3516
  %4071 = vmatprep.subr.bf16.mxu0 %v3519
  %4072 = vmatpush1.bf16.msra.mxu0 %v3518
  %4073 = vmatprep.subr.bf16.mxu0 %v3521
  %4074 = vmatpush1.bf16.msra.mxu0 %v3520
  %4075 = vmatprep.subr.bf16.mxu0 %v3523
  %4076 = vmatpush1.bf16.msra.mxu0 %v3522
  %4077 = vmatprep.subr.bf16.mxu0 %v3525
  %4078 = vmatpush1.bf16.msra.mxu0 %v3524
  %4079 = vmatprep.subr.bf16.mxu0 %v3527
  %4080 = vmatpush1.bf16.msra.mxu0 %v3526
  %4081 = vmatprep.subr.bf16.mxu0 %v3529
  %4082 = vmatpush1.bf16.msra.mxu0 %v3528
  %4083 = vmatprep.subr.bf16.mxu0 %v3531
  %4084 = vmatpush1.bf16.msra.mxu0 %v3530
  %4085 = vmatprep.subr.bf16.mxu0 %v3533
  %4086 = vmatpush1.bf16.msra.mxu0 %v3532
  %4087 = vmatprep.subr.bf16.mxu0 %v3535
  %4088 = vmatpush1.bf16.msra.mxu0 %v3534
  %4089 = vmatprep.subr.bf16.mxu0 %v3537
  %4090 = vmatpush1.bf16.msra.mxu0 %v3536
  %4091 = vmatprep.subr.bf16.mxu0 %v3539
  %4092 = vmatpush1.bf16.msra.mxu0 %v3538
  %4093 = vmatprep.subr.bf16.mxu0 %v3541
  %4094 = vmatpush1.bf16.msra.mxu0 %v3540
  %4095 = vmatprep.subr.bf16.mxu0 %v3543
  %4096 = vmatpush1.bf16.msra.mxu0 %v3542
  %4097 = vmatprep.subr.bf16.mxu0 %v3545
  %4098 = vmatpush1.bf16.msra.mxu0 %v3544
  %4099 = vmatprep.mubr.bf16.mxu0 %v2385
  %4100 = vmatmul.mubr.bf16.gmra.mrb[0].mxu0 %v2384
  %v4101 = vpop.f32.mrb[0].mxu0
  %v4102 = vadd.f32 %v4029, %v4101
  %v4103 = vpop.f32.mrb[0].mxu0
  %v4104 = vadd.f32 %v4031, %v4103
  %v4105 = vpop.f32.mrb[0].mxu0
  %v4106 = vadd.f32 %v4033, %v4105
  %v4107 = vpop.f32.mrb[0].mxu0
  %v4108 = vadd.f32 %v4035, %v4107
  %4109 = vmatprep.mubr.bf16.mxu0 %v2401
  %4110 = vmatmul.mubr.bf16.gmra.mrb[0].mxu0 %v2400
  %v4111 = vpop.f32.mrb[0].mxu0
  %v4112 = vadd.f32 %v4039, %v4111
  %v4113 = vpop.f32.mrb[0].mxu0
  %v4114 = vadd.f32 %v4041, %v4113
  %v4115 = vpop.f32.mrb[0].mxu0
  %v4116 = vadd.f32 %v4043, %v4115
  %v4117 = vpop.f32.mrb[0].mxu0
  %v4118 = vadd.f32 %v4045, %v4117
  %4119 = vmatprep.mubr.bf16.mxu0 %v2417
  %4120 = vmatmul.mubr.bf16.gmra.mrb[0].mxu0 %v2416
  %v4121 = vpop.f32.mrb[0].mxu0
  %v4122 = vadd.f32 %v4049, %v4121
  %v4123 = vpop.f32.mrb[0].mxu0
  %v4124 = vadd.f32 %v4051, %v4123
  %v4125 = vpop.f32.mrb[0].mxu0
  %v4126 = vadd.f32 %v4053, %v4125
  %v4127 = vpop.f32.mrb[0].mxu0
  %v4128 = vadd.f32 %v4055, %v4127
  %4129 = vmatprep.mubr.bf16.mxu0 %v2433
  %4130 = vmatmul.mubr.bf16.gmra.mrb[0].mxu0 %v2432
  %v4131 = vpop.f32.mrb[0].mxu0
  %v4132 = vadd.f32 %v4059, %v4131
  %v4133 = vpop.f32.mrb[0].mxu0
  %v4134 = vadd.f32 %v4061, %v4133
  %v4135 = vpop.f32.mrb[0].mxu0
  %v4136 = vadd.f32 %v4063, %v4135
  %v4137 = vpop.f32.mrb[0].mxu0
  %v4138 = vadd.f32 %v4065, %v4137
  %4139 = vdwg.mxu0
  %4140 = vmatprep.subr.bf16.mxu0 %v3547
  %4141 = vmatpush1.bf16.msra.mxu0 %v3546
  %4142 = vmatprep.subr.bf16.mxu0 %v3549
  %4143 = vmatpush1.bf16.msra.mxu0 %v3548
  %4144 = vmatprep.subr.bf16.mxu0 %v3551
  %4145 = vmatpush1.bf16.msra.mxu0 %v3550
  %4146 = vmatprep.subr.bf16.mxu0 %v3553
  %4147 = vmatpush1.bf16.msra.mxu0 %v3552
  %4148 = vmatprep.subr.bf16.mxu0 %v3555
  %4149 = vmatpush1.bf16.msra.mxu0 %v3554
  %4150 = vmatprep.subr.bf16.mxu0 %v3557
  %4151 = vmatpush1.bf16.msra.mxu0 %v3556
  %4152 = vmatprep.subr.bf16.mxu0 %v3559
  %4153 = vmatpush1.bf16.msra.mxu0 %v3558
  %4154 = vmatprep.subr.bf16.mxu0 %v3561
  %4155 = vmatpush1.bf16.msra.mxu0 %v3560
  %4156 = vmatprep.subr.bf16.mxu0 %v3563
  %4157 = vmatpush1.bf16.msra.mxu0 %v3562
  %4158 = vmatprep.subr.bf16.mxu0 %v3565
  %4159 = vmatpush1.bf16.msra.mxu0 %v3564
  %4160 = vmatprep.subr.bf16.mxu0 %v3567
  %4161 = vmatpush1.bf16.msra.mxu0 %v3566
  %4162 = vmatprep.subr.bf16.mxu0 %v3569
  %4163 = vmatpush1.bf16.msra.mxu0 %v3568
  %4164 = vmatprep.subr.bf16.mxu0 %v3571
  %4165 = vmatpush1.bf16.msra.mxu0 %v3570
  %4166 = vmatprep.subr.bf16.mxu0 %v3573
  %4167 = vmatpush1.bf16.msra.mxu0 %v3572
  %4168 = vmatprep.subr.bf16.mxu0 %v3575
  %4169 = vmatpush1.bf16.msra.mxu0 %v3574
  %4170 = vmatprep.subr.bf16.mxu0 %v3577
  %4171 = vmatpush1.bf16.msra.mxu0 %v3576
  %4172 = vmatprep.mubr.bf16.mxu0 %v2387
  %4173 = vmatmul.mubr.bf16.gmra.mrb[0].mxu0 %v2386
  %v4174 = vpop.f32.mrb[0].mxu0
  %v4175 = vadd.f32 %v4102, %v4174
  %v4176 = vpop.f32.mrb[0].mxu0
  %v4177 = vadd.f32 %v4104, %v4176
  %v4178 = vpop.f32.mrb[0].mxu0
  %v4179 = vadd.f32 %v4106, %v4178
  %v4180 = vpop.f32.mrb[0].mxu0
  %v4181 = vadd.f32 %v4108, %v4180
  %4182 = vmatprep.mubr.bf16.mxu0 %v2403
  %4183 = vmatmul.mubr.bf16.gmra.mrb[0].mxu0 %v2402
  %v4184 = vpop.f32.mrb[0].mxu0
  %v4185 = vadd.f32 %v4112, %v4184
  %v4186 = vpop.f32.mrb[0].mxu0
  %v4187 = vadd.f32 %v4114, %v4186
  %v4188 = vpop.f32.mrb[0].mxu0
  %v4189 = vadd.f32 %v4116, %v4188
  %v4190 = vpop.f32.mrb[0].mxu0
  %v4191 = vadd.f32 %v4118, %v4190
  %4192 = vmatprep.mubr.bf16.mxu0 %v2419
  %4193 = vmatmul.mubr.bf16.gmra.mrb[0].mxu0 %v2418
  %v4194 = vpop.f32.mrb[0].mxu0
  %v4195 = vadd.f32 %v4122, %v4194
  %v4196 = vpop.f32.mrb[0].mxu0
  %v4197 = vadd.f32 %v4124, %v4196
  %v4198 = vpop.f32.mrb[0].mxu0
  %v4199 = vadd.f32 %v4126, %v4198
  %v4200 = vpop.f32.mrb[0].mxu0
  %v4201 = vadd.f32 %v4128, %v4200
  %4202 = vmatprep.mubr.bf16.mxu0 %v2435
  %4203 = vmatmul.mubr.bf16.gmra.mrb[0].mxu0 %v2434
  %v4204 = vpop.f32.mrb[0].mxu0
  %v4205 = vadd.f32 %v4132, %v4204
  %v4206 = vpop.f32.mrb[0].mxu0
  %v4207 = vadd.f32 %v4134, %v4206
  %v4208 = vpop.f32.mrb[0].mxu0
  %v4209 = vadd.f32 %v4136, %v4208
  %v4210 = vpop.f32.mrb[0].mxu0
  %v4211 = vadd.f32 %v4138, %v4210
  %4212 = vdwg.mxu0
  %4213 = vmatprep.subr.bf16.mxu0 %v3579
  %4214 = vmatpush1.bf16.msra.mxu0 %v3578
  %4215 = vmatprep.subr.bf16.mxu0 %v3581
  %4216 = vmatpush1.bf16.msra.mxu0 %v3580
  %4217 = vmatprep.subr.bf16.mxu0 %v3583
  %4218 = vmatpush1.bf16.msra.mxu0 %v3582
  %4219 = vmatprep.subr.bf16.mxu0 %v3585
  %4220 = vmatpush1.bf16.msra.mxu0 %v3584
  %4221 = vmatprep.subr.bf16.mxu0 %v3587
  %4222 = vmatpush1.bf16.msra.mxu0 %v3586
  %4223 = vmatprep.subr.bf16.mxu0 %v3589
  %4224 = vmatpush1.bf16.msra.mxu0 %v3588
  %4225 = vmatprep.subr.bf16.mxu0 %v3591
  %4226 = vmatpush1.bf16.msra.mxu0 %v3590
  %4227 = vmatprep.subr.bf16.mxu0 %v3593
  %4228 = vmatpush1.bf16.msra.mxu0 %v3592
  %4229 = vmatprep.subr.bf16.mxu0 %v3595
  %4230 = vmatpush1.bf16.msra.mxu0 %v3594
  %4231 = vmatprep.subr.bf16.mxu0 %v3597
  %4232 = vmatpush1.bf16.msra.mxu0 %v3596
  %4233 = vmatprep.subr.bf16.mxu0 %v3599
  %4234 = vmatpush1.bf16.msra.mxu0 %v3598
  %4235 = vmatprep.subr.bf16.mxu0 %v3601
  %4236 = vmatpush1.bf16.msra.mxu0 %v3600
  %4237 = vmatprep.subr.bf16.mxu0 %v3603
  %4238 = vmatpush1.bf16.msra.mxu0 %v3602
  %4239 = vmatprep.subr.bf16.mxu0 %v3605
  %4240 = vmatpush1.bf16.msra.mxu0 %v3604
  %4241 = vmatprep.subr.bf16.mxu0 %v3607
  %4242 = vmatpush1.bf16.msra.mxu0 %v3606
  %4243 = vmatprep.subr.bf16.mxu0 %v3609
  %4244 = vmatpush1.bf16.msra.mxu0 %v3608
  %4245 = vmatprep.mubr.bf16.mxu0 %v2389
  %4246 = vmatmul.mubr.bf16.gmra.mrb[0].mxu0 %v2388
  %v4247 = vpop.f32.mrb[0].mxu0
  %v4248 = vadd.f32 %v4175, %v4247
  %v4249 = vpop.f32.mrb[0].mxu0
  %v4250 = vadd.f32 %v4177, %v4249
  %v4251 = vpop.f32.mrb[0].mxu0
  %v4252 = vadd.f32 %v4179, %v4251
  %v4253 = vpop.f32.mrb[0].mxu0
  %v4254 = vadd.f32 %v4181, %v4253
  %4255 = vmatprep.mubr.bf16.mxu0 %v2405
  %4256 = vmatmul.mubr.bf16.gmra.mrb[0].mxu0 %v2404
  %v4257 = vpop.f32.mrb[0].mxu0
  %v4258 = vadd.f32 %v4185, %v4257
  %v4259 = vpop.f32.mrb[0].mxu0
  %v4260 = vadd.f32 %v4187, %v4259
  %v4261 = vpop.f32.mrb[0].mxu0
  %v4262 = vadd.f32 %v4189, %v4261
  %v4263 = vpop.f32.mrb[0].mxu0
  %v4264 = vadd.f32 %v4191, %v4263
  %4265 = vmatprep.mubr.bf16.mxu0 %v2421
  %4266 = vmatmul.mubr.bf16.gmra.mrb[0].mxu0 %v2420
  %v4267 = vpop.f32.mrb[0].mxu0
  %v4268 = vadd.f32 %v4195, %v4267
  %v4269 = vpop.f32.mrb[0].mxu0
  %v4270 = vadd.f32 %v4197, %v4269
  %v4271 = vpop.f32.mrb[0].mxu0
  %v4272 = vadd.f32 %v4199, %v4271
  %v4273 = vpop.f32.mrb[0].mxu0
  %v4274 = vadd.f32 %v4201, %v4273
  %4275 = vmatprep.mubr.bf16.mxu0 %v2437
  %4276 = vmatmul.mubr.bf16.gmra.mrb[0].mxu0 %v2436
  %v4277 = vpop.f32.mrb[0].mxu0
  %v4278 = vadd.f32 %v4205, %v4277
  %v4279 = vpop.f32.mrb[0].mxu0
  %v4280 = vadd.f32 %v4207, %v4279
  %v4281 = vpop.f32.mrb[0].mxu0
  %v4282 = vadd.f32 %v4209, %v4281
  %v4283 = vpop.f32.mrb[0].mxu0
  %v4284 = vadd.f32 %v4211, %v4283
  %4285 = vdwg.mxu0
  %4286 = vmatprep.subr.bf16.mxu0 %v3611
  %4287 = vmatpush1.bf16.msra.mxu0 %v3610
  %4288 = vmatprep.subr.bf16.mxu0 %v3613
  %4289 = vmatpush1.bf16.msra.mxu0 %v3612
  %4290 = vmatprep.subr.bf16.mxu0 %v3615
  %4291 = vmatpush1.bf16.msra.mxu0 %v3614
  %4292 = vmatprep.subr.bf16.mxu0 %v3617
  %4293 = vmatpush1.bf16.msra.mxu0 %v3616
  %4294 = vmatprep.subr.bf16.mxu0 %v3619
  %4295 = vmatpush1.bf16.msra.mxu0 %v3618
  %4296 = vmatprep.subr.bf16.mxu0 %v3621
  %4297 = vmatpush1.bf16.msra.mxu0 %v3620
  %4298 = vmatprep.subr.bf16.mxu0 %v3623
  %4299 = vmatpush1.bf16.msra.mxu0 %v3622
  %4300 = vmatprep.subr.bf16.mxu0 %v3625
  %4301 = vmatpush1.bf16.msra.mxu0 %v3624
  %4302 = vmatprep.subr.bf16.mxu0 %v3627
  %4303 = vmatpush1.bf16.msra.mxu0 %v3626
  %4304 = vmatprep.subr.bf16.mxu0 %v3629
  %4305 = vmatpush1.bf16.msra.mxu0 %v3628
  %4306 = vmatprep.subr.bf16.mxu0 %v3631
  %4307 = vmatpush1.bf16.msra.mxu0 %v3630
  %4308 = vmatprep.subr.bf16.mxu0 %v3633
  %4309 = vmatpush1.bf16.msra.mxu0 %v3632
  %4310 = vmatprep.subr.bf16.mxu0 %v3635
  %4311 = vmatpush1.bf16.msra.mxu0 %v3634
  %4312 = vmatprep.subr.bf16.mxu0 %v3637
  %4313 = vmatpush1.bf16.msra.mxu0 %v3636
  %4314 = vmatprep.subr.bf16.mxu0 %v3639
  %4315 = vmatpush1.bf16.msra.mxu0 %v3638
  %4316 = vmatprep.subr.bf16.mxu0 %v3641
  %4317 = vmatpush1.bf16.msra.mxu0 %v3640
  %4318 = vmatprep.mubr.bf16.mxu0 %v2391
  %4319 = vmatmul.mubr.bf16.gmra.mrb[0].mxu0 %v2390
  %v4320 = vpop.f32.mrb[0].mxu0
  %v4321 = vadd.f32 %v4248, %v4320
  %v4322 = vpop.f32.mrb[0].mxu0
  %v4323 = vadd.f32 %v4250, %v4322
  %v4324 = vpop.f32.mrb[0].mxu0
  %v4325 = vadd.f32 %v4252, %v4324
  %v4326 = vpop.f32.mrb[0].mxu0
  %v4327 = vadd.f32 %v4254, %v4326
  %4328 = vmatprep.mubr.bf16.mxu0 %v2407
  %4329 = vmatmul.mubr.bf16.gmra.mrb[0].mxu0 %v2406
  %v4330 = vpop.f32.mrb[0].mxu0
  %v4331 = vadd.f32 %v4258, %v4330
  %v4332 = vpop.f32.mrb[0].mxu0
  %v4333 = vadd.f32 %v4260, %v4332
  %v4334 = vpop.f32.mrb[0].mxu0
  %v4335 = vadd.f32 %v4262, %v4334
  %v4336 = vpop.f32.mrb[0].mxu0
  %v4337 = vadd.f32 %v4264, %v4336
  %4338 = vmatprep.mubr.bf16.mxu0 %v2423
  %4339 = vmatmul.mubr.bf16.gmra.mrb[0].mxu0 %v2422
  %v4340 = vpop.f32.mrb[0].mxu0
  %v4341 = vadd.f32 %v4268, %v4340
  %v4342 = vpop.f32.mrb[0].mxu0
  %v4343 = vadd.f32 %v4270, %v4342
  %v4344 = vpop.f32.mrb[0].mxu0
  %v4345 = vadd.f32 %v4272, %v4344
  %v4346 = vpop.f32.mrb[0].mxu0
  %v4347 = vadd.f32 %v4274, %v4346
  %4348 = vmatprep.mubr.bf16.mxu0 %v2439
  %4349 = vmatmul.mubr.bf16.gmra.mrb[0].mxu0 %v2438
  %v4350 = vpop.f32.mrb[0].mxu0
  %v4351 = vadd.f32 %v4278, %v4350
  %v4352 = vpop.f32.mrb[0].mxu0
  %v4353 = vadd.f32 %v4280, %v4352
  %v4354 = vpop.f32.mrb[0].mxu0
  %v4355 = vadd.f32 %v4282, %v4354
  %v4356 = vpop.f32.mrb[0].mxu0
  %v4357 = vadd.f32 %v4284, %v4356
  %4358 = vdwg.mxu0
  %4359 = vmatprep.subr.bf16.mxu0 %v3643
  %4360 = vmatpush1.bf16.msra.mxu0 %v3642
  %4361 = vmatprep.subr.bf16.mxu0 %v3645
  %4362 = vmatpush1.bf16.msra.mxu0 %v3644
  %4363 = vmatprep.subr.bf16.mxu0 %v3647
  %4364 = vmatpush1.bf16.msra.mxu0 %v3646
  %4365 = vmatprep.subr.bf16.mxu0 %v3649
  %4366 = vmatpush1.bf16.msra.mxu0 %v3648
  %4367 = vmatprep.subr.bf16.mxu0 %v3651
  %4368 = vmatpush1.bf16.msra.mxu0 %v3650
  %4369 = vmatprep.subr.bf16.mxu0 %v3653
  %4370 = vmatpush1.bf16.msra.mxu0 %v3652
  %4371 = vmatprep.subr.bf16.mxu0 %v3655
  %4372 = vmatpush1.bf16.msra.mxu0 %v3654
  %4373 = vmatprep.subr.bf16.mxu0 %v3657
  %4374 = vmatpush1.bf16.msra.mxu0 %v3656
  %4375 = vmatprep.subr.bf16.mxu0 %v3659
  %4376 = vmatpush1.bf16.msra.mxu0 %v3658
  %4377 = vmatprep.subr.bf16.mxu0 %v3661
  %4378 = vmatpush1.bf16.msra.mxu0 %v3660
  %4379 = vmatprep.subr.bf16.mxu0 %v3663
  %4380 = vmatpush1.bf16.msra.mxu0 %v3662
  %4381 = vmatprep.subr.bf16.mxu0 %v3665
  %4382 = vmatpush1.bf16.msra.mxu0 %v3664
  %4383 = vmatprep.subr.bf16.mxu0 %v3667
  %4384 = vmatpush1.bf16.msra.mxu0 %v3666
  %4385 = vmatprep.subr.bf16.mxu0 %v3669
  %4386 = vmatpush1.bf16.msra.mxu0 %v3668
  %4387 = vmatprep.subr.bf16.mxu0 %v3671
  %4388 = vmatpush1.bf16.msra.mxu0 %v3670
  %4389 = vmatprep.subr.bf16.mxu0 %v3673
  %4390 = vmatpush1.bf16.msra.mxu0 %v3672
  %4391 = vmatprep.mubr.bf16.mxu0 %v2393
  %4392 = vmatmul.mubr.bf16.gmra.mrb[0].mxu0 %v2392
  %v4393 = vpop.f32.mrb[0].mxu0
  %v4394 = vadd.f32 %v4321, %v4393
  %v4395 = vpop.f32.mrb[0].mxu0
  %v4396 = vadd.f32 %v4323, %v4395
  %v4397 = vpop.f32.mrb[0].mxu0
  %v4398 = vadd.f32 %v4325, %v4397
  %v4399 = vpop.f32.mrb[0].mxu0
  %v4400 = vadd.f32 %v4327, %v4399
  %4401 = vmatprep.mubr.bf16.mxu0 %v2409
  %4402 = vmatmul.mubr.bf16.gmra.mrb[0].mxu0 %v2408
  %v4403 = vpop.f32.mrb[0].mxu0
  %v4404 = vadd.f32 %v4331, %v4403
  %v4405 = vpop.f32.mrb[0].mxu0
  %v4406 = vadd.f32 %v4333, %v4405
  %v4407 = vpop.f32.mrb[0].mxu0
  %v4408 = vadd.f32 %v4335, %v4407
  %v4409 = vpop.f32.mrb[0].mxu0
  %v4410 = vadd.f32 %v4337, %v4409
  %4411 = vmatprep.mubr.bf16.mxu0 %v2425
  %4412 = vmatmul.mubr.bf16.gmra.mrb[0].mxu0 %v2424
  %v4413 = vpop.f32.mrb[0].mxu0
  %v4414 = vadd.f32 %v4341, %v4413
  %v4415 = vpop.f32.mrb[0].mxu0
  %v4416 = vadd.f32 %v4343, %v4415
  %v4417 = vpop.f32.mrb[0].mxu0
  %v4418 = vadd.f32 %v4345, %v4417
  %v4419 = vpop.f32.mrb[0].mxu0
  %v4420 = vadd.f32 %v4347, %v4419
  %4421 = vmatprep.mubr.bf16.mxu0 %v2441
  %4422 = vmatmul.mubr.bf16.gmra.mrb[0].mxu0 %v2440
  %v4423 = vpop.f32.mrb[0].mxu0
  %v4424 = vadd.f32 %v4351, %v4423
  %v4425 = vpop.f32.mrb[0].mxu0
  %v4426 = vadd.f32 %v4353, %v4425
  %v4427 = vpop.f32.mrb[0].mxu0
  %v4428 = vadd.f32 %v4355, %v4427
  %v4429 = vpop.f32.mrb[0].mxu0
  %v4430 = vadd.f32 %v4357, %v4429
  %4431 = vdwg.mxu0
  %4432 = vmatprep.subr.bf16.mxu0 %v3675
  %4433 = vmatpush1.bf16.msra.mxu0 %v3674
  %4434 = vmatprep.subr.bf16.mxu0 %v3677
  %4435 = vmatpush1.bf16.msra.mxu0 %v3676
  %4436 = vmatprep.subr.bf16.mxu0 %v3679
  %4437 = vmatpush1.bf16.msra.mxu0 %v3678
  %4438 = vmatprep.subr.bf16.mxu0 %v3681
  %4439 = vmatpush1.bf16.msra.mxu0 %v3680
  %4440 = vmatprep.subr.bf16.mxu0 %v3683
  %4441 = vmatpush1.bf16.msra.mxu0 %v3682
  %4442 = vmatprep.subr.bf16.mxu0 %v3685
  %4443 = vmatpush1.bf16.msra.mxu0 %v3684
  %4444 = vmatprep.subr.bf16.mxu0 %v3687
  %4445 = vmatpush1.bf16.msra.mxu0 %v3686
  %4446 = vmatprep.subr.bf16.mxu0 %v3689
  %4447 = vmatpush1.bf16.msra.mxu0 %v3688
  %4448 = vmatprep.subr.bf16.mxu0 %v3691
  %4449 = vmatpush1.bf16.msra.mxu0 %v3690
  %4450 = vmatprep.subr.bf16.mxu0 %v3693
  %4451 = vmatpush1.bf16.msra.mxu0 %v3692
  %4452 = vmatprep.subr.bf16.mxu0 %v3695
  %4453 = vmatpush1.bf16.msra.mxu0 %v3694
  %4454 = vmatprep.subr.bf16.mxu0 %v3697
  %4455 = vmatpush1.bf16.msra.mxu0 %v3696
  %4456 = vmatprep.subr.bf16.mxu0 %v3699
  %4457 = vmatpush1.bf16.msra.mxu0 %v3698
  %4458 = vmatprep.subr.bf16.mxu0 %v3701
  %4459 = vmatpush1.bf16.msra.mxu0 %v3700
  %4460 = vmatprep.subr.bf16.mxu0 %v3703
  %4461 = vmatpush1.bf16.msra.mxu0 %v3702
  %4462 = vmatprep.subr.bf16.mxu0 %v3705
  %4463 = vmatpush1.bf16.msra.mxu0 %v3704
  %4464 = vmatprep.mubr.bf16.mxu0 %v2395
  %4465 = vmatmul.mubr.bf16.gmra.mrb[0].mxu0 %v2394
  %v4466 = vpop.f32.mrb[0].mxu0
  %v4467 = vadd.f32 %v4394, %v4466
  %v4468 = vpop.f32.mrb[0].mxu0
  %v4469 = vadd.f32 %v4396, %v4468
  %v4470 = vpop.f32.mrb[0].mxu0
  %v4471 = vadd.f32 %v4398, %v4470
  %v4472 = vpop.f32.mrb[0].mxu0
  %v4473 = vadd.f32 %v4400, %v4472
  %4474 = vmatprep.mubr.bf16.mxu0 %v2411
  %4475 = vmatmul.mubr.bf16.gmra.mrb[0].mxu0 %v2410
  %v4476 = vpop.f32.mrb[0].mxu0
  %v4477 = vadd.f32 %v4404, %v4476
  %v4478 = vpop.f32.mrb[0].mxu0
  %v4479 = vadd.f32 %v4406, %v4478
  %v4480 = vpop.f32.mrb[0].mxu0
  %v4481 = vadd.f32 %v4408, %v4480
  %v4482 = vpop.f32.mrb[0].mxu0
  %v4483 = vadd.f32 %v4410, %v4482
  %4484 = vmatprep.mubr.bf16.mxu0 %v2427
  %4485 = vmatmul.mubr.bf16.gmra.mrb[0].mxu0 %v2426
  %v4486 = vpop.f32.mrb[0].mxu0
  %v4487 = vadd.f32 %v4414, %v4486
  %v4488 = vpop.f32.mrb[0].mxu0
  %v4489 = vadd.f32 %v4416, %v4488
  %v4490 = vpop.f32.mrb[0].mxu0
  %v4491 = vadd.f32 %v4418, %v4490
  %v4492 = vpop.f32.mrb[0].mxu0
  %v4493 = vadd.f32 %v4420, %v4492
  %4494 = vmatprep.mubr.bf16.mxu0 %v2443
  %4495 = vmatmul.mubr.bf16.gmra.mrb[0].mxu0 %v2442
  %v4496 = vpop.f32.mrb[0].mxu0
  %v4497 = vadd.f32 %v4424, %v4496
  %v4498 = vpop.f32.mrb[0].mxu0
  %v4499 = vadd.f32 %v4426, %v4498
  %v4500 = vpop.f32.mrb[0].mxu0
  %v4501 = vadd.f32 %v4428, %v4500
  %v4502 = vpop.f32.mrb[0].mxu0
  %v4503 = vadd.f32 %v4430, %v4502
  %4504 = vdwg.mxu0
  %4505 = vmatprep.subr.bf16.mxu0 %v3707
  %4506 = vmatpush1.bf16.msra.mxu0 %v3706
  %4507 = vmatprep.subr.bf16.mxu0 %v3709
  %4508 = vmatpush1.bf16.msra.mxu0 %v3708
  %4509 = vmatprep.subr.bf16.mxu0 %v3711
  %4510 = vmatpush1.bf16.msra.mxu0 %v3710
  %4511 = vmatprep.subr.bf16.mxu0 %v3713
  %4512 = vmatpush1.bf16.msra.mxu0 %v3712
  %4513 = vmatprep.subr.bf16.mxu0 %v3715
  %4514 = vmatpush1.bf16.msra.mxu0 %v3714
  %4515 = vmatprep.subr.bf16.mxu0 %v3717
  %4516 = vmatpush1.bf16.msra.mxu0 %v3716
  %4517 = vmatprep.subr.bf16.mxu0 %v3719
  %4518 = vmatpush1.bf16.msra.mxu0 %v3718
  %4519 = vmatprep.subr.bf16.mxu0 %v3721
  %4520 = vmatpush1.bf16.msra.mxu0 %v3720
  %4521 = vmatprep.subr.bf16.mxu0 %v3723
  %4522 = vmatpush1.bf16.msra.mxu0 %v3722
  %4523 = vmatprep.subr.bf16.mxu0 %v3725
  %4524 = vmatpush1.bf16.msra.mxu0 %v3724
  %4525 = vmatprep.subr.bf16.mxu0 %v3727
  %4526 = vmatpush1.bf16.msra.mxu0 %v3726
  %4527 = vmatprep.subr.bf16.mxu0 %v3729
  %4528 = vmatpush1.bf16.msra.mxu0 %v3728
  %4529 = vmatprep.subr.bf16.mxu0 %v3731
  %4530 = vmatpush1.bf16.msra.mxu0 %v3730
  %4531 = vmatprep.subr.bf16.mxu0 %v3733
  %4532 = vmatpush1.bf16.msra.mxu0 %v3732
  %4533 = vmatprep.subr.bf16.mxu0 %v3735
  %4534 = vmatpush1.bf16.msra.mxu0 %v3734
  %4535 = vmatprep.subr.bf16.mxu0 %v3737
  %4536 = vmatpush1.bf16.msra.mxu0 %v3736
  %4537 = vmatprep.mubr.bf16.mxu0 %v2397
  %4538 = vmatmul.mubr.bf16.gmra.mrb[0].mxu0 %v2396
  %v4539 = vpop.f32.mrb[0].mxu0
  %v4540 = vadd.f32 %v4467, %v4539
  %v4541 = vpop.f32.mrb[0].mxu0
  %v4542 = vadd.f32 %v4469, %v4541
  %v4543 = vpop.f32.mrb[0].mxu0
  %v4544 = vadd.f32 %v4471, %v4543
  %v4545 = vpop.f32.mrb[0].mxu0
  %v4546 = vadd.f32 %v4473, %v4545
  %4547 = vmatprep.mubr.bf16.mxu0 %v2413
  %4548 = vmatmul.mubr.bf16.gmra.mrb[0].mxu0 %v2412
  %v4549 = vpop.f32.mrb[0].mxu0
  %v4550 = vadd.f32 %v4477, %v4549
  %v4551 = vpop.f32.mrb[0].mxu0
  %v4552 = vadd.f32 %v4479, %v4551
  %v4553 = vpop.f32.mrb[0].mxu0
  %v4554 = vadd.f32 %v4481, %v4553
  %v4555 = vpop.f32.mrb[0].mxu0
  %v4556 = vadd.f32 %v4483, %v4555
  %4557 = vmatprep.mubr.bf16.mxu0 %v2429
  %4558 = vmatmul.mubr.bf16.gmra.mrb[0].mxu0 %v2428
  %v4559 = vpop.f32.mrb[0].mxu0
  %v4560 = vadd.f32 %v4487, %v4559
  %v4561 = vpop.f32.mrb[0].mxu0
  %v4562 = vadd.f32 %v4489, %v4561
  %v4563 = vpop.f32.mrb[0].mxu0
  %v4564 = vadd.f32 %v4491, %v4563
  %v4565 = vpop.f32.mrb[0].mxu0
  %v4566 = vadd.f32 %v4493, %v4565
  %4567 = vmatprep.mubr.bf16.mxu0 %v2445
  %4568 = vmatmul.mubr.bf16.gmra.mrb[0].mxu0 %v2444
  %v4569 = vpop.f32.mrb[0].mxu0
  %v4570 = vadd.f32 %v4497, %v4569
  %v4571 = vpop.f32.mrb[0].mxu0
  %v4572 = vadd.f32 %v4499, %v4571
  %v4573 = vpop.f32.mrb[0].mxu0
  %v4574 = vadd.f32 %v4501, %v4573
  %v4575 = vpop.f32.mrb[0].mxu0
  %v4576 = vadd.f32 %v4503, %v4575
  %4577 = vdwg.mxu0
  %v4578 = vadd.f32 %v4540, %v26
  %v4579 = vadd.f32 %v4542, %v27
  %v4580 = vadd.f32 %v4544, %v28
  %v4581 = vadd.f32 %v4546, %v29
  %v4582 = vadd.f32 %v4550, %v30
  %v4583 = vadd.f32 %v4552, %v31
  %v4584 = vadd.f32 %v4554, %v32
  %v4585 = vadd.f32 %v4556, %v33
  %v4586 = vadd.f32 %v4560, %v34
  %v4587 = vadd.f32 %v4562, %v35
  %v4588 = vadd.f32 %v4564, %v36
  %v4589 = vadd.f32 %v4566, %v37
  %v4590 = vadd.f32 %v4570, %v38
  %v4591 = vadd.f32 %v4572, %v39
  %v4592 = vadd.f32 %v4574, %v40
  %v4593 = vadd.f32 %v4576, %v41
  %v4594 = vadd.f32 %v4578, %v4579
  %4595 = vadd.xlane.f32.xlu0 %v4594
  %v4596 = vpop.xlane.xlu0 %4595
  %v4597 = vadd.f32 %v4580, %v4581
  %4598 = vadd.xlane.f32.xlu0 %v4597
  %v4599 = vpop.xlane.xlu0 %4598
  %v4600 = vadd.f32 %v4582, %v4583
  %4601 = vadd.xlane.f32.xlu0 %v4600
  %v4602 = vpop.xlane.xlu0 %4601
  %v4603 = vadd.f32 %v4584, %v4585
  %4604 = vadd.xlane.f32.xlu0 %v4603
  %v4605 = vpop.xlane.xlu0 %4604
  %v4606 = vadd.f32 %v4586, %v4587
  %4607 = vadd.xlane.f32.xlu0 %v4606
  %v4608 = vpop.xlane.xlu0 %4607
  %v4609 = vadd.f32 %v4588, %v4589
  %4610 = vadd.xlane.f32.xlu0 %v4609
  %v4611 = vpop.xlane.xlu0 %4610
  %v4612 = vadd.f32 %v4590, %v4591
  %4613 = vadd.xlane.f32.xlu0 %v4612
  %v4614 = vpop.xlane.xlu0 %4613
  %v4615 = vadd.f32 %v4592, %v4593
  %4616 = vadd.xlane.f32.xlu0 %v4615
  %v4617 = vpop.xlane.xlu0 %4616
  %v4618 = vrcp.pop 256.0
  %v4619 = vmul.f32 %v4596, %v4618
  %v4620 = vmul.f32 %v4599, %v4618
  %v4621 = vmul.f32 %v4602, %v4618
  %v4622 = vmul.f32 %v4605, %v4618
  %v4623 = vmul.f32 %v4608, %v4618
  %v4624 = vmul.f32 %v4611, %v4618
  %v4625 = vmul.f32 %v4614, %v4618
  %v4626 = vmul.f32 %v4617, %v4618
  %v4627 = vsub.f32 %v4578, %v4619
  %v4628 = vsub.f32 %v4579, %v4619
  %v4629 = vsub.f32 %v4580, %v4620
  %v4630 = vsub.f32 %v4581, %v4620
  %v4631 = vsub.f32 %v4582, %v4621
  %v4632 = vsub.f32 %v4583, %v4621
  %v4633 = vsub.f32 %v4584, %v4622
  %v4634 = vsub.f32 %v4585, %v4622
  %v4635 = vsub.f32 %v4586, %v4623
  %v4636 = vsub.f32 %v4587, %v4623
  %v4637 = vsub.f32 %v4588, %v4624
  %v4638 = vsub.f32 %v4589, %v4624
  %v4639 = vsub.f32 %v4590, %v4625
  %v4640 = vsub.f32 %v4591, %v4625
  %v4641 = vsub.f32 %v4592, %v4626
  %v4642 = vsub.f32 %v4593, %v4626
  %v4643 = vmul.f32 %v4627, %v4627
  %v4644 = vmul.f32 %v4628, %v4628
  %v4645 = vmul.f32 %v4629, %v4629
  %v4646 = vmul.f32 %v4630, %v4630
  %v4647 = vmul.f32 %v4631, %v4631
  %v4648 = vmul.f32 %v4632, %v4632
  %v4649 = vmul.f32 %v4633, %v4633
  %v4650 = vmul.f32 %v4634, %v4634
  %v4651 = vmul.f32 %v4635, %v4635
  %v4652 = vmul.f32 %v4636, %v4636
  %v4653 = vmul.f32 %v4637, %v4637
  %v4654 = vmul.f32 %v4638, %v4638
  %v4655 = vmul.f32 %v4639, %v4639
  %v4656 = vmul.f32 %v4640, %v4640
  %v4657 = vmul.f32 %v4641, %v4641
  %v4658 = vmul.f32 %v4642, %v4642
  %v4659 = vadd.f32 %v4643, %v4644
  %4660 = vadd.xlane.f32.xlu0 %v4659
  %v4661 = vpop.xlane.xlu0 %4660
  %v4662 = vadd.f32 %v4645, %v4646
  %4663 = vadd.xlane.f32.xlu0 %v4662
  %v4664 = vpop.xlane.xlu0 %4663
  %v4665 = vadd.f32 %v4647, %v4648
  %4666 = vadd.xlane.f32.xlu0 %v4665
  %v4667 = vpop.xlane.xlu0 %4666
  %v4668 = vadd.f32 %v4649, %v4650
  %4669 = vadd.xlane.f32.xlu0 %v4668
  %v4670 = vpop.xlane.xlu0 %4669
  %v4671 = vadd.f32 %v4651, %v4652
  %4672 = vadd.xlane.f32.xlu0 %v4671
  %v4673 = vpop.xlane.xlu0 %4672
  %v4674 = vadd.f32 %v4653, %v4654
  %4675 = vadd.xlane.f32.xlu0 %v4674
  %v4676 = vpop.xlane.xlu0 %4675
  %v4677 = vadd.f32 %v4655, %v4656
  %4678 = vadd.xlane.f32.xlu0 %v4677
  %v4679 = vpop.xlane.xlu0 %4678
  %v4680 = vadd.f32 %v4657, %v4658
  %4681 = vadd.xlane.f32.xlu0 %v4680
  %v4682 = vpop.xlane.xlu0 %4681
  %v4683 = vmul.f32 %v4661, %v4618
  %v4684 = vmul.f32 %v4664, %v4618
  %v4685 = vmul.f32 %v4667, %v4618
  %v4686 = vmul.f32 %v4670, %v4618
  %v4687 = vmul.f32 %v4673, %v4618
  %v4688 = vmul.f32 %v4676, %v4618
  %v4689 = vmul.f32 %v4679, %v4618
  %v4690 = vmul.f32 %v4682, %v4618
  %v4691 = vadd.f32 %v4683, 1e-05
  %v4692 = vadd.f32 %v4684, 1e-05
  %v4693 = vadd.f32 %v4685, 1e-05
  %v4694 = vadd.f32 %v4686, 1e-05
  %v4695 = vadd.f32 %v4687, 1e-05
  %v4696 = vadd.f32 %v4688, 1e-05
  %v4697 = vadd.f32 %v4689, 1e-05
  %v4698 = vadd.f32 %v4690, 1e-05
  %v4699 = vrsqrt.pop %v4691
  %v4700 = vrsqrt.pop %v4692
  %v4701 = vrsqrt.pop %v4693
  %v4702 = vrsqrt.pop %v4694
  %v4703 = vrsqrt.pop %v4695
  %v4704 = vrsqrt.pop %v4696
  %v4705 = vrsqrt.pop %v4697
  %v4706 = vrsqrt.pop %v4698
  %v4707 = vmul.f32 %v4627, %v4699
  %v4708 = vmul.f32 %v4628, %v4699
  %v4709 = vmul.f32 %v4629, %v4700
  %v4710 = vmul.f32 %v4630, %v4700
  %v4711 = vmul.f32 %v4631, %v4701
  %v4712 = vmul.f32 %v4632, %v4701
  %v4713 = vmul.f32 %v4633, %v4702
  %v4714 = vmul.f32 %v4634, %v4702
  %v4715 = vmul.f32 %v4635, %v4703
  %v4716 = vmul.f32 %v4636, %v4703
  %v4717 = vmul.f32 %v4637, %v4704
  %v4718 = vmul.f32 %v4638, %v4704
  %v4719 = vmul.f32 %v4639, %v4705
  %v4720 = vmul.f32 %v4640, %v4705
  %v4721 = vmul.f32 %v4641, %v4706
  %v4722 = vmul.f32 %v4642, %v4706
  %v4723 = vld [vmem:[%s5] sm:$0x3]
  %v4725 = vlaneseq
  %v4726 = vshrl.u32 %v4725, 7
  %v4727 = vsub.s32 0, %v4726
  %v4728 = vrot.slane %v4723, %v4727
  %v4729 = vlaneseq
  %v4730 = vshrl.u32 %v4729, 7
  %v4731 = vsub.s32 1, %v4730
  %v4732 = vrot.slane %v4723, %v4731
  %v4735 = vmul.f32 %v4707, %v4728
  %v4736 = vmul.f32 %v4708, %v4732
  %v4737 = vmul.f32 %v4709, %v4728
  %v4738 = vmul.f32 %v4710, %v4732
  %v4739 = vmul.f32 %v4711, %v4728
  %v4740 = vmul.f32 %v4712, %v4732
  %v4741 = vmul.f32 %v4713, %v4728
  %v4742 = vmul.f32 %v4714, %v4732
  %v4743 = vmul.f32 %v4715, %v4728
  %v4744 = vmul.f32 %v4716, %v4732
  %v4745 = vmul.f32 %v4717, %v4728
  %v4746 = vmul.f32 %v4718, %v4732
  %v4747 = vmul.f32 %v4719, %v4728
  %v4748 = vmul.f32 %v4720, %v4732
  %v4749 = vmul.f32 %v4721, %v4728
  %v4750 = vmul.f32 %v4722, %v4732
  %v4751 = vld [vmem:[%s6] sm:$0x3]
  %v4753 = vlaneseq
  %v4754 = vshrl.u32 %v4753, 7
  %v4755 = vsub.s32 0, %v4754
  %v4756 = vrot.slane %v4751, %v4755
  %v4757 = vlaneseq
  %v4758 = vshrl.u32 %v4757, 7
  %v4759 = vsub.s32 1, %v4758
  %v4760 = vrot.slane %v4751, %v4759
  %v4763 = vadd.f32 %v4735, %v4756
  %v4764 = vadd.f32 %v4736, %v4760
  %v4765 = vadd.f32 %v4737, %v4756
  %v4766 = vadd.f32 %v4738, %v4760
  %v4767 = vadd.f32 %v4739, %v4756
  %v4768 = vadd.f32 %v4740, %v4760
  %v4769 = vadd.f32 %v4741, %v4756
  %v4770 = vadd.f32 %v4742, %v4760
  %v4771 = vadd.f32 %v4743, %v4756
  %v4772 = vadd.f32 %v4744, %v4760
  %v4773 = vadd.f32 %v4745, %v4756
  %v4774 = vadd.f32 %v4746, %v4760
  %v4775 = vadd.f32 %v4747, %v4756
  %v4776 = vadd.f32 %v4748, %v4760
  %v4777 = vadd.f32 %v4749, %v4756
  %v4778 = vadd.f32 %v4750, %v4760
  %4779 = vst [vmem:[%s7] sm:$0xff] %v4763
  %4780 = vst [vmem:[%s7 + $0x8] sm:$0xff] %v4764
  %4781 = vst [vmem:[%s7 + $0x10] sm:$0xff] %v4765
  %4782 = vst [vmem:[%s7 + $0x18] sm:$0xff] %v4766
  %4783 = vst [vmem:[%s7 + $0x20] sm:$0xff] %v4767
  %4784 = vst [vmem:[%s7 + $0x28] sm:$0xff] %v4768
  %4785 = vst [vmem:[%s7 + $0x30] sm:$0xff] %v4769
  %4786 = vst [vmem:[%s7 + $0x38] sm:$0xff] %v4770
  %4787 = vst [vmem:[%s7 + $0x40] sm:$0xff] %v4771
  %4788 = vst [vmem:[%s7 + $0x48] sm:$0xff] %v4772
  %4789 = vst [vmem:[%s7 + $0x50] sm:$0xff] %v4773
  %4790 = vst [vmem:[%s7 + $0x58] sm:$0xff] %v4774
  %4791 = vst [vmem:[%s7 + $0x60] sm:$0xff] %v4775
  %4792 = vst [vmem:[%s7 + $0x68] sm:$0xff] %v4776
  %4793 = vst [vmem:[%s7 + $0x70] sm:$0xff] %v4777
  %4794 = vst [vmem:[%s7 + $0x78] sm:$0xff] %v4778
  // Predicated region
  $region30: #{emodel_bigru_forward.17} parent=0 // pred_check
    _
  $region31: #{emodel_bigru_forward.17} parent=0 // pred_check_branch
    %4796 = sbr.rel (0) target = $region33
  $region32: #{emodel_bigru_forward.17} parent=0 // pred_region
    _
  $region33: #{emodel_bigru_forward.17} parent=0 // pred_fallthru
    _
  // Predicated region
  $region34: #{emodel_bigru_forward.17} parent=0 // pred_check
    _
  $region35: #{emodel_bigru_forward.17} parent=0 // pred_check_branch
    %4798 = sbr.rel (0) target = $region37
  $region36: #{emodel_bigru_forward.17} parent=0 // pred_region
    _
  $region37: #{emodel_bigru_forward.17} parent=0 // pred_fallthru
    _

</llo_original>
